<compile_context>
chip_gen: v7x
topology: tpu7x:2x2x1
jax: 0.10.0
libtpu: 0.0.40
codegen_flags: <defaults>
</compile_context>

<pallas_src>
import math
import functools

import jax
import jax.numpy as jnp
from jax.experimental import pallas as pl
from jax.experimental.pallas import tpu as pltpu


VMEM_LIMIT = 64 * 1024 * 1024  # raise v5e's 16 MiB default; <= physical on v7x


# ----------------------------------------------------------------------------
# Traced helpers used inside the fused kernels
# ----------------------------------------------------------------------------

def _add_layernorm(x, residual, gamma, beta, eps):
    """LayerNorm(x + residual) over the last axis, f32, PyTorch semantics."""
    y = x + residual
    mu = jnp.mean(y, axis=-1, keepdims=True)
    var = jnp.mean(jnp.square(y - mu), axis=-1, keepdims=True)
    return (y - mu) * jax.lax.rsqrt(var + eps) * gamma + beta


def _mha_into_out_proj(q, k, v, wo, neg_bias, heads, scale):
    """Multi-head attention folded into the output projection.

    q: [Sq, D] bf16, k/v: [Sk, D] bf16, wo: [D, Do] bf16,
    neg_bias: [Sq, Sk] f32 additive mask (0 keep / -1e9 masked, already
    broadcast once -- hoisted out of the head loop).

    Returns [Sq, Do] f32 == concat_h(softmax(q_h k_h^T / sqrt(dh)) v_h) @ wo,
    but without materializing the lane-concat: each head's PV result is
    multiplied by its dh-row slice of wo and accumulated into one lane-dense
    f32 accumulator (no XLU relayouts, bounded live values).
    """
    Sq, D = q.shape
    dh = D // heads
    acc = jnp.zeros((Sq, wo.shape[-1]), jnp.float32)
    for h in range(heads):
        sl = slice(h * dh, (h + 1) * dh)
        # q_h @ k_h^T without an explicit transpose op.
        s = jax.lax.dot_general(
            q[:, sl], k[:, sl], (((1,), (1,)), ((), ())),
            preferred_element_type=jnp.float32) * scale
        s = s + neg_bias
        s = s - jnp.max(s, axis=-1, keepdims=True)
        p = jnp.exp(s)
        p = p * pl.reciprocal(jnp.sum(p, axis=-1, keepdims=True), approx=True)
        ctx_h = jnp.dot(p.astype(v.dtype), v[:, sl],
                        preferred_element_type=jnp.float32)        # [Sq, dh]
        acc = acc + jnp.dot(ctx_h.astype(wo.dtype), wo[sl, :],
                            preferred_element_type=jnp.float32)    # [Sq, Do]
    return acc


# ----------------------------------------------------------------------------
# Fused layer-stack kernels (grid = (batch, layer); activations carried in the
# resident output block across the layer axis)
# ----------------------------------------------------------------------------

def _encoder_layer_kernel(pad_ref, x_ref,
                          wqkv_ref, bqkv_ref, wo_ref, bo_ref,
                          ln_g_ref, ln_b_ref,
                          w1_ref, b1_ref, w2_ref, b2_ref,
                          o_ref, *, heads, scale, eps):
    # Seed the carry from the embeddings on the first layer only; afterwards
    # the output block (resident across the L axis) holds layer l-1's output.
    @pl.when(pl.program_id(1) == 0)
    def _():
        o_ref[...] = x_ref[...]

    x_bf = o_ref[0]                                    # [S, D] bf16
    x32 = x_bf.astype(jnp.float32)
    S, D = x_bf.shape

    # --- fused QKV projection ---
    qkv = jnp.dot(x_bf, wqkv_ref[0],
                  preferred_element_type=jnp.float32) + bqkv_ref[0]
    q = qkv[:, :D].astype(x_bf.dtype)
    k = qkv[:, D:2 * D].astype(x_bf.dtype)
    v = qkv[:, 2 * D:].astype(x_bf.dtype)

    # --- key padding mask (broadcast hoisted out of the head loop) ---
    pad = pad_ref[0]                                   # [1, S] f32
    neg = jnp.broadcast_to(jnp.where(pad > 0.0, -1e9, 0.0), (S, S))

    # --- self-attention (output projection folded in) + residual + LN ---
    attn = _mha_into_out_proj(q, k, v, wo_ref[0], neg, heads, scale) + bo_ref[0]
    x1 = _add_layernorm(attn, x32, ln_g_ref[0], ln_b_ref[0], eps)

    # --- FFN + residual + LN ---
    h = jnp.dot(x1.astype(x_bf.dtype), w1_ref[0],
                preferred_element_type=jnp.float32) + b1_ref[0]
    h = jnp.maximum(h, 0.0)
    f = jnp.dot(h.astype(x_bf.dtype), w2_ref[0],
                preferred_element_type=jnp.float32) + b2_ref[0]
    x2 = _add_layernorm(f, x1, ln_g_ref[0], ln_b_ref[0], eps)

    o_ref[0] = x2.astype(o_ref.dtype)


def _decoder_layer_kernel(tpad_ref, spad_ref, y_ref, enc_ref,
                          s_wqkv_ref, s_bqkv_ref, s_wo_ref, s_bo_ref,
                          c_wq_ref, c_bq_ref, c_wkv_ref, c_bkv_ref,
                          c_wo_ref, c_bo_ref,
                          ln_g_ref, ln_b_ref,
                          w1_ref, b1_ref, w2_ref, b2_ref,
                          o_ref, *, heads, scale, eps):
    @pl.when(pl.program_id(1) == 0)
    def _():
        o_ref[...] = y_ref[...]

    y_bf = o_ref[0]                                    # [St, D] bf16 (carry)
    e_bf = enc_ref[0]                                  # [Ss, D] bf16
    y32 = y_bf.astype(jnp.float32)
    St, D = y_bf.shape
    Ss = e_bf.shape[0]

    # --- masked self-attention (causal triangle generated in-kernel) ---
    qkv = jnp.dot(y_bf, s_wqkv_ref[0],
                  preferred_element_type=jnp.float32) + s_bqkv_ref[0]
    q = qkv[:, :D].astype(y_bf.dtype)
    k = qkv[:, D:2 * D].astype(y_bf.dtype)
    v = qkv[:, 2 * D:].astype(y_bf.dtype)

    row = jax.lax.broadcasted_iota(jnp.int32, (St, St), 0)
    col = jax.lax.broadcasted_iota(jnp.int32, (St, St), 1)
    causal = col > row                                 # future tokens masked
    tpad = tpad_ref[0] > 0.0                           # [1, St] key padding
    self_neg = jnp.where(jnp.logical_or(causal, tpad), -1e9, 0.0)  # [St, St]

    attn = (_mha_into_out_proj(q, k, v, s_wo_ref[0], self_neg, heads, scale)
            + s_bo_ref[0])
    x1 = _add_layernorm(attn, y32, ln_g_ref[0], ln_b_ref[0], eps)

    # --- cross-attention over encoder output (fused KV projection) ---
    cq = (jnp.dot(x1.astype(y_bf.dtype), c_wq_ref[0],
                  preferred_element_type=jnp.float32)
          + c_bq_ref[0]).astype(y_bf.dtype)
    ckv = jnp.dot(e_bf, c_wkv_ref[0],
                  preferred_element_type=jnp.float32) + c_bkv_ref[0]
    ck = ckv[:, :D].astype(y_bf.dtype)
    cv = ckv[:, D:].astype(y_bf.dtype)

    cross_neg = jnp.broadcast_to(
        jnp.where(spad_ref[0] > 0.0, -1e9, 0.0), (St, Ss))   # hoisted once

    cattn = (_mha_into_out_proj(cq, ck, cv, c_wo_ref[0], cross_neg, heads,
                                scale) + c_bo_ref[0])
    x2 = _add_layernorm(cattn, x1, ln_g_ref[0], ln_b_ref[0], eps)

    # --- FFN + residual + LN ---
    h = jnp.dot(x2.astype(y_bf.dtype), w1_ref[0],
                preferred_element_type=jnp.float32) + b1_ref[0]
    h = jnp.maximum(h, 0.0)
    f = jnp.dot(h.astype(y_bf.dtype), w2_ref[0],
                preferred_element_type=jnp.float32) + b2_ref[0]
    x3 = _add_layernorm(f, x2, ln_g_ref[0], ln_b_ref[0], eps)

    o_ref[0] = x3.astype(o_ref.dtype)


def _logits_kernel(y_ref, w_ref, b_ref, logits_ref, lse_ref, m_sc, l_sc):
    """Vocab-tiled logits with online log-sum-exp carry in scratch."""
    v = pl.program_id(1)

    @pl.when(v == 0)
    def _():
        m_sc[...] = jnp.full(m_sc.shape, -jnp.inf, dtype=m_sc.dtype)
        l_sc[...] = jnp.zeros(l_sc.shape, dtype=l_sc.dtype)

    logits = jnp.dot(y_ref[0], w_ref[...],
                     preferred_element_type=jnp.float32) + b_ref[...]
    logits_ref[0] = logits

    m_prev = m_sc[...]
    m_new = jnp.maximum(m_prev, jnp.max(logits, axis=-1, keepdims=True))
    l_sc[...] = (l_sc[...] * jnp.exp(m_prev - m_new)
                 + jnp.sum(jnp.exp(logits - m_new), axis=-1, keepdims=True))
    m_sc[...] = m_new

    @pl.when(v == pl.num_programs(1) - 1)
    def _():
        lse_ref[0] = m_sc[...] + jnp.log(l_sc[...])


# ----------------------------------------------------------------------------
# pallas_call wrappers
# ----------------------------------------------------------------------------

def _per_batch_spec(shape):
    # Per-batch block, constant across the layer axis (no re-DMA across L).
    return pl.BlockSpec(shape, lambda b, l: (b,) + (0,) * (len(shape) - 1))


def _per_layer_spec(shape):
    # Stacked per-layer weight block indexed by the (inner, "arbitrary")
    # layer axis -- double-buffered by default so layer l+1's weights
    # prefetch while layer l computes.
    return pl.BlockSpec(shape, lambda b, l: (l,) + (0,) * (len(shape) - 1))


def encoder_stack(p, x_bf, src_pad, heads):
    B, S, D = x_bf.shape
    L = p["wqkv"].shape[0]
    F = p["ff_w1"].shape[-1]
    scale = 1.0 / math.sqrt(D // heads)
    kernel = functools.partial(_encoder_layer_kernel,
                               heads=heads, scale=scale, eps=1e-5)
    return pl.pallas_call(
        kernel,
        out_shape=jax.ShapeDtypeStruct((B, S, D), x_bf.dtype),
        grid=(B, L),
        in_specs=[
            _per_batch_spec((1, 1, S)),                 # pad mask
            _per_batch_spec((1, S, D)),                 # input embeddings
            _per_layer_spec((1, D, 3 * D)), _per_layer_spec((1, 1, 3 * D)),
            _per_layer_spec((1, D, D)), _per_layer_spec((1, 1, D)),
            _per_layer_spec((1, 1, D)), _per_layer_spec((1, 1, D)),
            _per_layer_spec((1, D, F)), _per_layer_spec((1, 1, F)),
            _per_layer_spec((1, F, D)), _per_layer_spec((1, 1, D)),
        ],
        out_specs=_per_batch_spec((1, S, D)),           # resident across L
        compiler_params=pltpu.CompilerParams(
            dimension_semantics=("parallel", "arbitrary"),
            vmem_limit_bytes=VMEM_LIMIT),
    )(src_pad, x_bf,
      p["wqkv"], p["bqkv"], p["wo"], p["bo"],
      p["ln_g"], p["ln_b"],
      p["ff_w1"], p["ff_b1"], p["ff_w2"], p["ff_b2"])


def decoder_stack(p, y_bf, enc_bf, tgt_pad, src_pad, heads):
    B, St, D = y_bf.shape
    Ss = enc_bf.shape[1]
    L = p["s_wqkv"].shape[0]
    F = p["ff_w1"].shape[-1]
    scale = 1.0 / math.sqrt(D // heads)
    kernel = functools.partial(_decoder_layer_kernel,
                               heads=heads, scale=scale, eps=1e-5)
    return pl.pallas_call(
        kernel,
        out_shape=jax.ShapeDtypeStruct((B, St, D), y_bf.dtype),
        grid=(B, L),
        in_specs=[
            _per_batch_spec((1, 1, St)),                # tgt pad mask
            _per_batch_spec((1, 1, Ss)),                # src pad mask
            _per_batch_spec((1, St, D)),                # decoder embeddings
            _per_batch_spec((1, Ss, D)),                # encoder output
            _per_layer_spec((1, D, 3 * D)), _per_layer_spec((1, 1, 3 * D)),
            _per_layer_spec((1, D, D)), _per_layer_spec((1, 1, D)),
            _per_layer_spec((1, D, D)), _per_layer_spec((1, 1, D)),
            _per_layer_spec((1, D, 2 * D)), _per_layer_spec((1, 1, 2 * D)),
            _per_layer_spec((1, D, D)), _per_layer_spec((1, 1, D)),
            _per_layer_spec((1, 1, D)), _per_layer_spec((1, 1, D)),
            _per_layer_spec((1, D, F)), _per_layer_spec((1, 1, F)),
            _per_layer_spec((1, F, D)), _per_layer_spec((1, 1, D)),
        ],
        out_specs=_per_batch_spec((1, St, D)),
        compiler_params=pltpu.CompilerParams(
            dimension_semantics=("parallel", "arbitrary"),
            vmem_limit_bytes=VMEM_LIMIT),
    )(tgt_pad, src_pad, y_bf, enc_bf,
      p["s_wqkv"], p["s_bqkv"], p["s_wo"], p["s_bo"],
      p["c_wq"], p["c_bq"], p["c_wkv"], p["c_bkv"],
      p["c_wo"], p["c_bo"],
      p["ln_g"], p["ln_b"],
      p["ff_w1"], p["ff_b1"], p["ff_w2"], p["ff_b2"])


def logits_log_softmax(y_bf, w, b, *, v_tile=2048):
    """Vocab-tiled logits + log-softmax.

    The kernel emits raw logits per vocab tile and a per-row LSE carried
    online in scratch; the final normalization (`logits - lse`) is a cheap
    elementwise XLA op.  This keeps the per-step weight block at (D, tV)
    instead of (D, V), which is mandatory at real vocab sizes on v7x.
    """
    B, St, D = y_bf.shape
    V = w.shape[1]
    tV = V if V <= v_tile else v_tile
    assert V % tV == 0, "vocab size must be a multiple of the vocab tile"
    nV = V // tV

    logits, lse = pl.pallas_call(
        _logits_kernel,
        out_shape=(jax.ShapeDtypeStruct((B, St, V), jnp.float32),
                   jax.ShapeDtypeStruct((B, St, 1), jnp.float32)),
        grid=(B, nV),
        in_specs=[
            pl.BlockSpec((1, St, D), lambda b, v: (b, 0, 0)),
            pl.BlockSpec((D, tV), lambda b, v: (0, v)),
            pl.BlockSpec((1, tV), lambda b, v: (0, v)),
        ],
        out_specs=(pl.BlockSpec((1, St, tV), lambda b, v: (b, 0, v)),
                   pl.BlockSpec((1, St, 1), lambda b, v: (b, 0, 0))),
        scratch_shapes=[pltpu.VMEM((St, 1), jnp.float32),
                        pltpu.VMEM((St, 1), jnp.float32)],
        compiler_params=pltpu.CompilerParams(
            dimension_semantics=("parallel", "arbitrary"),
            vmem_limit_bytes=VMEM_LIMIT),
    )(y_bf, w, b)
    # TODO(synk): on v5e, emitting bf16 logits (or fusing the downstream
    # loss/argmax) would halve the dominant HBM writeback of this kernel.
    return logits - lse


# ----------------------------------------------------------------------------
# Model glue (embedding gather, positional encoding, masks)
# ----------------------------------------------------------------------------

def positional_encoding_table(max_len, d_model):
    pos = jnp.arange(max_len, dtype=jnp.float32)[:, None]
    i = jnp.arange(d_model)[None, :]
    angle_rates = 1.0 / jnp.power(
        10000.0, (2 * (i // 2)).astype(jnp.float32) / d_model)
    angles = pos * angle_rates
    return jnp.where(i % 2 == 0, jnp.sin(angles), jnp.cos(angles))


def transformer_forward(params, src_words, target_words, *, heads, d_model):
    scale = math.sqrt(d_model)
    # Only the tiny [B,1,S] padding masks go to the kernels; the causal mask
    # is generated inside the decoder kernel from iota.
    src_pad = (src_words == 0).astype(jnp.float32)[:, None, :]      # [B,1,Ss]
    tgt_pad = (target_words == 0).astype(jnp.float32)[:, None, :]   # [B,1,St]

    emb = params["embed"]
    pe = params["pe"]

    # TODO(synk): token-id embedding gather + positional add stay in XLA
    # (dynamic gather has no clean single-block Pallas equivalent here).
    x = (emb[src_words] * scale
         + pe[None, :src_words.shape[1], :]).astype(jnp.bfloat16)
    encoded = encoder_stack(params["encoder"], x, src_pad, heads)

    y = (emb[target_words] * scale
         + pe[None, :target_words.shape[1], :]).astype(jnp.bfloat16)
    decoded = decoder_stack(params["decoder"], y, encoded, tgt_pad, src_pad,
                            heads)

    return logits_log_softmax(decoded, params["logit_w"], params["logit_b"])


# ----------------------------------------------------------------------------
# Deterministic parameter initialization (weights bf16, biases/LN f32).
# Per-layer parameters are STACKED along a leading L axis so the layer-stack
# kernels can index them with the L grid axis.
# ----------------------------------------------------------------------------

def _init_linear(key, fan_in, fan_out):
    w = (jax.random.normal(key, (fan_in, fan_out), jnp.float32)
         / math.sqrt(fan_in)).astype(jnp.bfloat16)
    b = jnp.zeros((1, fan_out), jnp.float32)
    return w, b


def _init_encoder_layer(key, d_model, ff_dim):
    ks = jax.random.split(key, 4)
    wqkv, bqkv = _init_linear(ks[0], d_model, 3 * d_model)
    wo, bo = _init_linear(ks[1], d_model, d_model)
    w1, b1 = _init_linear(ks[2], d_model, ff_dim)
    w2, b2 = _init_linear(ks[3], ff_dim, d_model)
    # NOTE: reference layer shares one LayerNorm across its sublayers.
    return {"wqkv": wqkv, "bqkv": bqkv, "wo": wo, "bo": bo,
            "ln_g": jnp.ones((1, d_model), jnp.float32),
            "ln_b": jnp.zeros((1, d_model), jnp.float32),
            "ff_w1": w1, "ff_b1": b1, "ff_w2": w2, "ff_b2": b2}


def _init_decoder_layer(key, d_model, ff_dim):
    ks = jax.random.split(key, 7)
    s_wqkv, s_bqkv = _init_linear(ks[0], d_model, 3 * d_model)
    s_wo, s_bo = _init_linear(ks[1], d_model, d_model)
    c_wq, c_bq = _init_linear(ks[2], d_model, d_model)
    c_wkv, c_bkv = _init_linear(ks[3], d_model, 2 * d_model)
    c_wo, c_bo = _init_linear(ks[4], d_model, d_model)
    w1, b1 = _init_linear(ks[5], d_model, ff_dim)
    w2, b2 = _init_linear(ks[6], ff_dim, d_model)
    return {"s_wqkv": s_wqkv, "s_bqkv": s_bqkv, "s_wo": s_wo, "s_bo": s_bo,
            "c_wq": c_wq, "c_bq": c_bq, "c_wkv": c_wkv, "c_bkv": c_bkv,
            "c_wo": c_wo, "c_bo": c_bo,
            "ln_g": jnp.ones((1, d_model), jnp.float32),
            "ln_b": jnp.zeros((1, d_model), jnp.float32),
            "ff_w1": w1, "ff_b1": b1, "ff_w2": w2, "ff_b2": b2}


def _stack_layers(layer_dicts):
    return jax.tree_util.tree_map(lambda *xs: jnp.stack(xs, axis=0),
                                  *layer_dicts)


def init_params(key, d_model, heads, num_layers, vocab_size, ff_dim):
    keys = jax.random.split(key, 2 + 2 * num_layers)
    enc_layers = [_init_encoder_layer(keys[2 + i], d_model, ff_dim)
                  for i in range(num_layers)]
    dec_layers = [_init_decoder_layer(keys[2 + num_layers + i], d_model,
                                      ff_dim)
                  for i in range(num_layers)]
    params = {
        "embed": jax.random.normal(keys[0], (vocab_size, d_model),
                                   jnp.float32),
        "pe": positional_encoding_table(vocab_size, d_model),
        "encoder": _stack_layers(enc_layers),
        "decoder": _stack_layers(dec_layers),
    }
    params["logit_w"], params["logit_b"] = _init_linear(
        keys[1], d_model, vocab_size)
    return params


# ----------------------------------------------------------------------------
# Demo
# ----------------------------------------------------------------------------

if __name__ == "__main__":
    # TODO(synk): for perf-representative runs use D>=256, dh in {64,128},
    # F and V multiples of 128; these demo shapes only exercise correctness.
    d_model, heads, num_layers, vocab_size = 32, 4, 2, 64
    ff_dim = 4 * d_model
    B, S_src, S_tgt = 2, 8, 8

    key = jax.random.PRNGKey(0)
    k_params, k_src, k_tgt = jax.random.split(key, 3)
    params = init_params(k_params, d_model, heads, num_layers, vocab_size,
                         ff_dim)

    src_words = jax.random.randint(k_src, (B, S_src), 1, vocab_size,
                                   dtype=jnp.int32)
    tgt_words = jax.random.randint(k_tgt, (B, S_tgt), 1, vocab_size,
                                   dtype=jnp.int32)
    # PAD (id 0) tokens so both masking paths are exercised
    src_words = src_words.at[0, -2:].set(0)
    tgt_words = tgt_words.at[1, -1].set(0)

    fwd = jax.jit(functools.partial(transformer_forward,
                                    heads=heads, d_model=d_model))
    out = fwd(params, src_words, tgt_words)
    out = jax.block_until_ready(out)

    assert out.shape == (B, S_tgt, vocab_size)
    assert bool(jnp.all(jnp.isfinite(out)))
    # log-softmax rows should sum to ~1 in prob space
    assert bool(jnp.allclose(jnp.sum(jnp.exp(out), axis=-1), 1.0, atol=1e-4))
    print("KERNEL_OK")
</pallas_src>

<mosaic_0001>
module attributes {stable_mosaic.version = 11 : i64} {
  func.func @_encoder_layer_kernel(%arg0: i32, %arg1: i32, %arg2: memref<1x1x8xf32, #tpu.memory_space<vmem>>, %arg3: memref<1x8x32xbf16, #tpu.memory_space<vmem>>, %arg4: memref<1x32x96xbf16, #tpu.memory_space<vmem>>, %arg5: memref<1x1x96xf32, #tpu.memory_space<vmem>>, %arg6: memref<1x32x32xbf16, #tpu.memory_space<vmem>>, %arg7: memref<1x1x32xf32, #tpu.memory_space<vmem>>, %arg8: memref<1x1x32xf32, #tpu.memory_space<vmem>>, %arg9: memref<1x1x32xf32, #tpu.memory_space<vmem>>, %arg10: memref<1x32x128xbf16, #tpu.memory_space<vmem>>, %arg11: memref<1x1x128xf32, #tpu.memory_space<vmem>>, %arg12: memref<1x128x32xbf16, #tpu.memory_space<vmem>>, %arg13: memref<1x1x32xf32, #tpu.memory_space<vmem>>, %arg14: memref<1x8x32xbf16, #tpu.memory_space<vmem>>) attributes {dimension_semantics = [#tpu.dimension_semantics<parallel>, #tpu.dimension_semantics<arbitrary>], iteration_bounds = array<i64: 2, 2>, scalar_prefetch = 0 : i64, scratch_operands = 0 : i64, tpu.core_type = #tpu.core_type<tc>, window_params = [{transform_indices = @transform_0, window_bounds = array<i64: 1, 1, 8>}, {transform_indices = @transform_1, window_bounds = array<i64: 1, 8, 32>}, {transform_indices = @transform_2, window_bounds = array<i64: 1, 32, 96>}, {transform_indices = @transform_3, window_bounds = array<i64: 1, 1, 96>}, {transform_indices = @transform_4, window_bounds = array<i64: 1, 32, 32>}, {transform_indices = @transform_5, window_bounds = array<i64: 1, 1, 32>}, {transform_indices = @transform_6, window_bounds = array<i64: 1, 1, 32>}, {transform_indices = @transform_7, window_bounds = array<i64: 1, 1, 32>}, {transform_indices = @transform_8, window_bounds = array<i64: 1, 32, 128>}, {transform_indices = @transform_9, window_bounds = array<i64: 1, 1, 128>}, {transform_indices = @transform_10, window_bounds = array<i64: 1, 128, 32>}, {transform_indices = @transform_11, window_bounds = array<i64: 1, 1, 32>}, {transform_indices = @transform_12, window_bounds = array<i64: 1, 8, 32>}]} {
    %c0_i32 = arith.constant 0 : i32
    %0 = arith.cmpi eq, %arg1, %c0_i32 : i32
    %1 = arith.extui %0 : i1 to i32
    %c0_i32_0 = arith.constant 0 : i32
    %2 = arith.cmpi ne, %1, %c0_i32_0 : i32
    scf.if %2 {
      %c0_86 = arith.constant 0 : index
      %c0_87 = arith.constant 0 : index
      %c0_88 = arith.constant 0 : index
      %203 = vector.load %arg3[%c0_86, %c0_87, %c0_88] : memref<1x8x32xbf16, #tpu.memory_space<vmem>>, vector<1x8x32xbf16>
      %c0_89 = arith.constant 0 : index
      %c0_90 = arith.constant 0 : index
      %c0_91 = arith.constant 0 : index
      %204 = vector.load %arg14[%c0_89, %c0_90, %c0_91] : memref<1x8x32xbf16, #tpu.memory_space<vmem>>, vector<1x8x32xbf16>
      tpu.vector_store %arg14[%c0_89, %c0_90, %c0_91], %203 {strides = array<i32>} : memref<1x8x32xbf16, #tpu.memory_space<vmem>>, vector<1x8x32xbf16>,
    } else {
    }
    %c0 = arith.constant 0 : index
    %c0_1 = arith.constant 0 : index
    %c0_2 = arith.constant 0 : index
    %3 = vector.load %arg14[%c0, %c0_1, %c0_2] : memref<1x8x32xbf16, #tpu.memory_space<vmem>>, vector<1x8x32xbf16>
    %4 = vector.shape_cast %3 : vector<1x8x32xbf16> to vector<8x32xbf16>
    %5 = arith.extf %4 : vector<8x32xbf16> to vector<8x32xf32>
    %c0_3 = arith.constant 0 : index
    %c0_4 = arith.constant 0 : index
    %c0_5 = arith.constant 0 : index
    %6 = vector.load %arg4[%c0_3, %c0_4, %c0_5] : memref<1x32x96xbf16, #tpu.memory_space<vmem>>, vector<1x32x96xbf16>
    %7 = vector.shape_cast %6 : vector<1x32x96xbf16> to vector<32x96xbf16>
    %cst = arith.constant dense<0.000000e+00> : vector<8x96xf32>
    %8 = tpu.matmul %4, %7, %cst {dimension_numbers = #tpu.dot_dimension_numbers<[1], [0], [0], [1], [0, 0, 1, 1], [], []>} : vector<8x32xbf16>, vector<32x96xbf16>, vector<8x96xf32> -> vector<8x96xf32>
    %c0_6 = arith.constant 0 : index
    %c0_7 = arith.constant 0 : index
    %c0_8 = arith.constant 0 : index
    %9 = vector.load %arg5[%c0_6, %c0_7, %c0_8] : memref<1x1x96xf32, #tpu.memory_space<vmem>>, vector<1x1x96xf32>
    %10 = vector.shape_cast %9 : vector<1x1x96xf32> to vector<1x96xf32>
    %11 = vector.broadcast %10 : vector<1x96xf32> to vector<8x96xf32>
    %12 = arith.addf %8, %11 : vector<8x96xf32>
    %13 = vector.extract_strided_slice %12 {offsets = [0, 0], sizes = [8, 32], strides = [1, 1]} : vector<8x96xf32> to vector<8x32xf32>
    %14 = arith.truncf %13 : vector<8x32xf32> to vector<8x32xbf16>
    %15 = vector.extract_strided_slice %12 {offsets = [0, 32], sizes = [8, 32], strides = [1, 1]} : vector<8x96xf32> to vector<8x32xf32>
    %16 = arith.truncf %15 : vector<8x32xf32> to vector<8x32xbf16>
    %17 = vector.extract_strided_slice %12 {offsets = [0, 64], sizes = [8, 32], strides = [1, 1]} : vector<8x96xf32> to vector<8x32xf32>
    %18 = arith.truncf %17 : vector<8x32xf32> to vector<8x32xbf16>
    %c0_9 = arith.constant 0 : index
    %c0_10 = arith.constant 0 : index
    %c0_11 = arith.constant 0 : index
    %19 = vector.load %arg2[%c0_9, %c0_10, %c0_11] : memref<1x1x8xf32, #tpu.memory_space<vmem>>, vector<1x1x8xf32>
    %20 = vector.shape_cast %19 : vector<1x1x8xf32> to vector<1x8xf32>
    %cst_12 = arith.constant 0.000000e+00 : f32
    %21 = vector.broadcast %cst_12 : f32 to vector<1x8xf32>
    %22 = arith.cmpf ogt, %20, %21 : vector<1x8xf32>
    %cst_13 = arith.constant -1.000000e+09 : f32
    %cst_14 = arith.constant 0.000000e+00 : f32
    %23 = vector.broadcast %cst_13 : f32 to vector<1x8xf32>
    %24 = vector.broadcast %cst_14 : f32 to vector<1x8xf32>
    %25 = arith.select %22, %23, %24 : vector<1x8xi1>, vector<1x8xf32>
    %26 = vector.shape_cast %25 : vector<1x8xf32> to vector<1x8xf32>
    %27 = vector.broadcast %26 : vector<1x8xf32> to vector<8x8xf32>
    %c0_15 = arith.constant 0 : index
    %c0_16 = arith.constant 0 : index
    %c0_17 = arith.constant 0 : index
    %28 = vector.load %arg6[%c0_15, %c0_16, %c0_17] : memref<1x32x32xbf16, #tpu.memory_space<vmem>>, vector<1x32x32xbf16>
    %29 = vector.shape_cast %28 : vector<1x32x32xbf16> to vector<32x32xbf16>
    %cst_18 = arith.constant 0.000000e+00 : f32
    %30 = vector.broadcast %cst_18 : f32 to vector<8x32xf32>
    %31 = vector.extract_strided_slice %14 {offsets = [0, 0], sizes = [8, 8], strides = [1, 1]} : vector<8x32xbf16> to vector<8x8xbf16>
    %32 = vector.extract_strided_slice %16 {offsets = [0, 0], sizes = [8, 8], strides = [1, 1]} : vector<8x32xbf16> to vector<8x8xbf16>
    %cst_19 = arith.constant dense<0.000000e+00> : vector<8x8xf32>
    %33 = tpu.matmul %31, %32, %cst_19 {dimension_numbers = #tpu.dot_dimension_numbers<[1], [1], [0], [0], [0, 0, 1, 0], [], []>} : vector<8x8xbf16>, vector<8x8xbf16>, vector<8x8xf32> -> vector<8x8xf32>
    %cst_20 = arith.constant 0.353553385 : f32
    %34 = vector.broadcast %cst_20 : f32 to vector<8x8xf32>
    %35 = arith.mulf %33, %34 : vector<8x8xf32>
    %36 = arith.addf %35, %27 : vector<8x8xf32>
    %cst_21 = arith.constant dense<0xFF800000> : vector<8xf32>
    %37 = vector.multi_reduction <maximumf>, %36, %cst_21 [1] : vector<8x8xf32> to vector<8xf32>
    %38 = vector.shape_cast %37 : vector<8xf32> to vector<8x1xf32>
    %39 = vector.broadcast %38 : vector<8x1xf32> to vector<8x8xf32>
    %40 = arith.subf %36, %39 : vector<8x8xf32>
    %41 = math.exp %40 : vector<8x8xf32>
    %cst_22 = arith.constant dense<0.000000e+00> : vector<8xf32>
    %42 = vector.multi_reduction <add>, %41, %cst_22 [1] : vector<8x8xf32> to vector<8xf32>
    %43 = vector.shape_cast %42 : vector<8xf32> to vector<8x1xf32>
    %44 = tpu.reciprocal %43 {approx = true} : vector<8x1xf32> -> vector<8x1xf32>
    %45 = vector.broadcast %44 : vector<8x1xf32> to vector<8x8xf32>
    %46 = arith.mulf %41, %45 : vector<8x8xf32>
    %47 = arith.truncf %46 : vector<8x8xf32> to vector<8x8xbf16>
    %48 = vector.extract_strided_slice %18 {offsets = [0, 0], sizes = [8, 8], strides = [1, 1]} : vector<8x32xbf16> to vector<8x8xbf16>
    %cst_23 = arith.constant dense<0.000000e+00> : vector<8x8xf32>
    %49 = tpu.matmul %47, %48, %cst_23 {dimension_numbers = #tpu.dot_dimension_numbers<[1], [0], [0], [1], [0, 0, 1, 1], [], []>} : vector<8x8xbf16>, vector<8x8xbf16>, vector<8x8xf32> -> vector<8x8xf32>
    %50 = arith.truncf %49 : vector<8x8xf32> to vector<8x8xbf16>
    %51 = vector.extract_strided_slice %29 {offsets = [0, 0], sizes = [8, 32], strides = [1, 1]} : vector<32x32xbf16> to vector<8x32xbf16>
    %cst_24 = arith.constant dense<0.000000e+00> : vector<8x32xf32>
    %52 = tpu.matmul %50, %51, %cst_24 {dimension_numbers = #tpu.dot_dimension_numbers<[1], [0], [0], [1], [0, 0, 1, 1], [], []>} : vector<8x8xbf16>, vector<8x32xbf16>, vector<8x32xf32> -> vector<8x32xf32>
    %53 = arith.addf %30, %52 : vector<8x32xf32>
    %54 = vector.extract_strided_slice %14 {offsets = [0, 8], sizes = [8, 8], strides = [1, 1]} : vector<8x32xbf16> to vector<8x8xbf16>
    %55 = vector.extract_strided_slice %16 {offsets = [0, 8], sizes = [8, 8], strides = [1, 1]} : vector<8x32xbf16> to vector<8x8xbf16>
    %cst_25 = arith.constant dense<0.000000e+00> : vector<8x8xf32>
    %56 = tpu.matmul %54, %55, %cst_25 {dimension_numbers = #tpu.dot_dimension_numbers<[1], [1], [0], [0], [0, 0, 1, 0], [], []>} : vector<8x8xbf16>, vector<8x8xbf16>, vector<8x8xf32> -> vector<8x8xf32>
    %cst_26 = arith.constant 0.353553385 : f32
    %57 = vector.broadcast %cst_26 : f32 to vector<8x8xf32>
    %58 = arith.mulf %56, %57 : vector<8x8xf32>
    %59 = arith.addf %58, %27 : vector<8x8xf32>
    %cst_27 = arith.constant dense<0xFF800000> : vector<8xf32>
    %60 = vector.multi_reduction <maximumf>, %59, %cst_27 [1] : vector<8x8xf32> to vector<8xf32>
    %61 = vector.shape_cast %60 : vector<8xf32> to vector<8x1xf32>
    %62 = vector.broadcast %61 : vector<8x1xf32> to vector<8x8xf32>
    %63 = arith.subf %59, %62 : vector<8x8xf32>
    %64 = math.exp %63 : vector<8x8xf32>
    %cst_28 = arith.constant dense<0.000000e+00> : vector<8xf32>
    %65 = vector.multi_reduction <add>, %64, %cst_28 [1] : vector<8x8xf32> to vector<8xf32>
    %66 = vector.shape_cast %65 : vector<8xf32> to vector<8x1xf32>
    %67 = tpu.reciprocal %66 {approx = true} : vector<8x1xf32> -> vector<8x1xf32>
    %68 = vector.broadcast %67 : vector<8x1xf32> to vector<8x8xf32>
    %69 = arith.mulf %64, %68 : vector<8x8xf32>
    %70 = arith.truncf %69 : vector<8x8xf32> to vector<8x8xbf16>
    %71 = vector.extract_strided_slice %18 {offsets = [0, 8], sizes = [8, 8], strides = [1, 1]} : vector<8x32xbf16> to vector<8x8xbf16>
    %cst_29 = arith.constant dense<0.000000e+00> : vector<8x8xf32>
    %72 = tpu.matmul %70, %71, %cst_29 {dimension_numbers = #tpu.dot_dimension_numbers<[1], [0], [0], [1], [0, 0, 1, 1], [], []>} : vector<8x8xbf16>, vector<8x8xbf16>, vector<8x8xf32> -> vector<8x8xf32>
    %73 = arith.truncf %72 : vector<8x8xf32> to vector<8x8xbf16>
    %74 = vector.extract_strided_slice %29 {offsets = [8, 0], sizes = [8, 32], strides = [1, 1]} : vector<32x32xbf16> to vector<8x32xbf16>
    %cst_30 = arith.constant dense<0.000000e+00> : vector<8x32xf32>
    %75 = tpu.matmul %73, %74, %cst_30 {dimension_numbers = #tpu.dot_dimension_numbers<[1], [0], [0], [1], [0, 0, 1, 1], [], []>} : vector<8x8xbf16>, vector<8x32xbf16>, vector<8x32xf32> -> vector<8x32xf32>
    %76 = arith.addf %53, %75 : vector<8x32xf32>
    %77 = vector.extract_strided_slice %14 {offsets = [0, 16], sizes = [8, 8], strides = [1, 1]} : vector<8x32xbf16> to vector<8x8xbf16>
    %78 = vector.extract_strided_slice %16 {offsets = [0, 16], sizes = [8, 8], strides = [1, 1]} : vector<8x32xbf16> to vector<8x8xbf16>
    %cst_31 = arith.constant dense<0.000000e+00> : vector<8x8xf32>
    %79 = tpu.matmul %77, %78, %cst_31 {dimension_numbers = #tpu.dot_dimension_numbers<[1], [1], [0], [0], [0, 0, 1, 0], [], []>} : vector<8x8xbf16>, vector<8x8xbf16>, vector<8x8xf32> -> vector<8x8xf32>
    %cst_32 = arith.constant 0.353553385 : f32
    %80 = vector.broadcast %cst_32 : f32 to vector<8x8xf32>
    %81 = arith.mulf %79, %80 : vector<8x8xf32>
    %82 = arith.addf %81, %27 : vector<8x8xf32>
    %cst_33 = arith.constant dense<0xFF800000> : vector<8xf32>
    %83 = vector.multi_reduction <maximumf>, %82, %cst_33 [1] : vector<8x8xf32> to vector<8xf32>
    %84 = vector.shape_cast %83 : vector<8xf32> to vector<8x1xf32>
    %85 = vector.broadcast %84 : vector<8x1xf32> to vector<8x8xf32>
    %86 = arith.subf %82, %85 : vector<8x8xf32>
    %87 = math.exp %86 : vector<8x8xf32>
    %cst_34 = arith.constant dense<0.000000e+00> : vector<8xf32>
    %88 = vector.multi_reduction <add>, %87, %cst_34 [1] : vector<8x8xf32> to vector<8xf32>
    %89 = vector.shape_cast %88 : vector<8xf32> to vector<8x1xf32>
    %90 = tpu.reciprocal %89 {approx = true} : vector<8x1xf32> -> vector<8x1xf32>
    %91 = vector.broadcast %90 : vector<8x1xf32> to vector<8x8xf32>
    %92 = arith.mulf %87, %91 : vector<8x8xf32>
    %93 = arith.truncf %92 : vector<8x8xf32> to vector<8x8xbf16>
    %94 = vector.extract_strided_slice %18 {offsets = [0, 16], sizes = [8, 8], strides = [1, 1]} : vector<8x32xbf16> to vector<8x8xbf16>
    %cst_35 = arith.constant dense<0.000000e+00> : vector<8x8xf32>
    %95 = tpu.matmul %93, %94, %cst_35 {dimension_numbers = #tpu.dot_dimension_numbers<[1], [0], [0], [1], [0, 0, 1, 1], [], []>} : vector<8x8xbf16>, vector<8x8xbf16>, vector<8x8xf32> -> vector<8x8xf32>
    %96 = arith.truncf %95 : vector<8x8xf32> to vector<8x8xbf16>
    %97 = vector.extract_strided_slice %29 {offsets = [16, 0], sizes = [8, 32], strides = [1, 1]} : vector<32x32xbf16> to vector<8x32xbf16>
    %cst_36 = arith.constant dense<0.000000e+00> : vector<8x32xf32>
    %98 = tpu.matmul %96, %97, %cst_36 {dimension_numbers = #tpu.dot_dimension_numbers<[1], [0], [0], [1], [0, 0, 1, 1], [], []>} : vector<8x8xbf16>, vector<8x32xbf16>, vector<8x32xf32> -> vector<8x32xf32>
    %99 = arith.addf %76, %98 : vector<8x32xf32>
    %100 = vector.extract_strided_slice %14 {offsets = [0, 24], sizes = [8, 8], strides = [1, 1]} : vector<8x32xbf16> to vector<8x8xbf16>
    %101 = vector.extract_strided_slice %16 {offsets = [0, 24], sizes = [8, 8], strides = [1, 1]} : vector<8x32xbf16> to vector<8x8xbf16>
    %cst_37 = arith.constant dense<0.000000e+00> : vector<8x8xf32>
    %102 = tpu.matmul %100, %101, %cst_37 {dimension_numbers = #tpu.dot_dimension_numbers<[1], [1], [0], [0], [0, 0, 1, 0], [], []>} : vector<8x8xbf16>, vector<8x8xbf16>, vector<8x8xf32> -> vector<8x8xf32>
    %cst_38 = arith.constant 0.353553385 : f32
    %103 = vector.broadcast %cst_38 : f32 to vector<8x8xf32>
    %104 = arith.mulf %102, %103 : vector<8x8xf32>
    %105 = arith.addf %104, %27 : vector<8x8xf32>
    %cst_39 = arith.constant dense<0xFF800000> : vector<8xf32>
    %106 = vector.multi_reduction <maximumf>, %105, %cst_39 [1] : vector<8x8xf32> to vector<8xf32>
    %107 = vector.shape_cast %106 : vector<8xf32> to vector<8x1xf32>
    %108 = vector.broadcast %107 : vector<8x1xf32> to vector<8x8xf32>
    %109 = arith.subf %105, %108 : vector<8x8xf32>
    %110 = math.exp %109 : vector<8x8xf32>
    %cst_40 = arith.constant dense<0.000000e+00> : vector<8xf32>
    %111 = vector.multi_reduction <add>, %110, %cst_40 [1] : vector<8x8xf32> to vector<8xf32>
    %112 = vector.shape_cast %111 : vector<8xf32> to vector<8x1xf32>
    %113 = tpu.reciprocal %112 {approx = true} : vector<8x1xf32> -> vector<8x1xf32>
    %114 = vector.broadcast %113 : vector<8x1xf32> to vector<8x8xf32>
    %115 = arith.mulf %110, %114 : vector<8x8xf32>
    %116 = arith.truncf %115 : vector<8x8xf32> to vector<8x8xbf16>
    %117 = vector.extract_strided_slice %18 {offsets = [0, 24], sizes = [8, 8], strides = [1, 1]} : vector<8x32xbf16> to vector<8x8xbf16>
    %cst_41 = arith.constant dense<0.000000e+00> : vector<8x8xf32>
    %118 = tpu.matmul %116, %117, %cst_41 {dimension_numbers = #tpu.dot_dimension_numbers<[1], [0], [0], [1], [0, 0, 1, 1], [], []>} : vector<8x8xbf16>, vector<8x8xbf16>, vector<8x8xf32> -> vector<8x8xf32>
    %119 = arith.truncf %118 : vector<8x8xf32> to vector<8x8xbf16>
    %120 = vector.extract_strided_slice %29 {offsets = [24, 0], sizes = [8, 32], strides = [1, 1]} : vector<32x32xbf16> to vector<8x32xbf16>
    %cst_42 = arith.constant dense<0.000000e+00> : vector<8x32xf32>
    %121 = tpu.matmul %119, %120, %cst_42 {dimension_numbers = #tpu.dot_dimension_numbers<[1], [0], [0], [1], [0, 0, 1, 1], [], []>} : vector<8x8xbf16>, vector<8x32xbf16>, vector<8x32xf32> -> vector<8x32xf32>
    %122 = arith.addf %99, %121 : vector<8x32xf32>
    %c0_43 = arith.constant 0 : index
    %c0_44 = arith.constant 0 : index
    %c0_45 = arith.constant 0 : index
    %123 = vector.load %arg7[%c0_43, %c0_44, %c0_45] : memref<1x1x32xf32, #tpu.memory_space<vmem>>, vector<1x1x32xf32>
    %124 = vector.shape_cast %123 : vector<1x1x32xf32> to vector<1x32xf32>
    %125 = vector.broadcast %124 : vector<1x32xf32> to vector<8x32xf32>
    %126 = arith.addf %122, %125 : vector<8x32xf32>
    %c0_46 = arith.constant 0 : index
    %c0_47 = arith.constant 0 : index
    %c0_48 = arith.constant 0 : index
    %127 = vector.load %arg8[%c0_46, %c0_47, %c0_48] : memref<1x1x32xf32, #tpu.memory_space<vmem>>, vector<1x1x32xf32>
    %128 = vector.shape_cast %127 : vector<1x1x32xf32> to vector<1x32xf32>
    %c0_49 = arith.constant 0 : index
    %c0_50 = arith.constant 0 : index
    %c0_51 = arith.constant 0 : index
    %129 = vector.load %arg9[%c0_49, %c0_50, %c0_51] : memref<1x1x32xf32, #tpu.memory_space<vmem>>, vector<1x1x32xf32>
    %130 = vector.shape_cast %129 : vector<1x1x32xf32> to vector<1x32xf32>
    %131 = arith.addf %126, %5 : vector<8x32xf32>
    %cst_52 = arith.constant dense<0.000000e+00> : vector<8xf32>
    %132 = vector.multi_reduction <add>, %131, %cst_52 [1] : vector<8x32xf32> to vector<8xf32>
    %133 = vector.shape_cast %132 : vector<8xf32> to vector<8x1xf32>
    %cst_53 = arith.constant 3.200000e+01 : f32
    %134 = vector.broadcast %cst_53 : f32 to vector<8x1xf32>
    %135 = arith.divf %133, %134 : vector<8x1xf32>
    %136 = vector.broadcast %135 : vector<8x1xf32> to vector<8x32xf32>
    %137 = arith.subf %131, %136 : vector<8x32xf32>
    %138 = arith.mulf %137, %137 : vector<8x32xf32>
    %cst_54 = arith.constant dense<0.000000e+00> : vector<8xf32>
    %139 = vector.multi_reduction <add>, %138, %cst_54 [1] : vector<8x32xf32> to vector<8xf32>
    %140 = vector.shape_cast %139 : vector<8xf32> to vector<8x1xf32>
    %cst_55 = arith.constant 3.200000e+01 : f32
    %141 = vector.broadcast %cst_55 : f32 to vector<8x1xf32>
    %142 = arith.divf %140, %141 : vector<8x1xf32>
    %143 = vector.broadcast %135 : vector<8x1xf32> to vector<8x32xf32>
    %144 = arith.subf %131, %143 : vector<8x32xf32>
    %cst_56 = arith.constant 9.99999974E-6 : f32
    %145 = vector.broadcast %cst_56 : f32 to vector<8x1xf32>
    %146 = arith.addf %142, %145 : vector<8x1xf32>
    %147 = math.rsqrt %146 : vector<8x1xf32>
    %148 = vector.broadcast %147 : vector<8x1xf32> to vector<8x32xf32>
    %149 = arith.mulf %144, %148 : vector<8x32xf32>
    %150 = vector.broadcast %128 : vector<1x32xf32> to vector<8x32xf32>
    %151 = arith.mulf %149, %150 : vector<8x32xf32>
    %152 = vector.broadcast %130 : vector<1x32xf32> to vector<8x32xf32>
    %153 = arith.addf %151, %152 : vector<8x32xf32>
    %154 = arith.truncf %153 : vector<8x32xf32> to vector<8x32xbf16>
    %c0_57 = arith.constant 0 : index
    %c0_58 = arith.constant 0 : index
    %c0_59 = arith.constant 0 : index
    %155 = vector.load %arg10[%c0_57, %c0_58, %c0_59] : memref<1x32x128xbf16, #tpu.memory_space<vmem>>, vector<1x32x128xbf16>
    %156 = vector.shape_cast %155 : vector<1x32x128xbf16> to vector<32x128xbf16>
    %cst_60 = arith.constant dense<0.000000e+00> : vector<8x128xf32>
    %157 = tpu.matmul %154, %156, %cst_60 {dimension_numbers = #tpu.dot_dimension_numbers<[1], [0], [0], [1], [0, 0, 1, 1], [], []>} : vector<8x32xbf16>, vector<32x128xbf16>, vector<8x128xf32> -> vector<8x128xf32>
    %c0_61 = arith.constant 0 : index
    %c0_62 = arith.constant 0 : index
    %c0_63 = arith.constant 0 : index
    %158 = vector.load %arg11[%c0_61, %c0_62, %c0_63] : memref<1x1x128xf32, #tpu.memory_space<vmem>>, vector<1x1x128xf32>
    %159 = vector.shape_cast %158 : vector<1x1x128xf32> to vector<1x128xf32>
    %160 = vector.broadcast %159 : vector<1x128xf32> to vector<8x128xf32>
    %161 = arith.addf %157, %160 : vector<8x128xf32>
    %cst_64 = arith.constant 0.000000e+00 : f32
    %162 = vector.broadcast %cst_64 : f32 to vector<8x128xf32>
    %163 = arith.maximumf %161, %162 : vector<8x128xf32>
    %164 = arith.truncf %163 : vector<8x128xf32> to vector<8x128xbf16>
    %c0_65 = arith.constant 0 : index
    %c0_66 = arith.constant 0 : index
    %c0_67 = arith.constant 0 : index
    %165 = vector.load %arg12[%c0_65, %c0_66, %c0_67] : memref<1x128x32xbf16, #tpu.memory_space<vmem>>, vector<1x128x32xbf16>
    %166 = vector.shape_cast %165 : vector<1x128x32xbf16> to vector<128x32xbf16>
    %cst_68 = arith.constant dense<0.000000e+00> : vector<8x32xf32>
    %167 = tpu.matmul %164, %166, %cst_68 {dimension_numbers = #tpu.dot_dimension_numbers<[1], [0], [0], [1], [0, 0, 1, 1], [], []>} : vector<8x128xbf16>, vector<128x32xbf16>, vector<8x32xf32> -> vector<8x32xf32>
    %c0_69 = arith.constant 0 : index
    %c0_70 = arith.constant 0 : index
    %c0_71 = arith.constant 0 : index
    %168 = vector.load %arg13[%c0_69, %c0_70, %c0_71] : memref<1x1x32xf32, #tpu.memory_space<vmem>>, vector<1x1x32xf32>
    %169 = vector.shape_cast %168 : vector<1x1x32xf32> to vector<1x32xf32>
    %170 = vector.broadcast %169 : vector<1x32xf32> to vector<8x32xf32>
    %171 = arith.addf %167, %170 : vector<8x32xf32>
    %c0_72 = arith.constant 0 : index
    %c0_73 = arith.constant 0 : index
    %c0_74 = arith.constant 0 : index
    %172 = vector.load %arg8[%c0_72, %c0_73, %c0_74] : memref<1x1x32xf32, #tpu.memory_space<vmem>>, vector<1x1x32xf32>
    %173 = vector.shape_cast %172 : vector<1x1x32xf32> to vector<1x32xf32>
    %c0_75 = arith.constant 0 : index
    %c0_76 = arith.constant 0 : index
    %c0_77 = arith.constant 0 : index
    %174 = vector.load %arg9[%c0_75, %c0_76, %c0_77] : memref<1x1x32xf32, #tpu.memory_space<vmem>>, vector<1x1x32xf32>
    %175 = vector.shape_cast %174 : vector<1x1x32xf32> to vector<1x32xf32>
    %176 = arith.addf %171, %153 : vector<8x32xf32>
    %cst_78 = arith.constant dense<0.000000e+00> : vector<8xf32>
    %177 = vector.multi_reduction <add>, %176, %cst_78 [1] : vector<8x32xf32> to vector<8xf32>
    %178 = vector.shape_cast %177 : vector<8xf32> to vector<8x1xf32>
    %cst_79 = arith.constant 3.200000e+01 : f32
    %179 = vector.broadcast %cst_79 : f32 to vector<8x1xf32>
    %180 = arith.divf %178, %179 : vector<8x1xf32>
    %181 = vector.broadcast %180 : vector<8x1xf32> to vector<8x32xf32>
    %182 = arith.subf %176, %181 : vector<8x32xf32>
    %183 = arith.mulf %182, %182 : vector<8x32xf32>
    %cst_80 = arith.constant dense<0.000000e+00> : vector<8xf32>
    %184 = vector.multi_reduction <add>, %183, %cst_80 [1] : vector<8x32xf32> to vector<8xf32>
    %185 = vector.shape_cast %184 : vector<8xf32> to vector<8x1xf32>
    %cst_81 = arith.constant 3.200000e+01 : f32
    %186 = vector.broadcast %cst_81 : f32 to vector<8x1xf32>
    %187 = arith.divf %185, %186 : vector<8x1xf32>
    %188 = vector.broadcast %180 : vector<8x1xf32> to vector<8x32xf32>
    %189 = arith.subf %176, %188 : vector<8x32xf32>
    %cst_82 = arith.constant 9.99999974E-6 : f32
    %190 = vector.broadcast %cst_82 : f32 to vector<8x1xf32>
    %191 = arith.addf %187, %190 : vector<8x1xf32>
    %192 = math.rsqrt %191 : vector<8x1xf32>
    %193 = vector.broadcast %192 : vector<8x1xf32> to vector<8x32xf32>
    %194 = arith.mulf %189, %193 : vector<8x32xf32>
    %195 = vector.broadcast %173 : vector<1x32xf32> to vector<8x32xf32>
    %196 = arith.mulf %194, %195 : vector<8x32xf32>
    %197 = vector.broadcast %175 : vector<1x32xf32> to vector<8x32xf32>
    %198 = arith.addf %196, %197 : vector<8x32xf32>
    %199 = arith.truncf %198 : vector<8x32xf32> to vector<8x32xbf16>
    %c0_83 = arith.constant 0 : index
    %c0_84 = arith.constant 0 : index
    %c0_85 = arith.constant 0 : index
    %200 = vector.load %arg14[%c0_83, %c0_84, %c0_85] : memref<1x8x32xbf16, #tpu.memory_space<vmem>>, vector<1x8x32xbf16>
    %201 = vector.shape_cast %200 : vector<1x8x32xbf16> to vector<8x32xbf16>
    %202 = vector.shape_cast %199 : vector<8x32xbf16> to vector<1x8x32xbf16>
    tpu.vector_store %arg14[%c0_83, %c0_84, %c0_85], %202 {strides = array<i32>} : memref<1x8x32xbf16, #tpu.memory_space<vmem>>, vector<1x8x32xbf16>,
    return
  }
  func.func @transform_0(%arg0: i32, %arg1: i32) -> (i32, i32, i32) {
    %c0_i32 = arith.constant 0 : i32
    %c0_i32_0 = arith.constant 0 : i32
    %c0_i32_1 = arith.constant 0 : i32
    return %arg0, %c0_i32, %c0_i32_0 : i32, i32, i32
  }
  func.func @transform_1(%arg0: i32, %arg1: i32) -> (i32, i32, i32) {
    %c0_i32 = arith.constant 0 : i32
    %c0_i32_0 = arith.constant 0 : i32
    %c0_i32_1 = arith.constant 0 : i32
    return %arg0, %c0_i32, %c0_i32_0 : i32, i32, i32
  }
  func.func @transform_2(%arg0: i32, %arg1: i32) -> (i32, i32, i32) {
    %c0_i32 = arith.constant 0 : i32
    %c0_i32_0 = arith.constant 0 : i32
    %c0_i32_1 = arith.constant 0 : i32
    return %arg1, %c0_i32, %c0_i32_0 : i32, i32, i32
  }
  func.func @transform_3(%arg0: i32, %arg1: i32) -> (i32, i32, i32) {
    %c0_i32 = arith.constant 0 : i32
    %c0_i32_0 = arith.constant 0 : i32
    %c0_i32_1 = arith.constant 0 : i32
    return %arg1, %c0_i32, %c0_i32_0 : i32, i32, i32
  }
  func.func @transform_4(%arg0: i32, %arg1: i32) -> (i32, i32, i32) {
    %c0_i32 = arith.constant 0 : i32
    %c0_i32_0 = arith.constant 0 : i32
    %c0_i32_1 = arith.constant 0 : i32
    return %arg1, %c0_i32, %c0_i32_0 : i32, i32, i32
  }
  func.func @transform_5(%arg0: i32, %arg1: i32) -> (i32, i32, i32) {
    %c0_i32 = arith.constant 0 : i32
    %c0_i32_0 = arith.constant 0 : i32
    %c0_i32_1 = arith.constant 0 : i32
    return %arg1, %c0_i32, %c0_i32_0 : i32, i32, i32
  }
  func.func @transform_6(%arg0: i32, %arg1: i32) -> (i32, i32, i32) {
    %c0_i32 = arith.constant 0 : i32
    %c0_i32_0 = arith.constant 0 : i32
    %c0_i32_1 = arith.constant 0 : i32
    return %arg1, %c0_i32, %c0_i32_0 : i32, i32, i32
  }
  func.func @transform_7(%arg0: i32, %arg1: i32) -> (i32, i32, i32) {
    %c0_i32 = arith.constant 0 : i32
    %c0_i32_0 = arith.constant 0 : i32
    %c0_i32_1 = arith.constant 0 : i32
    return %arg1, %c0_i32, %c0_i32_0 : i32, i32, i32
  }
  func.func @transform_8(%arg0: i32, %arg1: i32) -> (i32, i32, i32) {
    %c0_i32 = arith.constant 0 : i32
    %c0_i32_0 = arith.constant 0 : i32
    %c0_i32_1 = arith.constant 0 : i32
    return %arg1, %c0_i32, %c0_i32_0 : i32, i32, i32
  }
  func.func @transform_9(%arg0: i32, %arg1: i32) -> (i32, i32, i32) {
    %c0_i32 = arith.constant 0 : i32
    %c0_i32_0 = arith.constant 0 : i32
    %c0_i32_1 = arith.constant 0 : i32
    return %arg1, %c0_i32, %c0_i32_0 : i32, i32, i32
  }
  func.func @transform_10(%arg0: i32, %arg1: i32) -> (i32, i32, i32) {
    %c0_i32 = arith.constant 0 : i32
    %c0_i32_0 = arith.constant 0 : i32
    %c0_i32_1 = arith.constant 0 : i32
    return %arg1, %c0_i32, %c0_i32_0 : i32, i32, i32
  }
  func.func @transform_11(%arg0: i32, %arg1: i32) -> (i32, i32, i32) {
    %c0_i32 = arith.constant 0 : i32
    %c0_i32_0 = arith.constant 0 : i32
    %c0_i32_1 = arith.constant 0 : i32
    return %arg1, %c0_i32, %c0_i32_0 : i32, i32, i32
  }
  func.func @transform_12(%arg0: i32, %arg1: i32) -> (i32, i32, i32) {
    %c0_i32 = arith.constant 0 : i32
    %c0_i32_0 = arith.constant 0 : i32
    %c0_i32_1 = arith.constant 0 : i32
    return %arg0, %c0_i32, %c0_i32_0 : i32, i32, i32
  }
}

module attributes {stable_mosaic.version = 11 : i64} {
  func.func @_logits_kernel(%arg0: i32, %arg1: i32, %arg2: memref<1x8x32xbf16, #tpu.memory_space<vmem>>, %arg3: memref<32x64xbf16, #tpu.memory_space<vmem>>, %arg4: memref<1x64xf32, #tpu.memory_space<vmem>>, %arg5: memref<1x8x64xf32, #tpu.memory_space<vmem>>, %arg6: memref<1x8x1xf32, #tpu.memory_space<vmem>>, %arg7: memref<8x1xf32, #tpu.memory_space<vmem>>, %arg8: memref<8x1xf32, #tpu.memory_space<vmem>>) attributes {dimension_semantics = [#tpu.dimension_semantics<parallel>, #tpu.dimension_semantics<arbitrary>], iteration_bounds = array<i64: 2, 1>, scalar_prefetch = 0 : i64, scratch_operands = 2 : i64, tpu.core_type = #tpu.core_type<tc>, window_params = [{transform_indices = @transform_0, window_bounds = array<i64: 1, 8, 32>}, {transform_indices = @transform_1, window_bounds = array<i64: 32, 64>}, {transform_indices = @transform_2, window_bounds = array<i64: 1, 64>}, {transform_indices = @transform_3, window_bounds = array<i64: 1, 8, 64>}, {transform_indices = @transform_4, window_bounds = array<i64: 1, 8, 1>}]} {
    %c0_i32 = arith.constant 0 : i32
    %0 = arith.cmpi eq, %arg1, %c0_i32 : i32
    %1 = arith.extui %0 : i1 to i32
    %c0_i32_0 = arith.constant 0 : i32
    %2 = arith.cmpi ne, %1, %c0_i32_0 : i32
    scf.if %2 {
      %cst_22 = arith.constant 0xFF800000 : f32
      %32 = vector.broadcast %cst_22 : f32 to vector<8x1xf32>
      %c0_23 = arith.constant 0 : index
      %c0_24 = arith.constant 0 : index
      %33 = vector.load %arg7[%c0_23, %c0_24] : memref<8x1xf32, #tpu.memory_space<vmem>>, vector<8x1xf32>
      tpu.vector_store %arg7[%c0_23, %c0_24], %32 {strides = array<i32>} : memref<8x1xf32, #tpu.memory_space<vmem>>, vector<8x1xf32>,
      %cst_25 = arith.constant 0.000000e+00 : f32
      %34 = vector.broadcast %cst_25 : f32 to vector<8x1xf32>
      %c0_26 = arith.constant 0 : index
      %c0_27 = arith.constant 0 : index
      %35 = vector.load %arg8[%c0_26, %c0_27] : memref<8x1xf32, #tpu.memory_space<vmem>>, vector<8x1xf32>
      tpu.vector_store %arg8[%c0_26, %c0_27], %34 {strides = array<i32>} : memref<8x1xf32, #tpu.memory_space<vmem>>, vector<8x1xf32>,
    } else {
    }
    %c0 = arith.constant 0 : index
    %c0_1 = arith.constant 0 : index
    %c0_2 = arith.constant 0 : index
    %3 = vector.load %arg2[%c0, %c0_1, %c0_2] : memref<1x8x32xbf16, #tpu.memory_space<vmem>>, vector<1x8x32xbf16>
    %4 = vector.shape_cast %3 : vector<1x8x32xbf16> to vector<8x32xbf16>
    %c0_3 = arith.constant 0 : index
    %c0_4 = arith.constant 0 : index
    %5 = vector.load %arg3[%c0_3, %c0_4] : memref<32x64xbf16, #tpu.memory_space<vmem>>, vector<32x64xbf16>
    %cst = arith.constant dense<0.000000e+00> : vector<8x64xf32>
    %6 = tpu.matmul %4, %5, %cst {dimension_numbers = #tpu.dot_dimension_numbers<[1], [0], [0], [1], [0, 0, 1, 1], [], []>} : vector<8x32xbf16>, vector<32x64xbf16>, vector<8x64xf32> -> vector<8x64xf32>
    %c0_5 = arith.constant 0 : index
    %c0_6 = arith.constant 0 : index
    %7 = vector.load %arg4[%c0_5, %c0_6] : memref<1x64xf32, #tpu.memory_space<vmem>>, vector<1x64xf32>
    %8 = vector.broadcast %7 : vector<1x64xf32> to vector<8x64xf32>
    %9 = arith.addf %6, %8 : vector<8x64xf32>
    %c0_7 = arith.constant 0 : index
    %c0_8 = arith.constant 0 : index
    %c0_9 = arith.constant 0 : index
    %10 = vector.load %arg5[%c0_7, %c0_8, %c0_9] : memref<1x8x64xf32, #tpu.memory_space<vmem>>, vector<1x8x64xf32>
    %11 = vector.shape_cast %10 : vector<1x8x64xf32> to vector<8x64xf32>
    %12 = vector.shape_cast %9 : vector<8x64xf32> to vector<1x8x64xf32>
    tpu.vector_store %arg5[%c0_7, %c0_8, %c0_9], %12 {strides = array<i32>} : memref<1x8x64xf32, #tpu.memory_space<vmem>>, vector<1x8x64xf32>,
    %c0_10 = arith.constant 0 : index
    %c0_11 = arith.constant 0 : index
    %13 = vector.load %arg7[%c0_10, %c0_11] : memref<8x1xf32, #tpu.memory_space<vmem>>, vector<8x1xf32>
    %cst_12 = arith.constant dense<0xFF800000> : vector<8xf32>
    %14 = vector.multi_reduction <maximumf>, %9, %cst_12 [1] : vector<8x64xf32> to vector<8xf32>
    %15 = vector.shape_cast %14 : vector<8xf32> to vector<8x1xf32>
    %16 = arith.maximumf %13, %15 : vector<8x1xf32>
    %c0_13 = arith.constant 0 : index
    %c0_14 = arith.constant 0 : index
    %17 = vector.load %arg8[%c0_13, %c0_14] : memref<8x1xf32, #tpu.memory_space<vmem>>, vector<8x1xf32>
    %18 = arith.subf %13, %16 : vector<8x1xf32>
    %19 = math.exp %18 : vector<8x1xf32>
    %20 = arith.mulf %17, %19 : vector<8x1xf32>
    %21 = vector.broadcast %16 : vector<8x1xf32> to vector<8x64xf32>
    %22 = arith.subf %9, %21 : vector<8x64xf32>
    %23 = math.exp %22 : vector<8x64xf32>
    %cst_15 = arith.constant dense<0.000000e+00> : vector<8xf32>
    %24 = vector.multi_reduction <add>, %23, %cst_15 [1] : vector<8x64xf32> to vector<8xf32>
    %25 = vector.shape_cast %24 : vector<8xf32> to vector<8x1xf32>
    %26 = arith.addf %20, %25 : vector<8x1xf32>
    %c0_16 = arith.constant 0 : index
    %c0_17 = arith.constant 0 : index
    %27 = vector.load %arg8[%c0_16, %c0_17] : memref<8x1xf32, #tpu.memory_space<vmem>>, vector<8x1xf32>
    tpu.vector_store %arg8[%c0_16, %c0_17], %26 {strides = array<i32>} : memref<8x1xf32, #tpu.memory_space<vmem>>, vector<8x1xf32>,
    %c0_18 = arith.constant 0 : index
    %c0_19 = arith.constant 0 : index
    %28 = vector.load %arg7[%c0_18, %c0_19] : memref<8x1xf32, #tpu.memory_space<vmem>>, vector<8x1xf32>
    tpu.vector_store %arg7[%c0_18, %c0_19], %16 {strides = array<i32>} : memref<8x1xf32, #tpu.memory_space<vmem>>, vector<8x1xf32>,
    %c0_i32_20 = arith.constant 0 : i32
    %29 = arith.cmpi eq, %arg1, %c0_i32_20 : i32
    %30 = arith.extui %29 : i1 to i32
    %c0_i32_21 = arith.constant 0 : i32
    %31 = arith.cmpi ne, %30, %c0_i32_21 : i32
    scf.if %31 {
      %c0_22 = arith.constant 0 : index
      %c0_23 = arith.constant 0 : index
      %32 = vector.load %arg7[%c0_22, %c0_23] : memref<8x1xf32, #tpu.memory_space<vmem>>, vector<8x1xf32>
      %c0_24 = arith.constant 0 : index
      %c0_25 = arith.constant 0 : index
      %33 = vector.load %arg8[%c0_24, %c0_25] : memref<8x1xf32, #tpu.memory_space<vmem>>, vector<8x1xf32>
      %34 = math.log %33 : vector<8x1xf32>
      %35 = arith.addf %32, %34 : vector<8x1xf32>
      %c0_26 = arith.constant 0 : index
      %c0_27 = arith.constant 0 : index
      %c0_28 = arith.constant 0 : index
      %36 = vector.load %arg6[%c0_26, %c0_27, %c0_28] : memref<1x8x1xf32, #tpu.memory_space<vmem>>, vector<1x8x1xf32>
      %37 = vector.shape_cast %36 : vector<1x8x1xf32> to vector<8x1xf32>
      %38 = vector.shape_cast %35 : vector<8x1xf32> to vector<1x8x1xf32>
      tpu.vector_store %arg6[%c0_26, %c0_27, %c0_28], %38 {strides = array<i32>} : memref<1x8x1xf32, #tpu.memory_space<vmem>>, vector<1x8x1xf32>,
    } else {
    }
    return
  }
  func.func @transform_0(%arg0: i32, %arg1: i32) -> (i32, i32, i32) {
    %c0_i32 = arith.constant 0 : i32
    %c0_i32_0 = arith.constant 0 : i32
    %c0_i32_1 = arith.constant 0 : i32
    return %arg0, %c0_i32, %c0_i32_0 : i32, i32, i32
  }
  func.func @transform_1(%arg0: i32, %arg1: i32) -> (i32, i32) {
    %c0_i32 = arith.constant 0 : i32
    %c0_i32_0 = arith.constant 0 : i32
    return %c0_i32, %arg1 : i32, i32
  }
  func.func @transform_2(%arg0: i32, %arg1: i32) -> (i32, i32) {
    %c0_i32 = arith.constant 0 : i32
    %c0_i32_0 = arith.constant 0 : i32
    return %c0_i32, %arg1 : i32, i32
  }
  func.func @transform_3(%arg0: i32, %arg1: i32) -> (i32, i32, i32) {
    %c0_i32 = arith.constant 0 : i32
    %c0_i32_0 = arith.constant 0 : i32
    return %arg0, %c0_i32, %arg1 : i32, i32, i32
  }
  func.func @transform_4(%arg0: i32, %arg1: i32) -> (i32, i32, i32) {
    %c0_i32 = arith.constant 0 : i32
    %c0_i32_0 = arith.constant 0 : i32
    %c0_i32_1 = arith.constant 0 : i32
    return %arg0, %c0_i32, %c0_i32_0 : i32, i32, i32
  }
}

module attributes {stable_mosaic.version = 11 : i64} {
  func.func @_decoder_layer_kernel(%arg0: i32, %arg1: i32, %arg2: memref<1x1x8xf32, #tpu.memory_space<vmem>>, %arg3: memref<1x1x8xf32, #tpu.memory_space<vmem>>, %arg4: memref<1x8x32xbf16, #tpu.memory_space<vmem>>, %arg5: memref<1x8x32xbf16, #tpu.memory_space<vmem>>, %arg6: memref<1x32x96xbf16, #tpu.memory_space<vmem>>, %arg7: memref<1x1x96xf32, #tpu.memory_space<vmem>>, %arg8: memref<1x32x32xbf16, #tpu.memory_space<vmem>>, %arg9: memref<1x1x32xf32, #tpu.memory_space<vmem>>, %arg10: memref<1x32x32xbf16, #tpu.memory_space<vmem>>, %arg11: memref<1x1x32xf32, #tpu.memory_space<vmem>>, %arg12: memref<1x32x64xbf16, #tpu.memory_space<vmem>>, %arg13: memref<1x1x64xf32, #tpu.memory_space<vmem>>, %arg14: memref<1x32x32xbf16, #tpu.memory_space<vmem>>, %arg15: memref<1x1x32xf32, #tpu.memory_space<vmem>>, %arg16: memref<1x1x32xf32, #tpu.memory_space<vmem>>, %arg17: memref<1x1x32xf32, #tpu.memory_space<vmem>>, %arg18: memref<1x32x128xbf16, #tpu.memory_space<vmem>>, %arg19: memref<1x1x128xf32, #tpu.memory_space<vmem>>, %arg20: memref<1x128x32xbf16, #tpu.memory_space<vmem>>, %arg21: memref<1x1x32xf32, #tpu.memory_space<vmem>>, %arg22: memref<1x8x32xbf16, #tpu.memory_space<vmem>>) attributes {dimension_semantics = [#tpu.dimension_semantics<parallel>, #tpu.dimension_semantics<arbitrary>], iteration_bounds = array<i64: 2, 2>, scalar_prefetch = 0 : i64, scratch_operands = 0 : i64, tpu.core_type = #tpu.core_type<tc>, window_params = [{transform_indices = @transform_0, window_bounds = array<i64: 1, 1, 8>}, {transform_indices = @transform_1, window_bounds = array<i64: 1, 1, 8>}, {transform_indices = @transform_2, window_bounds = array<i64: 1, 8, 32>}, {transform_indices = @transform_3, window_bounds = array<i64: 1, 8, 32>}, {transform_indices = @transform_4, window_bounds = array<i64: 1, 32, 96>}, {transform_indices = @transform_5, window_bounds = array<i64: 1, 1, 96>}, {transform_indices = @transform_6, window_bounds = array<i64: 1, 32, 32>}, {transform_indices = @transform_7, window_bounds = array<i64: 1, 1, 32>}, {transform_indices = @transform_8, window_bounds = array<i64: 1, 32, 32>}, {transform_indices = @transform_9, window_bounds = array<i64: 1, 1, 32>}, {transform_indices = @transform_10, window_bounds = array<i64: 1, 32, 64>}, {transform_indices = @transform_11, window_bounds = array<i64: 1, 1, 64>}, {transform_indices = @transform_12, window_bounds = array<i64: 1, 32, 32>}, {transform_indices = @transform_13, window_bounds = array<i64: 1, 1, 32>}, {transform_indices = @transform_14, window_bounds = array<i64: 1, 1, 32>}, {transform_indices = @transform_15, window_bounds = array<i64: 1, 1, 32>}, {transform_indices = @transform_16, window_bounds = array<i64: 1, 32, 128>}, {transform_indices = @transform_17, window_bounds = array<i64: 1, 1, 128>}, {transform_indices = @transform_18, window_bounds = array<i64: 1, 128, 32>}, {transform_indices = @transform_19, window_bounds = array<i64: 1, 1, 32>}, {transform_indices = @transform_20, window_bounds = array<i64: 1, 8, 32>}]} {
    %c0_i32 = arith.constant 0 : i32
    %0 = arith.cmpi eq, %arg1, %c0_i32 : i32
    %1 = arith.extui %0 : i1 to i32
    %c0_i32_0 = arith.constant 0 : i32
    %2 = arith.cmpi ne, %1, %c0_i32_0 : i32
    scf.if %2 {
      %c0_151 = arith.constant 0 : index
      %c0_152 = arith.constant 0 : index
      %c0_153 = arith.constant 0 : index
      %363 = vector.load %arg4[%c0_151, %c0_152, %c0_153] : memref<1x8x32xbf16, #tpu.memory_space<vmem>>, vector<1x8x32xbf16>
      %c0_154 = arith.constant 0 : index
      %c0_155 = arith.constant 0 : index
      %c0_156 = arith.constant 0 : index
      %364 = vector.load %arg22[%c0_154, %c0_155, %c0_156] : memref<1x8x32xbf16, #tpu.memory_space<vmem>>, vector<1x8x32xbf16>
      tpu.vector_store %arg22[%c0_154, %c0_155, %c0_156], %363 {strides = array<i32>} : memref<1x8x32xbf16, #tpu.memory_space<vmem>>, vector<1x8x32xbf16>,
    } else {
    }
    %c0 = arith.constant 0 : index
    %c0_1 = arith.constant 0 : index
    %c0_2 = arith.constant 0 : index
    %3 = vector.load %arg22[%c0, %c0_1, %c0_2] : memref<1x8x32xbf16, #tpu.memory_space<vmem>>, vector<1x8x32xbf16>
    %4 = vector.shape_cast %3 : vector<1x8x32xbf16> to vector<8x32xbf16>
    %c0_3 = arith.constant 0 : index
    %c0_4 = arith.constant 0 : index
    %c0_5 = arith.constant 0 : index
    %5 = vector.load %arg5[%c0_3, %c0_4, %c0_5] : memref<1x8x32xbf16, #tpu.memory_space<vmem>>, vector<1x8x32xbf16>
    %6 = vector.shape_cast %5 : vector<1x8x32xbf16> to vector<8x32xbf16>
    %7 = arith.extf %4 : vector<8x32xbf16> to vector<8x32xf32>
    %c0_6 = arith.constant 0 : index
    %c0_7 = arith.constant 0 : index
    %c0_8 = arith.constant 0 : index
    %8 = vector.load %arg6[%c0_6, %c0_7, %c0_8] : memref<1x32x96xbf16, #tpu.memory_space<vmem>>, vector<1x32x96xbf16>
    %9 = vector.shape_cast %8 : vector<1x32x96xbf16> to vector<32x96xbf16>
    %cst = arith.constant dense<0.000000e+00> : vector<8x96xf32>
    %10 = tpu.matmul %4, %9, %cst {dimension_numbers = #tpu.dot_dimension_numbers<[1], [0], [0], [1], [0, 0, 1, 1], [], []>} : vector<8x32xbf16>, vector<32x96xbf16>, vector<8x96xf32> -> vector<8x96xf32>
    %c0_9 = arith.constant 0 : index
    %c0_10 = arith.constant 0 : index
    %c0_11 = arith.constant 0 : index
    %11 = vector.load %arg7[%c0_9, %c0_10, %c0_11] : memref<1x1x96xf32, #tpu.memory_space<vmem>>, vector<1x1x96xf32>
    %12 = vector.shape_cast %11 : vector<1x1x96xf32> to vector<1x96xf32>
    %13 = vector.broadcast %12 : vector<1x96xf32> to vector<8x96xf32>
    %14 = arith.addf %10, %13 : vector<8x96xf32>
    %15 = vector.extract_strided_slice %14 {offsets = [0, 0], sizes = [8, 32], strides = [1, 1]} : vector<8x96xf32> to vector<8x32xf32>
    %16 = arith.truncf %15 : vector<8x32xf32> to vector<8x32xbf16>
    %17 = vector.extract_strided_slice %14 {offsets = [0, 32], sizes = [8, 32], strides = [1, 1]} : vector<8x96xf32> to vector<8x32xf32>
    %18 = arith.truncf %17 : vector<8x32xf32> to vector<8x32xbf16>
    %19 = vector.extract_strided_slice %14 {offsets = [0, 64], sizes = [8, 32], strides = [1, 1]} : vector<8x96xf32> to vector<8x32xf32>
    %20 = arith.truncf %19 : vector<8x32xf32> to vector<8x32xbf16>
    %21 = tpu.iota {dimensions = array<i32: 0>} : vector<8x8xi32>
    %22 = tpu.iota {dimensions = array<i32: 1>} : vector<8x8xi32>
    %23 = arith.cmpi sgt, %22, %21 : vector<8x8xi32>
    %c0_12 = arith.constant 0 : index
    %c0_13 = arith.constant 0 : index
    %c0_14 = arith.constant 0 : index
    %24 = vector.load %arg2[%c0_12, %c0_13, %c0_14] : memref<1x1x8xf32, #tpu.memory_space<vmem>>, vector<1x1x8xf32>
    %25 = vector.shape_cast %24 : vector<1x1x8xf32> to vector<1x8xf32>
    %cst_15 = arith.constant 0.000000e+00 : f32
    %26 = vector.broadcast %cst_15 : f32 to vector<1x8xf32>
    %27 = arith.cmpf ogt, %25, %26 : vector<1x8xf32>
    %28 = vector.broadcast %27 : vector<1x8xi1> to vector<8x8xi1>
    %29 = arith.ori %23, %28 : vector<8x8xi1>
    %cst_16 = arith.constant -1.000000e+09 : f32
    %cst_17 = arith.constant 0.000000e+00 : f32
    %30 = vector.broadcast %cst_16 : f32 to vector<8x8xf32>
    %31 = vector.broadcast %cst_17 : f32 to vector<8x8xf32>
    %32 = arith.select %29, %30, %31 : vector<8x8xi1>, vector<8x8xf32>
    %c0_18 = arith.constant 0 : index
    %c0_19 = arith.constant 0 : index
    %c0_20 = arith.constant 0 : index
    %33 = vector.load %arg8[%c0_18, %c0_19, %c0_20] : memref<1x32x32xbf16, #tpu.memory_space<vmem>>, vector<1x32x32xbf16>
    %34 = vector.shape_cast %33 : vector<1x32x32xbf16> to vector<32x32xbf16>
    %cst_21 = arith.constant 0.000000e+00 : f32
    %35 = vector.broadcast %cst_21 : f32 to vector<8x32xf32>
    %36 = vector.extract_strided_slice %16 {offsets = [0, 0], sizes = [8, 8], strides = [1, 1]} : vector<8x32xbf16> to vector<8x8xbf16>
    %37 = vector.extract_strided_slice %18 {offsets = [0, 0], sizes = [8, 8], strides = [1, 1]} : vector<8x32xbf16> to vector<8x8xbf16>
    %cst_22 = arith.constant dense<0.000000e+00> : vector<8x8xf32>
    %38 = tpu.matmul %36, %37, %cst_22 {dimension_numbers = #tpu.dot_dimension_numbers<[1], [1], [0], [0], [0, 0, 1, 0], [], []>} : vector<8x8xbf16>, vector<8x8xbf16>, vector<8x8xf32> -> vector<8x8xf32>
    %cst_23 = arith.constant 0.353553385 : f32
    %39 = vector.broadcast %cst_23 : f32 to vector<8x8xf32>
    %40 = arith.mulf %38, %39 : vector<8x8xf32>
    %41 = arith.addf %40, %32 : vector<8x8xf32>
    %cst_24 = arith.constant dense<0xFF800000> : vector<8xf32>
    %42 = vector.multi_reduction <maximumf>, %41, %cst_24 [1] : vector<8x8xf32> to vector<8xf32>
    %43 = vector.shape_cast %42 : vector<8xf32> to vector<8x1xf32>
    %44 = vector.broadcast %43 : vector<8x1xf32> to vector<8x8xf32>
    %45 = arith.subf %41, %44 : vector<8x8xf32>
    %46 = math.exp %45 : vector<8x8xf32>
    %cst_25 = arith.constant dense<0.000000e+00> : vector<8xf32>
    %47 = vector.multi_reduction <add>, %46, %cst_25 [1] : vector<8x8xf32> to vector<8xf32>
    %48 = vector.shape_cast %47 : vector<8xf32> to vector<8x1xf32>
    %49 = tpu.reciprocal %48 {approx = true} : vector<8x1xf32> -> vector<8x1xf32>
    %50 = vector.broadcast %49 : vector<8x1xf32> to vector<8x8xf32>
    %51 = arith.mulf %46, %50 : vector<8x8xf32>
    %52 = arith.truncf %51 : vector<8x8xf32> to vector<8x8xbf16>
    %53 = vector.extract_strided_slice %20 {offsets = [0, 0], sizes = [8, 8], strides = [1, 1]} : vector<8x32xbf16> to vector<8x8xbf16>
    %cst_26 = arith.constant dense<0.000000e+00> : vector<8x8xf32>
    %54 = tpu.matmul %52, %53, %cst_26 {dimension_numbers = #tpu.dot_dimension_numbers<[1], [0], [0], [1], [0, 0, 1, 1], [], []>} : vector<8x8xbf16>, vector<8x8xbf16>, vector<8x8xf32> -> vector<8x8xf32>
    %55 = arith.truncf %54 : vector<8x8xf32> to vector<8x8xbf16>
    %56 = vector.extract_strided_slice %34 {offsets = [0, 0], sizes = [8, 32], strides = [1, 1]} : vector<32x32xbf16> to vector<8x32xbf16>
    %cst_27 = arith.constant dense<0.000000e+00> : vector<8x32xf32>
    %57 = tpu.matmul %55, %56, %cst_27 {dimension_numbers = #tpu.dot_dimension_numbers<[1], [0], [0], [1], [0, 0, 1, 1], [], []>} : vector<8x8xbf16>, vector<8x32xbf16>, vector<8x32xf32> -> vector<8x32xf32>
    %58 = arith.addf %35, %57 : vector<8x32xf32>
    %59 = vector.extract_strided_slice %16 {offsets = [0, 8], sizes = [8, 8], strides = [1, 1]} : vector<8x32xbf16> to vector<8x8xbf16>
    %60 = vector.extract_strided_slice %18 {offsets = [0, 8], sizes = [8, 8], strides = [1, 1]} : vector<8x32xbf16> to vector<8x8xbf16>
    %cst_28 = arith.constant dense<0.000000e+00> : vector<8x8xf32>
    %61 = tpu.matmul %59, %60, %cst_28 {dimension_numbers = #tpu.dot_dimension_numbers<[1], [1], [0], [0], [0, 0, 1, 0], [], []>} : vector<8x8xbf16>, vector<8x8xbf16>, vector<8x8xf32> -> vector<8x8xf32>
    %cst_29 = arith.constant 0.353553385 : f32
    %62 = vector.broadcast %cst_29 : f32 to vector<8x8xf32>
    %63 = arith.mulf %61, %62 : vector<8x8xf32>
    %64 = arith.addf %63, %32 : vector<8x8xf32>
    %cst_30 = arith.constant dense<0xFF800000> : vector<8xf32>
    %65 = vector.multi_reduction <maximumf>, %64, %cst_30 [1] : vector<8x8xf32> to vector<8xf32>
    %66 = vector.shape_cast %65 : vector<8xf32> to vector<8x1xf32>
    %67 = vector.broadcast %66 : vector<8x1xf32> to vector<8x8xf32>
    %68 = arith.subf %64, %67 : vector<8x8xf32>
    %69 = math.exp %68 : vector<8x8xf32>
    %cst_31 = arith.constant dense<0.000000e+00> : vector<8xf32>
    %70 = vector.multi_reduction <add>, %69, %cst_31 [1] : vector<8x8xf32> to vector<8xf32>
    %71 = vector.shape_cast %70 : vector<8xf32> to vector<8x1xf32>
    %72 = tpu.reciprocal %71 {approx = true} : vector<8x1xf32> -> vector<8x1xf32>
    %73 = vector.broadcast %72 : vector<8x1xf32> to vector<8x8xf32>
    %74 = arith.mulf %69, %73 : vector<8x8xf32>
    %75 = arith.truncf %74 : vector<8x8xf32> to vector<8x8xbf16>
    %76 = vector.extract_strided_slice %20 {offsets = [0, 8], sizes = [8, 8], strides = [1, 1]} : vector<8x32xbf16> to vector<8x8xbf16>
    %cst_32 = arith.constant dense<0.000000e+00> : vector<8x8xf32>
    %77 = tpu.matmul %75, %76, %cst_32 {dimension_numbers = #tpu.dot_dimension_numbers<[1], [0], [0], [1], [0, 0, 1, 1], [], []>} : vector<8x8xbf16>, vector<8x8xbf16>, vector<8x8xf32> -> vector<8x8xf32>
    %78 = arith.truncf %77 : vector<8x8xf32> to vector<8x8xbf16>
    %79 = vector.extract_strided_slice %34 {offsets = [8, 0], sizes = [8, 32], strides = [1, 1]} : vector<32x32xbf16> to vector<8x32xbf16>
    %cst_33 = arith.constant dense<0.000000e+00> : vector<8x32xf32>
    %80 = tpu.matmul %78, %79, %cst_33 {dimension_numbers = #tpu.dot_dimension_numbers<[1], [0], [0], [1], [0, 0, 1, 1], [], []>} : vector<8x8xbf16>, vector<8x32xbf16>, vector<8x32xf32> -> vector<8x32xf32>
    %81 = arith.addf %58, %80 : vector<8x32xf32>
    %82 = vector.extract_strided_slice %16 {offsets = [0, 16], sizes = [8, 8], strides = [1, 1]} : vector<8x32xbf16> to vector<8x8xbf16>
    %83 = vector.extract_strided_slice %18 {offsets = [0, 16], sizes = [8, 8], strides = [1, 1]} : vector<8x32xbf16> to vector<8x8xbf16>
    %cst_34 = arith.constant dense<0.000000e+00> : vector<8x8xf32>
    %84 = tpu.matmul %82, %83, %cst_34 {dimension_numbers = #tpu.dot_dimension_numbers<[1], [1], [0], [0], [0, 0, 1, 0], [], []>} : vector<8x8xbf16>, vector<8x8xbf16>, vector<8x8xf32> -> vector<8x8xf32>
    %cst_35 = arith.constant 0.353553385 : f32
    %85 = vector.broadcast %cst_35 : f32 to vector<8x8xf32>
    %86 = arith.mulf %84, %85 : vector<8x8xf32>
    %87 = arith.addf %86, %32 : vector<8x8xf32>
    %cst_36 = arith.constant dense<0xFF800000> : vector<8xf32>
    %88 = vector.multi_reduction <maximumf>, %87, %cst_36 [1] : vector<8x8xf32> to vector<8xf32>
    %89 = vector.shape_cast %88 : vector<8xf32> to vector<8x1xf32>
    %90 = vector.broadcast %89 : vector<8x1xf32> to vector<8x8xf32>
    %91 = arith.subf %87, %90 : vector<8x8xf32>
    %92 = math.exp %91 : vector<8x8xf32>
    %cst_37 = arith.constant dense<0.000000e+00> : vector<8xf32>
    %93 = vector.multi_reduction <add>, %92, %cst_37 [1] : vector<8x8xf32> to vector<8xf32>
    %94 = vector.shape_cast %93 : vector<8xf32> to vector<8x1xf32>
    %95 = tpu.reciprocal %94 {approx = true} : vector<8x1xf32> -> vector<8x1xf32>
    %96 = vector.broadcast %95 : vector<8x1xf32> to vector<8x8xf32>
    %97 = arith.mulf %92, %96 : vector<8x8xf32>
    %98 = arith.truncf %97 : vector<8x8xf32> to vector<8x8xbf16>
    %99 = vector.extract_strided_slice %20 {offsets = [0, 16], sizes = [8, 8], strides = [1, 1]} : vector<8x32xbf16> to vector<8x8xbf16>
    %cst_38 = arith.constant dense<0.000000e+00> : vector<8x8xf32>
    %100 = tpu.matmul %98, %99, %cst_38 {dimension_numbers = #tpu.dot_dimension_numbers<[1], [0], [0], [1], [0, 0, 1, 1], [], []>} : vector<8x8xbf16>, vector<8x8xbf16>, vector<8x8xf32> -> vector<8x8xf32>
    %101 = arith.truncf %100 : vector<8x8xf32> to vector<8x8xbf16>
    %102 = vector.extract_strided_slice %34 {offsets = [16, 0], sizes = [8, 32], strides = [1, 1]} : vector<32x32xbf16> to vector<8x32xbf16>
    %cst_39 = arith.constant dense<0.000000e+00> : vector<8x32xf32>
    %103 = tpu.matmul %101, %102, %cst_39 {dimension_numbers = #tpu.dot_dimension_numbers<[1], [0], [0], [1], [0, 0, 1, 1], [], []>} : vector<8x8xbf16>, vector<8x32xbf16>, vector<8x32xf32> -> vector<8x32xf32>
    %104 = arith.addf %81, %103 : vector<8x32xf32>
    %105 = vector.extract_strided_slice %16 {offsets = [0, 24], sizes = [8, 8], strides = [1, 1]} : vector<8x32xbf16> to vector<8x8xbf16>
    %106 = vector.extract_strided_slice %18 {offsets = [0, 24], sizes = [8, 8], strides = [1, 1]} : vector<8x32xbf16> to vector<8x8xbf16>
    %cst_40 = arith.constant dense<0.000000e+00> : vector<8x8xf32>
    %107 = tpu.matmul %105, %106, %cst_40 {dimension_numbers = #tpu.dot_dimension_numbers<[1], [1], [0], [0], [0, 0, 1, 0], [], []>} : vector<8x8xbf16>, vector<8x8xbf16>, vector<8x8xf32> -> vector<8x8xf32>
    %cst_41 = arith.constant 0.353553385 : f32
    %108 = vector.broadcast %cst_41 : f32 to vector<8x8xf32>
    %109 = arith.mulf %107, %108 : vector<8x8xf32>
    %110 = arith.addf %109, %32 : vector<8x8xf32>
    %cst_42 = arith.constant dense<0xFF800000> : vector<8xf32>
    %111 = vector.multi_reduction <maximumf>, %110, %cst_42 [1] : vector<8x8xf32> to vector<8xf32>
    %112 = vector.shape_cast %111 : vector<8xf32> to vector<8x1xf32>
    %113 = vector.broadcast %112 : vector<8x1xf32> to vector<8x8xf32>
    %114 = arith.subf %110, %113 : vector<8x8xf32>
    %115 = math.exp %114 : vector<8x8xf32>
    %cst_43 = arith.constant dense<0.000000e+00> : vector<8xf32>
    %116 = vector.multi_reduction <add>, %115, %cst_43 [1] : vector<8x8xf32> to vector<8xf32>
    %117 = vector.shape_cast %116 : vector<8xf32> to vector<8x1xf32>
    %118 = tpu.reciprocal %117 {approx = true} : vector<8x1xf32> -> vector<8x1xf32>
    %119 = vector.broadcast %118 : vector<8x1xf32> to vector<8x8xf32>
    %120 = arith.mulf %115, %119 : vector<8x8xf32>
    %121 = arith.truncf %120 : vector<8x8xf32> to vector<8x8xbf16>
    %122 = vector.extract_strided_slice %20 {offsets = [0, 24], sizes = [8, 8], strides = [1, 1]} : vector<8x32xbf16> to vector<8x8xbf16>
    %cst_44 = arith.constant dense<0.000000e+00> : vector<8x8xf32>
    %123 = tpu.matmul %121, %122, %cst_44 {dimension_numbers = #tpu.dot_dimension_numbers<[1], [0], [0], [1], [0, 0, 1, 1], [], []>} : vector<8x8xbf16>, vector<8x8xbf16>, vector<8x8xf32> -> vector<8x8xf32>
    %124 = arith.truncf %123 : vector<8x8xf32> to vector<8x8xbf16>
    %125 = vector.extract_strided_slice %34 {offsets = [24, 0], sizes = [8, 32], strides = [1, 1]} : vector<32x32xbf16> to vector<8x32xbf16>
    %cst_45 = arith.constant dense<0.000000e+00> : vector<8x32xf32>
    %126 = tpu.matmul %124, %125, %cst_45 {dimension_numbers = #tpu.dot_dimension_numbers<[1], [0], [0], [1], [0, 0, 1, 1], [], []>} : vector<8x8xbf16>, vector<8x32xbf16>, vector<8x32xf32> -> vector<8x32xf32>
    %127 = arith.addf %104, %126 : vector<8x32xf32>
    %c0_46 = arith.constant 0 : index
    %c0_47 = arith.constant 0 : index
    %c0_48 = arith.constant 0 : index
    %128 = vector.load %arg9[%c0_46, %c0_47, %c0_48] : memref<1x1x32xf32, #tpu.memory_space<vmem>>, vector<1x1x32xf32>
    %129 = vector.shape_cast %128 : vector<1x1x32xf32> to vector<1x32xf32>
    %130 = vector.broadcast %129 : vector<1x32xf32> to vector<8x32xf32>
    %131 = arith.addf %127, %130 : vector<8x32xf32>
    %c0_49 = arith.constant 0 : index
    %c0_50 = arith.constant 0 : index
    %c0_51 = arith.constant 0 : index
    %132 = vector.load %arg16[%c0_49, %c0_50, %c0_51] : memref<1x1x32xf32, #tpu.memory_space<vmem>>, vector<1x1x32xf32>
    %133 = vector.shape_cast %132 : vector<1x1x32xf32> to vector<1x32xf32>
    %c0_52 = arith.constant 0 : index
    %c0_53 = arith.constant 0 : index
    %c0_54 = arith.constant 0 : index
    %134 = vector.load %arg17[%c0_52, %c0_53, %c0_54] : memref<1x1x32xf32, #tpu.memory_space<vmem>>, vector<1x1x32xf32>
    %135 = vector.shape_cast %134 : vector<1x1x32xf32> to vector<1x32xf32>
    %136 = arith.addf %131, %7 : vector<8x32xf32>
    %cst_55 = arith.constant dense<0.000000e+00> : vector<8xf32>
    %137 = vector.multi_reduction <add>, %136, %cst_55 [1] : vector<8x32xf32> to vector<8xf32>
    %138 = vector.shape_cast %137 : vector<8xf32> to vector<8x1xf32>
    %cst_56 = arith.constant 3.200000e+01 : f32
    %139 = vector.broadcast %cst_56 : f32 to vector<8x1xf32>
    %140 = arith.divf %138, %139 : vector<8x1xf32>
    %141 = vector.broadcast %140 : vector<8x1xf32> to vector<8x32xf32>
    %142 = arith.subf %136, %141 : vector<8x32xf32>
    %143 = arith.mulf %142, %142 : vector<8x32xf32>
    %cst_57 = arith.constant dense<0.000000e+00> : vector<8xf32>
    %144 = vector.multi_reduction <add>, %143, %cst_57 [1] : vector<8x32xf32> to vector<8xf32>
    %145 = vector.shape_cast %144 : vector<8xf32> to vector<8x1xf32>
    %cst_58 = arith.constant 3.200000e+01 : f32
    %146 = vector.broadcast %cst_58 : f32 to vector<8x1xf32>
    %147 = arith.divf %145, %146 : vector<8x1xf32>
    %148 = vector.broadcast %140 : vector<8x1xf32> to vector<8x32xf32>
    %149 = arith.subf %136, %148 : vector<8x32xf32>
    %cst_59 = arith.constant 9.99999974E-6 : f32
    %150 = vector.broadcast %cst_59 : f32 to vector<8x1xf32>
    %151 = arith.addf %147, %150 : vector<8x1xf32>
    %152 = math.rsqrt %151 : vector<8x1xf32>
    %153 = vector.broadcast %152 : vector<8x1xf32> to vector<8x32xf32>
    %154 = arith.mulf %149, %153 : vector<8x32xf32>
    %155 = vector.broadcast %133 : vector<1x32xf32> to vector<8x32xf32>
    %156 = arith.mulf %154, %155 : vector<8x32xf32>
    %157 = vector.broadcast %135 : vector<1x32xf32> to vector<8x32xf32>
    %158 = arith.addf %156, %157 : vector<8x32xf32>
    %159 = arith.truncf %158 : vector<8x32xf32> to vector<8x32xbf16>
    %c0_60 = arith.constant 0 : index
    %c0_61 = arith.constant 0 : index
    %c0_62 = arith.constant 0 : index
    %160 = vector.load %arg10[%c0_60, %c0_61, %c0_62] : memref<1x32x32xbf16, #tpu.memory_space<vmem>>, vector<1x32x32xbf16>
    %161 = vector.shape_cast %160 : vector<1x32x32xbf16> to vector<32x32xbf16>
    %cst_63 = arith.constant dense<0.000000e+00> : vector<8x32xf32>
    %162 = tpu.matmul %159, %161, %cst_63 {dimension_numbers = #tpu.dot_dimension_numbers<[1], [0], [0], [1], [0, 0, 1, 1], [], []>} : vector<8x32xbf16>, vector<32x32xbf16>, vector<8x32xf32> -> vector<8x32xf32>
    %c0_64 = arith.constant 0 : index
    %c0_65 = arith.constant 0 : index
    %c0_66 = arith.constant 0 : index
    %163 = vector.load %arg11[%c0_64, %c0_65, %c0_66] : memref<1x1x32xf32, #tpu.memory_space<vmem>>, vector<1x1x32xf32>
    %164 = vector.shape_cast %163 : vector<1x1x32xf32> to vector<1x32xf32>
    %165 = vector.broadcast %164 : vector<1x32xf32> to vector<8x32xf32>
    %166 = arith.addf %162, %165 : vector<8x32xf32>
    %167 = arith.truncf %166 : vector<8x32xf32> to vector<8x32xbf16>
    %c0_67 = arith.constant 0 : index
    %c0_68 = arith.constant 0 : index
    %c0_69 = arith.constant 0 : index
    %168 = vector.load %arg12[%c0_67, %c0_68, %c0_69] : memref<1x32x64xbf16, #tpu.memory_space<vmem>>, vector<1x32x64xbf16>
    %169 = vector.shape_cast %168 : vector<1x32x64xbf16> to vector<32x64xbf16>
    %cst_70 = arith.constant dense<0.000000e+00> : vector<8x64xf32>
    %170 = tpu.matmul %6, %169, %cst_70 {dimension_numbers = #tpu.dot_dimension_numbers<[1], [0], [0], [1], [0, 0, 1, 1], [], []>} : vector<8x32xbf16>, vector<32x64xbf16>, vector<8x64xf32> -> vector<8x64xf32>
    %c0_71 = arith.constant 0 : index
    %c0_72 = arith.constant 0 : index
    %c0_73 = arith.constant 0 : index
    %171 = vector.load %arg13[%c0_71, %c0_72, %c0_73] : memref<1x1x64xf32, #tpu.memory_space<vmem>>, vector<1x1x64xf32>
    %172 = vector.shape_cast %171 : vector<1x1x64xf32> to vector<1x64xf32>
    %173 = vector.broadcast %172 : vector<1x64xf32> to vector<8x64xf32>
    %174 = arith.addf %170, %173 : vector<8x64xf32>
    %175 = vector.extract_strided_slice %174 {offsets = [0, 0], sizes = [8, 32], strides = [1, 1]} : vector<8x64xf32> to vector<8x32xf32>
    %176 = arith.truncf %175 : vector<8x32xf32> to vector<8x32xbf16>
    %177 = vector.extract_strided_slice %174 {offsets = [0, 32], sizes = [8, 32], strides = [1, 1]} : vector<8x64xf32> to vector<8x32xf32>
    %178 = arith.truncf %177 : vector<8x32xf32> to vector<8x32xbf16>
    %c0_74 = arith.constant 0 : index
    %c0_75 = arith.constant 0 : index
    %c0_76 = arith.constant 0 : index
    %179 = vector.load %arg3[%c0_74, %c0_75, %c0_76] : memref<1x1x8xf32, #tpu.memory_space<vmem>>, vector<1x1x8xf32>
    %180 = vector.shape_cast %179 : vector<1x1x8xf32> to vector<1x8xf32>
    %cst_77 = arith.constant 0.000000e+00 : f32
    %181 = vector.broadcast %cst_77 : f32 to vector<1x8xf32>
    %182 = arith.cmpf ogt, %180, %181 : vector<1x8xf32>
    %cst_78 = arith.constant -1.000000e+09 : f32
    %cst_79 = arith.constant 0.000000e+00 : f32
    %183 = vector.broadcast %cst_78 : f32 to vector<1x8xf32>
    %184 = vector.broadcast %cst_79 : f32 to vector<1x8xf32>
    %185 = arith.select %182, %183, %184 : vector<1x8xi1>, vector<1x8xf32>
    %186 = vector.shape_cast %185 : vector<1x8xf32> to vector<1x8xf32>
    %187 = vector.broadcast %186 : vector<1x8xf32> to vector<8x8xf32>
    %c0_80 = arith.constant 0 : index
    %c0_81 = arith.constant 0 : index
    %c0_82 = arith.constant 0 : index
    %188 = vector.load %arg14[%c0_80, %c0_81, %c0_82] : memref<1x32x32xbf16, #tpu.memory_space<vmem>>, vector<1x32x32xbf16>
    %189 = vector.shape_cast %188 : vector<1x32x32xbf16> to vector<32x32xbf16>
    %cst_83 = arith.constant 0.000000e+00 : f32
    %190 = vector.broadcast %cst_83 : f32 to vector<8x32xf32>
    %191 = vector.extract_strided_slice %167 {offsets = [0, 0], sizes = [8, 8], strides = [1, 1]} : vector<8x32xbf16> to vector<8x8xbf16>
    %192 = vector.extract_strided_slice %176 {offsets = [0, 0], sizes = [8, 8], strides = [1, 1]} : vector<8x32xbf16> to vector<8x8xbf16>
    %cst_84 = arith.constant dense<0.000000e+00> : vector<8x8xf32>
    %193 = tpu.matmul %191, %192, %cst_84 {dimension_numbers = #tpu.dot_dimension_numbers<[1], [1], [0], [0], [0, 0, 1, 0], [], []>} : vector<8x8xbf16>, vector<8x8xbf16>, vector<8x8xf32> -> vector<8x8xf32>
    %cst_85 = arith.constant 0.353553385 : f32
    %194 = vector.broadcast %cst_85 : f32 to vector<8x8xf32>
    %195 = arith.mulf %193, %194 : vector<8x8xf32>
    %196 = arith.addf %195, %187 : vector<8x8xf32>
    %cst_86 = arith.constant dense<0xFF800000> : vector<8xf32>
    %197 = vector.multi_reduction <maximumf>, %196, %cst_86 [1] : vector<8x8xf32> to vector<8xf32>
    %198 = vector.shape_cast %197 : vector<8xf32> to vector<8x1xf32>
    %199 = vector.broadcast %198 : vector<8x1xf32> to vector<8x8xf32>
    %200 = arith.subf %196, %199 : vector<8x8xf32>
    %201 = math.exp %200 : vector<8x8xf32>
    %cst_87 = arith.constant dense<0.000000e+00> : vector<8xf32>
    %202 = vector.multi_reduction <add>, %201, %cst_87 [1] : vector<8x8xf32> to vector<8xf32>
    %203 = vector.shape_cast %202 : vector<8xf32> to vector<8x1xf32>
    %204 = tpu.reciprocal %203 {approx = true} : vector<8x1xf32> -> vector<8x1xf32>
    %205 = vector.broadcast %204 : vector<8x1xf32> to vector<8x8xf32>
    %206 = arith.mulf %201, %205 : vector<8x8xf32>
    %207 = arith.truncf %206 : vector<8x8xf32> to vector<8x8xbf16>
    %208 = vector.extract_strided_slice %178 {offsets = [0, 0], sizes = [8, 8], strides = [1, 1]} : vector<8x32xbf16> to vector<8x8xbf16>
    %cst_88 = arith.constant dense<0.000000e+00> : vector<8x8xf32>
    %209 = tpu.matmul %207, %208, %cst_88 {dimension_numbers = #tpu.dot_dimension_numbers<[1], [0], [0], [1], [0, 0, 1, 1], [], []>} : vector<8x8xbf16>, vector<8x8xbf16>, vector<8x8xf32> -> vector<8x8xf32>
    %210 = arith.truncf %209 : vector<8x8xf32> to vector<8x8xbf16>
    %211 = vector.extract_strided_slice %189 {offsets = [0, 0], sizes = [8, 32], strides = [1, 1]} : vector<32x32xbf16> to vector<8x32xbf16>
    %cst_89 = arith.constant dense<0.000000e+00> : vector<8x32xf32>
    %212 = tpu.matmul %210, %211, %cst_89 {dimension_numbers = #tpu.dot_dimension_numbers<[1], [0], [0], [1], [0, 0, 1, 1], [], []>} : vector<8x8xbf16>, vector<8x32xbf16>, vector<8x32xf32> -> vector<8x32xf32>
    %213 = arith.addf %190, %212 : vector<8x32xf32>
    %214 = vector.extract_strided_slice %167 {offsets = [0, 8], sizes = [8, 8], strides = [1, 1]} : vector<8x32xbf16> to vector<8x8xbf16>
    %215 = vector.extract_strided_slice %176 {offsets = [0, 8], sizes = [8, 8], strides = [1, 1]} : vector<8x32xbf16> to vector<8x8xbf16>
    %cst_90 = arith.constant dense<0.000000e+00> : vector<8x8xf32>
    %216 = tpu.matmul %214, %215, %cst_90 {dimension_numbers = #tpu.dot_dimension_numbers<[1], [1], [0], [0], [0, 0, 1, 0], [], []>} : vector<8x8xbf16>, vector<8x8xbf16>, vector<8x8xf32> -> vector<8x8xf32>
    %cst_91 = arith.constant 0.353553385 : f32
    %217 = vector.broadcast %cst_91 : f32 to vector<8x8xf32>
    %218 = arith.mulf %216, %217 : vector<8x8xf32>
    %219 = arith.addf %218, %187 : vector<8x8xf32>
    %cst_92 = arith.constant dense<0xFF800000> : vector<8xf32>
    %220 = vector.multi_reduction <maximumf>, %219, %cst_92 [1] : vector<8x8xf32> to vector<8xf32>
    %221 = vector.shape_cast %220 : vector<8xf32> to vector<8x1xf32>
    %222 = vector.broadcast %221 : vector<8x1xf32> to vector<8x8xf32>
    %223 = arith.subf %219, %222 : vector<8x8xf32>
    %224 = math.exp %223 : vector<8x8xf32>
    %cst_93 = arith.constant dense<0.000000e+00> : vector<8xf32>
    %225 = vector.multi_reduction <add>, %224, %cst_93 [1] : vector<8x8xf32> to vector<8xf32>
    %226 = vector.shape_cast %225 : vector<8xf32> to vector<8x1xf32>
    %227 = tpu.reciprocal %226 {approx = true} : vector<8x1xf32> -> vector<8x1xf32>
    %228 = vector.broadcast %227 : vector<8x1xf32> to vector<8x8xf32>
    %229 = arith.mulf %224, %228 : vector<8x8xf32>
    %230 = arith.truncf %229 : vector<8x8xf32> to vector<8x8xbf16>
    %231 = vector.extract_strided_slice %178 {offsets = [0, 8], sizes = [8, 8], strides = [1, 1]} : vector<8x32xbf16> to vector<8x8xbf16>
    %cst_94 = arith.constant dense<0.000000e+00> : vector<8x8xf32>
    %232 = tpu.matmul %230, %231, %cst_94 {dimension_numbers = #tpu.dot_dimension_numbers<[1], [0], [0], [1], [0, 0, 1, 1], [], []>} : vector<8x8xbf16>, vector<8x8xbf16>, vector<8x8xf32> -> vector<8x8xf32>
    %233 = arith.truncf %232 : vector<8x8xf32> to vector<8x8xbf16>
    %234 = vector.extract_strided_slice %189 {offsets = [8, 0], sizes = [8, 32], strides = [1, 1]} : vector<32x32xbf16> to vector<8x32xbf16>
    %cst_95 = arith.constant dense<0.000000e+00> : vector<8x32xf32>
    %235 = tpu.matmul %233, %234, %cst_95 {dimension_numbers = #tpu.dot_dimension_numbers<[1], [0], [0], [1], [0, 0, 1, 1], [], []>} : vector<8x8xbf16>, vector<8x32xbf16>, vector<8x32xf32> -> vector<8x32xf32>
    %236 = arith.addf %213, %235 : vector<8x32xf32>
    %237 = vector.extract_strided_slice %167 {offsets = [0, 16], sizes = [8, 8], strides = [1, 1]} : vector<8x32xbf16> to vector<8x8xbf16>
    %238 = vector.extract_strided_slice %176 {offsets = [0, 16], sizes = [8, 8], strides = [1, 1]} : vector<8x32xbf16> to vector<8x8xbf16>
    %cst_96 = arith.constant dense<0.000000e+00> : vector<8x8xf32>
    %239 = tpu.matmul %237, %238, %cst_96 {dimension_numbers = #tpu.dot_dimension_numbers<[1], [1], [0], [0], [0, 0, 1, 0], [], []>} : vector<8x8xbf16>, vector<8x8xbf16>, vector<8x8xf32> -> vector<8x8xf32>
    %cst_97 = arith.constant 0.353553385 : f32
    %240 = vector.broadcast %cst_97 : f32 to vector<8x8xf32>
    %241 = arith.mulf %239, %240 : vector<8x8xf32>
    %242 = arith.addf %241, %187 : vector<8x8xf32>
    %cst_98 = arith.constant dense<0xFF800000> : vector<8xf32>
    %243 = vector.multi_reduction <maximumf>, %242, %cst_98 [1] : vector<8x8xf32> to vector<8xf32>
    %244 = vector.shape_cast %243 : vector<8xf32> to vector<8x1xf32>
    %245 = vector.broadcast %244 : vector<8x1xf32> to vector<8x8xf32>
    %246 = arith.subf %242, %245 : vector<8x8xf32>
    %247 = math.exp %246 : vector<8x8xf32>
    %cst_99 = arith.constant dense<0.000000e+00> : vector<8xf32>
    %248 = vector.multi_reduction <add>, %247, %cst_99 [1] : vector<8x8xf32> to vector<8xf32>
    %249 = vector.shape_cast %248 : vector<8xf32> to vector<8x1xf32>
    %250 = tpu.reciprocal %249 {approx = true} : vector<8x1xf32> -> vector<8x1xf32>
    %251 = vector.broadcast %250 : vector<8x1xf32> to vector<8x8xf32>
    %252 = arith.mulf %247, %251 : vector<8x8xf32>
    %253 = arith.truncf %252 : vector<8x8xf32> to vector<8x8xbf16>
    %254 = vector.extract_strided_slice %178 {offsets = [0, 16], sizes = [8, 8], strides = [1, 1]} : vector<8x32xbf16> to vector<8x8xbf16>
    %cst_100 = arith.constant dense<0.000000e+00> : vector<8x8xf32>
    %255 = tpu.matmul %253, %254, %cst_100 {dimension_numbers = #tpu.dot_dimension_numbers<[1], [0], [0], [1], [0, 0, 1, 1], [], []>} : vector<8x8xbf16>, vector<8x8xbf16>, vector<8x8xf32> -> vector<8x8xf32>
    %256 = arith.truncf %255 : vector<8x8xf32> to vector<8x8xbf16>
    %257 = vector.extract_strided_slice %189 {offsets = [16, 0], sizes = [8, 32], strides = [1, 1]} : vector<32x32xbf16> to vector<8x32xbf16>
    %cst_101 = arith.constant dense<0.000000e+00> : vector<8x32xf32>
    %258 = tpu.matmul %256, %257, %cst_101 {dimension_numbers = #tpu.dot_dimension_numbers<[1], [0], [0], [1], [0, 0, 1, 1], [], []>} : vector<8x8xbf16>, vector<8x32xbf16>, vector<8x32xf32> -> vector<8x32xf32>
    %259 = arith.addf %236, %258 : vector<8x32xf32>
    %260 = vector.extract_strided_slice %167 {offsets = [0, 24], sizes = [8, 8], strides = [1, 1]} : vector<8x32xbf16> to vector<8x8xbf16>
    %261 = vector.extract_strided_slice %176 {offsets = [0, 24], sizes = [8, 8], strides = [1, 1]} : vector<8x32xbf16> to vector<8x8xbf16>
    %cst_102 = arith.constant dense<0.000000e+00> : vector<8x8xf32>
    %262 = tpu.matmul %260, %261, %cst_102 {dimension_numbers = #tpu.dot_dimension_numbers<[1], [1], [0], [0], [0, 0, 1, 0], [], []>} : vector<8x8xbf16>, vector<8x8xbf16>, vector<8x8xf32> -> vector<8x8xf32>
    %cst_103 = arith.constant 0.353553385 : f32
    %263 = vector.broadcast %cst_103 : f32 to vector<8x8xf32>
    %264 = arith.mulf %262, %263 : vector<8x8xf32>
    %265 = arith.addf %264, %187 : vector<8x8xf32>
    %cst_104 = arith.constant dense<0xFF800000> : vector<8xf32>
    %266 = vector.multi_reduction <maximumf>, %265, %cst_104 [1] : vector<8x8xf32> to vector<8xf32>
    %267 = vector.shape_cast %266 : vector<8xf32> to vector<8x1xf32>
    %268 = vector.broadcast %267 : vector<8x1xf32> to vector<8x8xf32>
    %269 = arith.subf %265, %268 : vector<8x8xf32>
    %270 = math.exp %269 : vector<8x8xf32>
    %cst_105 = arith.constant dense<0.000000e+00> : vector<8xf32>
    %271 = vector.multi_reduction <add>, %270, %cst_105 [1] : vector<8x8xf32> to vector<8xf32>
    %272 = vector.shape_cast %271 : vector<8xf32> to vector<8x1xf32>
    %273 = tpu.reciprocal %272 {approx = true} : vector<8x1xf32> -> vector<8x1xf32>
    %274 = vector.broadcast %273 : vector<8x1xf32> to vector<8x8xf32>
    %275 = arith.mulf %270, %274 : vector<8x8xf32>
    %276 = arith.truncf %275 : vector<8x8xf32> to vector<8x8xbf16>
    %277 = vector.extract_strided_slice %178 {offsets = [0, 24], sizes = [8, 8], strides = [1, 1]} : vector<8x32xbf16> to vector<8x8xbf16>
    %cst_106 = arith.constant dense<0.000000e+00> : vector<8x8xf32>
    %278 = tpu.matmul %276, %277, %cst_106 {dimension_numbers = #tpu.dot_dimension_numbers<[1], [0], [0], [1], [0, 0, 1, 1], [], []>} : vector<8x8xbf16>, vector<8x8xbf16>, vector<8x8xf32> -> vector<8x8xf32>
    %279 = arith.truncf %278 : vector<8x8xf32> to vector<8x8xbf16>
    %280 = vector.extract_strided_slice %189 {offsets = [24, 0], sizes = [8, 32], strides = [1, 1]} : vector<32x32xbf16> to vector<8x32xbf16>
    %cst_107 = arith.constant dense<0.000000e+00> : vector<8x32xf32>
    %281 = tpu.matmul %279, %280, %cst_107 {dimension_numbers = #tpu.dot_dimension_numbers<[1], [0], [0], [1], [0, 0, 1, 1], [], []>} : vector<8x8xbf16>, vector<8x32xbf16>, vector<8x32xf32> -> vector<8x32xf32>
    %282 = arith.addf %259, %281 : vector<8x32xf32>
    %c0_108 = arith.constant 0 : index
    %c0_109 = arith.constant 0 : index
    %c0_110 = arith.constant 0 : index
    %283 = vector.load %arg15[%c0_108, %c0_109, %c0_110] : memref<1x1x32xf32, #tpu.memory_space<vmem>>, vector<1x1x32xf32>
    %284 = vector.shape_cast %283 : vector<1x1x32xf32> to vector<1x32xf32>
    %285 = vector.broadcast %284 : vector<1x32xf32> to vector<8x32xf32>
    %286 = arith.addf %282, %285 : vector<8x32xf32>
    %c0_111 = arith.constant 0 : index
    %c0_112 = arith.constant 0 : index
    %c0_113 = arith.constant 0 : index
    %287 = vector.load %arg16[%c0_111, %c0_112, %c0_113] : memref<1x1x32xf32, #tpu.memory_space<vmem>>, vector<1x1x32xf32>
    %288 = vector.shape_cast %287 : vector<1x1x32xf32> to vector<1x32xf32>
    %c0_114 = arith.constant 0 : index
    %c0_115 = arith.constant 0 : index
    %c0_116 = arith.constant 0 : index
    %289 = vector.load %arg17[%c0_114, %c0_115, %c0_116] : memref<1x1x32xf32, #tpu.memory_space<vmem>>, vector<1x1x32xf32>
    %290 = vector.shape_cast %289 : vector<1x1x32xf32> to vector<1x32xf32>
    %291 = arith.addf %286, %158 : vector<8x32xf32>
    %cst_117 = arith.constant dense<0.000000e+00> : vector<8xf32>
    %292 = vector.multi_reduction <add>, %291, %cst_117 [1] : vector<8x32xf32> to vector<8xf32>
    %293 = vector.shape_cast %292 : vector<8xf32> to vector<8x1xf32>
    %cst_118 = arith.constant 3.200000e+01 : f32
    %294 = vector.broadcast %cst_118 : f32 to vector<8x1xf32>
    %295 = arith.divf %293, %294 : vector<8x1xf32>
    %296 = vector.broadcast %295 : vector<8x1xf32> to vector<8x32xf32>
    %297 = arith.subf %291, %296 : vector<8x32xf32>
    %298 = arith.mulf %297, %297 : vector<8x32xf32>
    %cst_119 = arith.constant dense<0.000000e+00> : vector<8xf32>
    %299 = vector.multi_reduction <add>, %298, %cst_119 [1] : vector<8x32xf32> to vector<8xf32>
    %300 = vector.shape_cast %299 : vector<8xf32> to vector<8x1xf32>
    %cst_120 = arith.constant 3.200000e+01 : f32
    %301 = vector.broadcast %cst_120 : f32 to vector<8x1xf32>
    %302 = arith.divf %300, %301 : vector<8x1xf32>
    %303 = vector.broadcast %295 : vector<8x1xf32> to vector<8x32xf32>
    %304 = arith.subf %291, %303 : vector<8x32xf32>
    %cst_121 = arith.constant 9.99999974E-6 : f32
    %305 = vector.broadcast %cst_121 : f32 to vector<8x1xf32>
    %306 = arith.addf %302, %305 : vector<8x1xf32>
    %307 = math.rsqrt %306 : vector<8x1xf32>
    %308 = vector.broadcast %307 : vector<8x1xf32> to vector<8x32xf32>
    %309 = arith.mulf %304, %308 : vector<8x32xf32>
    %310 = vector.broadcast %288 : vector<1x32xf32> to vector<8x32xf32>
    %311 = arith.mulf %309, %310 : vector<8x32xf32>
    %312 = vector.broadcast %290 : vector<1x32xf32> to vector<8x32xf32>
    %313 = arith.addf %311, %312 : vector<8x32xf32>
    %314 = arith.truncf %313 : vector<8x32xf32> to vector<8x32xbf16>
    %c0_122 = arith.constant 0 : index
    %c0_123 = arith.constant 0 : index
    %c0_124 = arith.constant 0 : index
    %315 = vector.load %arg18[%c0_122, %c0_123, %c0_124] : memref<1x32x128xbf16, #tpu.memory_space<vmem>>, vector<1x32x128xbf16>
    %316 = vector.shape_cast %315 : vector<1x32x128xbf16> to vector<32x128xbf16>
    %cst_125 = arith.constant dense<0.000000e+00> : vector<8x128xf32>
    %317 = tpu.matmul %314, %316, %cst_125 {dimension_numbers = #tpu.dot_dimension_numbers<[1], [0], [0], [1], [0, 0, 1, 1], [], []>} : vector<8x32xbf16>, vector<32x128xbf16>, vector<8x128xf32> -> vector<8x128xf32>
    %c0_126 = arith.constant 0 : index
    %c0_127 = arith.constant 0 : index
    %c0_128 = arith.constant 0 : index
    %318 = vector.load %arg19[%c0_126, %c0_127, %c0_128] : memref<1x1x128xf32, #tpu.memory_space<vmem>>, vector<1x1x128xf32>
    %319 = vector.shape_cast %318 : vector<1x1x128xf32> to vector<1x128xf32>
    %320 = vector.broadcast %319 : vector<1x128xf32> to vector<8x128xf32>
    %321 = arith.addf %317, %320 : vector<8x128xf32>
    %cst_129 = arith.constant 0.000000e+00 : f32
    %322 = vector.broadcast %cst_129 : f32 to vector<8x128xf32>
    %323 = arith.maximumf %321, %322 : vector<8x128xf32>
    %324 = arith.truncf %323 : vector<8x128xf32> to vector<8x128xbf16>
    %c0_130 = arith.constant 0 : index
    %c0_131 = arith.constant 0 : index
    %c0_132 = arith.constant 0 : index
    %325 = vector.load %arg20[%c0_130, %c0_131, %c0_132] : memref<1x128x32xbf16, #tpu.memory_space<vmem>>, vector<1x128x32xbf16>
    %326 = vector.shape_cast %325 : vector<1x128x32xbf16> to vector<128x32xbf16>
    %cst_133 = arith.constant dense<0.000000e+00> : vector<8x32xf32>
    %327 = tpu.matmul %324, %326, %cst_133 {dimension_numbers = #tpu.dot_dimension_numbers<[1], [0], [0], [1], [0, 0, 1, 1], [], []>} : vector<8x128xbf16>, vector<128x32xbf16>, vector<8x32xf32> -> vector<8x32xf32>
    %c0_134 = arith.constant 0 : index
    %c0_135 = arith.constant 0 : index
    %c0_136 = arith.constant 0 : index
    %328 = vector.load %arg21[%c0_134, %c0_135, %c0_136] : memref<1x1x32xf32, #tpu.memory_space<vmem>>, vector<1x1x32xf32>
    %329 = vector.shape_cast %328 : vector<1x1x32xf32> to vector<1x32xf32>
    %330 = vector.broadcast %329 : vector<1x32xf32> to vector<8x32xf32>
    %331 = arith.addf %327, %330 : vector<8x32xf32>
    %c0_137 = arith.constant 0 : index
    %c0_138 = arith.constant 0 : index
    %c0_139 = arith.constant 0 : index
    %332 = vector.load %arg16[%c0_137, %c0_138, %c0_139] : memref<1x1x32xf32, #tpu.memory_space<vmem>>, vector<1x1x32xf32>
    %333 = vector.shape_cast %332 : vector<1x1x32xf32> to vector<1x32xf32>
    %c0_140 = arith.constant 0 : index
    %c0_141 = arith.constant 0 : index
    %c0_142 = arith.constant 0 : index
    %334 = vector.load %arg17[%c0_140, %c0_141, %c0_142] : memref<1x1x32xf32, #tpu.memory_space<vmem>>, vector<1x1x32xf32>
    %335 = vector.shape_cast %334 : vector<1x1x32xf32> to vector<1x32xf32>
    %336 = arith.addf %331, %313 : vector<8x32xf32>
    %cst_143 = arith.constant dense<0.000000e+00> : vector<8xf32>
    %337 = vector.multi_reduction <add>, %336, %cst_143 [1] : vector<8x32xf32> to vector<8xf32>
    %338 = vector.shape_cast %337 : vector<8xf32> to vector<8x1xf32>
    %cst_144 = arith.constant 3.200000e+01 : f32
    %339 = vector.broadcast %cst_144 : f32 to vector<8x1xf32>
    %340 = arith.divf %338, %339 : vector<8x1xf32>
    %341 = vector.broadcast %340 : vector<8x1xf32> to vector<8x32xf32>
    %342 = arith.subf %336, %341 : vector<8x32xf32>
    %343 = arith.mulf %342, %342 : vector<8x32xf32>
    %cst_145 = arith.constant dense<0.000000e+00> : vector<8xf32>
    %344 = vector.multi_reduction <add>, %343, %cst_145 [1] : vector<8x32xf32> to vector<8xf32>
    %345 = vector.shape_cast %344 : vector<8xf32> to vector<8x1xf32>
    %cst_146 = arith.constant 3.200000e+01 : f32
    %346 = vector.broadcast %cst_146 : f32 to vector<8x1xf32>
    %347 = arith.divf %345, %346 : vector<8x1xf32>
    %348 = vector.broadcast %340 : vector<8x1xf32> to vector<8x32xf32>
    %349 = arith.subf %336, %348 : vector<8x32xf32>
    %cst_147 = arith.constant 9.99999974E-6 : f32
    %350 = vector.broadcast %cst_147 : f32 to vector<8x1xf32>
    %351 = arith.addf %347, %350 : vector<8x1xf32>
    %352 = math.rsqrt %351 : vector<8x1xf32>
    %353 = vector.broadcast %352 : vector<8x1xf32> to vector<8x32xf32>
    %354 = arith.mulf %349, %353 : vector<8x32xf32>
    %355 = vector.broadcast %333 : vector<1x32xf32> to vector<8x32xf32>
    %356 = arith.mulf %354, %355 : vector<8x32xf32>
    %357 = vector.broadcast %335 : vector<1x32xf32> to vector<8x32xf32>
    %358 = arith.addf %356, %357 : vector<8x32xf32>
    %359 = arith.truncf %358 : vector<8x32xf32> to vector<8x32xbf16>
    %c0_148 = arith.constant 0 : index
    %c0_149 = arith.constant 0 : index
    %c0_150 = arith.constant 0 : index
    %360 = vector.load %arg22[%c0_148, %c0_149, %c0_150] : memref<1x8x32xbf16, #tpu.memory_space<vmem>>, vector<1x8x32xbf16>
    %361 = vector.shape_cast %360 : vector<1x8x32xbf16> to vector<8x32xbf16>
    %362 = vector.shape_cast %359 : vector<8x32xbf16> to vector<1x8x32xbf16>
    tpu.vector_store %arg22[%c0_148, %c0_149, %c0_150], %362 {strides = array<i32>} : memref<1x8x32xbf16, #tpu.memory_space<vmem>>, vector<1x8x32xbf16>,
    return
  }
  func.func @transform_0(%arg0: i32, %arg1: i32) -> (i32, i32, i32) {
    %c0_i32 = arith.constant 0 : i32
    %c0_i32_0 = arith.constant 0 : i32
    %c0_i32_1 = arith.constant 0 : i32
    return %arg0, %c0_i32, %c0_i32_0 : i32, i32, i32
  }
  func.func @transform_1(%arg0: i32, %arg1: i32) -> (i32, i32, i32) {
    %c0_i32 = arith.constant 0 : i32
    %c0_i32_0 = arith.constant 0 : i32
    %c0_i32_1 = arith.constant 0 : i32
    return %arg0, %c0_i32, %c0_i32_0 : i32, i32, i32
  }
  func.func @transform_2(%arg0: i32, %arg1: i32) -> (i32, i32, i32) {
    %c0_i32 = arith.constant 0 : i32
    %c0_i32_0 = arith.constant 0 : i32
    %c0_i32_1 = arith.constant 0 : i32
    return %arg0, %c0_i32, %c0_i32_0 : i32, i32, i32
  }
  func.func @transform_3(%arg0: i32, %arg1: i32) -> (i32, i32, i32) {
    %c0_i32 = arith.constant 0 : i32
    %c0_i32_0 = arith.constant 0 : i32
    %c0_i32_1 = arith.constant 0 : i32
    return %arg0, %c0_i32, %c0_i32_0 : i32, i32, i32
  }
  func.func @transform_4(%arg0: i32, %arg1: i32) -> (i32, i32, i32) {
    %c0_i32 = arith.constant 0 : i32
    %c0_i32_0 = arith.constant 0 : i32
    %c0_i32_1 = arith.constant 0 : i32
    return %arg1, %c0_i32, %c0_i32_0 : i32, i32, i32
  }
  func.func @transform_5(%arg0: i32, %arg1: i32) -> (i32, i32, i32) {
    %c0_i32 = arith.constant 0 : i32
    %c0_i32_0 = arith.constant 0 : i32
    %c0_i32_1 = arith.constant 0 : i32
    return %arg1, %c0_i32, %c0_i32_0 : i32, i32, i32
  }
  func.func @transform_6(%arg0: i32, %arg1: i32) -> (i32, i32, i32) {
    %c0_i32 = arith.constant 0 : i32
    %c0_i32_0 = arith.constant 0 : i32
    %c0_i32_1 = arith.constant 0 : i32
    return %arg1, %c0_i32, %c0_i32_0 : i32, i32, i32
  }
  func.func @transform_7(%arg0: i32, %arg1: i32) -> (i32, i32, i32) {
    %c0_i32 = arith.constant 0 : i32
    %c0_i32_0 = arith.constant 0 : i32
    %c0_i32_1 = arith.constant 0 : i32
    return %arg1, %c0_i32, %c0_i32_0 : i32, i32, i32
  }
  func.func @transform_8(%arg0: i32, %arg1: i32) -> (i32, i32, i32) {
    %c0_i32 = arith.constant 0 : i32
    %c0_i32_0 = arith.constant 0 : i32
    %c0_i32_1 = arith.constant 0 : i32
    return %arg1, %c0_i32, %c0_i32_0 : i32, i32, i32
  }
  func.func @transform_9(%arg0: i32, %arg1: i32) -> (i32, i32, i32) {
    %c0_i32 = arith.constant 0 : i32
    %c0_i32_0 = arith.constant 0 : i32
    %c0_i32_1 = arith.constant 0 : i32
    return %arg1, %c0_i32, %c0_i32_0 : i32, i32, i32
  }
  func.func @transform_10(%arg0: i32, %arg1: i32) -> (i32, i32, i32) {
    %c0_i32 = arith.constant 0 : i32
    %c0_i32_0 = arith.constant 0 : i32
    %c0_i32_1 = arith.constant 0 : i32
    return %arg1, %c0_i32, %c0_i32_0 : i32, i32, i32
  }
  func.func @transform_11(%arg0: i32, %arg1: i32) -> (i32, i32, i32) {
    %c0_i32 = arith.constant 0 : i32
    %c0_i32_0 = arith.constant 0 : i32
    %c0_i32_1 = arith.constant 0 : i32
    return %arg1, %c0_i32, %c0_i32_0 : i32, i32, i32
  }
  func.func @transform_12(%arg0: i32, %arg1: i32) -> (i32, i32, i32) {
    %c0_i32 = arith.constant 0 : i32
    %c0_i32_0 = arith.constant 0 : i32
    %c0_i32_1 = arith.constant 0 : i32
    return %arg1, %c0_i32, %c0_i32_0 : i32, i32, i32
  }
  func.func @transform_13(%arg0: i32, %arg1: i32) -> (i32, i32, i32) {
    %c0_i32 = arith.constant 0 : i32
    %c0_i32_0 = arith.constant 0 : i32
    %c0_i32_1 = arith.constant 0 : i32
    return %arg1, %c0_i32, %c0_i32_0 : i32, i32, i32
  }
  func.func @transform_14(%arg0: i32, %arg1: i32) -> (i32, i32, i32) {
    %c0_i32 = arith.constant 0 : i32
    %c0_i32_0 = arith.constant 0 : i32
    %c0_i32_1 = arith.constant 0 : i32
    return %arg1, %c0_i32, %c0_i32_0 : i32, i32, i32
  }
  func.func @transform_15(%arg0: i32, %arg1: i32) -> (i32, i32, i32) {
    %c0_i32 = arith.constant 0 : i32
    %c0_i32_0 = arith.constant 0 : i32
    %c0_i32_1 = arith.constant 0 : i32
    return %arg1, %c0_i32, %c0_i32_0 : i32, i32, i32
  }
  func.func @transform_16(%arg0: i32, %arg1: i32) -> (i32, i32, i32) {
    %c0_i32 = arith.constant 0 : i32
    %c0_i32_0 = arith.constant 0 : i32
    %c0_i32_1 = arith.constant 0 : i32
    return %arg1, %c0_i32, %c0_i32_0 : i32, i32, i32
  }
  func.func @transform_17(%arg0: i32, %arg1: i32) -> (i32, i32, i32) {
    %c0_i32 = arith.constant 0 : i32
    %c0_i32_0 = arith.constant 0 : i32
    %c0_i32_1 = arith.constant 0 : i32
    return %arg1, %c0_i32, %c0_i32_0 : i32, i32, i32
  }
  func.func @transform_18(%arg0: i32, %arg1: i32) -> (i32, i32, i32) {
    %c0_i32 = arith.constant 0 : i32
    %c0_i32_0 = arith.constant 0 : i32
    %c0_i32_1 = arith.constant 0 : i32
    return %arg1, %c0_i32, %c0_i32_0 : i32, i32, i32
  }
  func.func @transform_19(%arg0: i32, %arg1: i32) -> (i32, i32, i32) {
    %c0_i32 = arith.constant 0 : i32
    %c0_i32_0 = arith.constant 0 : i32
    %c0_i32_1 = arith.constant 0 : i32
    return %arg1, %c0_i32, %c0_i32_0 : i32, i32, i32
  }
  func.func @transform_20(%arg0: i32, %arg1: i32) -> (i32, i32, i32) {
    %c0_i32 = arith.constant 0 : i32
    %c0_i32_0 = arith.constant 0 : i32
    %c0_i32_1 = arith.constant 0 : i32
    return %arg0, %c0_i32, %c0_i32_0 : i32, i32, i32
  }
}

</mosaic_0001>

<llo_original>
// kernel: transformer_forward.5
$region0: #{transformer_forward.5}
  #allocation0 [shape = 'u32[]', space=smem, size = 0x4, offset = 0x4, fixed_abs, tag = 'smem constant byte address 0x4 - core index']
  #allocation1 [shape = 'u32[144,128]{1,0:T(1,128)}', space=vmem, size = 0x12000, scoped, tag = 'internal scratch']
  #allocation2 [shape = 'f32[8,1]{1,0:T(8,128)}', space=vmem, size = 0x1000, scoped, tag = 'scratch operand']
  #allocation3 [shape = 'f32[8,1]{1,0:T(8,128)}', space=vmem, size = 0x1000, scoped, tag = 'scratch operand']
  %s0 = inlined_call_operand.hbm [shape: bf16[2,8,32], index: 0, kind: input, shape index: {}]
  %s1 = inlined_call_operand.hbm [shape: bf16[32,64], index: 1, kind: input, shape index: {}]
  %s2 = inlined_call_operand.hbm [shape: f32[1,64], index: 2, kind: input, shape index: {}]
  %s3 = inlined_call_operand.hbm [shape: f32[2,8,64], index: 3, kind: output, shape index: {0}]
  %s4 = inlined_call_operand.hbm [shape: f32[2,8,1], index: 4, kind: output, shape index: {1}]
  %5 = xla_tuple %s3, %s4
  %s6 = sld [smem:[#allocation0]]
  $region73: #{transformer_forward.5} parent=0
    _
  %s8 = ssub.s32 1, %s6
  %s9 = scalar_select 0, %s8, %s6
  $region1: #{transformer_forward.5} parent=0
    #allocation4 [shape = 'u8[4096]{0}', space=vmem, size = 0x1000, scoped, tag = 'input window, operand 0']
    #allocation5 [shape = 's32[2]{0}', space=sflag, size = 0x8, scoped, tag = 'scoped memory for transformer_forward.5']
    #allocation6 [shape = 's32[2]{0}', space=sflag, size = 0x8, scoped, tag = 'scoped memory for transformer_forward.5']
    #allocation7 [shape = 'u8[8192]{0}', space=vmem, size = 0x2000, scoped, tag = 'input window, operand 1, single buffered']
    #allocation8 [shape = 's32[1]{0}', space=sflag, size = 0x4, scoped, tag = 'scoped memory for transformer_forward.5']
    #allocation9 [shape = 'u8[512]{0}', space=vmem, size = 0x400, scoped, tag = 'input window, operand 2, single buffered']
    #allocation10 [shape = 'u8[8192]{0}', space=vmem, size = 0x2000, scoped, tag = 'output window, operand 0']
    #allocation11 [shape = 'u8[8192]{0}', space=vmem, size = 0x2000, scoped, tag = 'output window, operand 1']
    #allocation12 [shape = 's32[2]{0}', space=sflag, size = 0x8, scoped, tag = 'scoped memory for transformer_forward.5']
    %10 = vsyncpa [#allocation5], 0
    %s11 = scalar_lea.sflag [#allocation5], 1
    %12 = vsyncpa %s11, 0
    %13 = vsyncpa [#allocation8], 0
    %14 = vsyncpa [#allocation6], 0
    %s15 = scalar_lea.sflag [#allocation6], 1
    %16 = vsyncpa %s15, 0
    %17 = vsyncpa [#allocation12], 0
    %s18 = scalar_lea.sflag [#allocation12], 1
    %19 = vsyncpa %s18, 0
    loop: start=0, step=1, limit=4
    $region2: #{transformer_forward.5} parent=1 // loop_pre_header
      _
    $region3: #{transformer_forward.5} parent=1 // loop_header
      %s21 = sphi 0, %s25
      %p22 = scmp.ge.s32.totalorder %s21, 4
      %s28 = sphi 0, %s40
      %s29 = sphi 0, %s36
      %s30 = sphi 0, %s28
      %s31 = sphi 0, %s29
      %s32 = sphi 0, %s30
      %s33 = sphi 0, %s31
      %s43 = sphi 0, %s45
      %s46 = sphi 0, %s43
      %s47 = sphi 0, %s46
      %s63 = sphi 0, %s47
      %s69 = sphi 0, %s71
      %s72 = sphi 0, %s69
      %s73 = sphi 0, %s72
      %s89 = sphi 0, %s73
      %s95 = sphi 0, %s97
      %s98 = sphi 0, %s95
      %s99 = sphi 0, %s98
      %s115 = sphi 0, %s99
      %s123 = sphi 0, %s125
      %s126 = sphi 0, %s123
      %s127 = sphi 0, %s126
      %s143 = sphi 0, %s127
      %s149 = sphi 0, %s151
      %s152 = sphi 0, %s149
      %s153 = sphi 0, %s152
      %s169 = sphi 0, %s153
    $region4: #{transformer_forward.5} parent=1 // loop_header_branch
      %24 = sbr.rel (%p22) target = $region8
    $region5: #{transformer_forward.5} parent=1 // loop_body
      %s26 = ssub.s32 %s21, 1
      %s27 = ssub.s32 %s21, 2
      %s34 = sadd.s32 1, %s29
      %p35 = scmp.ge.s32.totalorder %s34, 1
      %s36 = scalar_select %p35, 0, %s34
      %s37 = sadd.s32 1, %s28
      %s38 = scalar_select %p35, %s37, %s28
      %p39 = scmp.ge.s32.totalorder %s38, 2
      %s40 = scalar_select %p39, 0, %s38
      %s41 = ssub.s32 %s28, %s40
      %p42 = scmp.eq.s32.totalorder %s41, 0
      %s44 = sadd.s32 %s43, 1
      %s45 = scalar_select %p42, %s43, %s44
      %p48 = pneg %p42
      %p49 = scmp.eq.s32.totalorder %s21, 1
      %p50 = por %p48, %p49
      %p51 = scmp.ne.s32.totalorder %s43, %s46
      %p52 = scmp.eq.s32.totalorder %s21, 0
      %p53 = por %p51, %p52
      %p54 = scmp.ne.s32.totalorder %s43, %s46
      %p55 = scmp.eq.s32.totalorder %s26, 1
      %p56 = por %p54, %p55
      %p57 = scmp.ne.s32.totalorder %s46, %s47
      %p58 = scmp.eq.s32.totalorder %s26, 0
      %p59 = por %p57, %p58
      %p60 = scmp.ne.s32.totalorder %s46, %s47
      %p61 = scmp.eq.s32.totalorder %s27, 1
      %p62 = por %p60, %p61
      %p64 = scmp.ne.s32.totalorder %s47, %s63
      %p65 = scmp.eq.s32.totalorder %s27, 0
      %p66 = por %p64, %p65
      %s67 = ssub.s32 %s29, %s36
      %p68 = scmp.eq.s32.totalorder %s67, 0
      %s70 = sadd.s32 %s69, 1
      %s71 = scalar_select %p68, %s69, %s70
      %p74 = pneg %p68
      %p75 = scmp.eq.s32.totalorder %s21, 1
      %p76 = por %p74, %p75
      %p77 = scmp.ne.s32.totalorder %s69, %s72
      %p78 = scmp.eq.s32.totalorder %s21, 0
      %p79 = por %p77, %p78
      %p80 = scmp.ne.s32.totalorder %s69, %s72
      %p81 = scmp.eq.s32.totalorder %s26, 1
      %p82 = por %p80, %p81
      %p83 = scmp.ne.s32.totalorder %s72, %s73
      %p84 = scmp.eq.s32.totalorder %s26, 0
      %p85 = por %p83, %p84
      %p86 = scmp.ne.s32.totalorder %s72, %s73
      %p87 = scmp.eq.s32.totalorder %s27, 1
      %p88 = por %p86, %p87
      %p90 = scmp.ne.s32.totalorder %s73, %s89
      %p91 = scmp.eq.s32.totalorder %s27, 0
      %p92 = por %p90, %p91
      %s93 = ssub.s32 %s29, %s36
      %p94 = scmp.eq.s32.totalorder %s93, 0
      %s96 = sadd.s32 %s95, 1
      %s97 = scalar_select %p94, %s95, %s96
      %p100 = pneg %p94
      %p101 = scmp.eq.s32.totalorder %s21, 1
      %p102 = por %p100, %p101
      %p103 = scmp.ne.s32.totalorder %s95, %s98
      %p104 = scmp.eq.s32.totalorder %s21, 0
      %p105 = por %p103, %p104
      %p106 = scmp.ne.s32.totalorder %s95, %s98
      %p107 = scmp.eq.s32.totalorder %s26, 1
      %p108 = por %p106, %p107
      %p109 = scmp.ne.s32.totalorder %s98, %s99
      %p110 = scmp.eq.s32.totalorder %s26, 0
      %p111 = por %p109, %p110
      %p112 = scmp.ne.s32.totalorder %s98, %s99
      %p113 = scmp.eq.s32.totalorder %s27, 1
      %p114 = por %p112, %p113
      %p116 = scmp.ne.s32.totalorder %s99, %s115
      %p117 = scmp.eq.s32.totalorder %s27, 0
      %p118 = por %p116, %p117
      %s119 = ssub.s32 %s28, %s40
      %s120 = ssub.s32 %s29, %s36
      %s121 = sor.u32 %s119, %s120
      %p122 = scmp.eq.s32.totalorder %s121, 0
      %s124 = sadd.s32 %s123, 1
      %s125 = scalar_select %p122, %s123, %s124
      %p128 = pneg %p122
      %p129 = scmp.eq.s32.totalorder %s21, 1
      %p130 = por %p128, %p129
      %p131 = scmp.ne.s32.totalorder %s123, %s126
      %p132 = scmp.eq.s32.totalorder %s21, 0
      %p133 = por %p131, %p132
      %p134 = scmp.ne.s32.totalorder %s123, %s126
      %p135 = scmp.eq.s32.totalorder %s26, 1
      %p136 = por %p134, %p135
      %p137 = scmp.ne.s32.totalorder %s126, %s127
      %p138 = scmp.eq.s32.totalorder %s26, 0
      %p139 = por %p137, %p138
      %p140 = scmp.ne.s32.totalorder %s126, %s127
      %p141 = scmp.eq.s32.totalorder %s27, 1
      %p142 = por %p140, %p141
      %p144 = scmp.ne.s32.totalorder %s127, %s143
      %p145 = scmp.eq.s32.totalorder %s27, 0
      %p146 = por %p144, %p145
      %s147 = ssub.s32 %s28, %s40
      %p148 = scmp.eq.s32.totalorder %s147, 0
      %s150 = sadd.s32 %s149, 1
      %s151 = scalar_select %p148, %s149, %s150
      %p154 = pneg %p148
      %p155 = scmp.eq.s32.totalorder %s21, 1
      %p156 = por %p154, %p155
      %p157 = scmp.ne.s32.totalorder %s149, %s152
      %p158 = scmp.eq.s32.totalorder %s21, 0
      %p159 = por %p157, %p158
      %p160 = scmp.ne.s32.totalorder %s149, %s152
      %p161 = scmp.eq.s32.totalorder %s26, 1
      %p162 = por %p160, %p161
      %p163 = scmp.ne.s32.totalorder %s152, %s153
      %p164 = scmp.eq.s32.totalorder %s26, 0
      %p165 = por %p163, %p164
      %p166 = scmp.ne.s32.totalorder %s152, %s153
      %p167 = scmp.eq.s32.totalorder %s27, 1
      %p168 = por %p166, %p167
      %p170 = scmp.ne.s32.totalorder %s153, %s169
      %p171 = scmp.eq.s32.totalorder %s27, 0
      %p172 = por %p170, %p171
      %p173 = scmp.le.s32.totalorder 1, %s21
      %p174 = scmp.lt.s32.totalorder %s21, 3
      %p175 = pnand %p173, %p174
      %p176 = pneg %p175
      // Predicated region
      $region9: #{transformer_forward.5} parent=5 // pred_check
        _
      $region10: #{transformer_forward.5} parent=5 // pred_check_branch
        %178 = sbr.rel (%p175) target = $region12
      $region11: #{transformer_forward.5} parent=5 // pred_region
        %s179 = ssub.s32 %s21, 1
        // Predicated region
        $region13: #{transformer_forward.5} parent=11 // pred_check
          %p180 = pneg %p85
        $region14: #{transformer_forward.5} parent=11 // pred_check_branch
          %182 = sbr.rel (%p180) target = $region16
        $region15: #{transformer_forward.5} parent=11 // pred_region
          %s184 = ssub.s32 256, 256
          %185 = vsyncadd [#allocation8], %s184
          %s186 = smul.addr %s31, 64
          %s187 = scalar_lea.hbm %s1, %s186
          %s188 = sshll.u32 [#allocation7], 4
          %s189 = int_to_ptr.vmem [resolvable:$true] %s188
          %194 = dma.hbm_to_vmem [thread:$0]  %s187, 256, %s189, [#allocation8], 64, 64, 4
        $region16: #{transformer_forward.5} parent=11 // pred_fallthru
          _
        // Predicated region
        $region17: #{transformer_forward.5} parent=11 // pred_check
          %p195 = pneg %p111
        $region18: #{transformer_forward.5} parent=11 // pred_check_branch
          %197 = sbr.rel (%p195) target = $region20
        $region19: #{transformer_forward.5} parent=11 // pred_region
          %s199 = ssub.s32 16, 16
          %200 = vsyncadd [#allocation8], %s199
          %s201 = smul.addr %s31, 16
          %s202 = scalar_lea.hbm %s2, %s201
          %s204 = sshll.u32 [#allocation9], 4
          %s205 = int_to_ptr.vmem [resolvable:$true] %s204
          %207 = dma.hbm_to_vmem [thread:$0]  %s202, 16, %s205, [#allocation8]
        $region20: #{transformer_forward.5} parent=11 // pred_fallthru
          _
      $region12: #{transformer_forward.5} parent=5 // pred_fallthru
        _
      %p208 = scmp.lt.s32.totalorder %s21, 2
      // Predicated region
      $region21: #{transformer_forward.5} parent=5 // pred_check
        %p209 = pneg %p208
      $region22: #{transformer_forward.5} parent=5 // pred_check_branch
        %211 = sbr.rel (%p209) target = $region24
      $region23: #{transformer_forward.5} parent=5 // pred_region
        // Predicated region
        $region25: #{transformer_forward.5} parent=23 // pred_check
          %p212 = pneg %p53
        $region26: #{transformer_forward.5} parent=23 // pred_check_branch
          %214 = sbr.rel (%p212) target = $region28
        $region27: #{transformer_forward.5} parent=23 // pred_region
          %s215 = sand.u32 %s43, 1
          %s216 = scalar_lea.sflag [#allocation5], %s215
          %s217 = sand.u32 %s43, 1
          %s218 = smul.addr %s217, 4
          %s219 = scalar_lea.vmem [#allocation4], %s218
          %s221 = ssub.s32 64, 64
          %222 = vsyncadd %s216, %s221
          %s223 = smul.addr %s28, 64
          %s224 = scalar_lea.hbm %s0, %s223
          %s226 = sshll.u32 %s219, 4
          %s227 = int_to_ptr.vmem [resolvable:$true] %s226
          %229 = dma.hbm_to_vmem [thread:$0]  %s224, 64, %s227, %s216
        $region28: #{transformer_forward.5} parent=23 // pred_fallthru
          _
      $region24: #{transformer_forward.5} parent=5 // pred_fallthru
        _
      %p230 = scmp.le.s32.totalorder 1, %s21
      %p231 = scmp.lt.s32.totalorder %s21, 3
      %p232 = pnand %p230, %p231
      %p233 = pneg %p232
      // Predicated region
      $region29: #{transformer_forward.5} parent=5 // pred_check
        _
      $region30: #{transformer_forward.5} parent=5 // pred_check_branch
        %235 = sbr.rel (%p232) target = $region32
      $region31: #{transformer_forward.5} parent=5 // pred_region
        %s236 = ssub.s32 %s21, 1
        %s237 = sand.u32 %s46, 1
        %s238 = scalar_lea.sflag [#allocation5], %s237
        %s239 = sand.u32 %s46, 1
        %s240 = smul.addr %s239, 4
        %s241 = scalar_lea.vmem [#allocation4], %s240
        // Predicated region
        $region33: #{transformer_forward.5} parent=31 // pred_check
          %p242 = pneg %p59
        $region34: #{transformer_forward.5} parent=31 // pred_check_branch
          %244 = sbr.rel (%p242) target = $region36
        $region35: #{transformer_forward.5} parent=31 // pred_region
          %245 = dma.done %s238, 64
        $region36: #{transformer_forward.5} parent=31 // pred_fallthru
          _
        // Predicated region
        $region37: #{transformer_forward.5} parent=31 // pred_check
          %p246 = pneg %p85
        $region38: #{transformer_forward.5} parent=31 // pred_check_branch
          %248 = sbr.rel (%p246) target = $region40
        $region39: #{transformer_forward.5} parent=31 // pred_region
          %249 = dma.done [#allocation8], 256
        $region40: #{transformer_forward.5} parent=31 // pred_fallthru
          _
        // Predicated region
        $region41: #{transformer_forward.5} parent=31 // pred_check
          %p250 = pneg %p111
        $region42: #{transformer_forward.5} parent=31 // pred_check_branch
          %252 = sbr.rel (%p250) target = $region44
        $region43: #{transformer_forward.5} parent=31 // pred_region
          %253 = dma.done [#allocation8], 16
        $region44: #{transformer_forward.5} parent=31 // pred_fallthru
          _
        %s254 = sand.u32 %s46, 1
        %s255 = scalar_lea.sflag [#allocation5], %s254
        %s256 = sand.u32 %s46, 1
        %s257 = smul.addr %s256, 4
        %s258 = scalar_lea.vmem [#allocation4], %s257
        %p259 = pneg %p59
        %p260 = pneg %p56
        %p261 = pneg %p85
        %p262 = pneg %p82
        %p263 = pneg %p111
        %p264 = pneg %p108
        %p265 = pneg %p139
        %p266 = pneg %p136
        %s267 = sand.u32 %s126, 1
        %s268 = scalar_lea.sflag [#allocation6], %s267
        %s269 = sand.u32 %s126, 1
        %s270 = smul.addr %s269, 8
        %s271 = scalar_lea.vmem [#allocation10], %s270
        %p272 = pneg %p165
        %p273 = pneg %p162
        %s274 = sand.u32 %s152, 1
        %s275 = scalar_lea.sflag [#allocation12], %s274
        %s276 = sand.u32 %s152, 1
        %s277 = smul.addr %s276, 8
        %s278 = scalar_lea.vmem [#allocation11], %s277
        %p280 = scmp.eq.s32.totalorder %s31, 0
        // Predicated region
        $region45: #{transformer_forward.5} parent=31 // pred_check
          %p281 = pneg %p280
        $region46: #{transformer_forward.5} parent=31 // pred_check_branch
          %283 = sbr.rel (%p281) target = $region48
        $region47: #{transformer_forward.5} parent=31 // pred_region
          %vm284 = vcmask 7168
          %285 = vst.msk [vmem:[#allocation2] sm:$0xff] %vm284, -inf
          %286 = vst.msk [vmem:[#allocation3] sm:$0xff] %vm284, 0.0
        $region48: #{transformer_forward.5} parent=31 // pred_fallthru
          _
        %v287 = vld [vmem:[%s241] sm:$0xf]
        %v288 = vld [vmem:[#allocation7] sm:$0xf]
        %v289 = vld [vmem:[#allocation7 + $0x4] sm:$0xf]
        %v290 = vld [vmem:[#allocation7 + $0x8] sm:$0xf]
        %v291 = vld [vmem:[#allocation7 + $0xc] sm:$0xf]
        %v292 = vld [vmem:[#allocation9] sm:$0x1]
        %v294 = vlaneseq
        %v295 = vshrl.u32 %v294, 7
        %v296 = vsub.s32 0, %v295
        %v297 = vrot.slane %v292, %v296
        %v303 = vunpack.c.l.b16 %v288
        %v304 = vunpack.c.l.b16 %v289
        %v305 = vunpack.c.l.b16 %v290
        %v306 = vunpack.c.l.b16 %v291
        %v307 = vpack.c.b16 %v304, %v303
        %v308 = vpack.c.b16 %v306, %v305
        %vm311 = vcmask 261120
        %v313 = vsel %vm311, %v287, 0
        %315 = vmatprep.subr.bf16.mxu0 0
        %316 = vmatpush1.bf16.msra.mxu0 %v307
        %317 = vmatprep.subr.bf16.mxu0 0
        %318 = vmatpush1.bf16.msra.mxu0 %v308
        %319 = vmatprep.subr.bf16.mxu0 0
        %320 = vmatpush1.bf16.msra.mxu0 0
        %321 = vmatprep.subr.bf16.mxu0 0
        %322 = vmatpush1.bf16.msra.mxu0 0
        %323 = vmatprep.subr.bf16.mxu0 0
        %324 = vmatpush1.bf16.msra.mxu0 0
        %325 = vmatprep.subr.bf16.mxu0 0
        %326 = vmatpush1.bf16.msra.mxu0 0
        %327 = vmatprep.subr.bf16.mxu0 0
        %328 = vmatpush1.bf16.msra.mxu0 0
        %329 = vmatprep.subr.bf16.mxu0 0
        %330 = vmatpush1.bf16.msra.mxu0 0
        %331 = vmatprep.subr.bf16.mxu0 0
        %332 = vmatpush1.bf16.msra.mxu0 0
        %333 = vmatprep.subr.bf16.mxu0 0
        %334 = vmatpush1.bf16.msra.mxu0 0
        %335 = vmatprep.subr.bf16.mxu0 0
        %336 = vmatpush1.bf16.msra.mxu0 0
        %337 = vmatprep.subr.bf16.mxu0 0
        %338 = vmatpush1.bf16.msra.mxu0 0
        %339 = vmatprep.subr.bf16.mxu0 0
        %340 = vmatpush1.bf16.msra.mxu0 0
        %341 = vmatprep.subr.bf16.mxu0 0
        %342 = vmatpush1.bf16.msra.mxu0 0
        %343 = vmatprep.subr.bf16.mxu0 0
        %344 = vmatpush1.bf16.msra.mxu0 0
        %345 = vmatprep.subr.bf16.mxu0 0
        %346 = vmatpush1.bf16.msra.mxu0 0
        %347 = vmatprep.mubr.bf16.mxu0 0
        %348 = vmatmul.mubr.bf16.gmra.mrb[0].mxu0 %v313
        %v349 = vpop.f32.mrb[0].mxu0
        %v350 = vadd.f32 %v297, %v349
        %v351 = vpop.f32.mrb[0].mxu0
        %v352 = vpop.f32.mrb[0].mxu0
        %v353 = vpop.f32.mrb[0].mxu0
        %354 = vdwg.mxu0
        %vm355 = vcmask 523264
        %356 = vst.msk [vmem:[%s271] sm:$0xff] %vm355, %v350
        %v357 = vld [vmem:[#allocation2] sm:$0xff]
        %v358 = vsel %vm355, %v350, -inf
        %359 = vmax.xlane.f32.xlu0 %v358
        %v360 = vpop.xlane.xlu0 %359
        %v361 = vmax.f32 %v357, %v360
        %v362 = vld [vmem:[#allocation3] sm:$0xff]
        %v363 = vsub.f32 %v357, %v361
        %v364 = vmul.f32 %v363, 1.442695
        %v365 = vpow.pop %v364
        %v366 = vmul.f32 %v362, %v365
        %368 = vset.pattern.permute.xlu0 0
        %369 = vperm.xlu0 %368, %v361
        %v370 = vpop.permute.xlu0 %369
        %v372 = vsub.f32 %v350, %v370
        %v373 = vmul.f32 %v372, 1.442695
        %v374 = vpow.pop %v373
        %v375 = vsel %vm355, %v374, 0.0
        %376 = vadd.xlane.f32.xlu0 %v375
        %v377 = vpop.xlane.xlu0 %376
        %v378 = vadd.f32 %v366, %v377
        %vm379 = vcmask 7168
        %380 = vst.msk [vmem:[#allocation3] sm:$0xff] %vm379, %v378
        %381 = vst.msk [vmem:[#allocation2] sm:$0xff] %vm379, %v361
        // Predicated region
        $region49: #{transformer_forward.5} parent=31 // pred_check
          %p382 = pneg %p280
        $region50: #{transformer_forward.5} parent=31 // pred_check_branch
          %384 = sbr.rel (%p382) target = $region52
        $region51: #{transformer_forward.5} parent=31 // pred_region
          %v385 = vld [vmem:[#allocation2] sm:$0xff]
          %v386 = vld [vmem:[#allocation3] sm:$0xff]
          %v387 = vlog2.pop %v386
          %v388 = vmul.f32 %v387, 0.6931472
          %v389 = vadd.f32 %v385, %v388
          %390 = vst.msk [vmem:[%s278] sm:$0xff] %vm379, %v389
        $region52: #{transformer_forward.5} parent=31 // pred_fallthru
          _
        %s391 = sand.u32 %s126, 1
        %s392 = scalar_lea.sflag [#allocation6], %s391
        %s393 = sand.u32 %s126, 1
        %s394 = smul.addr %s393, 8
        %s395 = scalar_lea.vmem [#allocation10], %s394
        %s396 = sand.u32 %s152, 1
        %s397 = scalar_lea.sflag [#allocation12], %s396
        %s398 = sand.u32 %s152, 1
        %s399 = smul.addr %s398, 8
        %s400 = scalar_lea.vmem [#allocation11], %s399
        // Predicated region
        $region53: #{transformer_forward.5} parent=31 // pred_check
          %p401 = pneg %p136
        $region54: #{transformer_forward.5} parent=31 // pred_check_branch
          %403 = sbr.rel (%p401) target = $region56
        $region55: #{transformer_forward.5} parent=31 // pred_region
          %s405 = ssub.s32 128, 128
          %406 = vsyncadd %s392, %s405
          %s407 = sadd.s32 %s31, %s30
          %s408 = smul.addr %s407, 128
          %s409 = scalar_lea.hbm %s3, %s408
          %s411 = sshll.u32 %s395, 4
          %s412 = int_to_ptr.vmem [resolvable:$true] %s411
          %414 = dma.vmem_to_hbm [thread:$0]  %s412, 128, %s409, %s392
        $region56: #{transformer_forward.5} parent=31 // pred_fallthru
          _
        // Predicated region
        $region57: #{transformer_forward.5} parent=31 // pred_check
          %p415 = pneg %p162
        $region58: #{transformer_forward.5} parent=31 // pred_check_branch
          %417 = sbr.rel (%p415) target = $region60
        $region59: #{transformer_forward.5} parent=31 // pred_region
          %s419 = ssub.s32 128, 128
          %420 = vsyncadd %s397, %s419
          %s421 = smul.addr %s30, 128
          %s422 = scalar_lea.hbm %s4, %s421
          %s424 = sshll.u32 %s400, 4
          %s425 = int_to_ptr.vmem [resolvable:$true] %s424
          %427 = dma.vmem_to_hbm [thread:$0]  %s425, 128, %s422, %s397
        $region60: #{transformer_forward.5} parent=31 // pred_fallthru
          _
      $region32: #{transformer_forward.5} parent=5 // pred_fallthru
        _
      %p428 = scmp.le.s32.totalorder 2, %s21
      // Predicated region
      $region61: #{transformer_forward.5} parent=5 // pred_check
        %p429 = pneg %p428
      $region62: #{transformer_forward.5} parent=5 // pred_check_branch
        %431 = sbr.rel (%p429) target = $region64
      $region63: #{transformer_forward.5} parent=5 // pred_region
        %s432 = ssub.s32 %s21, 2
        // Predicated region
        $region65: #{transformer_forward.5} parent=63 // pred_check
          %p433 = pneg %p142
        $region66: #{transformer_forward.5} parent=63 // pred_check_branch
          %435 = sbr.rel (%p433) target = $region68
        $region67: #{transformer_forward.5} parent=63 // pred_region
          %s436 = sand.u32 %s127, 1
          %s437 = scalar_lea.sflag [#allocation6], %s436
          %s438 = sand.u32 %s127, 1
          %s439 = smul.addr %s438, 8
          %s440 = scalar_lea.vmem [#allocation10], %s439
          %441 = dma.done %s437, 128
        $region68: #{transformer_forward.5} parent=63 // pred_fallthru
          _
        // Predicated region
        $region69: #{transformer_forward.5} parent=63 // pred_check
          %p442 = pneg %p168
        $region70: #{transformer_forward.5} parent=63 // pred_check_branch
          %444 = sbr.rel (%p442) target = $region72
        $region71: #{transformer_forward.5} parent=63 // pred_region
          %s445 = sand.u32 %s153, 1
          %s446 = scalar_lea.sflag [#allocation12], %s445
          %s447 = sand.u32 %s153, 1
          %s448 = smul.addr %s447, 8
          %s449 = scalar_lea.vmem [#allocation11], %s448
          %450 = dma.done %s446, 128
        $region72: #{transformer_forward.5} parent=63 // pred_fallthru
          _
      $region64: #{transformer_forward.5} parent=5 // pred_fallthru
        _
    $region6: #{transformer_forward.5} parent=1 // loop_footer
      %s25 = sadd.s32 1, %s21
    $region7: #{transformer_forward.5} parent=1 // loop_footer_branch
      %20 = sbr.rel target = $region3
    $region8: #{transformer_forward.5} parent=1 // loop_exit
      _
    %451 = vsyncpa [#allocation5], 1
    %s452 = scalar_lea.sflag [#allocation5], 1
    %453 = vsyncpa %s452, 1
    %454 = vsyncpa [#allocation8], 1
    %455 = vsyncpa [#allocation6], 1
    %s456 = scalar_lea.sflag [#allocation6], 1
    %457 = vsyncpa %s456, 1
    %458 = vsyncpa [#allocation12], 1
    %s459 = scalar_lea.sflag [#allocation12], 1
    %460 = vsyncpa %s459, 1

// kernel: transformer_forward.3
$region0: #{transformer_forward.3}
  #allocation0 [shape = 'u32[]', space=smem, size = 0x4, offset = 0x4, fixed_abs, tag = 'smem constant byte address 0x4 - core index']
  #allocation1 [shape = 'u32[144,128]{1,0:T(1,128)}', space=vmem, size = 0x12000, scoped, tag = 'internal scratch']
  %s0 = inlined_call_operand.hbm [shape: f32[2,1,8], index: 0, kind: input, shape index: {}]
  %s1 = inlined_call_operand.hbm [shape: bf16[2,8,32], index: 1, kind: input, shape index: {}]
  %s2 = inlined_call_operand.hbm [shape: bf16[2,32,96], index: 2, kind: input, shape index: {}]
  %s3 = inlined_call_operand.hbm [shape: f32[2,1,96], index: 3, kind: input, shape index: {}]
  %s4 = inlined_call_operand.hbm [shape: bf16[2,32,32], index: 4, kind: input, shape index: {}]
  %s5 = inlined_call_operand.hbm [shape: f32[2,1,32], index: 5, kind: input, shape index: {}]
  %s6 = inlined_call_operand.hbm [shape: f32[2,1,32], index: 6, kind: input, shape index: {}]
  %s7 = inlined_call_operand.hbm [shape: f32[2,1,32], index: 7, kind: input, shape index: {}]
  %s8 = inlined_call_operand.hbm [shape: bf16[2,32,128], index: 8, kind: input, shape index: {}]
  %s9 = inlined_call_operand.hbm [shape: f32[2,1,128], index: 9, kind: input, shape index: {}]
  %s10 = inlined_call_operand.hbm [shape: bf16[2,128,32], index: 10, kind: input, shape index: {}]
  %s11 = inlined_call_operand.hbm [shape: f32[2,1,32], index: 11, kind: input, shape index: {}]
  %s12 = inlined_call_operand.hbm [shape: bf16[2,8,32], index: 12, kind: output, shape index: {}]
  %s13 = sld [smem:[#allocation0]]
  $region133: #{transformer_forward.3} parent=0
    _
  %s15 = ssub.s32 1, %s13
  %s16 = scalar_select 0, %s15, %s13
  $region1: #{transformer_forward.3} parent=0
    #allocation2 [shape = 'u8[1024]{0}', space=vmem, size = 0x400, scoped, tag = 'input window, operand 0']
    #allocation3 [shape = 's32[2]{0}', space=sflag, size = 0x8, scoped, tag = 'scoped memory for transformer_forward.3']
    #allocation4 [shape = 's32[2]{0}', space=sflag, size = 0x8, scoped, tag = 'scoped memory for transformer_forward.3']
    #allocation5 [shape = 'u8[4096]{0}', space=vmem, size = 0x1000, scoped, tag = 'input window, operand 1']
    #allocation6 [shape = 's32[2]{0}', space=sflag, size = 0x8, scoped, tag = 'scoped memory for transformer_forward.3']
    #allocation7 [shape = 'u8[16384]{0}', space=vmem, size = 0x4000, scoped, tag = 'input window, operand 2']
    #allocation8 [shape = 'u8[1024]{0}', space=vmem, size = 0x400, scoped, tag = 'input window, operand 3']
    #allocation9 [shape = 's32[2]{0}', space=sflag, size = 0x8, scoped, tag = 'scoped memory for transformer_forward.3']
    #allocation10 [shape = 'u8[16384]{0}', space=vmem, size = 0x4000, scoped, tag = 'input window, operand 4']
    #allocation11 [shape = 'u8[1024]{0}', space=vmem, size = 0x400, scoped, tag = 'input window, operand 5']
    #allocation12 [shape = 's32[2]{0}', space=sflag, size = 0x8, scoped, tag = 'scoped memory for transformer_forward.3']
    #allocation13 [shape = 'u8[1024]{0}', space=vmem, size = 0x400, scoped, tag = 'input window, operand 6']
    #allocation14 [shape = 'u8[1024]{0}', space=vmem, size = 0x400, scoped, tag = 'input window, operand 7']
    #allocation15 [shape = 's32[2]{0}', space=sflag, size = 0x8, scoped, tag = 'scoped memory for transformer_forward.3']
    #allocation16 [shape = 'u8[16384]{0}', space=vmem, size = 0x4000, scoped, tag = 'input window, operand 8']
    #allocation17 [shape = 'u8[1024]{0}', space=vmem, size = 0x400, scoped, tag = 'input window, operand 9']
    #allocation18 [shape = 's32[2]{0}', space=sflag, size = 0x8, scoped, tag = 'scoped memory for transformer_forward.3']
    #allocation19 [shape = 'u8[65536]{0}', space=vmem, size = 0x10000, scoped, tag = 'input window, operand 10']
    #allocation20 [shape = 'u8[1024]{0}', space=vmem, size = 0x400, scoped, tag = 'input window, operand 11']
    #allocation21 [shape = 's32[2]{0}', space=sflag, size = 0x8, scoped, tag = 'scoped memory for transformer_forward.3']
    #allocation22 [shape = 'u8[4096]{0}', space=vmem, size = 0x1000, scoped, tag = 'output window, operand 0']
    %17 = vsyncpa [#allocation3], 0
    %s18 = scalar_lea.sflag [#allocation3], 1
    %19 = vsyncpa %s18, 0
    %20 = vsyncpa [#allocation6], 0
    %s21 = scalar_lea.sflag [#allocation6], 1
    %22 = vsyncpa %s21, 0
    %23 = vsyncpa [#allocation9], 0
    %s24 = scalar_lea.sflag [#allocation9], 1
    %25 = vsyncpa %s24, 0
    %26 = vsyncpa [#allocation12], 0
    %s27 = scalar_lea.sflag [#allocation12], 1
    %28 = vsyncpa %s27, 0
    %29 = vsyncpa [#allocation15], 0
    %s30 = scalar_lea.sflag [#allocation15], 1
    %31 = vsyncpa %s30, 0
    %32 = vsyncpa [#allocation18], 0
    %s33 = scalar_lea.sflag [#allocation18], 1
    %34 = vsyncpa %s33, 0
    %35 = vsyncpa [#allocation21], 0
    %s36 = scalar_lea.sflag [#allocation21], 1
    %37 = vsyncpa %s36, 0
    %38 = vsyncpa [#allocation4], 0
    %s39 = scalar_lea.sflag [#allocation4], 1
    %40 = vsyncpa %s39, 0
    loop: start=0, step=1, limit=6
    $region2: #{transformer_forward.3} parent=1 // loop_pre_header
      _
    $region3: #{transformer_forward.3} parent=1 // loop_header
      %s42 = sphi 0, %s46
      %p43 = scmp.ge.s32.totalorder %s42, 6
      %s49 = sphi 0, %s61
      %s50 = sphi 0, %s57
      %s51 = sphi 0, %s49
      %s52 = sphi 0, %s50
      %s53 = sphi 0, %s51
      %s54 = sphi 0, %s52
      %s64 = sphi 0, %s66
      %s67 = sphi 0, %s64
      %s68 = sphi 0, %s67
      %s84 = sphi 0, %s68
      %s90 = sphi 0, %s92
      %s93 = sphi 0, %s90
      %s94 = sphi 0, %s93
      %s110 = sphi 0, %s94
      %s116 = sphi 0, %s118
      %s119 = sphi 0, %s116
      %s120 = sphi 0, %s119
      %s136 = sphi 0, %s120
      %s142 = sphi 0, %s144
      %s145 = sphi 0, %s142
      %s146 = sphi 0, %s145
      %s162 = sphi 0, %s146
      %s168 = sphi 0, %s170
      %s171 = sphi 0, %s168
      %s172 = sphi 0, %s171
      %s188 = sphi 0, %s172
      %s194 = sphi 0, %s196
      %s197 = sphi 0, %s194
      %s198 = sphi 0, %s197
      %s214 = sphi 0, %s198
      %s220 = sphi 0, %s222
      %s223 = sphi 0, %s220
      %s224 = sphi 0, %s223
      %s240 = sphi 0, %s224
      %s246 = sphi 0, %s248
      %s249 = sphi 0, %s246
      %s250 = sphi 0, %s249
      %s266 = sphi 0, %s250
      %s272 = sphi 0, %s274
      %s275 = sphi 0, %s272
      %s276 = sphi 0, %s275
      %s292 = sphi 0, %s276
      %s298 = sphi 0, %s300
      %s301 = sphi 0, %s298
      %s302 = sphi 0, %s301
      %s318 = sphi 0, %s302
      %s324 = sphi 0, %s326
      %s327 = sphi 0, %s324
      %s328 = sphi 0, %s327
      %s344 = sphi 0, %s328
      %s350 = sphi 0, %s352
      %s353 = sphi 0, %s350
      %s354 = sphi 0, %s353
      %s370 = sphi 0, %s354
      %s376 = sphi 0, %s378
      %s379 = sphi 0, %s376
      %s380 = sphi 0, %s379
      %s396 = sphi 0, %s380
    $region4: #{transformer_forward.3} parent=1 // loop_header_branch
      %45 = sbr.rel (%p43) target = $region8
    $region5: #{transformer_forward.3} parent=1 // loop_body
      %s47 = ssub.s32 %s42, 1
      %s48 = ssub.s32 %s42, 2
      %s55 = sadd.s32 1, %s50
      %p56 = scmp.ge.s32.totalorder %s55, 2
      %s57 = scalar_select %p56, 0, %s55
      %s58 = sadd.s32 1, %s49
      %s59 = scalar_select %p56, %s58, %s49
      %p60 = scmp.ge.s32.totalorder %s59, 2
      %s61 = scalar_select %p60, 0, %s59
      %s62 = ssub.s32 %s49, %s61
      %p63 = scmp.eq.s32.totalorder %s62, 0
      %s65 = sadd.s32 %s64, 1
      %s66 = scalar_select %p63, %s64, %s65
      %p69 = pneg %p63
      %p70 = scmp.eq.s32.totalorder %s42, 3
      %p71 = por %p69, %p70
      %p72 = scmp.ne.s32.totalorder %s64, %s67
      %p73 = scmp.eq.s32.totalorder %s42, 0
      %p74 = por %p72, %p73
      %p75 = scmp.ne.s32.totalorder %s64, %s67
      %p76 = scmp.eq.s32.totalorder %s47, 3
      %p77 = por %p75, %p76
      %p78 = scmp.ne.s32.totalorder %s67, %s68
      %p79 = scmp.eq.s32.totalorder %s47, 0
      %p80 = por %p78, %p79
      %p81 = scmp.ne.s32.totalorder %s67, %s68
      %p82 = scmp.eq.s32.totalorder %s48, 3
      %p83 = por %p81, %p82
      %p85 = scmp.ne.s32.totalorder %s68, %s84
      %p86 = scmp.eq.s32.totalorder %s48, 0
      %p87 = por %p85, %p86
      %s88 = ssub.s32 %s49, %s61
      %p89 = scmp.eq.s32.totalorder %s88, 0
      %s91 = sadd.s32 %s90, 1
      %s92 = scalar_select %p89, %s90, %s91
      %p95 = pneg %p89
      %p96 = scmp.eq.s32.totalorder %s42, 3
      %p97 = por %p95, %p96
      %p98 = scmp.ne.s32.totalorder %s90, %s93
      %p99 = scmp.eq.s32.totalorder %s42, 0
      %p100 = por %p98, %p99
      %p101 = scmp.ne.s32.totalorder %s90, %s93
      %p102 = scmp.eq.s32.totalorder %s47, 3
      %p103 = por %p101, %p102
      %p104 = scmp.ne.s32.totalorder %s93, %s94
      %p105 = scmp.eq.s32.totalorder %s47, 0
      %p106 = por %p104, %p105
      %p107 = scmp.ne.s32.totalorder %s93, %s94
      %p108 = scmp.eq.s32.totalorder %s48, 3
      %p109 = por %p107, %p108
      %p111 = scmp.ne.s32.totalorder %s94, %s110
      %p112 = scmp.eq.s32.totalorder %s48, 0
      %p113 = por %p111, %p112
      %s114 = ssub.s32 %s50, %s57
      %p115 = scmp.eq.s32.totalorder %s114, 0
      %s117 = sadd.s32 %s116, 1
      %s118 = scalar_select %p115, %s116, %s117
      %p121 = pneg %p115
      %p122 = scmp.eq.s32.totalorder %s42, 3
      %p123 = por %p121, %p122
      %p124 = scmp.ne.s32.totalorder %s116, %s119
      %p125 = scmp.eq.s32.totalorder %s42, 0
      %p126 = por %p124, %p125
      %p127 = scmp.ne.s32.totalorder %s116, %s119
      %p128 = scmp.eq.s32.totalorder %s47, 3
      %p129 = por %p127, %p128
      %p130 = scmp.ne.s32.totalorder %s119, %s120
      %p131 = scmp.eq.s32.totalorder %s47, 0
      %p132 = por %p130, %p131
      %p133 = scmp.ne.s32.totalorder %s119, %s120
      %p134 = scmp.eq.s32.totalorder %s48, 3
      %p135 = por %p133, %p134
      %p137 = scmp.ne.s32.totalorder %s120, %s136
      %p138 = scmp.eq.s32.totalorder %s48, 0
      %p139 = por %p137, %p138
      %s140 = ssub.s32 %s50, %s57
      %p141 = scmp.eq.s32.totalorder %s140, 0
      %s143 = sadd.s32 %s142, 1
      %s144 = scalar_select %p141, %s142, %s143
      %p147 = pneg %p141
      %p148 = scmp.eq.s32.totalorder %s42, 3
      %p149 = por %p147, %p148
      %p150 = scmp.ne.s32.totalorder %s142, %s145
      %p151 = scmp.eq.s32.totalorder %s42, 0
      %p152 = por %p150, %p151
      %p153 = scmp.ne.s32.totalorder %s142, %s145
      %p154 = scmp.eq.s32.totalorder %s47, 3
      %p155 = por %p153, %p154
      %p156 = scmp.ne.s32.totalorder %s145, %s146
      %p157 = scmp.eq.s32.totalorder %s47, 0
      %p158 = por %p156, %p157
      %p159 = scmp.ne.s32.totalorder %s145, %s146
      %p160 = scmp.eq.s32.totalorder %s48, 3
      %p161 = por %p159, %p160
      %p163 = scmp.ne.s32.totalorder %s146, %s162
      %p164 = scmp.eq.s32.totalorder %s48, 0
      %p165 = por %p163, %p164
      %s166 = ssub.s32 %s50, %s57
      %p167 = scmp.eq.s32.totalorder %s166, 0
      %s169 = sadd.s32 %s168, 1
      %s170 = scalar_select %p167, %s168, %s169
      %p173 = pneg %p167
      %p174 = scmp.eq.s32.totalorder %s42, 3
      %p175 = por %p173, %p174
      %p176 = scmp.ne.s32.totalorder %s168, %s171
      %p177 = scmp.eq.s32.totalorder %s42, 0
      %p178 = por %p176, %p177
      %p179 = scmp.ne.s32.totalorder %s168, %s171
      %p180 = scmp.eq.s32.totalorder %s47, 3
      %p181 = por %p179, %p180
      %p182 = scmp.ne.s32.totalorder %s171, %s172
      %p183 = scmp.eq.s32.totalorder %s47, 0
      %p184 = por %p182, %p183
      %p185 = scmp.ne.s32.totalorder %s171, %s172
      %p186 = scmp.eq.s32.totalorder %s48, 3
      %p187 = por %p185, %p186
      %p189 = scmp.ne.s32.totalorder %s172, %s188
      %p190 = scmp.eq.s32.totalorder %s48, 0
      %p191 = por %p189, %p190
      %s192 = ssub.s32 %s50, %s57
      %p193 = scmp.eq.s32.totalorder %s192, 0
      %s195 = sadd.s32 %s194, 1
      %s196 = scalar_select %p193, %s194, %s195
      %p199 = pneg %p193
      %p200 = scmp.eq.s32.totalorder %s42, 3
      %p201 = por %p199, %p200
      %p202 = scmp.ne.s32.totalorder %s194, %s197
      %p203 = scmp.eq.s32.totalorder %s42, 0
      %p204 = por %p202, %p203
      %p205 = scmp.ne.s32.totalorder %s194, %s197
      %p206 = scmp.eq.s32.totalorder %s47, 3
      %p207 = por %p205, %p206
      %p208 = scmp.ne.s32.totalorder %s197, %s198
      %p209 = scmp.eq.s32.totalorder %s47, 0
      %p210 = por %p208, %p209
      %p211 = scmp.ne.s32.totalorder %s197, %s198
      %p212 = scmp.eq.s32.totalorder %s48, 3
      %p213 = por %p211, %p212
      %p215 = scmp.ne.s32.totalorder %s198, %s214
      %p216 = scmp.eq.s32.totalorder %s48, 0
      %p217 = por %p215, %p216
      %s218 = ssub.s32 %s50, %s57
      %p219 = scmp.eq.s32.totalorder %s218, 0
      %s221 = sadd.s32 %s220, 1
      %s222 = scalar_select %p219, %s220, %s221
      %p225 = pneg %p219
      %p226 = scmp.eq.s32.totalorder %s42, 3
      %p227 = por %p225, %p226
      %p228 = scmp.ne.s32.totalorder %s220, %s223
      %p229 = scmp.eq.s32.totalorder %s42, 0
      %p230 = por %p228, %p229
      %p231 = scmp.ne.s32.totalorder %s220, %s223
      %p232 = scmp.eq.s32.totalorder %s47, 3
      %p233 = por %p231, %p232
      %p234 = scmp.ne.s32.totalorder %s223, %s224
      %p235 = scmp.eq.s32.totalorder %s47, 0
      %p236 = por %p234, %p235
      %p237 = scmp.ne.s32.totalorder %s223, %s224
      %p238 = scmp.eq.s32.totalorder %s48, 3
      %p239 = por %p237, %p238
      %p241 = scmp.ne.s32.totalorder %s224, %s240
      %p242 = scmp.eq.s32.totalorder %s48, 0
      %p243 = por %p241, %p242
      %s244 = ssub.s32 %s50, %s57
      %p245 = scmp.eq.s32.totalorder %s244, 0
      %s247 = sadd.s32 %s246, 1
      %s248 = scalar_select %p245, %s246, %s247
      %p251 = pneg %p245
      %p252 = scmp.eq.s32.totalorder %s42, 3
      %p253 = por %p251, %p252
      %p254 = scmp.ne.s32.totalorder %s246, %s249
      %p255 = scmp.eq.s32.totalorder %s42, 0
      %p256 = por %p254, %p255
      %p257 = scmp.ne.s32.totalorder %s246, %s249
      %p258 = scmp.eq.s32.totalorder %s47, 3
      %p259 = por %p257, %p258
      %p260 = scmp.ne.s32.totalorder %s249, %s250
      %p261 = scmp.eq.s32.totalorder %s47, 0
      %p262 = por %p260, %p261
      %p263 = scmp.ne.s32.totalorder %s249, %s250
      %p264 = scmp.eq.s32.totalorder %s48, 3
      %p265 = por %p263, %p264
      %p267 = scmp.ne.s32.totalorder %s250, %s266
      %p268 = scmp.eq.s32.totalorder %s48, 0
      %p269 = por %p267, %p268
      %s270 = ssub.s32 %s50, %s57
      %p271 = scmp.eq.s32.totalorder %s270, 0
      %s273 = sadd.s32 %s272, 1
      %s274 = scalar_select %p271, %s272, %s273
      %p277 = pneg %p271
      %p278 = scmp.eq.s32.totalorder %s42, 3
      %p279 = por %p277, %p278
      %p280 = scmp.ne.s32.totalorder %s272, %s275
      %p281 = scmp.eq.s32.totalorder %s42, 0
      %p282 = por %p280, %p281
      %p283 = scmp.ne.s32.totalorder %s272, %s275
      %p284 = scmp.eq.s32.totalorder %s47, 3
      %p285 = por %p283, %p284
      %p286 = scmp.ne.s32.totalorder %s275, %s276
      %p287 = scmp.eq.s32.totalorder %s47, 0
      %p288 = por %p286, %p287
      %p289 = scmp.ne.s32.totalorder %s275, %s276
      %p290 = scmp.eq.s32.totalorder %s48, 3
      %p291 = por %p289, %p290
      %p293 = scmp.ne.s32.totalorder %s276, %s292
      %p294 = scmp.eq.s32.totalorder %s48, 0
      %p295 = por %p293, %p294
      %s296 = ssub.s32 %s50, %s57
      %p297 = scmp.eq.s32.totalorder %s296, 0
      %s299 = sadd.s32 %s298, 1
      %s300 = scalar_select %p297, %s298, %s299
      %p303 = pneg %p297
      %p304 = scmp.eq.s32.totalorder %s42, 3
      %p305 = por %p303, %p304
      %p306 = scmp.ne.s32.totalorder %s298, %s301
      %p307 = scmp.eq.s32.totalorder %s42, 0
      %p308 = por %p306, %p307
      %p309 = scmp.ne.s32.totalorder %s298, %s301
      %p310 = scmp.eq.s32.totalorder %s47, 3
      %p311 = por %p309, %p310
      %p312 = scmp.ne.s32.totalorder %s301, %s302
      %p313 = scmp.eq.s32.totalorder %s47, 0
      %p314 = por %p312, %p313
      %p315 = scmp.ne.s32.totalorder %s301, %s302
      %p316 = scmp.eq.s32.totalorder %s48, 3
      %p317 = por %p315, %p316
      %p319 = scmp.ne.s32.totalorder %s302, %s318
      %p320 = scmp.eq.s32.totalorder %s48, 0
      %p321 = por %p319, %p320
      %s322 = ssub.s32 %s50, %s57
      %p323 = scmp.eq.s32.totalorder %s322, 0
      %s325 = sadd.s32 %s324, 1
      %s326 = scalar_select %p323, %s324, %s325
      %p329 = pneg %p323
      %p330 = scmp.eq.s32.totalorder %s42, 3
      %p331 = por %p329, %p330
      %p332 = scmp.ne.s32.totalorder %s324, %s327
      %p333 = scmp.eq.s32.totalorder %s42, 0
      %p334 = por %p332, %p333
      %p335 = scmp.ne.s32.totalorder %s324, %s327
      %p336 = scmp.eq.s32.totalorder %s47, 3
      %p337 = por %p335, %p336
      %p338 = scmp.ne.s32.totalorder %s327, %s328
      %p339 = scmp.eq.s32.totalorder %s47, 0
      %p340 = por %p338, %p339
      %p341 = scmp.ne.s32.totalorder %s327, %s328
      %p342 = scmp.eq.s32.totalorder %s48, 3
      %p343 = por %p341, %p342
      %p345 = scmp.ne.s32.totalorder %s328, %s344
      %p346 = scmp.eq.s32.totalorder %s48, 0
      %p347 = por %p345, %p346
      %s348 = ssub.s32 %s50, %s57
      %p349 = scmp.eq.s32.totalorder %s348, 0
      %s351 = sadd.s32 %s350, 1
      %s352 = scalar_select %p349, %s350, %s351
      %p355 = pneg %p349
      %p356 = scmp.eq.s32.totalorder %s42, 3
      %p357 = por %p355, %p356
      %p358 = scmp.ne.s32.totalorder %s350, %s353
      %p359 = scmp.eq.s32.totalorder %s42, 0
      %p360 = por %p358, %p359
      %p361 = scmp.ne.s32.totalorder %s350, %s353
      %p362 = scmp.eq.s32.totalorder %s47, 3
      %p363 = por %p361, %p362
      %p364 = scmp.ne.s32.totalorder %s353, %s354
      %p365 = scmp.eq.s32.totalorder %s47, 0
      %p366 = por %p364, %p365
      %p367 = scmp.ne.s32.totalorder %s353, %s354
      %p368 = scmp.eq.s32.totalorder %s48, 3
      %p369 = por %p367, %p368
      %p371 = scmp.ne.s32.totalorder %s354, %s370
      %p372 = scmp.eq.s32.totalorder %s48, 0
      %p373 = por %p371, %p372
      %s374 = ssub.s32 %s49, %s61
      %p375 = scmp.eq.s32.totalorder %s374, 0
      %s377 = sadd.s32 %s376, 1
      %s378 = scalar_select %p375, %s376, %s377
      %p381 = pneg %p375
      %p382 = scmp.eq.s32.totalorder %s42, 3
      %p383 = por %p381, %p382
      %p384 = scmp.ne.s32.totalorder %s376, %s379
      %p385 = scmp.eq.s32.totalorder %s42, 0
      %p386 = por %p384, %p385
      %p387 = scmp.ne.s32.totalorder %s376, %s379
      %p388 = scmp.eq.s32.totalorder %s47, 3
      %p389 = por %p387, %p388
      %p390 = scmp.ne.s32.totalorder %s379, %s380
      %p391 = scmp.eq.s32.totalorder %s47, 0
      %p392 = por %p390, %p391
      %p393 = scmp.ne.s32.totalorder %s379, %s380
      %p394 = scmp.eq.s32.totalorder %s48, 3
      %p395 = por %p393, %p394
      %p397 = scmp.ne.s32.totalorder %s380, %s396
      %p398 = scmp.eq.s32.totalorder %s48, 0
      %p399 = por %p397, %p398
      %p400 = scmp.le.s32.totalorder 1, %s42
      %p401 = scmp.lt.s32.totalorder %s42, 5
      %p402 = pnand %p400, %p401
      %p403 = pneg %p402
      // Predicated region
      $region9: #{transformer_forward.3} parent=5 // pred_check
        _
      $region10: #{transformer_forward.3} parent=5 // pred_check_branch
        %405 = sbr.rel (%p402) target = $region12
      $region11: #{transformer_forward.3} parent=5 // pred_region
        %s406 = ssub.s32 %s42, 1
      $region12: #{transformer_forward.3} parent=5 // pred_fallthru
        _
      %p407 = scmp.lt.s32.totalorder %s42, 4
      // Predicated region
      $region13: #{transformer_forward.3} parent=5 // pred_check
        %p408 = pneg %p407
      $region14: #{transformer_forward.3} parent=5 // pred_check_branch
        %410 = sbr.rel (%p408) target = $region16
      $region15: #{transformer_forward.3} parent=5 // pred_region
        // Predicated region
        $region17: #{transformer_forward.3} parent=15 // pred_check
          %p411 = pneg %p74
        $region18: #{transformer_forward.3} parent=15 // pred_check_branch
          %413 = sbr.rel (%p411) target = $region20
        $region19: #{transformer_forward.3} parent=15 // pred_region
          %s414 = sand.u32 %s64, 1
          %s415 = scalar_lea.sflag [#allocation3], %s414
          %s416 = sand.u32 %s64, 1
          %s417 = scalar_lea.vmem [#allocation2], %s416
          %s419 = ssub.s32 16, 16
          %420 = vsyncadd %s415, %s419
          %s421 = smul.addr %s49, 16
          %s422 = scalar_lea.hbm %s0, %s421
          %s424 = sshll.u32 %s417, 4
          %s425 = int_to_ptr.vmem [resolvable:$true] %s424
          %427 = dma.hbm_to_vmem [thread:$0]  %s422, 16, %s425, %s415
        $region20: #{transformer_forward.3} parent=15 // pred_fallthru
          _
        // Predicated region
        $region21: #{transformer_forward.3} parent=15 // pred_check
          %p428 = pneg %p100
        $region22: #{transformer_forward.3} parent=15 // pred_check_branch
          %430 = sbr.rel (%p428) target = $region24
        $region23: #{transformer_forward.3} parent=15 // pred_region
          %s431 = sand.u32 %s42, 1
          %s432 = scalar_lea.sflag [#allocation6], %s431
          %s433 = sand.u32 %s90, 1
          %s434 = smul.addr %s433, 4
          %s435 = scalar_lea.vmem [#allocation5], %s434
          %s437 = ssub.s32 64, 64
          %438 = vsyncadd %s432, %s437
          %s439 = smul.addr %s49, 64
          %s440 = scalar_lea.hbm %s1, %s439
          %s442 = sshll.u32 %s435, 4
          %s443 = int_to_ptr.vmem [resolvable:$true] %s442
          %445 = dma.hbm_to_vmem [thread:$0]  %s440, 64, %s443, %s432
        $region24: #{transformer_forward.3} parent=15 // pred_fallthru
          _
        // Predicated region
        $region25: #{transformer_forward.3} parent=15 // pred_check
          %p446 = pneg %p126
        $region26: #{transformer_forward.3} parent=15 // pred_check_branch
          %448 = sbr.rel (%p446) target = $region28
        $region27: #{transformer_forward.3} parent=15 // pred_region
          %s449 = sand.u32 %s42, 1
          %s450 = scalar_lea.sflag [#allocation6], %s449
          %s451 = sand.u32 %s116, 1
          %s452 = smul.addr %s451, 16
          %s453 = scalar_lea.vmem [#allocation7], %s452
          %s455 = ssub.s32 256, 256
          %456 = vsyncadd %s450, %s455
          %s457 = smul.addr %s50, 4
          %s458 = smul.addr %s457, 64
          %s459 = scalar_lea.hbm %s2, %s458
          %s460 = sshll.u32 %s453, 4
          %s461 = int_to_ptr.vmem [resolvable:$true] %s460
          %466 = dma.hbm_to_vmem [thread:$0]  %s459, 256, %s461, %s450, 64, 64, 4
        $region28: #{transformer_forward.3} parent=15 // pred_fallthru
          _
        // Predicated region
        $region29: #{transformer_forward.3} parent=15 // pred_check
          %p467 = pneg %p152
        $region30: #{transformer_forward.3} parent=15 // pred_check_branch
          %469 = sbr.rel (%p467) target = $region32
        $region31: #{transformer_forward.3} parent=15 // pred_region
          %s470 = sand.u32 %s42, 1
          %s471 = scalar_lea.sflag [#allocation9], %s470
          %s472 = sand.u32 %s142, 1
          %s473 = scalar_lea.vmem [#allocation8], %s472
          %s475 = ssub.s32 16, 16
          %476 = vsyncadd %s471, %s475
          %s477 = smul.addr %s50, 16
          %s478 = scalar_lea.hbm %s3, %s477
          %s480 = sshll.u32 %s473, 4
          %s481 = int_to_ptr.vmem [resolvable:$true] %s480
          %483 = dma.hbm_to_vmem [thread:$0]  %s478, 16, %s481, %s471
        $region32: #{transformer_forward.3} parent=15 // pred_fallthru
          _
        // Predicated region
        $region33: #{transformer_forward.3} parent=15 // pred_check
          %p484 = pneg %p178
        $region34: #{transformer_forward.3} parent=15 // pred_check_branch
          %486 = sbr.rel (%p484) target = $region36
        $region35: #{transformer_forward.3} parent=15 // pred_region
          %s487 = sand.u32 %s42, 1
          %s488 = scalar_lea.sflag [#allocation9], %s487
          %s489 = sand.u32 %s168, 1
          %s490 = smul.addr %s489, 16
          %s491 = scalar_lea.vmem [#allocation10], %s490
          %s493 = ssub.s32 256, 256
          %494 = vsyncadd %s488, %s493
          %s495 = smul.addr %s50, 4
          %s496 = smul.addr %s495, 64
          %s497 = scalar_lea.hbm %s4, %s496
          %s498 = sshll.u32 %s491, 4
          %s499 = int_to_ptr.vmem [resolvable:$true] %s498
          %504 = dma.hbm_to_vmem [thread:$0]  %s497, 256, %s499, %s488, 64, 64, 4
        $region36: #{transformer_forward.3} parent=15 // pred_fallthru
          _
        // Predicated region
        $region37: #{transformer_forward.3} parent=15 // pred_check
          %p505 = pneg %p204
        $region38: #{transformer_forward.3} parent=15 // pred_check_branch
          %507 = sbr.rel (%p505) target = $region40
        $region39: #{transformer_forward.3} parent=15 // pred_region
          %s508 = sand.u32 %s42, 1
          %s509 = scalar_lea.sflag [#allocation12], %s508
          %s510 = sand.u32 %s194, 1
          %s511 = scalar_lea.vmem [#allocation11], %s510
          %s513 = ssub.s32 16, 16
          %514 = vsyncadd %s509, %s513
          %s515 = smul.addr %s50, 16
          %s516 = scalar_lea.hbm %s5, %s515
          %s518 = sshll.u32 %s511, 4
          %s519 = int_to_ptr.vmem [resolvable:$true] %s518
          %521 = dma.hbm_to_vmem [thread:$0]  %s516, 16, %s519, %s509
        $region40: #{transformer_forward.3} parent=15 // pred_fallthru
          _
        // Predicated region
        $region41: #{transformer_forward.3} parent=15 // pred_check
          %p522 = pneg %p230
        $region42: #{transformer_forward.3} parent=15 // pred_check_branch
          %524 = sbr.rel (%p522) target = $region44
        $region43: #{transformer_forward.3} parent=15 // pred_region
          %s525 = sand.u32 %s42, 1
          %s526 = scalar_lea.sflag [#allocation12], %s525
          %s527 = sand.u32 %s220, 1
          %s528 = scalar_lea.vmem [#allocation13], %s527
          %s530 = ssub.s32 16, 16
          %531 = vsyncadd %s526, %s530
          %s532 = smul.addr %s50, 16
          %s533 = scalar_lea.hbm %s6, %s532
          %s535 = sshll.u32 %s528, 4
          %s536 = int_to_ptr.vmem [resolvable:$true] %s535
          %538 = dma.hbm_to_vmem [thread:$0]  %s533, 16, %s536, %s526
        $region44: #{transformer_forward.3} parent=15 // pred_fallthru
          _
        // Predicated region
        $region45: #{transformer_forward.3} parent=15 // pred_check
          %p539 = pneg %p256
        $region46: #{transformer_forward.3} parent=15 // pred_check_branch
          %541 = sbr.rel (%p539) target = $region48
        $region47: #{transformer_forward.3} parent=15 // pred_region
          %s542 = sand.u32 %s42, 1
          %s543 = scalar_lea.sflag [#allocation15], %s542
          %s544 = sand.u32 %s246, 1
          %s545 = scalar_lea.vmem [#allocation14], %s544
          %s547 = ssub.s32 16, 16
          %548 = vsyncadd %s543, %s547
          %s549 = smul.addr %s50, 16
          %s550 = scalar_lea.hbm %s7, %s549
          %s552 = sshll.u32 %s545, 4
          %s553 = int_to_ptr.vmem [resolvable:$true] %s552
          %555 = dma.hbm_to_vmem [thread:$0]  %s550, 16, %s553, %s543
        $region48: #{transformer_forward.3} parent=15 // pred_fallthru
          _
        // Predicated region
        $region49: #{transformer_forward.3} parent=15 // pred_check
          %p556 = pneg %p282
        $region50: #{transformer_forward.3} parent=15 // pred_check_branch
          %558 = sbr.rel (%p556) target = $region52
        $region51: #{transformer_forward.3} parent=15 // pred_region
          %s559 = sand.u32 %s42, 1
          %s560 = scalar_lea.sflag [#allocation15], %s559
          %s561 = sand.u32 %s272, 1
          %s562 = smul.addr %s561, 16
          %s563 = scalar_lea.vmem [#allocation16], %s562
          %s565 = ssub.s32 256, 256
          %566 = vsyncadd %s560, %s565
          %s567 = smul.addr %s50, 4
          %s568 = smul.addr %s567, 64
          %s569 = scalar_lea.hbm %s8, %s568
          %s570 = sshll.u32 %s563, 4
          %s571 = int_to_ptr.vmem [resolvable:$true] %s570
          %576 = dma.hbm_to_vmem [thread:$0]  %s569, 256, %s571, %s560, 64, 64, 4
        $region52: #{transformer_forward.3} parent=15 // pred_fallthru
          _
        // Predicated region
        $region53: #{transformer_forward.3} parent=15 // pred_check
          %p577 = pneg %p308
        $region54: #{transformer_forward.3} parent=15 // pred_check_branch
          %579 = sbr.rel (%p577) target = $region56
        $region55: #{transformer_forward.3} parent=15 // pred_region
          %s580 = sand.u32 %s42, 1
          %s581 = scalar_lea.sflag [#allocation18], %s580
          %s582 = sand.u32 %s298, 1
          %s583 = scalar_lea.vmem [#allocation17], %s582
          %s585 = ssub.s32 16, 16
          %586 = vsyncadd %s581, %s585
          %s587 = smul.addr %s50, 16
          %s588 = scalar_lea.hbm %s9, %s587
          %s590 = sshll.u32 %s583, 4
          %s591 = int_to_ptr.vmem [resolvable:$true] %s590
          %593 = dma.hbm_to_vmem [thread:$0]  %s588, 16, %s591, %s581
        $region56: #{transformer_forward.3} parent=15 // pred_fallthru
          _
        // Predicated region
        $region57: #{transformer_forward.3} parent=15 // pred_check
          %p594 = pneg %p334
        $region58: #{transformer_forward.3} parent=15 // pred_check_branch
          %596 = sbr.rel (%p594) target = $region60
        $region59: #{transformer_forward.3} parent=15 // pred_region
          %s597 = sand.u32 %s42, 1
          %s598 = scalar_lea.sflag [#allocation18], %s597
          %s599 = sand.u32 %s324, 1
          %s600 = smul.addr %s599, 64
          %s601 = scalar_lea.vmem [#allocation19], %s600
          %s603 = ssub.s32 1024, 1024
          %604 = vsyncadd %s598, %s603
          %s605 = smul.addr %s50, 16
          %s606 = smul.addr %s605, 64
          %s607 = scalar_lea.hbm %s10, %s606
          %s608 = sshll.u32 %s601, 4
          %s609 = int_to_ptr.vmem [resolvable:$true] %s608
          %614 = dma.hbm_to_vmem [thread:$0]  %s607, 1024, %s609, %s598, 64, 64, 4
        $region60: #{transformer_forward.3} parent=15 // pred_fallthru
          _
        // Predicated region
        $region61: #{transformer_forward.3} parent=15 // pred_check
          %p615 = pneg %p360
        $region62: #{transformer_forward.3} parent=15 // pred_check_branch
          %617 = sbr.rel (%p615) target = $region64
        $region63: #{transformer_forward.3} parent=15 // pred_region
          %s618 = sand.u32 %s350, 1
          %s619 = scalar_lea.sflag [#allocation21], %s618
          %s620 = sand.u32 %s350, 1
          %s621 = scalar_lea.vmem [#allocation20], %s620
          %s623 = ssub.s32 16, 16
          %624 = vsyncadd %s619, %s623
          %s625 = smul.addr %s50, 16
          %s626 = scalar_lea.hbm %s11, %s625
          %s628 = sshll.u32 %s621, 4
          %s629 = int_to_ptr.vmem [resolvable:$true] %s628
          %631 = dma.hbm_to_vmem [thread:$0]  %s626, 16, %s629, %s619
        $region64: #{transformer_forward.3} parent=15 // pred_fallthru
          _
      $region16: #{transformer_forward.3} parent=5 // pred_fallthru
        _
      %p632 = scmp.le.s32.totalorder 1, %s42
      %p633 = scmp.lt.s32.totalorder %s42, 5
      %p634 = pnand %p632, %p633
      %p635 = pneg %p634
      // Predicated region
      $region65: #{transformer_forward.3} parent=5 // pred_check
        _
      $region66: #{transformer_forward.3} parent=5 // pred_check_branch
        %637 = sbr.rel (%p634) target = $region68
      $region67: #{transformer_forward.3} parent=5 // pred_region
        %s638 = ssub.s32 %s42, 1
        %s639 = sand.u32 %s67, 1
        %s640 = scalar_lea.sflag [#allocation3], %s639
        %s641 = sand.u32 %s67, 1
        %s642 = scalar_lea.vmem [#allocation2], %s641
        // Predicated region
        $region69: #{transformer_forward.3} parent=67 // pred_check
          %p643 = pneg %p80
        $region70: #{transformer_forward.3} parent=67 // pred_check_branch
          %645 = sbr.rel (%p643) target = $region72
        $region71: #{transformer_forward.3} parent=67 // pred_region
          %646 = dma.done %s640, 16
        $region72: #{transformer_forward.3} parent=67 // pred_fallthru
          _
        %s647 = sand.u32 %s47, 1
        %s648 = scalar_lea.sflag [#allocation6], %s647
        %s649 = sand.u32 %s93, 1
        %s650 = smul.addr %s649, 4
        %s651 = scalar_lea.vmem [#allocation5], %s650
        // Predicated region
        $region73: #{transformer_forward.3} parent=67 // pred_check
          %p652 = pneg %p106
        $region74: #{transformer_forward.3} parent=67 // pred_check_branch
          %654 = sbr.rel (%p652) target = $region76
        $region75: #{transformer_forward.3} parent=67 // pred_region
          %655 = dma.done %s648, 64
        $region76: #{transformer_forward.3} parent=67 // pred_fallthru
          _
        %s656 = sand.u32 %s47, 1
        %s657 = scalar_lea.sflag [#allocation6], %s656
        %s658 = sand.u32 %s119, 1
        %s659 = smul.addr %s658, 16
        %s660 = scalar_lea.vmem [#allocation7], %s659
        // Predicated region
        $region77: #{transformer_forward.3} parent=67 // pred_check
          %p661 = pneg %p132
        $region78: #{transformer_forward.3} parent=67 // pred_check_branch
          %663 = sbr.rel (%p661) target = $region80
        $region79: #{transformer_forward.3} parent=67 // pred_region
          %664 = dma.done %s657, 256
        $region80: #{transformer_forward.3} parent=67 // pred_fallthru
          _
        %s665 = sand.u32 %s47, 1
        %s666 = scalar_lea.sflag [#allocation9], %s665
        %s667 = sand.u32 %s145, 1
        %s668 = scalar_lea.vmem [#allocation8], %s667
        // Predicated region
        $region81: #{transformer_forward.3} parent=67 // pred_check
          %p669 = pneg %p158
        $region82: #{transformer_forward.3} parent=67 // pred_check_branch
          %671 = sbr.rel (%p669) target = $region84
        $region83: #{transformer_forward.3} parent=67 // pred_region
          %672 = dma.done %s666, 16
        $region84: #{transformer_forward.3} parent=67 // pred_fallthru
          _
        %s673 = sand.u32 %s47, 1
        %s674 = scalar_lea.sflag [#allocation9], %s673
        %s675 = sand.u32 %s171, 1
        %s676 = smul.addr %s675, 16
        %s677 = scalar_lea.vmem [#allocation10], %s676
        // Predicated region
        $region85: #{transformer_forward.3} parent=67 // pred_check
          %p678 = pneg %p184
        $region86: #{transformer_forward.3} parent=67 // pred_check_branch
          %680 = sbr.rel (%p678) target = $region88
        $region87: #{transformer_forward.3} parent=67 // pred_region
          %681 = dma.done %s674, 256
        $region88: #{transformer_forward.3} parent=67 // pred_fallthru
          _
        %s682 = sand.u32 %s47, 1
        %s683 = scalar_lea.sflag [#allocation12], %s682
        %s684 = sand.u32 %s197, 1
        %s685 = scalar_lea.vmem [#allocation11], %s684
        // Predicated region
        $region89: #{transformer_forward.3} parent=67 // pred_check
          %p686 = pneg %p210
        $region90: #{transformer_forward.3} parent=67 // pred_check_branch
          %688 = sbr.rel (%p686) target = $region92
        $region91: #{transformer_forward.3} parent=67 // pred_region
          %689 = dma.done %s683, 16
        $region92: #{transformer_forward.3} parent=67 // pred_fallthru
          _
        %s690 = sand.u32 %s47, 1
        %s691 = scalar_lea.sflag [#allocation12], %s690
        %s692 = sand.u32 %s223, 1
        %s693 = scalar_lea.vmem [#allocation13], %s692
        // Predicated region
        $region93: #{transformer_forward.3} parent=67 // pred_check
          %p694 = pneg %p236
        $region94: #{transformer_forward.3} parent=67 // pred_check_branch
          %696 = sbr.rel (%p694) target = $region96
        $region95: #{transformer_forward.3} parent=67 // pred_region
          %697 = dma.done %s691, 16
        $region96: #{transformer_forward.3} parent=67 // pred_fallthru
          _
        %s698 = sand.u32 %s47, 1
        %s699 = scalar_lea.sflag [#allocation15], %s698
        %s700 = sand.u32 %s249, 1
        %s701 = scalar_lea.vmem [#allocation14], %s700
        // Predicated region
        $region97: #{transformer_forward.3} parent=67 // pred_check
          %p702 = pneg %p262
        $region98: #{transformer_forward.3} parent=67 // pred_check_branch
          %704 = sbr.rel (%p702) target = $region100
        $region99: #{transformer_forward.3} parent=67 // pred_region
          %705 = dma.done %s699, 16
        $region100: #{transformer_forward.3} parent=67 // pred_fallthru
          _
        %s706 = sand.u32 %s47, 1
        %s707 = scalar_lea.sflag [#allocation15], %s706
        %s708 = sand.u32 %s275, 1
        %s709 = smul.addr %s708, 16
        %s710 = scalar_lea.vmem [#allocation16], %s709
        // Predicated region
        $region101: #{transformer_forward.3} parent=67 // pred_check
          %p711 = pneg %p288
        $region102: #{transformer_forward.3} parent=67 // pred_check_branch
          %713 = sbr.rel (%p711) target = $region104
        $region103: #{transformer_forward.3} parent=67 // pred_region
          %714 = dma.done %s707, 256
        $region104: #{transformer_forward.3} parent=67 // pred_fallthru
          _
        %s715 = sand.u32 %s47, 1
        %s716 = scalar_lea.sflag [#allocation18], %s715
        %s717 = sand.u32 %s301, 1
        %s718 = scalar_lea.vmem [#allocation17], %s717
        // Predicated region
        $region105: #{transformer_forward.3} parent=67 // pred_check
          %p719 = pneg %p314
        $region106: #{transformer_forward.3} parent=67 // pred_check_branch
          %721 = sbr.rel (%p719) target = $region108
        $region107: #{transformer_forward.3} parent=67 // pred_region
          %722 = dma.done %s716, 16
        $region108: #{transformer_forward.3} parent=67 // pred_fallthru
          _
        %s723 = sand.u32 %s47, 1
        %s724 = scalar_lea.sflag [#allocation18], %s723
        %s725 = sand.u32 %s327, 1
        %s726 = smul.addr %s725, 64
        %s727 = scalar_lea.vmem [#allocation19], %s726
        // Predicated region
        $region109: #{transformer_forward.3} parent=67 // pred_check
          %p728 = pneg %p340
        $region110: #{transformer_forward.3} parent=67 // pred_check_branch
          %730 = sbr.rel (%p728) target = $region112
        $region111: #{transformer_forward.3} parent=67 // pred_region
          %731 = dma.done %s724, 1024
        $region112: #{transformer_forward.3} parent=67 // pred_fallthru
          _
        %s732 = sand.u32 %s353, 1
        %s733 = scalar_lea.sflag [#allocation21], %s732
        %s734 = sand.u32 %s353, 1
        %s735 = scalar_lea.vmem [#allocation20], %s734
        // Predicated region
        $region113: #{transformer_forward.3} parent=67 // pred_check
          %p736 = pneg %p366
        $region114: #{transformer_forward.3} parent=67 // pred_check_branch
          %738 = sbr.rel (%p736) target = $region116
        $region115: #{transformer_forward.3} parent=67 // pred_region
          %739 = dma.done %s733, 16
        $region116: #{transformer_forward.3} parent=67 // pred_fallthru
          _
        %s740 = sand.u32 %s67, 1
        %s741 = scalar_lea.sflag [#allocation3], %s740
        %s742 = sand.u32 %s67, 1
        %s743 = scalar_lea.vmem [#allocation2], %s742
        %p744 = pneg %p80
        %p745 = pneg %p77
        %s746 = sand.u32 %s47, 1
        %s747 = scalar_lea.sflag [#allocation6], %s746
        %s748 = sand.u32 %s93, 1
        %s749 = smul.addr %s748, 4
        %s750 = scalar_lea.vmem [#allocation5], %s749
        %p751 = pneg %p106
        %p752 = pneg %p103
        %s753 = sand.u32 %s47, 1
        %s754 = scalar_lea.sflag [#allocation6], %s753
        %s755 = sand.u32 %s119, 1
        %s756 = smul.addr %s755, 16
        %s757 = scalar_lea.vmem [#allocation7], %s756
        %p758 = pneg %p132
        %p759 = pneg %p129
        %s760 = sand.u32 %s47, 1
        %s761 = scalar_lea.sflag [#allocation9], %s760
        %s762 = sand.u32 %s145, 1
        %s763 = scalar_lea.vmem [#allocation8], %s762
        %p764 = pneg %p158
        %p765 = pneg %p155
        %s766 = sand.u32 %s47, 1
        %s767 = scalar_lea.sflag [#allocation9], %s766
        %s768 = sand.u32 %s171, 1
        %s769 = smul.addr %s768, 16
        %s770 = scalar_lea.vmem [#allocation10], %s769
        %p771 = pneg %p184
        %p772 = pneg %p181
        %s773 = sand.u32 %s47, 1
        %s774 = scalar_lea.sflag [#allocation12], %s773
        %s775 = sand.u32 %s197, 1
        %s776 = scalar_lea.vmem [#allocation11], %s775
        %p777 = pneg %p210
        %p778 = pneg %p207
        %s779 = sand.u32 %s47, 1
        %s780 = scalar_lea.sflag [#allocation12], %s779
        %s781 = sand.u32 %s223, 1
        %s782 = scalar_lea.vmem [#allocation13], %s781
        %p783 = pneg %p236
        %p784 = pneg %p233
        %s785 = sand.u32 %s47, 1
        %s786 = scalar_lea.sflag [#allocation15], %s785
        %s787 = sand.u32 %s249, 1
        %s788 = scalar_lea.vmem [#allocation14], %s787
        %p789 = pneg %p262
        %p790 = pneg %p259
        %s791 = sand.u32 %s47, 1
        %s792 = scalar_lea.sflag [#allocation15], %s791
        %s793 = sand.u32 %s275, 1
        %s794 = smul.addr %s793, 16
        %s795 = scalar_lea.vmem [#allocation16], %s794
        %p796 = pneg %p288
        %p797 = pneg %p285
        %s798 = sand.u32 %s47, 1
        %s799 = scalar_lea.sflag [#allocation18], %s798
        %s800 = sand.u32 %s301, 1
        %s801 = scalar_lea.vmem [#allocation17], %s800
        %p802 = pneg %p314
        %p803 = pneg %p311
        %s804 = sand.u32 %s47, 1
        %s805 = scalar_lea.sflag [#allocation18], %s804
        %s806 = sand.u32 %s327, 1
        %s807 = smul.addr %s806, 64
        %s808 = scalar_lea.vmem [#allocation19], %s807
        %p809 = pneg %p340
        %p810 = pneg %p337
        %s811 = sand.u32 %s353, 1
        %s812 = scalar_lea.sflag [#allocation21], %s811
        %s813 = sand.u32 %s353, 1
        %s814 = scalar_lea.vmem [#allocation20], %s813
        %p815 = pneg %p366
        %p816 = pneg %p363
        %p817 = pneg %p392
        %p818 = pneg %p389
        %s819 = sand.u32 %s379, 1
        %s820 = scalar_lea.sflag [#allocation4], %s819
        %s821 = sand.u32 %s379, 1
        %s822 = smul.addr %s821, 4
        %s823 = scalar_lea.vmem [#allocation22], %s822
        %p825 = scmp.eq.s32.totalorder %s52, 0
        // Predicated region
        $region117: #{transformer_forward.3} parent=67 // pred_check
          %p826 = pneg %p825
        $region118: #{transformer_forward.3} parent=67 // pred_check_branch
          %828 = sbr.rel (%p826) target = $region120
        $region119: #{transformer_forward.3} parent=67 // pred_region
          %v829 = vld [vmem:[%s651] sm:$0xf]
          %vm830 = vcmask 257024
          %831 = vst.msk [vmem:[%s823] sm:$0xf] %vm830, %v829
        $region120: #{transformer_forward.3} parent=67 // pred_fallthru
          _
        %v832 = vld [vmem:[%s823] sm:$0xf]
        %v833 = vunpack.c.l.bf16 %v832
        %v834 = vld [vmem:[%s660] sm:$0xf]
        %v835 = vld [vmem:[%s660 + $0x4] sm:$0xf]
        %v836 = vld [vmem:[%s660 + $0x8] sm:$0xf]
        %v837 = vld [vmem:[%s660 + $0xc] sm:$0xf]
        %v838 = vld [vmem:[%s668] sm:$0x1]
        %v840 = vlaneseq
        %v841 = vshrl.u32 %v840, 7
        %v842 = vsub.s32 0, %v841
        %v843 = vrot.slane %v838, %v842
        %v849 = vunpack.c.l.b16 %v834
        %v850 = vunpack.c.l.b16 %v835
        %v851 = vunpack.c.l.b16 %v836
        %v852 = vunpack.c.l.b16 %v837
        %v853 = vpack.c.b16 %v850, %v849
        %v854 = vpack.c.b16 %v852, %v851
        %vm857 = vcmask 261120
        %v859 = vsel %vm857, %v832, 0
        %861 = vmatprep.subr.bf16.mxu0 0
        %862 = vmatpush1.bf16.msra.mxu0 %v853
        %863 = vmatprep.subr.bf16.mxu0 0
        %864 = vmatpush1.bf16.msra.mxu0 %v854
        %865 = vmatprep.subr.bf16.mxu0 0
        %866 = vmatpush1.bf16.msra.mxu0 0
        %867 = vmatprep.subr.bf16.mxu0 0
        %868 = vmatpush1.bf16.msra.mxu0 0
        %869 = vmatprep.subr.bf16.mxu0 0
        %870 = vmatpush1.bf16.msra.mxu0 0
        %871 = vmatprep.subr.bf16.mxu0 0
        %872 = vmatpush1.bf16.msra.mxu0 0
        %873 = vmatprep.subr.bf16.mxu0 0
        %874 = vmatpush1.bf16.msra.mxu0 0
        %875 = vmatprep.subr.bf16.mxu0 0
        %876 = vmatpush1.bf16.msra.mxu0 0
        %877 = vmatprep.subr.bf16.mxu0 0
        %878 = vmatpush1.bf16.msra.mxu0 0
        %879 = vmatprep.subr.bf16.mxu0 0
        %880 = vmatpush1.bf16.msra.mxu0 0
        %881 = vmatprep.subr.bf16.mxu0 0
        %882 = vmatpush1.bf16.msra.mxu0 0
        %883 = vmatprep.subr.bf16.mxu0 0
        %884 = vmatpush1.bf16.msra.mxu0 0
        %885 = vmatprep.subr.bf16.mxu0 0
        %886 = vmatpush1.bf16.msra.mxu0 0
        %887 = vmatprep.subr.bf16.mxu0 0
        %888 = vmatpush1.bf16.msra.mxu0 0
        %889 = vmatprep.subr.bf16.mxu0 0
        %890 = vmatpush1.bf16.msra.mxu0 0
        %891 = vmatprep.subr.bf16.mxu0 0
        %892 = vmatpush1.bf16.msra.mxu0 0
        %893 = vmatprep.mubr.bf16.mxu0 0
        %894 = vmatmul.mubr.bf16.gmra.mrb[0].mxu0 %v859
        %v895 = vpop.f32.mrb[0].mxu0
        %v896 = vadd.f32 %v843, %v895
        %v897 = vpop.f32.mrb[0].mxu0
        %v898 = vpop.f32.mrb[0].mxu0
        %v899 = vpop.f32.mrb[0].mxu0
        %900 = vdwg.mxu0
        %v901 = vpack.c.bf16 %v896, %v896
        %v902 = vld [vmem:[%s642] sm:$0x1]
        %vm903 = vcmp.gt.f32.partialorder %v902, 0.0
        %v904 = vsel %vm903, -1e+09, 0.0
        %v906 = vlaneseq
        %v907 = vshrl.u32 %v906, 7
        %v908 = vsub.s32 0, %v907
        %v909 = vrot.slane %v904, %v908
        %v911 = vld [vmem:[%s677] sm:$0xf]
        %v912 = vld [vmem:[%s677 + $0x4] sm:$0xf]
        %v913 = vld [vmem:[%s677 + $0x8] sm:$0xf]
        %v914 = vld [vmem:[%s677 + $0xc] sm:$0xf]
        %916 = vrot.lane.b32.xlu0 %v901, 96
        %v917 = vpop.permute.xlu0 %916
        %vm918 = vcmask 64512
        %v920 = vsel %vm918, %v901, 0
        %v923 = vsel %vm918, %v917, 0
        %925 = vmatprep.subr.bf16.mxu0 0
        %926 = vmatpush1.bf16.xpose.msra.mxu0 %v923
        %927 = vmatprep.subr.bf16.mxu0 0
        %928 = vmatpush1.bf16.xpose.msra.mxu0 0
        %929 = vmatprep.subr.bf16.mxu0 0
        %930 = vmatpush1.bf16.xpose.msra.mxu0 0
        %931 = vmatprep.subr.bf16.mxu0 0
        %932 = vmatpush1.bf16.xpose.msra.mxu0 0
        %933 = vmatprep.subr.bf16.mxu0 0
        %934 = vmatpush1.bf16.xpose.msra.mxu0 0
        %935 = vmatprep.subr.bf16.mxu0 0
        %936 = vmatpush1.bf16.xpose.msra.mxu0 0
        %937 = vmatprep.subr.bf16.mxu0 0
        %938 = vmatpush1.bf16.xpose.msra.mxu0 0
        %939 = vmatprep.subr.bf16.mxu0 0
        %940 = vmatpush1.bf16.xpose.msra.mxu0 0
        %941 = vmatprep.subr.bf16.mxu0 0
        %942 = vmatpush1.bf16.xpose.msra.mxu0 0
        %943 = vmatprep.subr.bf16.mxu0 0
        %944 = vmatpush1.bf16.xpose.msra.mxu0 0
        %945 = vmatprep.subr.bf16.mxu0 0
        %946 = vmatpush1.bf16.xpose.msra.mxu0 0
        %947 = vmatprep.subr.bf16.mxu0 0
        %948 = vmatpush1.bf16.xpose.msra.mxu0 0
        %949 = vmatprep.subr.bf16.mxu0 0
        %950 = vmatpush1.bf16.xpose.msra.mxu0 0
        %951 = vmatprep.subr.bf16.mxu0 0
        %952 = vmatpush1.bf16.xpose.msra.mxu0 0
        %953 = vmatprep.subr.bf16.mxu0 0
        %954 = vmatpush1.bf16.xpose.msra.mxu0 0
        %955 = vmatprep.subr.bf16.mxu0 0
        %956 = vmatpush1.bf16.xpose.msra.mxu0 0
        %957 = vmatprep.mubr.bf16.mxu0 0
        %958 = vmatmul.mubr.bf16.gmra.mrb[0].mxu0 %v920
        %v959 = vpop.f32.mrb[0].mxu0
        %v960 = vadd.f32 0.0, %v959
        %v961 = vpop.f32.mrb[0].mxu0
        %v962 = vpop.f32.mrb[0].mxu0
        %v963 = vpop.f32.mrb[0].mxu0
        %964 = vdwg.mxu0
        %v965 = vmul.f32 %v960, 0.35355338
        %v966 = vadd.f32 %v965, %v909
        %v967 = vsel %vm918, %v966, -inf
        %968 = vmax.xlane.f32.xlu0 %v967
        %v969 = vpop.xlane.xlu0 %968
        %v970 = vsub.f32 %v966, %v969
        %v971 = vmul.f32 %v970, 1.442695
        %v972 = vpow.pop %v971
        %v973 = vsel %vm918, %v972, 0.0
        %974 = vadd.xlane.f32.xlu0 %v973
        %v975 = vpop.xlane.xlu0 %974
        %v976 = vrcp.pop %v975
        %v977 = vmul.f32 %v972, %v976
        %v978 = vpack.c.bf16 %v977, %v977
        %979 = vrot.lane.b32.xlu0 %v901, 64
        %v980 = vpop.permute.xlu0 %979
        %v982 = vsel %vm918, %v978, 0
        %vm984 = vcmask 1043456
        %v986 = vsel %vm984, %v980, 0
        %988 = vmatprep.subr.bf16.mxu0 0
        %989 = vmatpush1.bf16.msra.mxu0 %v986
        %990 = vmatprep.subr.bf16.mxu0 0
        %991 = vmatpush1.bf16.msra.mxu0 0
        %992 = vmatprep.subr.bf16.mxu0 0
        %993 = vmatpush1.bf16.msra.mxu0 0
        %994 = vmatprep.subr.bf16.mxu0 0
        %995 = vmatpush1.bf16.msra.mxu0 0
        %996 = vmatprep.subr.bf16.mxu0 0
        %997 = vmatpush1.bf16.msra.mxu0 0
        %998 = vmatprep.subr.bf16.mxu0 0
        %999 = vmatpush1.bf16.msra.mxu0 0
        %1000 = vmatprep.subr.bf16.mxu0 0
        %1001 = vmatpush1.bf16.msra.mxu0 0
        %1002 = vmatprep.subr.bf16.mxu0 0
        %1003 = vmatpush1.bf16.msra.mxu0 0
        %1004 = vmatprep.subr.bf16.mxu0 0
        %1005 = vmatpush1.bf16.msra.mxu0 0
        %1006 = vmatprep.subr.bf16.mxu0 0
        %1007 = vmatpush1.bf16.msra.mxu0 0
        %1008 = vmatprep.subr.bf16.mxu0 0
        %1009 = vmatpush1.bf16.msra.mxu0 0
        %1010 = vmatprep.subr.bf16.mxu0 0
        %1011 = vmatpush1.bf16.msra.mxu0 0
        %1012 = vmatprep.subr.bf16.mxu0 0
        %1013 = vmatpush1.bf16.msra.mxu0 0
        %1014 = vmatprep.subr.bf16.mxu0 0
        %1015 = vmatpush1.bf16.msra.mxu0 0
        %1016 = vmatprep.subr.bf16.mxu0 0
        %1017 = vmatpush1.bf16.msra.mxu0 0
        %1018 = vmatprep.subr.bf16.mxu0 0
        %1019 = vmatpush1.bf16.msra.mxu0 0
        %1020 = vmatprep.mubr.bf16.mxu0 0
        %1021 = vmatmul.mubr.bf16.gmra.mrb[0].mxu0 %v982
        %v1022 = vpop.f32.mrb[0].mxu0
        %v1023 = vadd.f32 0.0, %v1022
        %v1024 = vpop.f32.mrb[0].mxu0
        %v1025 = vpop.f32.mrb[0].mxu0
        %v1026 = vpop.f32.mrb[0].mxu0
        %1027 = vdwg.mxu0
        %v1028 = vpack.c.bf16 %v1023, %v1023
        %1029 = vrot.lane.b32.xlu0 %v901, 120
        %v1030 = vpop.permute.xlu0 %1029
        %1031 = vrot.lane.b32.xlu0 %v901, 88
        %v1032 = vpop.permute.xlu0 %1031
        %v1034 = vsel %vm918, %v1030, 0
        %v1037 = vsel %vm918, %v1032, 0
        %1039 = vmatprep.subr.bf16.mxu0 0
        %1040 = vmatpush1.bf16.xpose.msra.mxu0 %v1037
        %1041 = vmatprep.subr.bf16.mxu0 0
        %1042 = vmatpush1.bf16.xpose.msra.mxu0 0
        %1043 = vmatprep.subr.bf16.mxu0 0
        %1044 = vmatpush1.bf16.xpose.msra.mxu0 0
        %1045 = vmatprep.subr.bf16.mxu0 0
        %1046 = vmatpush1.bf16.xpose.msra.mxu0 0
        %1047 = vmatprep.subr.bf16.mxu0 0
        %1048 = vmatpush1.bf16.xpose.msra.mxu0 0
        %1049 = vmatprep.subr.bf16.mxu0 0
        %1050 = vmatpush1.bf16.xpose.msra.mxu0 0
        %1051 = vmatprep.subr.bf16.mxu0 0
        %1052 = vmatpush1.bf16.xpose.msra.mxu0 0
        %1053 = vmatprep.subr.bf16.mxu0 0
        %1054 = vmatpush1.bf16.xpose.msra.mxu0 0
        %1055 = vmatprep.subr.bf16.mxu0 0
        %1056 = vmatpush1.bf16.xpose.msra.mxu0 0
        %1057 = vmatprep.subr.bf16.mxu0 0
        %1058 = vmatpush1.bf16.xpose.msra.mxu0 0
        %1059 = vmatprep.subr.bf16.mxu0 0
        %1060 = vmatpush1.bf16.xpose.msra.mxu0 0
        %1061 = vmatprep.subr.bf16.mxu0 0
        %1062 = vmatpush1.bf16.xpose.msra.mxu0 0
        %1063 = vmatprep.subr.bf16.mxu0 0
        %1064 = vmatpush1.bf16.xpose.msra.mxu0 0
        %1065 = vmatprep.subr.bf16.mxu0 0
        %1066 = vmatpush1.bf16.xpose.msra.mxu0 0
        %1067 = vmatprep.subr.bf16.mxu0 0
        %1068 = vmatpush1.bf16.xpose.msra.mxu0 0
        %1069 = vmatprep.subr.bf16.mxu0 0
        %1070 = vmatpush1.bf16.xpose.msra.mxu0 0
        %1071 = vmatprep.mubr.bf16.mxu0 0
        %1072 = vmatmul.mubr.bf16.gmra.mrb[0].mxu0 %v1034
        %v1073 = vpop.f32.mrb[0].mxu0
        %v1074 = vadd.f32 0.0, %v1073
        %v1075 = vpop.f32.mrb[0].mxu0
        %v1076 = vpop.f32.mrb[0].mxu0
        %v1077 = vpop.f32.mrb[0].mxu0
        %1078 = vdwg.mxu0
        %v1079 = vmul.f32 %v1074, 0.35355338
        %v1080 = vadd.f32 %v1079, %v909
        %v1081 = vsel %vm918, %v1080, -inf
        %1082 = vmax.xlane.f32.xlu0 %v1081
        %v1083 = vpop.xlane.xlu0 %1082
        %v1084 = vsub.f32 %v1080, %v1083
        %v1085 = vmul.f32 %v1084, 1.442695
        %v1086 = vpow.pop %v1085
        %v1087 = vsel %vm918, %v1086, 0.0
        %1088 = vadd.xlane.f32.xlu0 %v1087
        %v1089 = vpop.xlane.xlu0 %1088
        %v1090 = vrcp.pop %v1089
        %v1091 = vmul.f32 %v1086, %v1090
        %v1092 = vpack.c.bf16 %v1091, %v1091
        %1093 = vrot.lane.b32.xlu0 %v901, 56
        %v1094 = vpop.permute.xlu0 %1093
        %v1096 = vsel %vm918, %v1092, 0
        %v1099 = vsel %vm984, %v1094, 0
        %1101 = vmatprep.subr.bf16.mxu0 0
        %1102 = vmatpush1.bf16.msra.mxu0 %v1099
        %1103 = vmatprep.subr.bf16.mxu0 0
        %1104 = vmatpush1.bf16.msra.mxu0 0
        %1105 = vmatprep.subr.bf16.mxu0 0
        %1106 = vmatpush1.bf16.msra.mxu0 0
        %1107 = vmatprep.subr.bf16.mxu0 0
        %1108 = vmatpush1.bf16.msra.mxu0 0
        %1109 = vmatprep.subr.bf16.mxu0 0
        %1110 = vmatpush1.bf16.msra.mxu0 0
        %1111 = vmatprep.subr.bf16.mxu0 0
        %1112 = vmatpush1.bf16.msra.mxu0 0
        %1113 = vmatprep.subr.bf16.mxu0 0
        %1114 = vmatpush1.bf16.msra.mxu0 0
        %1115 = vmatprep.subr.bf16.mxu0 0
        %1116 = vmatpush1.bf16.msra.mxu0 0
        %1117 = vmatprep.subr.bf16.mxu0 0
        %1118 = vmatpush1.bf16.msra.mxu0 0
        %1119 = vmatprep.subr.bf16.mxu0 0
        %1120 = vmatpush1.bf16.msra.mxu0 0
        %1121 = vmatprep.subr.bf16.mxu0 0
        %1122 = vmatpush1.bf16.msra.mxu0 0
        %1123 = vmatprep.subr.bf16.mxu0 0
        %1124 = vmatpush1.bf16.msra.mxu0 0
        %1125 = vmatprep.subr.bf16.mxu0 0
        %1126 = vmatpush1.bf16.msra.mxu0 0
        %1127 = vmatprep.subr.bf16.mxu0 0
        %1128 = vmatpush1.bf16.msra.mxu0 0
        %1129 = vmatprep.subr.bf16.mxu0 0
        %1130 = vmatpush1.bf16.msra.mxu0 0
        %1131 = vmatprep.subr.bf16.mxu0 0
        %1132 = vmatpush1.bf16.msra.mxu0 0
        %1133 = vmatprep.mubr.bf16.mxu0 0
        %1134 = vmatmul.mubr.bf16.gmra.mrb[0].mxu0 %v1096
        %v1135 = vpop.f32.mrb[0].mxu0
        %v1136 = vadd.f32 0.0, %v1135
        %v1137 = vpop.f32.mrb[0].mxu0
        %v1138 = vpop.f32.mrb[0].mxu0
        %v1139 = vpop.f32.mrb[0].mxu0
        %1140 = vdwg.mxu0
        %v1141 = vpack.c.bf16 %v1136, %v1136
        %v1143 = vsel %vm918, %v1141, 0
        %v1146 = vsel %vm984, %v912, 0
        %1148 = vmatprep.subr.bf16.mxu0 0
        %1149 = vmatpush1.bf16.msra.mxu0 %v1146
        %1150 = vmatprep.subr.bf16.mxu0 0
        %1151 = vmatpush1.bf16.msra.mxu0 0
        %1152 = vmatprep.subr.bf16.mxu0 0
        %1153 = vmatpush1.bf16.msra.mxu0 0
        %1154 = vmatprep.subr.bf16.mxu0 0
        %1155 = vmatpush1.bf16.msra.mxu0 0
        %1156 = vmatprep.subr.bf16.mxu0 0
        %1157 = vmatpush1.bf16.msra.mxu0 0
        %1158 = vmatprep.subr.bf16.mxu0 0
        %1159 = vmatpush1.bf16.msra.mxu0 0
        %1160 = vmatprep.subr.bf16.mxu0 0
        %1161 = vmatpush1.bf16.msra.mxu0 0
        %1162 = vmatprep.subr.bf16.mxu0 0
        %1163 = vmatpush1.bf16.msra.mxu0 0
        %1164 = vmatprep.subr.bf16.mxu0 0
        %1165 = vmatpush1.bf16.msra.mxu0 0
        %1166 = vmatprep.subr.bf16.mxu0 0
        %1167 = vmatpush1.bf16.msra.mxu0 0
        %1168 = vmatprep.subr.bf16.mxu0 0
        %1169 = vmatpush1.bf16.msra.mxu0 0
        %1170 = vmatprep.subr.bf16.mxu0 0
        %1171 = vmatpush1.bf16.msra.mxu0 0
        %1172 = vmatprep.subr.bf16.mxu0 0
        %1173 = vmatpush1.bf16.msra.mxu0 0
        %1174 = vmatprep.subr.bf16.mxu0 0
        %1175 = vmatpush1.bf16.msra.mxu0 0
        %1176 = vmatprep.subr.bf16.mxu0 0
        %1177 = vmatpush1.bf16.msra.mxu0 0
        %1178 = vmatprep.subr.bf16.mxu0 0
        %1179 = vmatpush1.bf16.msra.mxu0 0
        %1180 = vmatprep.mubr.bf16.mxu0 0
        %1181 = vmatmul.mubr.bf16.gmra.mrb[0].mxu0 %v1143
        %v1182 = vpop.f32.mrb[0].mxu0
        %v1183 = vadd.f32 0.0, %v1182
        %v1184 = vpop.f32.mrb[0].mxu0
        %v1185 = vpop.f32.mrb[0].mxu0
        %v1186 = vpop.f32.mrb[0].mxu0
        %1187 = vdwg.mxu0
        %v1189 = vsel %vm918, %v1028, 0
        %v1192 = vsel %vm984, %v911, 0
        %1194 = vmatprep.subr.bf16.mxu0 0
        %1195 = vmatpush1.bf16.msra.mxu0 %v1192
        %1196 = vmatprep.subr.bf16.mxu0 0
        %1197 = vmatpush1.bf16.msra.mxu0 0
        %1198 = vmatprep.subr.bf16.mxu0 0
        %1199 = vmatpush1.bf16.msra.mxu0 0
        %1200 = vmatprep.subr.bf16.mxu0 0
        %1201 = vmatpush1.bf16.msra.mxu0 0
        %1202 = vmatprep.subr.bf16.mxu0 0
        %1203 = vmatpush1.bf16.msra.mxu0 0
        %1204 = vmatprep.subr.bf16.mxu0 0
        %1205 = vmatpush1.bf16.msra.mxu0 0
        %1206 = vmatprep.subr.bf16.mxu0 0
        %1207 = vmatpush1.bf16.msra.mxu0 0
        %1208 = vmatprep.subr.bf16.mxu0 0
        %1209 = vmatpush1.bf16.msra.mxu0 0
        %1210 = vmatprep.subr.bf16.mxu0 0
        %1211 = vmatpush1.bf16.msra.mxu0 0
        %1212 = vmatprep.subr.bf16.mxu0 0
        %1213 = vmatpush1.bf16.msra.mxu0 0
        %1214 = vmatprep.subr.bf16.mxu0 0
        %1215 = vmatpush1.bf16.msra.mxu0 0
        %1216 = vmatprep.subr.bf16.mxu0 0
        %1217 = vmatpush1.bf16.msra.mxu0 0
        %1218 = vmatprep.subr.bf16.mxu0 0
        %1219 = vmatpush1.bf16.msra.mxu0 0
        %1220 = vmatprep.subr.bf16.mxu0 0
        %1221 = vmatpush1.bf16.msra.mxu0 0
        %1222 = vmatprep.subr.bf16.mxu0 0
        %1223 = vmatpush1.bf16.msra.mxu0 0
        %1224 = vmatprep.subr.bf16.mxu0 0
        %1225 = vmatpush1.bf16.msra.mxu0 0
        %1226 = vmatprep.mubr.bf16.mxu0 0
        %1227 = vmatmul.mubr.bf16.gmra.mrb[0].mxu0 %v1189
        %v1228 = vpop.f32.mrb[0].mxu0
        %v1229 = vadd.f32 %v1183, %v1228
        %v1230 = vpop.f32.mrb[0].mxu0
        %v1231 = vpop.f32.mrb[0].mxu0
        %v1232 = vpop.f32.mrb[0].mxu0
        %1233 = vdwg.mxu0
        %1234 = vrot.lane.b32.xlu0 %v901, 112
        %v1235 = vpop.permute.xlu0 %1234
        %1236 = vrot.lane.b32.xlu0 %v901, 80
        %v1237 = vpop.permute.xlu0 %1236
        %v1239 = vsel %vm918, %v1235, 0
        %v1242 = vsel %vm918, %v1237, 0
        %1244 = vmatprep.subr.bf16.mxu0 0
        %1245 = vmatpush1.bf16.xpose.msra.mxu0 %v1242
        %1246 = vmatprep.subr.bf16.mxu0 0
        %1247 = vmatpush1.bf16.xpose.msra.mxu0 0
        %1248 = vmatprep.subr.bf16.mxu0 0
        %1249 = vmatpush1.bf16.xpose.msra.mxu0 0
        %1250 = vmatprep.subr.bf16.mxu0 0
        %1251 = vmatpush1.bf16.xpose.msra.mxu0 0
        %1252 = vmatprep.subr.bf16.mxu0 0
        %1253 = vmatpush1.bf16.xpose.msra.mxu0 0
        %1254 = vmatprep.subr.bf16.mxu0 0
        %1255 = vmatpush1.bf16.xpose.msra.mxu0 0
        %1256 = vmatprep.subr.bf16.mxu0 0
        %1257 = vmatpush1.bf16.xpose.msra.mxu0 0
        %1258 = vmatprep.subr.bf16.mxu0 0
        %1259 = vmatpush1.bf16.xpose.msra.mxu0 0
        %1260 = vmatprep.subr.bf16.mxu0 0
        %1261 = vmatpush1.bf16.xpose.msra.mxu0 0
        %1262 = vmatprep.subr.bf16.mxu0 0
        %1263 = vmatpush1.bf16.xpose.msra.mxu0 0
        %1264 = vmatprep.subr.bf16.mxu0 0
        %1265 = vmatpush1.bf16.xpose.msra.mxu0 0
        %1266 = vmatprep.subr.bf16.mxu0 0
        %1267 = vmatpush1.bf16.xpose.msra.mxu0 0
        %1268 = vmatprep.subr.bf16.mxu0 0
        %1269 = vmatpush1.bf16.xpose.msra.mxu0 0
        %1270 = vmatprep.subr.bf16.mxu0 0
        %1271 = vmatpush1.bf16.xpose.msra.mxu0 0
        %1272 = vmatprep.subr.bf16.mxu0 0
        %1273 = vmatpush1.bf16.xpose.msra.mxu0 0
        %1274 = vmatprep.subr.bf16.mxu0 0
        %1275 = vmatpush1.bf16.xpose.msra.mxu0 0
        %1276 = vmatprep.mubr.bf16.mxu0 0
        %1277 = vmatmul.mubr.bf16.gmra.mrb[0].mxu0 %v1239
        %v1278 = vpop.f32.mrb[0].mxu0
        %v1279 = vadd.f32 0.0, %v1278
        %v1280 = vpop.f32.mrb[0].mxu0
        %v1281 = vpop.f32.mrb[0].mxu0
        %v1282 = vpop.f32.mrb[0].mxu0
        %1283 = vdwg.mxu0
        %v1284 = vmul.f32 %v1279, 0.35355338
        %v1285 = vadd.f32 %v1284, %v909
        %v1286 = vsel %vm918, %v1285, -inf
        %1287 = vmax.xlane.f32.xlu0 %v1286
        %v1288 = vpop.xlane.xlu0 %1287
        %v1289 = vsub.f32 %v1285, %v1288
        %v1290 = vmul.f32 %v1289, 1.442695
        %v1291 = vpow.pop %v1290
        %v1292 = vsel %vm918, %v1291, 0.0
        %1293 = vadd.xlane.f32.xlu0 %v1292
        %v1294 = vpop.xlane.xlu0 %1293
        %v1295 = vrcp.pop %v1294
        %v1296 = vmul.f32 %v1291, %v1295
        %v1297 = vpack.c.bf16 %v1296, %v1296
        %1298 = vrot.lane.b32.xlu0 %v901, 48
        %v1299 = vpop.permute.xlu0 %1298
        %v1301 = vsel %vm918, %v1297, 0
        %v1304 = vsel %vm984, %v1299, 0
        %1306 = vmatprep.subr.bf16.mxu0 0
        %1307 = vmatpush1.bf16.msra.mxu0 %v1304
        %1308 = vmatprep.subr.bf16.mxu0 0
        %1309 = vmatpush1.bf16.msra.mxu0 0
        %1310 = vmatprep.subr.bf16.mxu0 0
        %1311 = vmatpush1.bf16.msra.mxu0 0
        %1312 = vmatprep.subr.bf16.mxu0 0
        %1313 = vmatpush1.bf16.msra.mxu0 0
        %1314 = vmatprep.subr.bf16.mxu0 0
        %1315 = vmatpush1.bf16.msra.mxu0 0
        %1316 = vmatprep.subr.bf16.mxu0 0
        %1317 = vmatpush1.bf16.msra.mxu0 0
        %1318 = vmatprep.subr.bf16.mxu0 0
        %1319 = vmatpush1.bf16.msra.mxu0 0
        %1320 = vmatprep.subr.bf16.mxu0 0
        %1321 = vmatpush1.bf16.msra.mxu0 0
        %1322 = vmatprep.subr.bf16.mxu0 0
        %1323 = vmatpush1.bf16.msra.mxu0 0
        %1324 = vmatprep.subr.bf16.mxu0 0
        %1325 = vmatpush1.bf16.msra.mxu0 0
        %1326 = vmatprep.subr.bf16.mxu0 0
        %1327 = vmatpush1.bf16.msra.mxu0 0
        %1328 = vmatprep.subr.bf16.mxu0 0
        %1329 = vmatpush1.bf16.msra.mxu0 0
        %1330 = vmatprep.subr.bf16.mxu0 0
        %1331 = vmatpush1.bf16.msra.mxu0 0
        %1332 = vmatprep.subr.bf16.mxu0 0
        %1333 = vmatpush1.bf16.msra.mxu0 0
        %1334 = vmatprep.subr.bf16.mxu0 0
        %1335 = vmatpush1.bf16.msra.mxu0 0
        %1336 = vmatprep.subr.bf16.mxu0 0
        %1337 = vmatpush1.bf16.msra.mxu0 0
        %1338 = vmatprep.mubr.bf16.mxu0 0
        %1339 = vmatmul.mubr.bf16.gmra.mrb[0].mxu0 %v1301
        %v1340 = vpop.f32.mrb[0].mxu0
        %v1341 = vadd.f32 0.0, %v1340
        %v1342 = vpop.f32.mrb[0].mxu0
        %v1343 = vpop.f32.mrb[0].mxu0
        %v1344 = vpop.f32.mrb[0].mxu0
        %1345 = vdwg.mxu0
        %v1346 = vpack.c.bf16 %v1341, %v1341
        %v1348 = vsel %vm918, %v1346, 0
        %v1351 = vsel %vm984, %v913, 0
        %1353 = vmatprep.subr.bf16.mxu0 0
        %1354 = vmatpush1.bf16.msra.mxu0 %v1351
        %1355 = vmatprep.subr.bf16.mxu0 0
        %1356 = vmatpush1.bf16.msra.mxu0 0
        %1357 = vmatprep.subr.bf16.mxu0 0
        %1358 = vmatpush1.bf16.msra.mxu0 0
        %1359 = vmatprep.subr.bf16.mxu0 0
        %1360 = vmatpush1.bf16.msra.mxu0 0
        %1361 = vmatprep.subr.bf16.mxu0 0
        %1362 = vmatpush1.bf16.msra.mxu0 0
        %1363 = vmatprep.subr.bf16.mxu0 0
        %1364 = vmatpush1.bf16.msra.mxu0 0
        %1365 = vmatprep.subr.bf16.mxu0 0
        %1366 = vmatpush1.bf16.msra.mxu0 0
        %1367 = vmatprep.subr.bf16.mxu0 0
        %1368 = vmatpush1.bf16.msra.mxu0 0
        %1369 = vmatprep.subr.bf16.mxu0 0
        %1370 = vmatpush1.bf16.msra.mxu0 0
        %1371 = vmatprep.subr.bf16.mxu0 0
        %1372 = vmatpush1.bf16.msra.mxu0 0
        %1373 = vmatprep.subr.bf16.mxu0 0
        %1374 = vmatpush1.bf16.msra.mxu0 0
        %1375 = vmatprep.subr.bf16.mxu0 0
        %1376 = vmatpush1.bf16.msra.mxu0 0
        %1377 = vmatprep.subr.bf16.mxu0 0
        %1378 = vmatpush1.bf16.msra.mxu0 0
        %1379 = vmatprep.subr.bf16.mxu0 0
        %1380 = vmatpush1.bf16.msra.mxu0 0
        %1381 = vmatprep.subr.bf16.mxu0 0
        %1382 = vmatpush1.bf16.msra.mxu0 0
        %1383 = vmatprep.subr.bf16.mxu0 0
        %1384 = vmatpush1.bf16.msra.mxu0 0
        %1385 = vmatprep.mubr.bf16.mxu0 0
        %1386 = vmatmul.mubr.bf16.gmra.mrb[0].mxu0 %v1348
        %v1387 = vpop.f32.mrb[0].mxu0
        %v1388 = vadd.f32 0.0, %v1387
        %v1389 = vpop.f32.mrb[0].mxu0
        %v1390 = vpop.f32.mrb[0].mxu0
        %v1391 = vpop.f32.mrb[0].mxu0
        %1392 = vdwg.mxu0
        %v1393 = vadd.f32 %v1229, %v1388
        %1394 = vrot.lane.b32.xlu0 %v901, 104
        %v1395 = vpop.permute.xlu0 %1394
        %1396 = vrot.lane.b32.xlu0 %v901, 72
        %v1397 = vpop.permute.xlu0 %1396
        %v1399 = vsel %vm918, %v1395, 0
        %v1402 = vsel %vm918, %v1397, 0
        %1404 = vmatprep.subr.bf16.mxu0 0
        %1405 = vmatpush1.bf16.xpose.msra.mxu0 %v1402
        %1406 = vmatprep.subr.bf16.mxu0 0
        %1407 = vmatpush1.bf16.xpose.msra.mxu0 0
        %1408 = vmatprep.subr.bf16.mxu0 0
        %1409 = vmatpush1.bf16.xpose.msra.mxu0 0
        %1410 = vmatprep.subr.bf16.mxu0 0
        %1411 = vmatpush1.bf16.xpose.msra.mxu0 0
        %1412 = vmatprep.subr.bf16.mxu0 0
        %1413 = vmatpush1.bf16.xpose.msra.mxu0 0
        %1414 = vmatprep.subr.bf16.mxu0 0
        %1415 = vmatpush1.bf16.xpose.msra.mxu0 0
        %1416 = vmatprep.subr.bf16.mxu0 0
        %1417 = vmatpush1.bf16.xpose.msra.mxu0 0
        %1418 = vmatprep.subr.bf16.mxu0 0
        %1419 = vmatpush1.bf16.xpose.msra.mxu0 0
        %1420 = vmatprep.subr.bf16.mxu0 0
        %1421 = vmatpush1.bf16.xpose.msra.mxu0 0
        %1422 = vmatprep.subr.bf16.mxu0 0
        %1423 = vmatpush1.bf16.xpose.msra.mxu0 0
        %1424 = vmatprep.subr.bf16.mxu0 0
        %1425 = vmatpush1.bf16.xpose.msra.mxu0 0
        %1426 = vmatprep.subr.bf16.mxu0 0
        %1427 = vmatpush1.bf16.xpose.msra.mxu0 0
        %1428 = vmatprep.subr.bf16.mxu0 0
        %1429 = vmatpush1.bf16.xpose.msra.mxu0 0
        %1430 = vmatprep.subr.bf16.mxu0 0
        %1431 = vmatpush1.bf16.xpose.msra.mxu0 0
        %1432 = vmatprep.subr.bf16.mxu0 0
        %1433 = vmatpush1.bf16.xpose.msra.mxu0 0
        %1434 = vmatprep.subr.bf16.mxu0 0
        %1435 = vmatpush1.bf16.xpose.msra.mxu0 0
        %1436 = vmatprep.mubr.bf16.mxu0 0
        %1437 = vmatmul.mubr.bf16.gmra.mrb[0].mxu0 %v1399
        %v1438 = vpop.f32.mrb[0].mxu0
        %v1439 = vadd.f32 0.0, %v1438
        %v1440 = vpop.f32.mrb[0].mxu0
        %v1441 = vpop.f32.mrb[0].mxu0
        %v1442 = vpop.f32.mrb[0].mxu0
        %1443 = vdwg.mxu0
        %v1444 = vmul.f32 %v1439, 0.35355338
        %v1445 = vadd.f32 %v1444, %v909
        %v1446 = vsel %vm918, %v1445, -inf
        %1447 = vmax.xlane.f32.xlu0 %v1446
        %v1448 = vpop.xlane.xlu0 %1447
        %v1449 = vsub.f32 %v1445, %v1448
        %v1450 = vmul.f32 %v1449, 1.442695
        %v1451 = vpow.pop %v1450
        %v1452 = vsel %vm918, %v1451, 0.0
        %1453 = vadd.xlane.f32.xlu0 %v1452
        %v1454 = vpop.xlane.xlu0 %1453
        %v1455 = vrcp.pop %v1454
        %v1456 = vmul.f32 %v1451, %v1455
        %v1457 = vpack.c.bf16 %v1456, %v1456
        %1458 = vrot.lane.b32.xlu0 %v901, 40
        %v1459 = vpop.permute.xlu0 %1458
        %v1461 = vsel %vm918, %v1457, 0
        %v1464 = vsel %vm984, %v1459, 0
        %1466 = vmatprep.subr.bf16.mxu0 0
        %1467 = vmatpush1.bf16.msra.mxu0 %v1464
        %1468 = vmatprep.subr.bf16.mxu0 0
        %1469 = vmatpush1.bf16.msra.mxu0 0
        %1470 = vmatprep.subr.bf16.mxu0 0
        %1471 = vmatpush1.bf16.msra.mxu0 0
        %1472 = vmatprep.subr.bf16.mxu0 0
        %1473 = vmatpush1.bf16.msra.mxu0 0
        %1474 = vmatprep.subr.bf16.mxu0 0
        %1475 = vmatpush1.bf16.msra.mxu0 0
        %1476 = vmatprep.subr.bf16.mxu0 0
        %1477 = vmatpush1.bf16.msra.mxu0 0
        %1478 = vmatprep.subr.bf16.mxu0 0
        %1479 = vmatpush1.bf16.msra.mxu0 0
        %1480 = vmatprep.subr.bf16.mxu0 0
        %1481 = vmatpush1.bf16.msra.mxu0 0
        %1482 = vmatprep.subr.bf16.mxu0 0
        %1483 = vmatpush1.bf16.msra.mxu0 0
        %1484 = vmatprep.subr.bf16.mxu0 0
        %1485 = vmatpush1.bf16.msra.mxu0 0
        %1486 = vmatprep.subr.bf16.mxu0 0
        %1487 = vmatpush1.bf16.msra.mxu0 0
        %1488 = vmatprep.subr.bf16.mxu0 0
        %1489 = vmatpush1.bf16.msra.mxu0 0
        %1490 = vmatprep.subr.bf16.mxu0 0
        %1491 = vmatpush1.bf16.msra.mxu0 0
        %1492 = vmatprep.subr.bf16.mxu0 0
        %1493 = vmatpush1.bf16.msra.mxu0 0
        %1494 = vmatprep.subr.bf16.mxu0 0
        %1495 = vmatpush1.bf16.msra.mxu0 0
        %1496 = vmatprep.subr.bf16.mxu0 0
        %1497 = vmatpush1.bf16.msra.mxu0 0
        %1498 = vmatprep.mubr.bf16.mxu0 0
        %1499 = vmatmul.mubr.bf16.gmra.mrb[0].mxu0 %v1461
        %v1500 = vpop.f32.mrb[0].mxu0
        %v1501 = vadd.f32 0.0, %v1500
        %v1502 = vpop.f32.mrb[0].mxu0
        %v1503 = vpop.f32.mrb[0].mxu0
        %v1504 = vpop.f32.mrb[0].mxu0
        %1505 = vdwg.mxu0
        %v1506 = vpack.c.bf16 %v1501, %v1501
        %v1508 = vsel %vm918, %v1506, 0
        %v1511 = vsel %vm984, %v914, 0
        %1513 = vmatprep.subr.bf16.mxu0 0
        %1514 = vmatpush1.bf16.msra.mxu0 %v1511
        %1515 = vmatprep.subr.bf16.mxu0 0
        %1516 = vmatpush1.bf16.msra.mxu0 0
        %1517 = vmatprep.subr.bf16.mxu0 0
        %1518 = vmatpush1.bf16.msra.mxu0 0
        %1519 = vmatprep.subr.bf16.mxu0 0
        %1520 = vmatpush1.bf16.msra.mxu0 0
        %1521 = vmatprep.subr.bf16.mxu0 0
        %1522 = vmatpush1.bf16.msra.mxu0 0
        %1523 = vmatprep.subr.bf16.mxu0 0
        %1524 = vmatpush1.bf16.msra.mxu0 0
        %1525 = vmatprep.subr.bf16.mxu0 0
        %1526 = vmatpush1.bf16.msra.mxu0 0
        %1527 = vmatprep.subr.bf16.mxu0 0
        %1528 = vmatpush1.bf16.msra.mxu0 0
        %1529 = vmatprep.subr.bf16.mxu0 0
        %1530 = vmatpush1.bf16.msra.mxu0 0
        %1531 = vmatprep.subr.bf16.mxu0 0
        %1532 = vmatpush1.bf16.msra.mxu0 0
        %1533 = vmatprep.subr.bf16.mxu0 0
        %1534 = vmatpush1.bf16.msra.mxu0 0
        %1535 = vmatprep.subr.bf16.mxu0 0
        %1536 = vmatpush1.bf16.msra.mxu0 0
        %1537 = vmatprep.subr.bf16.mxu0 0
        %1538 = vmatpush1.bf16.msra.mxu0 0
        %1539 = vmatprep.subr.bf16.mxu0 0
        %1540 = vmatpush1.bf16.msra.mxu0 0
        %1541 = vmatprep.subr.bf16.mxu0 0
        %1542 = vmatpush1.bf16.msra.mxu0 0
        %1543 = vmatprep.subr.bf16.mxu0 0
        %1544 = vmatpush1.bf16.msra.mxu0 0
        %1545 = vmatprep.mubr.bf16.mxu0 0
        %1546 = vmatmul.mubr.bf16.gmra.mrb[0].mxu0 %v1508
        %v1547 = vpop.f32.mrb[0].mxu0
        %v1548 = vadd.f32 0.0, %v1547
        %v1549 = vpop.f32.mrb[0].mxu0
        %v1550 = vpop.f32.mrb[0].mxu0
        %v1551 = vpop.f32.mrb[0].mxu0
        %1552 = vdwg.mxu0
        %v1553 = vadd.f32 %v1393, %v1548
        %v1554 = vld [vmem:[%s685] sm:$0x1]
        %v1556 = vlaneseq
        %v1557 = vshrl.u32 %v1556, 7
        %v1558 = vsub.s32 0, %v1557
        %v1559 = vrot.slane %v1554, %v1558
        %v1561 = vadd.f32 %v1553, %v1559
        %v1562 = vld [vmem:[%s693] sm:$0x1]
        %v1563 = vld [vmem:[%s701] sm:$0x1]
        %v1564 = vadd.f32 %v1561, %v833
        %v1565 = vsel %vm857, %v1564, 0.0
        %1566 = vadd.xlane.f32.xlu0 %v1565
        %v1567 = vpop.xlane.xlu0 %1566
        %v1568 = vrcp.pop 32.0
        %v1569 = vmul.f32 %v1567, %v1568
        %v1570 = vsub.f32 %v1564, %v1569
        %v1571 = vmul.f32 %v1570, %v1570
        %v1572 = vsel %vm857, %v1571, 0.0
        %1573 = vadd.xlane.f32.xlu0 %v1572
        %v1574 = vpop.xlane.xlu0 %1573
        %v1575 = vmul.f32 %v1574, %v1568
        %v1576 = vadd.f32 %v1575, 1e-05
        %v1577 = vrsqrt.pop %v1576
        %v1578 = vmul.f32 %v1570, %v1577
        %v1580 = vlaneseq
        %v1581 = vshrl.u32 %v1580, 7
        %v1582 = vsub.s32 0, %v1581
        %v1583 = vrot.slane %v1562, %v1582
        %v1585 = vmul.f32 %v1578, %v1583
        %v1587 = vlaneseq
        %v1588 = vshrl.u32 %v1587, 7
        %v1589 = vsub.s32 0, %v1588
        %v1590 = vrot.slane %v1563, %v1589
        %v1592 = vadd.f32 %v1585, %v1590
        %v1593 = vpack.c.bf16 %v1592, %v1592
        %v1594 = vld [vmem:[%s710] sm:$0xf]
        %v1595 = vld [vmem:[%s710 + $0x4] sm:$0xf]
        %v1596 = vld [vmem:[%s710 + $0x8] sm:$0xf]
        %v1597 = vld [vmem:[%s710 + $0xc] sm:$0xf]
        %v1598 = vld [vmem:[%s718] sm:$0x1]
        %v1600 = vlaneseq
        %v1601 = vshrl.u32 %v1600, 7
        %v1602 = vsub.s32 0, %v1601
        %v1603 = vrot.slane %v1598, %v1602
        %v1609 = vunpack.c.l.b16 %v1594
        %v1610 = vunpack.c.l.b16 %v1595
        %v1611 = vunpack.c.l.b16 %v1596
        %v1612 = vunpack.c.l.b16 %v1597
        %v1613 = vpack.c.b16 %v1610, %v1609
        %v1614 = vpack.c.b16 %v1612, %v1611
        %v1618 = vsel %vm857, %v1593, 0
        %1620 = vmatprep.subr.bf16.mxu0 0
        %1621 = vmatpush1.bf16.msra.mxu0 %v1613
        %1622 = vmatprep.subr.bf16.mxu0 0
        %1623 = vmatpush1.bf16.msra.mxu0 %v1614
        %1624 = vmatprep.subr.bf16.mxu0 0
        %1625 = vmatpush1.bf16.msra.mxu0 0
        %1626 = vmatprep.subr.bf16.mxu0 0
        %1627 = vmatpush1.bf16.msra.mxu0 0
        %1628 = vmatprep.subr.bf16.mxu0 0
        %1629 = vmatpush1.bf16.msra.mxu0 0
        %1630 = vmatprep.subr.bf16.mxu0 0
        %1631 = vmatpush1.bf16.msra.mxu0 0
        %1632 = vmatprep.subr.bf16.mxu0 0
        %1633 = vmatpush1.bf16.msra.mxu0 0
        %1634 = vmatprep.subr.bf16.mxu0 0
        %1635 = vmatpush1.bf16.msra.mxu0 0
        %1636 = vmatprep.subr.bf16.mxu0 0
        %1637 = vmatpush1.bf16.msra.mxu0 0
        %1638 = vmatprep.subr.bf16.mxu0 0
        %1639 = vmatpush1.bf16.msra.mxu0 0
        %1640 = vmatprep.subr.bf16.mxu0 0
        %1641 = vmatpush1.bf16.msra.mxu0 0
        %1642 = vmatprep.subr.bf16.mxu0 0
        %1643 = vmatpush1.bf16.msra.mxu0 0
        %1644 = vmatprep.subr.bf16.mxu0 0
        %1645 = vmatpush1.bf16.msra.mxu0 0
        %1646 = vmatprep.subr.bf16.mxu0 0
        %1647 = vmatpush1.bf16.msra.mxu0 0
        %1648 = vmatprep.subr.bf16.mxu0 0
        %1649 = vmatpush1.bf16.msra.mxu0 0
        %1650 = vmatprep.subr.bf16.mxu0 0
        %1651 = vmatpush1.bf16.msra.mxu0 0
        %1652 = vmatprep.mubr.bf16.mxu0 0
        %1653 = vmatmul.mubr.bf16.gmra.mrb[0].mxu0 %v1618
        %v1654 = vpop.f32.mrb[0].mxu0
        %v1655 = vadd.f32 %v1603, %v1654
        %v1656 = vpop.f32.mrb[0].mxu0
        %v1657 = vpop.f32.mrb[0].mxu0
        %v1658 = vpop.f32.mrb[0].mxu0
        %1659 = vdwg.mxu0
        %v1660 = vmax.f32 %v1655, 0.0
        %v1661 = vpack.c.bf16 %v1660, %v1660
        %v1662 = vld [vmem:[%s727] sm:$0xf]
        %v1663 = vld [vmem:[%s727 + $0x4] sm:$0xf]
        %v1664 = vld [vmem:[%s727 + $0x8] sm:$0xf]
        %v1665 = vld [vmem:[%s727 + $0xc] sm:$0xf]
        %v1666 = vld [vmem:[%s727 + $0x10] sm:$0xf]
        %v1667 = vld [vmem:[%s727 + $0x14] sm:$0xf]
        %v1668 = vld [vmem:[%s727 + $0x18] sm:$0xf]
        %v1669 = vld [vmem:[%s727 + $0x1c] sm:$0xf]
        %v1670 = vld [vmem:[%s727 + $0x20] sm:$0xf]
        %v1671 = vld [vmem:[%s727 + $0x24] sm:$0xf]
        %v1672 = vld [vmem:[%s727 + $0x28] sm:$0xf]
        %v1673 = vld [vmem:[%s727 + $0x2c] sm:$0xf]
        %v1674 = vld [vmem:[%s727 + $0x30] sm:$0xf]
        %v1675 = vld [vmem:[%s727 + $0x34] sm:$0xf]
        %v1676 = vld [vmem:[%s727 + $0x38] sm:$0xf]
        %v1677 = vld [vmem:[%s727 + $0x3c] sm:$0xf]
        %v1678 = vld [vmem:[%s735] sm:$0x1]
        %v1680 = vlaneseq
        %v1681 = vshrl.u32 %v1680, 7
        %v1682 = vsub.s32 0, %v1681
        %v1683 = vrot.slane %v1678, %v1682
        %v1701 = vunpack.c.l.b16 %v1662
        %v1702 = vunpack.c.l.b16 %v1663
        %v1703 = vunpack.c.l.b16 %v1664
        %v1704 = vunpack.c.l.b16 %v1665
        %v1705 = vunpack.c.l.b16 %v1666
        %v1706 = vunpack.c.l.b16 %v1667
        %v1707 = vunpack.c.l.b16 %v1668
        %v1708 = vunpack.c.l.b16 %v1669
        %v1709 = vunpack.c.l.b16 %v1670
        %v1710 = vunpack.c.l.b16 %v1671
        %v1711 = vunpack.c.l.b16 %v1672
        %v1712 = vunpack.c.l.b16 %v1673
        %v1713 = vunpack.c.l.b16 %v1674
        %v1714 = vunpack.c.l.b16 %v1675
        %v1715 = vunpack.c.l.b16 %v1676
        %v1716 = vunpack.c.l.b16 %v1677
        %v1717 = vpack.c.b16 %v1702, %v1701
        %v1718 = vpack.c.b16 %v1704, %v1703
        %v1719 = vpack.c.b16 %v1706, %v1705
        %v1720 = vpack.c.b16 %v1708, %v1707
        %v1721 = vpack.c.b16 %v1710, %v1709
        %v1722 = vpack.c.b16 %v1712, %v1711
        %v1723 = vpack.c.b16 %v1714, %v1713
        %v1724 = vpack.c.b16 %v1716, %v1715
        %1733 = vmatprep.subr.bf16.mxu0 0
        %1734 = vmatpush1.bf16.msra.mxu0 %v1717
        %1735 = vmatprep.subr.bf16.mxu0 0
        %1736 = vmatpush1.bf16.msra.mxu0 %v1718
        %1737 = vmatprep.subr.bf16.mxu0 0
        %1738 = vmatpush1.bf16.msra.mxu0 %v1719
        %1739 = vmatprep.subr.bf16.mxu0 0
        %1740 = vmatpush1.bf16.msra.mxu0 %v1720
        %1741 = vmatprep.subr.bf16.mxu0 0
        %1742 = vmatpush1.bf16.msra.mxu0 %v1721
        %1743 = vmatprep.subr.bf16.mxu0 0
        %1744 = vmatpush1.bf16.msra.mxu0 %v1722
        %1745 = vmatprep.subr.bf16.mxu0 0
        %1746 = vmatpush1.bf16.msra.mxu0 %v1723
        %1747 = vmatprep.subr.bf16.mxu0 0
        %1748 = vmatpush1.bf16.msra.mxu0 %v1724
        %1749 = vmatprep.subr.bf16.mxu0 0
        %1750 = vmatpush1.bf16.msra.mxu0 0
        %1751 = vmatprep.subr.bf16.mxu0 0
        %1752 = vmatpush1.bf16.msra.mxu0 0
        %1753 = vmatprep.subr.bf16.mxu0 0
        %1754 = vmatpush1.bf16.msra.mxu0 0
        %1755 = vmatprep.subr.bf16.mxu0 0
        %1756 = vmatpush1.bf16.msra.mxu0 0
        %1757 = vmatprep.subr.bf16.mxu0 0
        %1758 = vmatpush1.bf16.msra.mxu0 0
        %1759 = vmatprep.subr.bf16.mxu0 0
        %1760 = vmatpush1.bf16.msra.mxu0 0
        %1761 = vmatprep.subr.bf16.mxu0 0
        %1762 = vmatpush1.bf16.msra.mxu0 0
        %1763 = vmatprep.subr.bf16.mxu0 0
        %1764 = vmatpush1.bf16.msra.mxu0 0
        %1765 = vmatprep.mubr.bf16.mxu0 0
        %1766 = vmatmul.mubr.bf16.gmra.mrb[0].mxu0 %v1661
        %v1767 = vpop.f32.mrb[0].mxu0
        %v1768 = vadd.f32 %v1683, %v1767
        %v1769 = vpop.f32.mrb[0].mxu0
        %v1770 = vpop.f32.mrb[0].mxu0
        %v1771 = vpop.f32.mrb[0].mxu0
        %1772 = vdwg.mxu0
        %v1773 = vadd.f32 %v1768, %v1592
        %v1774 = vsel %vm857, %v1773, 0.0
        %1775 = vadd.xlane.f32.xlu0 %v1774
        %v1776 = vpop.xlane.xlu0 %1775
        %v1777 = vmul.f32 %v1776, %v1568
        %v1778 = vsub.f32 %v1773, %v1777
        %v1779 = vmul.f32 %v1778, %v1778
        %v1780 = vsel %vm857, %v1779, 0.0
        %1781 = vadd.xlane.f32.xlu0 %v1780
        %v1782 = vpop.xlane.xlu0 %1781
        %v1783 = vmul.f32 %v1782, %v1568
        %v1784 = vadd.f32 %v1783, 1e-05
        %v1785 = vrsqrt.pop %v1784
        %v1786 = vmul.f32 %v1778, %v1785
        %v1787 = vmul.f32 %v1786, %v1583
        %v1788 = vadd.f32 %v1787, %v1590
        %v1789 = vpack.c.bf16 %v1788, %v1788
        %vm1790 = vcmask 257024
        %1791 = vst.msk [vmem:[%s823] sm:$0xf] %vm1790, %v1789
        %s1792 = sand.u32 %s379, 1
        %s1793 = scalar_lea.sflag [#allocation4], %s1792
        %s1794 = sand.u32 %s379, 1
        %s1795 = smul.addr %s1794, 4
        %s1796 = scalar_lea.vmem [#allocation22], %s1795
        // Predicated region
        $region121: #{transformer_forward.3} parent=67 // pred_check
          %p1797 = pneg %p389
        $region122: #{transformer_forward.3} parent=67 // pred_check_branch
          %1799 = sbr.rel (%p1797) target = $region124
        $region123: #{transformer_forward.3} parent=67 // pred_region
          %s1801 = ssub.s32 64, 64
          %1802 = vsyncadd %s1793, %s1801
          %s1803 = smul.addr %s51, 64
          %s1804 = scalar_lea.hbm %s12, %s1803
          %s1806 = sshll.u32 %s1796, 4
          %s1807 = int_to_ptr.vmem [resolvable:$true] %s1806
          %1809 = dma.vmem_to_hbm [thread:$0]  %s1807, 64, %s1804, %s1793
        $region124: #{transformer_forward.3} parent=67 // pred_fallthru
          _
      $region68: #{transformer_forward.3} parent=5 // pred_fallthru
        _
      %p1810 = scmp.le.s32.totalorder 2, %s42
      // Predicated region
      $region125: #{transformer_forward.3} parent=5 // pred_check
        %p1811 = pneg %p1810
      $region126: #{transformer_forward.3} parent=5 // pred_check_branch
        %1813 = sbr.rel (%p1811) target = $region128
      $region127: #{transformer_forward.3} parent=5 // pred_region
        %s1814 = ssub.s32 %s42, 2
        // Predicated region
        $region129: #{transformer_forward.3} parent=127 // pred_check
          %p1815 = pneg %p395
        $region130: #{transformer_forward.3} parent=127 // pred_check_branch
          %1817 = sbr.rel (%p1815) target = $region132
        $region131: #{transformer_forward.3} parent=127 // pred_region
          %s1818 = sand.u32 %s380, 1
          %s1819 = scalar_lea.sflag [#allocation4], %s1818
          %s1820 = sand.u32 %s380, 1
          %s1821 = smul.addr %s1820, 4
          %s1822 = scalar_lea.vmem [#allocation22], %s1821
          %1823 = dma.done %s1819, 64
        $region132: #{transformer_forward.3} parent=127 // pred_fallthru
          _
      $region128: #{transformer_forward.3} parent=5 // pred_fallthru
        _
    $region6: #{transformer_forward.3} parent=1 // loop_footer
      %s46 = sadd.s32 1, %s42
    $region7: #{transformer_forward.3} parent=1 // loop_footer_branch
      %41 = sbr.rel target = $region3
    $region8: #{transformer_forward.3} parent=1 // loop_exit
      _
    %1824 = vsyncpa [#allocation3], 1
    %s1825 = scalar_lea.sflag [#allocation3], 1
    %1826 = vsyncpa %s1825, 1
    %1827 = vsyncpa [#allocation6], 1
    %s1828 = scalar_lea.sflag [#allocation6], 1
    %1829 = vsyncpa %s1828, 1
    %1830 = vsyncpa [#allocation9], 1
    %s1831 = scalar_lea.sflag [#allocation9], 1
    %1832 = vsyncpa %s1831, 1
    %1833 = vsyncpa [#allocation12], 1
    %s1834 = scalar_lea.sflag [#allocation12], 1
    %1835 = vsyncpa %s1834, 1
    %1836 = vsyncpa [#allocation15], 1
    %s1837 = scalar_lea.sflag [#allocation15], 1
    %1838 = vsyncpa %s1837, 1
    %1839 = vsyncpa [#allocation18], 1
    %s1840 = scalar_lea.sflag [#allocation18], 1
    %1841 = vsyncpa %s1840, 1
    %1842 = vsyncpa [#allocation21], 1
    %s1843 = scalar_lea.sflag [#allocation21], 1
    %1844 = vsyncpa %s1843, 1
    %1845 = vsyncpa [#allocation4], 1
    %s1846 = scalar_lea.sflag [#allocation4], 1
    %1847 = vsyncpa %s1846, 1

// kernel: transformer_forward.4
$region0: #{transformer_forward.4}
  #allocation0 [shape = 'u32[]', space=smem, size = 0x4, offset = 0x4, fixed_abs, tag = 'smem constant byte address 0x4 - core index']
  #allocation1 [shape = 'u32[144,128]{1,0:T(1,128)}', space=vmem, size = 0x12000, scoped, tag = 'internal scratch']
  %s0 = inlined_call_operand.hbm [shape: f32[2,1,8], index: 0, kind: input, shape index: {}]
  %s1 = inlined_call_operand.hbm [shape: f32[2,1,8], index: 1, kind: input, shape index: {}]
  %s2 = inlined_call_operand.hbm [shape: bf16[2,8,32], index: 2, kind: input, shape index: {}]
  %s3 = inlined_call_operand.hbm [shape: bf16[2,8,32], index: 3, kind: input, shape index: {}]
  %s4 = inlined_call_operand.hbm [shape: bf16[2,32,96], index: 4, kind: input, shape index: {}]
  %s5 = inlined_call_operand.hbm [shape: f32[2,1,96], index: 5, kind: input, shape index: {}]
  %s6 = inlined_call_operand.hbm [shape: bf16[2,32,32], index: 6, kind: input, shape index: {}]
  %s7 = inlined_call_operand.hbm [shape: f32[2,1,32], index: 7, kind: input, shape index: {}]
  %s8 = inlined_call_operand.hbm [shape: bf16[2,32,32], index: 8, kind: input, shape index: {}]
  %s9 = inlined_call_operand.hbm [shape: f32[2,1,32], index: 9, kind: input, shape index: {}]
  %s10 = inlined_call_operand.hbm [shape: bf16[2,32,64], index: 10, kind: input, shape index: {}]
  %s11 = inlined_call_operand.hbm [shape: f32[2,1,64], index: 11, kind: input, shape index: {}]
  %s12 = inlined_call_operand.hbm [shape: bf16[2,32,32], index: 12, kind: input, shape index: {}]
  %s13 = inlined_call_operand.hbm [shape: f32[2,1,32], index: 13, kind: input, shape index: {}]
  %s14 = inlined_call_operand.hbm [shape: f32[2,1,32], index: 14, kind: input, shape index: {}]
  %s15 = inlined_call_operand.hbm [shape: f32[2,1,32], index: 15, kind: input, shape index: {}]
  %s16 = inlined_call_operand.hbm [shape: bf16[2,32,128], index: 16, kind: input, shape index: {}]
  %s17 = inlined_call_operand.hbm [shape: f32[2,1,128], index: 17, kind: input, shape index: {}]
  %s18 = inlined_call_operand.hbm [shape: bf16[2,128,32], index: 18, kind: input, shape index: {}]
  %s19 = inlined_call_operand.hbm [shape: f32[2,1,32], index: 19, kind: input, shape index: {}]
  %s20 = inlined_call_operand.hbm [shape: bf16[2,8,32], index: 20, kind: output, shape index: {}]
  %s21 = sld [smem:[#allocation0]]
  $region197: #{transformer_forward.4} parent=0
    _
  %s23 = ssub.s32 1, %s21
  %s24 = scalar_select 0, %s23, %s21
  $region1: #{transformer_forward.4} parent=0
    #allocation2 [shape = 'u8[1024]{0}', space=vmem, size = 0x400, scoped, tag = 'input window, operand 0']
    #allocation3 [shape = 's32[2]{0}', space=sflag, size = 0x8, scoped, tag = 'scoped memory for transformer_forward.4']
    #allocation4 [shape = 's32[2]{0}', space=sflag, size = 0x8, scoped, tag = 'scoped memory for transformer_forward.4']
    #allocation5 [shape = 'u8[1024]{0}', space=vmem, size = 0x400, scoped, tag = 'input window, operand 1']
    #allocation6 [shape = 's32[2]{0}', space=sflag, size = 0x8, scoped, tag = 'scoped memory for transformer_forward.4']
    #allocation7 [shape = 'u8[4096]{0}', space=vmem, size = 0x1000, scoped, tag = 'input window, operand 2']
    #allocation8 [shape = 'u8[4096]{0}', space=vmem, size = 0x1000, scoped, tag = 'input window, operand 3']
    #allocation9 [shape = 's32[2]{0}', space=sflag, size = 0x8, scoped, tag = 'scoped memory for transformer_forward.4']
    #allocation10 [shape = 'u8[16384]{0}', space=vmem, size = 0x4000, scoped, tag = 'input window, operand 4']
    #allocation11 [shape = 'u8[1024]{0}', space=vmem, size = 0x400, scoped, tag = 'input window, operand 5']
    #allocation12 [shape = 's32[2]{0}', space=sflag, size = 0x8, scoped, tag = 'scoped memory for transformer_forward.4']
    #allocation13 [shape = 'u8[16384]{0}', space=vmem, size = 0x4000, scoped, tag = 'input window, operand 6']
    #allocation14 [shape = 'u8[1024]{0}', space=vmem, size = 0x400, scoped, tag = 'input window, operand 7']
    #allocation15 [shape = 's32[2]{0}', space=sflag, size = 0x8, scoped, tag = 'scoped memory for transformer_forward.4']
    #allocation16 [shape = 'u8[16384]{0}', space=vmem, size = 0x4000, scoped, tag = 'input window, operand 8']
    #allocation17 [shape = 'u8[1024]{0}', space=vmem, size = 0x400, scoped, tag = 'input window, operand 9']
    #allocation18 [shape = 's32[2]{0}', space=sflag, size = 0x8, scoped, tag = 'scoped memory for transformer_forward.4']
    #allocation19 [shape = 'u8[16384]{0}', space=vmem, size = 0x4000, scoped, tag = 'input window, operand 10']
    #allocation20 [shape = 'u8[1024]{0}', space=vmem, size = 0x400, scoped, tag = 'input window, operand 11']
    #allocation21 [shape = 's32[2]{0}', space=sflag, size = 0x8, scoped, tag = 'scoped memory for transformer_forward.4']
    #allocation22 [shape = 'u8[16384]{0}', space=vmem, size = 0x4000, scoped, tag = 'input window, operand 12']
    #allocation23 [shape = 'u8[1024]{0}', space=vmem, size = 0x400, scoped, tag = 'input window, operand 13']
    #allocation24 [shape = 's32[2]{0}', space=sflag, size = 0x8, scoped, tag = 'scoped memory for transformer_forward.4']
    #allocation25 [shape = 'u8[1024]{0}', space=vmem, size = 0x400, scoped, tag = 'input window, operand 14']
    #allocation26 [shape = 'u8[1024]{0}', space=vmem, size = 0x400, scoped, tag = 'input window, operand 15']
    #allocation27 [shape = 's32[2]{0}', space=sflag, size = 0x8, scoped, tag = 'scoped memory for transformer_forward.4']
    #allocation28 [shape = 'u8[16384]{0}', space=vmem, size = 0x4000, scoped, tag = 'input window, operand 16']
    #allocation29 [shape = 'u8[1024]{0}', space=vmem, size = 0x400, scoped, tag = 'input window, operand 17']
    #allocation30 [shape = 's32[2]{0}', space=sflag, size = 0x8, scoped, tag = 'scoped memory for transformer_forward.4']
    #allocation31 [shape = 'u8[65536]{0}', space=vmem, size = 0x10000, scoped, tag = 'input window, operand 18']
    #allocation32 [shape = 'u8[1024]{0}', space=vmem, size = 0x400, scoped, tag = 'input window, operand 19']
    #allocation33 [shape = 's32[2]{0}', space=sflag, size = 0x8, scoped, tag = 'scoped memory for transformer_forward.4']
    #allocation34 [shape = 'u8[4096]{0}', space=vmem, size = 0x1000, scoped, tag = 'output window, operand 0']
    %25 = vsyncpa [#allocation3], 0
    %s26 = scalar_lea.sflag [#allocation3], 1
    %27 = vsyncpa %s26, 0
    %28 = vsyncpa [#allocation6], 0
    %s29 = scalar_lea.sflag [#allocation6], 1
    %30 = vsyncpa %s29, 0
    %31 = vsyncpa [#allocation9], 0
    %s32 = scalar_lea.sflag [#allocation9], 1
    %33 = vsyncpa %s32, 0
    %34 = vsyncpa [#allocation12], 0
    %s35 = scalar_lea.sflag [#allocation12], 1
    %36 = vsyncpa %s35, 0
    %37 = vsyncpa [#allocation15], 0
    %s38 = scalar_lea.sflag [#allocation15], 1
    %39 = vsyncpa %s38, 0
    %40 = vsyncpa [#allocation18], 0
    %s41 = scalar_lea.sflag [#allocation18], 1
    %42 = vsyncpa %s41, 0
    %43 = vsyncpa [#allocation21], 0
    %s44 = scalar_lea.sflag [#allocation21], 1
    %45 = vsyncpa %s44, 0
    %46 = vsyncpa [#allocation24], 0
    %s47 = scalar_lea.sflag [#allocation24], 1
    %48 = vsyncpa %s47, 0
    %49 = vsyncpa [#allocation27], 0
    %s50 = scalar_lea.sflag [#allocation27], 1
    %51 = vsyncpa %s50, 0
    %52 = vsyncpa [#allocation30], 0
    %s53 = scalar_lea.sflag [#allocation30], 1
    %54 = vsyncpa %s53, 0
    %55 = vsyncpa [#allocation33], 0
    %s56 = scalar_lea.sflag [#allocation33], 1
    %57 = vsyncpa %s56, 0
    %58 = vsyncpa [#allocation4], 0
    %s59 = scalar_lea.sflag [#allocation4], 1
    %60 = vsyncpa %s59, 0
    loop: start=0, step=1, limit=6
    $region2: #{transformer_forward.4} parent=1 // loop_pre_header
      _
    $region3: #{transformer_forward.4} parent=1 // loop_header
      %s62 = sphi 0, %s66
      %p63 = scmp.ge.s32.totalorder %s62, 6
      %s69 = sphi 0, %s81
      %s70 = sphi 0, %s77
      %s71 = sphi 0, %s69
      %s72 = sphi 0, %s70
      %s73 = sphi 0, %s71
      %s74 = sphi 0, %s72
      %s84 = sphi 0, %s86
      %s87 = sphi 0, %s84
      %s88 = sphi 0, %s87
      %s104 = sphi 0, %s88
      %s110 = sphi 0, %s112
      %s113 = sphi 0, %s110
      %s114 = sphi 0, %s113
      %s130 = sphi 0, %s114
      %s136 = sphi 0, %s138
      %s139 = sphi 0, %s136
      %s140 = sphi 0, %s139
      %s156 = sphi 0, %s140
      %s162 = sphi 0, %s164
      %s165 = sphi 0, %s162
      %s166 = sphi 0, %s165
      %s182 = sphi 0, %s166
      %s188 = sphi 0, %s190
      %s191 = sphi 0, %s188
      %s192 = sphi 0, %s191
      %s208 = sphi 0, %s192
      %s214 = sphi 0, %s216
      %s217 = sphi 0, %s214
      %s218 = sphi 0, %s217
      %s234 = sphi 0, %s218
      %s240 = sphi 0, %s242
      %s243 = sphi 0, %s240
      %s244 = sphi 0, %s243
      %s260 = sphi 0, %s244
      %s266 = sphi 0, %s268
      %s269 = sphi 0, %s266
      %s270 = sphi 0, %s269
      %s286 = sphi 0, %s270
      %s292 = sphi 0, %s294
      %s295 = sphi 0, %s292
      %s296 = sphi 0, %s295
      %s312 = sphi 0, %s296
      %s318 = sphi 0, %s320
      %s321 = sphi 0, %s318
      %s322 = sphi 0, %s321
      %s338 = sphi 0, %s322
      %s344 = sphi 0, %s346
      %s347 = sphi 0, %s344
      %s348 = sphi 0, %s347
      %s364 = sphi 0, %s348
      %s370 = sphi 0, %s372
      %s373 = sphi 0, %s370
      %s374 = sphi 0, %s373
      %s390 = sphi 0, %s374
      %s396 = sphi 0, %s398
      %s399 = sphi 0, %s396
      %s400 = sphi 0, %s399
      %s416 = sphi 0, %s400
      %s422 = sphi 0, %s424
      %s425 = sphi 0, %s422
      %s426 = sphi 0, %s425
      %s442 = sphi 0, %s426
      %s448 = sphi 0, %s450
      %s451 = sphi 0, %s448
      %s452 = sphi 0, %s451
      %s468 = sphi 0, %s452
      %s474 = sphi 0, %s476
      %s477 = sphi 0, %s474
      %s478 = sphi 0, %s477
      %s494 = sphi 0, %s478
      %s500 = sphi 0, %s502
      %s503 = sphi 0, %s500
      %s504 = sphi 0, %s503
      %s520 = sphi 0, %s504
      %s526 = sphi 0, %s528
      %s529 = sphi 0, %s526
      %s530 = sphi 0, %s529
      %s546 = sphi 0, %s530
      %s552 = sphi 0, %s554
      %s555 = sphi 0, %s552
      %s556 = sphi 0, %s555
      %s572 = sphi 0, %s556
      %s578 = sphi 0, %s580
      %s581 = sphi 0, %s578
      %s582 = sphi 0, %s581
      %s598 = sphi 0, %s582
      %s604 = sphi 0, %s606
      %s607 = sphi 0, %s604
      %s608 = sphi 0, %s607
      %s624 = sphi 0, %s608
    $region4: #{transformer_forward.4} parent=1 // loop_header_branch
      %65 = sbr.rel (%p63) target = $region8
    $region5: #{transformer_forward.4} parent=1 // loop_body
      %s67 = ssub.s32 %s62, 1
      %s68 = ssub.s32 %s62, 2
      %s75 = sadd.s32 1, %s70
      %p76 = scmp.ge.s32.totalorder %s75, 2
      %s77 = scalar_select %p76, 0, %s75
      %s78 = sadd.s32 1, %s69
      %s79 = scalar_select %p76, %s78, %s69
      %p80 = scmp.ge.s32.totalorder %s79, 2
      %s81 = scalar_select %p80, 0, %s79
      %s82 = ssub.s32 %s69, %s81
      %p83 = scmp.eq.s32.totalorder %s82, 0
      %s85 = sadd.s32 %s84, 1
      %s86 = scalar_select %p83, %s84, %s85
      %p89 = pneg %p83
      %p90 = scmp.eq.s32.totalorder %s62, 3
      %p91 = por %p89, %p90
      %p92 = scmp.ne.s32.totalorder %s84, %s87
      %p93 = scmp.eq.s32.totalorder %s62, 0
      %p94 = por %p92, %p93
      %p95 = scmp.ne.s32.totalorder %s84, %s87
      %p96 = scmp.eq.s32.totalorder %s67, 3
      %p97 = por %p95, %p96
      %p98 = scmp.ne.s32.totalorder %s87, %s88
      %p99 = scmp.eq.s32.totalorder %s67, 0
      %p100 = por %p98, %p99
      %p101 = scmp.ne.s32.totalorder %s87, %s88
      %p102 = scmp.eq.s32.totalorder %s68, 3
      %p103 = por %p101, %p102
      %p105 = scmp.ne.s32.totalorder %s88, %s104
      %p106 = scmp.eq.s32.totalorder %s68, 0
      %p107 = por %p105, %p106
      %s108 = ssub.s32 %s69, %s81
      %p109 = scmp.eq.s32.totalorder %s108, 0
      %s111 = sadd.s32 %s110, 1
      %s112 = scalar_select %p109, %s110, %s111
      %p115 = pneg %p109
      %p116 = scmp.eq.s32.totalorder %s62, 3
      %p117 = por %p115, %p116
      %p118 = scmp.ne.s32.totalorder %s110, %s113
      %p119 = scmp.eq.s32.totalorder %s62, 0
      %p120 = por %p118, %p119
      %p121 = scmp.ne.s32.totalorder %s110, %s113
      %p122 = scmp.eq.s32.totalorder %s67, 3
      %p123 = por %p121, %p122
      %p124 = scmp.ne.s32.totalorder %s113, %s114
      %p125 = scmp.eq.s32.totalorder %s67, 0
      %p126 = por %p124, %p125
      %p127 = scmp.ne.s32.totalorder %s113, %s114
      %p128 = scmp.eq.s32.totalorder %s68, 3
      %p129 = por %p127, %p128
      %p131 = scmp.ne.s32.totalorder %s114, %s130
      %p132 = scmp.eq.s32.totalorder %s68, 0
      %p133 = por %p131, %p132
      %s134 = ssub.s32 %s69, %s81
      %p135 = scmp.eq.s32.totalorder %s134, 0
      %s137 = sadd.s32 %s136, 1
      %s138 = scalar_select %p135, %s136, %s137
      %p141 = pneg %p135
      %p142 = scmp.eq.s32.totalorder %s62, 3
      %p143 = por %p141, %p142
      %p144 = scmp.ne.s32.totalorder %s136, %s139
      %p145 = scmp.eq.s32.totalorder %s62, 0
      %p146 = por %p144, %p145
      %p147 = scmp.ne.s32.totalorder %s136, %s139
      %p148 = scmp.eq.s32.totalorder %s67, 3
      %p149 = por %p147, %p148
      %p150 = scmp.ne.s32.totalorder %s139, %s140
      %p151 = scmp.eq.s32.totalorder %s67, 0
      %p152 = por %p150, %p151
      %p153 = scmp.ne.s32.totalorder %s139, %s140
      %p154 = scmp.eq.s32.totalorder %s68, 3
      %p155 = por %p153, %p154
      %p157 = scmp.ne.s32.totalorder %s140, %s156
      %p158 = scmp.eq.s32.totalorder %s68, 0
      %p159 = por %p157, %p158
      %s160 = ssub.s32 %s69, %s81
      %p161 = scmp.eq.s32.totalorder %s160, 0
      %s163 = sadd.s32 %s162, 1
      %s164 = scalar_select %p161, %s162, %s163
      %p167 = pneg %p161
      %p168 = scmp.eq.s32.totalorder %s62, 3
      %p169 = por %p167, %p168
      %p170 = scmp.ne.s32.totalorder %s162, %s165
      %p171 = scmp.eq.s32.totalorder %s62, 0
      %p172 = por %p170, %p171
      %p173 = scmp.ne.s32.totalorder %s162, %s165
      %p174 = scmp.eq.s32.totalorder %s67, 3
      %p175 = por %p173, %p174
      %p176 = scmp.ne.s32.totalorder %s165, %s166
      %p177 = scmp.eq.s32.totalorder %s67, 0
      %p178 = por %p176, %p177
      %p179 = scmp.ne.s32.totalorder %s165, %s166
      %p180 = scmp.eq.s32.totalorder %s68, 3
      %p181 = por %p179, %p180
      %p183 = scmp.ne.s32.totalorder %s166, %s182
      %p184 = scmp.eq.s32.totalorder %s68, 0
      %p185 = por %p183, %p184
      %s186 = ssub.s32 %s70, %s77
      %p187 = scmp.eq.s32.totalorder %s186, 0
      %s189 = sadd.s32 %s188, 1
      %s190 = scalar_select %p187, %s188, %s189
      %p193 = pneg %p187
      %p194 = scmp.eq.s32.totalorder %s62, 3
      %p195 = por %p193, %p194
      %p196 = scmp.ne.s32.totalorder %s188, %s191
      %p197 = scmp.eq.s32.totalorder %s62, 0
      %p198 = por %p196, %p197
      %p199 = scmp.ne.s32.totalorder %s188, %s191
      %p200 = scmp.eq.s32.totalorder %s67, 3
      %p201 = por %p199, %p200
      %p202 = scmp.ne.s32.totalorder %s191, %s192
      %p203 = scmp.eq.s32.totalorder %s67, 0
      %p204 = por %p202, %p203
      %p205 = scmp.ne.s32.totalorder %s191, %s192
      %p206 = scmp.eq.s32.totalorder %s68, 3
      %p207 = por %p205, %p206
      %p209 = scmp.ne.s32.totalorder %s192, %s208
      %p210 = scmp.eq.s32.totalorder %s68, 0
      %p211 = por %p209, %p210
      %s212 = ssub.s32 %s70, %s77
      %p213 = scmp.eq.s32.totalorder %s212, 0
      %s215 = sadd.s32 %s214, 1
      %s216 = scalar_select %p213, %s214, %s215
      %p219 = pneg %p213
      %p220 = scmp.eq.s32.totalorder %s62, 3
      %p221 = por %p219, %p220
      %p222 = scmp.ne.s32.totalorder %s214, %s217
      %p223 = scmp.eq.s32.totalorder %s62, 0
      %p224 = por %p222, %p223
      %p225 = scmp.ne.s32.totalorder %s214, %s217
      %p226 = scmp.eq.s32.totalorder %s67, 3
      %p227 = por %p225, %p226
      %p228 = scmp.ne.s32.totalorder %s217, %s218
      %p229 = scmp.eq.s32.totalorder %s67, 0
      %p230 = por %p228, %p229
      %p231 = scmp.ne.s32.totalorder %s217, %s218
      %p232 = scmp.eq.s32.totalorder %s68, 3
      %p233 = por %p231, %p232
      %p235 = scmp.ne.s32.totalorder %s218, %s234
      %p236 = scmp.eq.s32.totalorder %s68, 0
      %p237 = por %p235, %p236
      %s238 = ssub.s32 %s70, %s77
      %p239 = scmp.eq.s32.totalorder %s238, 0
      %s241 = sadd.s32 %s240, 1
      %s242 = scalar_select %p239, %s240, %s241
      %p245 = pneg %p239
      %p246 = scmp.eq.s32.totalorder %s62, 3
      %p247 = por %p245, %p246
      %p248 = scmp.ne.s32.totalorder %s240, %s243
      %p249 = scmp.eq.s32.totalorder %s62, 0
      %p250 = por %p248, %p249
      %p251 = scmp.ne.s32.totalorder %s240, %s243
      %p252 = scmp.eq.s32.totalorder %s67, 3
      %p253 = por %p251, %p252
      %p254 = scmp.ne.s32.totalorder %s243, %s244
      %p255 = scmp.eq.s32.totalorder %s67, 0
      %p256 = por %p254, %p255
      %p257 = scmp.ne.s32.totalorder %s243, %s244
      %p258 = scmp.eq.s32.totalorder %s68, 3
      %p259 = por %p257, %p258
      %p261 = scmp.ne.s32.totalorder %s244, %s260
      %p262 = scmp.eq.s32.totalorder %s68, 0
      %p263 = por %p261, %p262
      %s264 = ssub.s32 %s70, %s77
      %p265 = scmp.eq.s32.totalorder %s264, 0
      %s267 = sadd.s32 %s266, 1
      %s268 = scalar_select %p265, %s266, %s267
      %p271 = pneg %p265
      %p272 = scmp.eq.s32.totalorder %s62, 3
      %p273 = por %p271, %p272
      %p274 = scmp.ne.s32.totalorder %s266, %s269
      %p275 = scmp.eq.s32.totalorder %s62, 0
      %p276 = por %p274, %p275
      %p277 = scmp.ne.s32.totalorder %s266, %s269
      %p278 = scmp.eq.s32.totalorder %s67, 3
      %p279 = por %p277, %p278
      %p280 = scmp.ne.s32.totalorder %s269, %s270
      %p281 = scmp.eq.s32.totalorder %s67, 0
      %p282 = por %p280, %p281
      %p283 = scmp.ne.s32.totalorder %s269, %s270
      %p284 = scmp.eq.s32.totalorder %s68, 3
      %p285 = por %p283, %p284
      %p287 = scmp.ne.s32.totalorder %s270, %s286
      %p288 = scmp.eq.s32.totalorder %s68, 0
      %p289 = por %p287, %p288
      %s290 = ssub.s32 %s70, %s77
      %p291 = scmp.eq.s32.totalorder %s290, 0
      %s293 = sadd.s32 %s292, 1
      %s294 = scalar_select %p291, %s292, %s293
      %p297 = pneg %p291
      %p298 = scmp.eq.s32.totalorder %s62, 3
      %p299 = por %p297, %p298
      %p300 = scmp.ne.s32.totalorder %s292, %s295
      %p301 = scmp.eq.s32.totalorder %s62, 0
      %p302 = por %p300, %p301
      %p303 = scmp.ne.s32.totalorder %s292, %s295
      %p304 = scmp.eq.s32.totalorder %s67, 3
      %p305 = por %p303, %p304
      %p306 = scmp.ne.s32.totalorder %s295, %s296
      %p307 = scmp.eq.s32.totalorder %s67, 0
      %p308 = por %p306, %p307
      %p309 = scmp.ne.s32.totalorder %s295, %s296
      %p310 = scmp.eq.s32.totalorder %s68, 3
      %p311 = por %p309, %p310
      %p313 = scmp.ne.s32.totalorder %s296, %s312
      %p314 = scmp.eq.s32.totalorder %s68, 0
      %p315 = por %p313, %p314
      %s316 = ssub.s32 %s70, %s77
      %p317 = scmp.eq.s32.totalorder %s316, 0
      %s319 = sadd.s32 %s318, 1
      %s320 = scalar_select %p317, %s318, %s319
      %p323 = pneg %p317
      %p324 = scmp.eq.s32.totalorder %s62, 3
      %p325 = por %p323, %p324
      %p326 = scmp.ne.s32.totalorder %s318, %s321
      %p327 = scmp.eq.s32.totalorder %s62, 0
      %p328 = por %p326, %p327
      %p329 = scmp.ne.s32.totalorder %s318, %s321
      %p330 = scmp.eq.s32.totalorder %s67, 3
      %p331 = por %p329, %p330
      %p332 = scmp.ne.s32.totalorder %s321, %s322
      %p333 = scmp.eq.s32.totalorder %s67, 0
      %p334 = por %p332, %p333
      %p335 = scmp.ne.s32.totalorder %s321, %s322
      %p336 = scmp.eq.s32.totalorder %s68, 3
      %p337 = por %p335, %p336
      %p339 = scmp.ne.s32.totalorder %s322, %s338
      %p340 = scmp.eq.s32.totalorder %s68, 0
      %p341 = por %p339, %p340
      %s342 = ssub.s32 %s70, %s77
      %p343 = scmp.eq.s32.totalorder %s342, 0
      %s345 = sadd.s32 %s344, 1
      %s346 = scalar_select %p343, %s344, %s345
      %p349 = pneg %p343
      %p350 = scmp.eq.s32.totalorder %s62, 3
      %p351 = por %p349, %p350
      %p352 = scmp.ne.s32.totalorder %s344, %s347
      %p353 = scmp.eq.s32.totalorder %s62, 0
      %p354 = por %p352, %p353
      %p355 = scmp.ne.s32.totalorder %s344, %s347
      %p356 = scmp.eq.s32.totalorder %s67, 3
      %p357 = por %p355, %p356
      %p358 = scmp.ne.s32.totalorder %s347, %s348
      %p359 = scmp.eq.s32.totalorder %s67, 0
      %p360 = por %p358, %p359
      %p361 = scmp.ne.s32.totalorder %s347, %s348
      %p362 = scmp.eq.s32.totalorder %s68, 3
      %p363 = por %p361, %p362
      %p365 = scmp.ne.s32.totalorder %s348, %s364
      %p366 = scmp.eq.s32.totalorder %s68, 0
      %p367 = por %p365, %p366
      %s368 = ssub.s32 %s70, %s77
      %p369 = scmp.eq.s32.totalorder %s368, 0
      %s371 = sadd.s32 %s370, 1
      %s372 = scalar_select %p369, %s370, %s371
      %p375 = pneg %p369
      %p376 = scmp.eq.s32.totalorder %s62, 3
      %p377 = por %p375, %p376
      %p378 = scmp.ne.s32.totalorder %s370, %s373
      %p379 = scmp.eq.s32.totalorder %s62, 0
      %p380 = por %p378, %p379
      %p381 = scmp.ne.s32.totalorder %s370, %s373
      %p382 = scmp.eq.s32.totalorder %s67, 3
      %p383 = por %p381, %p382
      %p384 = scmp.ne.s32.totalorder %s373, %s374
      %p385 = scmp.eq.s32.totalorder %s67, 0
      %p386 = por %p384, %p385
      %p387 = scmp.ne.s32.totalorder %s373, %s374
      %p388 = scmp.eq.s32.totalorder %s68, 3
      %p389 = por %p387, %p388
      %p391 = scmp.ne.s32.totalorder %s374, %s390
      %p392 = scmp.eq.s32.totalorder %s68, 0
      %p393 = por %p391, %p392
      %s394 = ssub.s32 %s70, %s77
      %p395 = scmp.eq.s32.totalorder %s394, 0
      %s397 = sadd.s32 %s396, 1
      %s398 = scalar_select %p395, %s396, %s397
      %p401 = pneg %p395
      %p402 = scmp.eq.s32.totalorder %s62, 3
      %p403 = por %p401, %p402
      %p404 = scmp.ne.s32.totalorder %s396, %s399
      %p405 = scmp.eq.s32.totalorder %s62, 0
      %p406 = por %p404, %p405
      %p407 = scmp.ne.s32.totalorder %s396, %s399
      %p408 = scmp.eq.s32.totalorder %s67, 3
      %p409 = por %p407, %p408
      %p410 = scmp.ne.s32.totalorder %s399, %s400
      %p411 = scmp.eq.s32.totalorder %s67, 0
      %p412 = por %p410, %p411
      %p413 = scmp.ne.s32.totalorder %s399, %s400
      %p414 = scmp.eq.s32.totalorder %s68, 3
      %p415 = por %p413, %p414
      %p417 = scmp.ne.s32.totalorder %s400, %s416
      %p418 = scmp.eq.s32.totalorder %s68, 0
      %p419 = por %p417, %p418
      %s420 = ssub.s32 %s70, %s77
      %p421 = scmp.eq.s32.totalorder %s420, 0
      %s423 = sadd.s32 %s422, 1
      %s424 = scalar_select %p421, %s422, %s423
      %p427 = pneg %p421
      %p428 = scmp.eq.s32.totalorder %s62, 3
      %p429 = por %p427, %p428
      %p430 = scmp.ne.s32.totalorder %s422, %s425
      %p431 = scmp.eq.s32.totalorder %s62, 0
      %p432 = por %p430, %p431
      %p433 = scmp.ne.s32.totalorder %s422, %s425
      %p434 = scmp.eq.s32.totalorder %s67, 3
      %p435 = por %p433, %p434
      %p436 = scmp.ne.s32.totalorder %s425, %s426
      %p437 = scmp.eq.s32.totalorder %s67, 0
      %p438 = por %p436, %p437
      %p439 = scmp.ne.s32.totalorder %s425, %s426
      %p440 = scmp.eq.s32.totalorder %s68, 3
      %p441 = por %p439, %p440
      %p443 = scmp.ne.s32.totalorder %s426, %s442
      %p444 = scmp.eq.s32.totalorder %s68, 0
      %p445 = por %p443, %p444
      %s446 = ssub.s32 %s70, %s77
      %p447 = scmp.eq.s32.totalorder %s446, 0
      %s449 = sadd.s32 %s448, 1
      %s450 = scalar_select %p447, %s448, %s449
      %p453 = pneg %p447
      %p454 = scmp.eq.s32.totalorder %s62, 3
      %p455 = por %p453, %p454
      %p456 = scmp.ne.s32.totalorder %s448, %s451
      %p457 = scmp.eq.s32.totalorder %s62, 0
      %p458 = por %p456, %p457
      %p459 = scmp.ne.s32.totalorder %s448, %s451
      %p460 = scmp.eq.s32.totalorder %s67, 3
      %p461 = por %p459, %p460
      %p462 = scmp.ne.s32.totalorder %s451, %s452
      %p463 = scmp.eq.s32.totalorder %s67, 0
      %p464 = por %p462, %p463
      %p465 = scmp.ne.s32.totalorder %s451, %s452
      %p466 = scmp.eq.s32.totalorder %s68, 3
      %p467 = por %p465, %p466
      %p469 = scmp.ne.s32.totalorder %s452, %s468
      %p470 = scmp.eq.s32.totalorder %s68, 0
      %p471 = por %p469, %p470
      %s472 = ssub.s32 %s70, %s77
      %p473 = scmp.eq.s32.totalorder %s472, 0
      %s475 = sadd.s32 %s474, 1
      %s476 = scalar_select %p473, %s474, %s475
      %p479 = pneg %p473
      %p480 = scmp.eq.s32.totalorder %s62, 3
      %p481 = por %p479, %p480
      %p482 = scmp.ne.s32.totalorder %s474, %s477
      %p483 = scmp.eq.s32.totalorder %s62, 0
      %p484 = por %p482, %p483
      %p485 = scmp.ne.s32.totalorder %s474, %s477
      %p486 = scmp.eq.s32.totalorder %s67, 3
      %p487 = por %p485, %p486
      %p488 = scmp.ne.s32.totalorder %s477, %s478
      %p489 = scmp.eq.s32.totalorder %s67, 0
      %p490 = por %p488, %p489
      %p491 = scmp.ne.s32.totalorder %s477, %s478
      %p492 = scmp.eq.s32.totalorder %s68, 3
      %p493 = por %p491, %p492
      %p495 = scmp.ne.s32.totalorder %s478, %s494
      %p496 = scmp.eq.s32.totalorder %s68, 0
      %p497 = por %p495, %p496
      %s498 = ssub.s32 %s70, %s77
      %p499 = scmp.eq.s32.totalorder %s498, 0
      %s501 = sadd.s32 %s500, 1
      %s502 = scalar_select %p499, %s500, %s501
      %p505 = pneg %p499
      %p506 = scmp.eq.s32.totalorder %s62, 3
      %p507 = por %p505, %p506
      %p508 = scmp.ne.s32.totalorder %s500, %s503
      %p509 = scmp.eq.s32.totalorder %s62, 0
      %p510 = por %p508, %p509
      %p511 = scmp.ne.s32.totalorder %s500, %s503
      %p512 = scmp.eq.s32.totalorder %s67, 3
      %p513 = por %p511, %p512
      %p514 = scmp.ne.s32.totalorder %s503, %s504
      %p515 = scmp.eq.s32.totalorder %s67, 0
      %p516 = por %p514, %p515
      %p517 = scmp.ne.s32.totalorder %s503, %s504
      %p518 = scmp.eq.s32.totalorder %s68, 3
      %p519 = por %p517, %p518
      %p521 = scmp.ne.s32.totalorder %s504, %s520
      %p522 = scmp.eq.s32.totalorder %s68, 0
      %p523 = por %p521, %p522
      %s524 = ssub.s32 %s70, %s77
      %p525 = scmp.eq.s32.totalorder %s524, 0
      %s527 = sadd.s32 %s526, 1
      %s528 = scalar_select %p525, %s526, %s527
      %p531 = pneg %p525
      %p532 = scmp.eq.s32.totalorder %s62, 3
      %p533 = por %p531, %p532
      %p534 = scmp.ne.s32.totalorder %s526, %s529
      %p535 = scmp.eq.s32.totalorder %s62, 0
      %p536 = por %p534, %p535
      %p537 = scmp.ne.s32.totalorder %s526, %s529
      %p538 = scmp.eq.s32.totalorder %s67, 3
      %p539 = por %p537, %p538
      %p540 = scmp.ne.s32.totalorder %s529, %s530
      %p541 = scmp.eq.s32.totalorder %s67, 0
      %p542 = por %p540, %p541
      %p543 = scmp.ne.s32.totalorder %s529, %s530
      %p544 = scmp.eq.s32.totalorder %s68, 3
      %p545 = por %p543, %p544
      %p547 = scmp.ne.s32.totalorder %s530, %s546
      %p548 = scmp.eq.s32.totalorder %s68, 0
      %p549 = por %p547, %p548
      %s550 = ssub.s32 %s70, %s77
      %p551 = scmp.eq.s32.totalorder %s550, 0
      %s553 = sadd.s32 %s552, 1
      %s554 = scalar_select %p551, %s552, %s553
      %p557 = pneg %p551
      %p558 = scmp.eq.s32.totalorder %s62, 3
      %p559 = por %p557, %p558
      %p560 = scmp.ne.s32.totalorder %s552, %s555
      %p561 = scmp.eq.s32.totalorder %s62, 0
      %p562 = por %p560, %p561
      %p563 = scmp.ne.s32.totalorder %s552, %s555
      %p564 = scmp.eq.s32.totalorder %s67, 3
      %p565 = por %p563, %p564
      %p566 = scmp.ne.s32.totalorder %s555, %s556
      %p567 = scmp.eq.s32.totalorder %s67, 0
      %p568 = por %p566, %p567
      %p569 = scmp.ne.s32.totalorder %s555, %s556
      %p570 = scmp.eq.s32.totalorder %s68, 3
      %p571 = por %p569, %p570
      %p573 = scmp.ne.s32.totalorder %s556, %s572
      %p574 = scmp.eq.s32.totalorder %s68, 0
      %p575 = por %p573, %p574
      %s576 = ssub.s32 %s70, %s77
      %p577 = scmp.eq.s32.totalorder %s576, 0
      %s579 = sadd.s32 %s578, 1
      %s580 = scalar_select %p577, %s578, %s579
      %p583 = pneg %p577
      %p584 = scmp.eq.s32.totalorder %s62, 3
      %p585 = por %p583, %p584
      %p586 = scmp.ne.s32.totalorder %s578, %s581
      %p587 = scmp.eq.s32.totalorder %s62, 0
      %p588 = por %p586, %p587
      %p589 = scmp.ne.s32.totalorder %s578, %s581
      %p590 = scmp.eq.s32.totalorder %s67, 3
      %p591 = por %p589, %p590
      %p592 = scmp.ne.s32.totalorder %s581, %s582
      %p593 = scmp.eq.s32.totalorder %s67, 0
      %p594 = por %p592, %p593
      %p595 = scmp.ne.s32.totalorder %s581, %s582
      %p596 = scmp.eq.s32.totalorder %s68, 3
      %p597 = por %p595, %p596
      %p599 = scmp.ne.s32.totalorder %s582, %s598
      %p600 = scmp.eq.s32.totalorder %s68, 0
      %p601 = por %p599, %p600
      %s602 = ssub.s32 %s69, %s81
      %p603 = scmp.eq.s32.totalorder %s602, 0
      %s605 = sadd.s32 %s604, 1
      %s606 = scalar_select %p603, %s604, %s605
      %p609 = pneg %p603
      %p610 = scmp.eq.s32.totalorder %s62, 3
      %p611 = por %p609, %p610
      %p612 = scmp.ne.s32.totalorder %s604, %s607
      %p613 = scmp.eq.s32.totalorder %s62, 0
      %p614 = por %p612, %p613
      %p615 = scmp.ne.s32.totalorder %s604, %s607
      %p616 = scmp.eq.s32.totalorder %s67, 3
      %p617 = por %p615, %p616
      %p618 = scmp.ne.s32.totalorder %s607, %s608
      %p619 = scmp.eq.s32.totalorder %s67, 0
      %p620 = por %p618, %p619
      %p621 = scmp.ne.s32.totalorder %s607, %s608
      %p622 = scmp.eq.s32.totalorder %s68, 3
      %p623 = por %p621, %p622
      %p625 = scmp.ne.s32.totalorder %s608, %s624
      %p626 = scmp.eq.s32.totalorder %s68, 0
      %p627 = por %p625, %p626
      %p628 = scmp.le.s32.totalorder 1, %s62
      %p629 = scmp.lt.s32.totalorder %s62, 5
      %p630 = pnand %p628, %p629
      %p631 = pneg %p630
      // Predicated region
      $region9: #{transformer_forward.4} parent=5 // pred_check
        _
      $region10: #{transformer_forward.4} parent=5 // pred_check_branch
        %633 = sbr.rel (%p630) target = $region12
      $region11: #{transformer_forward.4} parent=5 // pred_region
        %s634 = ssub.s32 %s62, 1
      $region12: #{transformer_forward.4} parent=5 // pred_fallthru
        _
      %p635 = scmp.lt.s32.totalorder %s62, 4
      // Predicated region
      $region13: #{transformer_forward.4} parent=5 // pred_check
        %p636 = pneg %p635
      $region14: #{transformer_forward.4} parent=5 // pred_check_branch
        %638 = sbr.rel (%p636) target = $region16
      $region15: #{transformer_forward.4} parent=5 // pred_region
        // Predicated region
        $region17: #{transformer_forward.4} parent=15 // pred_check
          %p639 = pneg %p94
        $region18: #{transformer_forward.4} parent=15 // pred_check_branch
          %641 = sbr.rel (%p639) target = $region20
        $region19: #{transformer_forward.4} parent=15 // pred_region
          %s642 = sand.u32 %s84, 1
          %s643 = scalar_lea.sflag [#allocation3], %s642
          %s644 = sand.u32 %s84, 1
          %s645 = scalar_lea.vmem [#allocation2], %s644
          %s647 = ssub.s32 16, 16
          %648 = vsyncadd %s643, %s647
          %s649 = smul.addr %s69, 16
          %s650 = scalar_lea.hbm %s0, %s649
          %s652 = sshll.u32 %s645, 4
          %s653 = int_to_ptr.vmem [resolvable:$true] %s652
          %655 = dma.hbm_to_vmem [thread:$0]  %s650, 16, %s653, %s643
        $region20: #{transformer_forward.4} parent=15 // pred_fallthru
          _
        // Predicated region
        $region21: #{transformer_forward.4} parent=15 // pred_check
          %p656 = pneg %p120
        $region22: #{transformer_forward.4} parent=15 // pred_check_branch
          %658 = sbr.rel (%p656) target = $region24
        $region23: #{transformer_forward.4} parent=15 // pred_region
          %s659 = sand.u32 %s62, 1
          %s660 = scalar_lea.sflag [#allocation6], %s659
          %s661 = sand.u32 %s110, 1
          %s662 = scalar_lea.vmem [#allocation5], %s661
          %s664 = ssub.s32 16, 16
          %665 = vsyncadd %s660, %s664
          %s666 = smul.addr %s69, 16
          %s667 = scalar_lea.hbm %s1, %s666
          %s669 = sshll.u32 %s662, 4
          %s670 = int_to_ptr.vmem [resolvable:$true] %s669
          %672 = dma.hbm_to_vmem [thread:$0]  %s667, 16, %s670, %s660
        $region24: #{transformer_forward.4} parent=15 // pred_fallthru
          _
        // Predicated region
        $region25: #{transformer_forward.4} parent=15 // pred_check
          %p673 = pneg %p146
        $region26: #{transformer_forward.4} parent=15 // pred_check_branch
          %675 = sbr.rel (%p673) target = $region28
        $region27: #{transformer_forward.4} parent=15 // pred_region
          %s676 = sand.u32 %s62, 1
          %s677 = scalar_lea.sflag [#allocation6], %s676
          %s678 = sand.u32 %s136, 1
          %s679 = smul.addr %s678, 4
          %s680 = scalar_lea.vmem [#allocation7], %s679
          %s682 = ssub.s32 64, 64
          %683 = vsyncadd %s677, %s682
          %s684 = smul.addr %s69, 64
          %s685 = scalar_lea.hbm %s2, %s684
          %s687 = sshll.u32 %s680, 4
          %s688 = int_to_ptr.vmem [resolvable:$true] %s687
          %690 = dma.hbm_to_vmem [thread:$0]  %s685, 64, %s688, %s677
        $region28: #{transformer_forward.4} parent=15 // pred_fallthru
          _
        // Predicated region
        $region29: #{transformer_forward.4} parent=15 // pred_check
          %p691 = pneg %p172
        $region30: #{transformer_forward.4} parent=15 // pred_check_branch
          %693 = sbr.rel (%p691) target = $region32
        $region31: #{transformer_forward.4} parent=15 // pred_region
          %s694 = sand.u32 %s62, 1
          %s695 = scalar_lea.sflag [#allocation9], %s694
          %s696 = sand.u32 %s162, 1
          %s697 = smul.addr %s696, 4
          %s698 = scalar_lea.vmem [#allocation8], %s697
          %s700 = ssub.s32 64, 64
          %701 = vsyncadd %s695, %s700
          %s702 = smul.addr %s69, 64
          %s703 = scalar_lea.hbm %s3, %s702
          %s705 = sshll.u32 %s698, 4
          %s706 = int_to_ptr.vmem [resolvable:$true] %s705
          %708 = dma.hbm_to_vmem [thread:$0]  %s703, 64, %s706, %s695
        $region32: #{transformer_forward.4} parent=15 // pred_fallthru
          _
        // Predicated region
        $region33: #{transformer_forward.4} parent=15 // pred_check
          %p709 = pneg %p198
        $region34: #{transformer_forward.4} parent=15 // pred_check_branch
          %711 = sbr.rel (%p709) target = $region36
        $region35: #{transformer_forward.4} parent=15 // pred_region
          %s712 = sand.u32 %s62, 1
          %s713 = scalar_lea.sflag [#allocation9], %s712
          %s714 = sand.u32 %s188, 1
          %s715 = smul.addr %s714, 16
          %s716 = scalar_lea.vmem [#allocation10], %s715
          %s718 = ssub.s32 256, 256
          %719 = vsyncadd %s713, %s718
          %s720 = smul.addr %s70, 4
          %s721 = smul.addr %s720, 64
          %s722 = scalar_lea.hbm %s4, %s721
          %s723 = sshll.u32 %s716, 4
          %s724 = int_to_ptr.vmem [resolvable:$true] %s723
          %729 = dma.hbm_to_vmem [thread:$0]  %s722, 256, %s724, %s713, 64, 64, 4
        $region36: #{transformer_forward.4} parent=15 // pred_fallthru
          _
        // Predicated region
        $region37: #{transformer_forward.4} parent=15 // pred_check
          %p730 = pneg %p224
        $region38: #{transformer_forward.4} parent=15 // pred_check_branch
          %732 = sbr.rel (%p730) target = $region40
        $region39: #{transformer_forward.4} parent=15 // pred_region
          %s733 = sand.u32 %s62, 1
          %s734 = scalar_lea.sflag [#allocation12], %s733
          %s735 = sand.u32 %s214, 1
          %s736 = scalar_lea.vmem [#allocation11], %s735
          %s738 = ssub.s32 16, 16
          %739 = vsyncadd %s734, %s738
          %s740 = smul.addr %s70, 16
          %s741 = scalar_lea.hbm %s5, %s740
          %s743 = sshll.u32 %s736, 4
          %s744 = int_to_ptr.vmem [resolvable:$true] %s743
          %746 = dma.hbm_to_vmem [thread:$0]  %s741, 16, %s744, %s734
        $region40: #{transformer_forward.4} parent=15 // pred_fallthru
          _
        // Predicated region
        $region41: #{transformer_forward.4} parent=15 // pred_check
          %p747 = pneg %p250
        $region42: #{transformer_forward.4} parent=15 // pred_check_branch
          %749 = sbr.rel (%p747) target = $region44
        $region43: #{transformer_forward.4} parent=15 // pred_region
          %s750 = sand.u32 %s62, 1
          %s751 = scalar_lea.sflag [#allocation12], %s750
          %s752 = sand.u32 %s240, 1
          %s753 = smul.addr %s752, 16
          %s754 = scalar_lea.vmem [#allocation13], %s753
          %s756 = ssub.s32 256, 256
          %757 = vsyncadd %s751, %s756
          %s758 = smul.addr %s70, 4
          %s759 = smul.addr %s758, 64
          %s760 = scalar_lea.hbm %s6, %s759
          %s761 = sshll.u32 %s754, 4
          %s762 = int_to_ptr.vmem [resolvable:$true] %s761
          %767 = dma.hbm_to_vmem [thread:$0]  %s760, 256, %s762, %s751, 64, 64, 4
        $region44: #{transformer_forward.4} parent=15 // pred_fallthru
          _
        // Predicated region
        $region45: #{transformer_forward.4} parent=15 // pred_check
          %p768 = pneg %p276
        $region46: #{transformer_forward.4} parent=15 // pred_check_branch
          %770 = sbr.rel (%p768) target = $region48
        $region47: #{transformer_forward.4} parent=15 // pred_region
          %s771 = sand.u32 %s62, 1
          %s772 = scalar_lea.sflag [#allocation15], %s771
          %s773 = sand.u32 %s266, 1
          %s774 = scalar_lea.vmem [#allocation14], %s773
          %s776 = ssub.s32 16, 16
          %777 = vsyncadd %s772, %s776
          %s778 = smul.addr %s70, 16
          %s779 = scalar_lea.hbm %s7, %s778
          %s781 = sshll.u32 %s774, 4
          %s782 = int_to_ptr.vmem [resolvable:$true] %s781
          %784 = dma.hbm_to_vmem [thread:$0]  %s779, 16, %s782, %s772
        $region48: #{transformer_forward.4} parent=15 // pred_fallthru
          _
        // Predicated region
        $region49: #{transformer_forward.4} parent=15 // pred_check
          %p785 = pneg %p302
        $region50: #{transformer_forward.4} parent=15 // pred_check_branch
          %787 = sbr.rel (%p785) target = $region52
        $region51: #{transformer_forward.4} parent=15 // pred_region
          %s788 = sand.u32 %s62, 1
          %s789 = scalar_lea.sflag [#allocation15], %s788
          %s790 = sand.u32 %s292, 1
          %s791 = smul.addr %s790, 16
          %s792 = scalar_lea.vmem [#allocation16], %s791
          %s794 = ssub.s32 256, 256
          %795 = vsyncadd %s789, %s794
          %s796 = smul.addr %s70, 4
          %s797 = smul.addr %s796, 64
          %s798 = scalar_lea.hbm %s8, %s797
          %s799 = sshll.u32 %s792, 4
          %s800 = int_to_ptr.vmem [resolvable:$true] %s799
          %805 = dma.hbm_to_vmem [thread:$0]  %s798, 256, %s800, %s789, 64, 64, 4
        $region52: #{transformer_forward.4} parent=15 // pred_fallthru
          _
        // Predicated region
        $region53: #{transformer_forward.4} parent=15 // pred_check
          %p806 = pneg %p328
        $region54: #{transformer_forward.4} parent=15 // pred_check_branch
          %808 = sbr.rel (%p806) target = $region56
        $region55: #{transformer_forward.4} parent=15 // pred_region
          %s809 = sand.u32 %s62, 1
          %s810 = scalar_lea.sflag [#allocation18], %s809
          %s811 = sand.u32 %s318, 1
          %s812 = scalar_lea.vmem [#allocation17], %s811
          %s814 = ssub.s32 16, 16
          %815 = vsyncadd %s810, %s814
          %s816 = smul.addr %s70, 16
          %s817 = scalar_lea.hbm %s9, %s816
          %s819 = sshll.u32 %s812, 4
          %s820 = int_to_ptr.vmem [resolvable:$true] %s819
          %822 = dma.hbm_to_vmem [thread:$0]  %s817, 16, %s820, %s810
        $region56: #{transformer_forward.4} parent=15 // pred_fallthru
          _
        // Predicated region
        $region57: #{transformer_forward.4} parent=15 // pred_check
          %p823 = pneg %p354
        $region58: #{transformer_forward.4} parent=15 // pred_check_branch
          %825 = sbr.rel (%p823) target = $region60
        $region59: #{transformer_forward.4} parent=15 // pred_region
          %s826 = sand.u32 %s62, 1
          %s827 = scalar_lea.sflag [#allocation18], %s826
          %s828 = sand.u32 %s344, 1
          %s829 = smul.addr %s828, 16
          %s830 = scalar_lea.vmem [#allocation19], %s829
          %s832 = ssub.s32 256, 256
          %833 = vsyncadd %s827, %s832
          %s834 = smul.addr %s70, 4
          %s835 = smul.addr %s834, 64
          %s836 = scalar_lea.hbm %s10, %s835
          %s837 = sshll.u32 %s830, 4
          %s838 = int_to_ptr.vmem [resolvable:$true] %s837
          %843 = dma.hbm_to_vmem [thread:$0]  %s836, 256, %s838, %s827, 64, 64, 4
        $region60: #{transformer_forward.4} parent=15 // pred_fallthru
          _
        // Predicated region
        $region61: #{transformer_forward.4} parent=15 // pred_check
          %p844 = pneg %p380
        $region62: #{transformer_forward.4} parent=15 // pred_check_branch
          %846 = sbr.rel (%p844) target = $region64
        $region63: #{transformer_forward.4} parent=15 // pred_region
          %s847 = sand.u32 %s62, 1
          %s848 = scalar_lea.sflag [#allocation21], %s847
          %s849 = sand.u32 %s370, 1
          %s850 = scalar_lea.vmem [#allocation20], %s849
          %s852 = ssub.s32 16, 16
          %853 = vsyncadd %s848, %s852
          %s854 = smul.addr %s70, 16
          %s855 = scalar_lea.hbm %s11, %s854
          %s857 = sshll.u32 %s850, 4
          %s858 = int_to_ptr.vmem [resolvable:$true] %s857
          %860 = dma.hbm_to_vmem [thread:$0]  %s855, 16, %s858, %s848
        $region64: #{transformer_forward.4} parent=15 // pred_fallthru
          _
        // Predicated region
        $region65: #{transformer_forward.4} parent=15 // pred_check
          %p861 = pneg %p406
        $region66: #{transformer_forward.4} parent=15 // pred_check_branch
          %863 = sbr.rel (%p861) target = $region68
        $region67: #{transformer_forward.4} parent=15 // pred_region
          %s864 = sand.u32 %s62, 1
          %s865 = scalar_lea.sflag [#allocation21], %s864
          %s866 = sand.u32 %s396, 1
          %s867 = smul.addr %s866, 16
          %s868 = scalar_lea.vmem [#allocation22], %s867
          %s870 = ssub.s32 256, 256
          %871 = vsyncadd %s865, %s870
          %s872 = smul.addr %s70, 4
          %s873 = smul.addr %s872, 64
          %s874 = scalar_lea.hbm %s12, %s873
          %s875 = sshll.u32 %s868, 4
          %s876 = int_to_ptr.vmem [resolvable:$true] %s875
          %881 = dma.hbm_to_vmem [thread:$0]  %s874, 256, %s876, %s865, 64, 64, 4
        $region68: #{transformer_forward.4} parent=15 // pred_fallthru
          _
        // Predicated region
        $region69: #{transformer_forward.4} parent=15 // pred_check
          %p882 = pneg %p432
        $region70: #{transformer_forward.4} parent=15 // pred_check_branch
          %884 = sbr.rel (%p882) target = $region72
        $region71: #{transformer_forward.4} parent=15 // pred_region
          %s885 = sand.u32 %s62, 1
          %s886 = scalar_lea.sflag [#allocation24], %s885
          %s887 = sand.u32 %s422, 1
          %s888 = scalar_lea.vmem [#allocation23], %s887
          %s890 = ssub.s32 16, 16
          %891 = vsyncadd %s886, %s890
          %s892 = smul.addr %s70, 16
          %s893 = scalar_lea.hbm %s13, %s892
          %s895 = sshll.u32 %s888, 4
          %s896 = int_to_ptr.vmem [resolvable:$true] %s895
          %898 = dma.hbm_to_vmem [thread:$0]  %s893, 16, %s896, %s886
        $region72: #{transformer_forward.4} parent=15 // pred_fallthru
          _
        // Predicated region
        $region73: #{transformer_forward.4} parent=15 // pred_check
          %p899 = pneg %p458
        $region74: #{transformer_forward.4} parent=15 // pred_check_branch
          %901 = sbr.rel (%p899) target = $region76
        $region75: #{transformer_forward.4} parent=15 // pred_region
          %s902 = sand.u32 %s62, 1
          %s903 = scalar_lea.sflag [#allocation24], %s902
          %s904 = sand.u32 %s448, 1
          %s905 = scalar_lea.vmem [#allocation25], %s904
          %s907 = ssub.s32 16, 16
          %908 = vsyncadd %s903, %s907
          %s909 = smul.addr %s70, 16
          %s910 = scalar_lea.hbm %s14, %s909
          %s912 = sshll.u32 %s905, 4
          %s913 = int_to_ptr.vmem [resolvable:$true] %s912
          %915 = dma.hbm_to_vmem [thread:$0]  %s910, 16, %s913, %s903
        $region76: #{transformer_forward.4} parent=15 // pred_fallthru
          _
        // Predicated region
        $region77: #{transformer_forward.4} parent=15 // pred_check
          %p916 = pneg %p484
        $region78: #{transformer_forward.4} parent=15 // pred_check_branch
          %918 = sbr.rel (%p916) target = $region80
        $region79: #{transformer_forward.4} parent=15 // pred_region
          %s919 = sand.u32 %s62, 1
          %s920 = scalar_lea.sflag [#allocation27], %s919
          %s921 = sand.u32 %s474, 1
          %s922 = scalar_lea.vmem [#allocation26], %s921
          %s924 = ssub.s32 16, 16
          %925 = vsyncadd %s920, %s924
          %s926 = smul.addr %s70, 16
          %s927 = scalar_lea.hbm %s15, %s926
          %s929 = sshll.u32 %s922, 4
          %s930 = int_to_ptr.vmem [resolvable:$true] %s929
          %932 = dma.hbm_to_vmem [thread:$0]  %s927, 16, %s930, %s920
        $region80: #{transformer_forward.4} parent=15 // pred_fallthru
          _
        // Predicated region
        $region81: #{transformer_forward.4} parent=15 // pred_check
          %p933 = pneg %p510
        $region82: #{transformer_forward.4} parent=15 // pred_check_branch
          %935 = sbr.rel (%p933) target = $region84
        $region83: #{transformer_forward.4} parent=15 // pred_region
          %s936 = sand.u32 %s62, 1
          %s937 = scalar_lea.sflag [#allocation27], %s936
          %s938 = sand.u32 %s500, 1
          %s939 = smul.addr %s938, 16
          %s940 = scalar_lea.vmem [#allocation28], %s939
          %s942 = ssub.s32 256, 256
          %943 = vsyncadd %s937, %s942
          %s944 = smul.addr %s70, 4
          %s945 = smul.addr %s944, 64
          %s946 = scalar_lea.hbm %s16, %s945
          %s947 = sshll.u32 %s940, 4
          %s948 = int_to_ptr.vmem [resolvable:$true] %s947
          %953 = dma.hbm_to_vmem [thread:$0]  %s946, 256, %s948, %s937, 64, 64, 4
        $region84: #{transformer_forward.4} parent=15 // pred_fallthru
          _
        // Predicated region
        $region85: #{transformer_forward.4} parent=15 // pred_check
          %p954 = pneg %p536
        $region86: #{transformer_forward.4} parent=15 // pred_check_branch
          %956 = sbr.rel (%p954) target = $region88
        $region87: #{transformer_forward.4} parent=15 // pred_region
          %s957 = sand.u32 %s62, 1
          %s958 = scalar_lea.sflag [#allocation30], %s957
          %s959 = sand.u32 %s526, 1
          %s960 = scalar_lea.vmem [#allocation29], %s959
          %s962 = ssub.s32 16, 16
          %963 = vsyncadd %s958, %s962
          %s964 = smul.addr %s70, 16
          %s965 = scalar_lea.hbm %s17, %s964
          %s967 = sshll.u32 %s960, 4
          %s968 = int_to_ptr.vmem [resolvable:$true] %s967
          %970 = dma.hbm_to_vmem [thread:$0]  %s965, 16, %s968, %s958
        $region88: #{transformer_forward.4} parent=15 // pred_fallthru
          _
        // Predicated region
        $region89: #{transformer_forward.4} parent=15 // pred_check
          %p971 = pneg %p562
        $region90: #{transformer_forward.4} parent=15 // pred_check_branch
          %973 = sbr.rel (%p971) target = $region92
        $region91: #{transformer_forward.4} parent=15 // pred_region
          %s974 = sand.u32 %s62, 1
          %s975 = scalar_lea.sflag [#allocation30], %s974
          %s976 = sand.u32 %s552, 1
          %s977 = smul.addr %s976, 64
          %s978 = scalar_lea.vmem [#allocation31], %s977
          %s980 = ssub.s32 1024, 1024
          %981 = vsyncadd %s975, %s980
          %s982 = smul.addr %s70, 16
          %s983 = smul.addr %s982, 64
          %s984 = scalar_lea.hbm %s18, %s983
          %s985 = sshll.u32 %s978, 4
          %s986 = int_to_ptr.vmem [resolvable:$true] %s985
          %991 = dma.hbm_to_vmem [thread:$0]  %s984, 1024, %s986, %s975, 64, 64, 4
        $region92: #{transformer_forward.4} parent=15 // pred_fallthru
          _
        // Predicated region
        $region93: #{transformer_forward.4} parent=15 // pred_check
          %p992 = pneg %p588
        $region94: #{transformer_forward.4} parent=15 // pred_check_branch
          %994 = sbr.rel (%p992) target = $region96
        $region95: #{transformer_forward.4} parent=15 // pred_region
          %s995 = sand.u32 %s578, 1
          %s996 = scalar_lea.sflag [#allocation33], %s995
          %s997 = sand.u32 %s578, 1
          %s998 = scalar_lea.vmem [#allocation32], %s997
          %s1000 = ssub.s32 16, 16
          %1001 = vsyncadd %s996, %s1000
          %s1002 = smul.addr %s70, 16
          %s1003 = scalar_lea.hbm %s19, %s1002
          %s1005 = sshll.u32 %s998, 4
          %s1006 = int_to_ptr.vmem [resolvable:$true] %s1005
          %1008 = dma.hbm_to_vmem [thread:$0]  %s1003, 16, %s1006, %s996
        $region96: #{transformer_forward.4} parent=15 // pred_fallthru
          _
      $region16: #{transformer_forward.4} parent=5 // pred_fallthru
        _
      %p1009 = scmp.le.s32.totalorder 1, %s62
      %p1010 = scmp.lt.s32.totalorder %s62, 5
      %p1011 = pnand %p1009, %p1010
      %p1012 = pneg %p1011
      // Predicated region
      $region97: #{transformer_forward.4} parent=5 // pred_check
        _
      $region98: #{transformer_forward.4} parent=5 // pred_check_branch
        %1014 = sbr.rel (%p1011) target = $region100
      $region99: #{transformer_forward.4} parent=5 // pred_region
        %s1015 = ssub.s32 %s62, 1
        %s1016 = sand.u32 %s87, 1
        %s1017 = scalar_lea.sflag [#allocation3], %s1016
        %s1018 = sand.u32 %s87, 1
        %s1019 = scalar_lea.vmem [#allocation2], %s1018
        // Predicated region
        $region101: #{transformer_forward.4} parent=99 // pred_check
          %p1020 = pneg %p100
        $region102: #{transformer_forward.4} parent=99 // pred_check_branch
          %1022 = sbr.rel (%p1020) target = $region104
        $region103: #{transformer_forward.4} parent=99 // pred_region
          %1023 = dma.done %s1017, 16
        $region104: #{transformer_forward.4} parent=99 // pred_fallthru
          _
        %s1024 = sand.u32 %s67, 1
        %s1025 = scalar_lea.sflag [#allocation6], %s1024
        %s1026 = sand.u32 %s113, 1
        %s1027 = scalar_lea.vmem [#allocation5], %s1026
        // Predicated region
        $region105: #{transformer_forward.4} parent=99 // pred_check
          %p1028 = pneg %p126
        $region106: #{transformer_forward.4} parent=99 // pred_check_branch
          %1030 = sbr.rel (%p1028) target = $region108
        $region107: #{transformer_forward.4} parent=99 // pred_region
          %1031 = dma.done %s1025, 16
        $region108: #{transformer_forward.4} parent=99 // pred_fallthru
          _
        %s1032 = sand.u32 %s67, 1
        %s1033 = scalar_lea.sflag [#allocation6], %s1032
        %s1034 = sand.u32 %s139, 1
        %s1035 = smul.addr %s1034, 4
        %s1036 = scalar_lea.vmem [#allocation7], %s1035
        // Predicated region
        $region109: #{transformer_forward.4} parent=99 // pred_check
          %p1037 = pneg %p152
        $region110: #{transformer_forward.4} parent=99 // pred_check_branch
          %1039 = sbr.rel (%p1037) target = $region112
        $region111: #{transformer_forward.4} parent=99 // pred_region
          %1040 = dma.done %s1033, 64
        $region112: #{transformer_forward.4} parent=99 // pred_fallthru
          _
        %s1041 = sand.u32 %s67, 1
        %s1042 = scalar_lea.sflag [#allocation9], %s1041
        %s1043 = sand.u32 %s165, 1
        %s1044 = smul.addr %s1043, 4
        %s1045 = scalar_lea.vmem [#allocation8], %s1044
        // Predicated region
        $region113: #{transformer_forward.4} parent=99 // pred_check
          %p1046 = pneg %p178
        $region114: #{transformer_forward.4} parent=99 // pred_check_branch
          %1048 = sbr.rel (%p1046) target = $region116
        $region115: #{transformer_forward.4} parent=99 // pred_region
          %1049 = dma.done %s1042, 64
        $region116: #{transformer_forward.4} parent=99 // pred_fallthru
          _
        %s1050 = sand.u32 %s67, 1
        %s1051 = scalar_lea.sflag [#allocation9], %s1050
        %s1052 = sand.u32 %s191, 1
        %s1053 = smul.addr %s1052, 16
        %s1054 = scalar_lea.vmem [#allocation10], %s1053
        // Predicated region
        $region117: #{transformer_forward.4} parent=99 // pred_check
          %p1055 = pneg %p204
        $region118: #{transformer_forward.4} parent=99 // pred_check_branch
          %1057 = sbr.rel (%p1055) target = $region120
        $region119: #{transformer_forward.4} parent=99 // pred_region
          %1058 = dma.done %s1051, 256
        $region120: #{transformer_forward.4} parent=99 // pred_fallthru
          _
        %s1059 = sand.u32 %s67, 1
        %s1060 = scalar_lea.sflag [#allocation12], %s1059
        %s1061 = sand.u32 %s217, 1
        %s1062 = scalar_lea.vmem [#allocation11], %s1061
        // Predicated region
        $region121: #{transformer_forward.4} parent=99 // pred_check
          %p1063 = pneg %p230
        $region122: #{transformer_forward.4} parent=99 // pred_check_branch
          %1065 = sbr.rel (%p1063) target = $region124
        $region123: #{transformer_forward.4} parent=99 // pred_region
          %1066 = dma.done %s1060, 16
        $region124: #{transformer_forward.4} parent=99 // pred_fallthru
          _
        %s1067 = sand.u32 %s67, 1
        %s1068 = scalar_lea.sflag [#allocation12], %s1067
        %s1069 = sand.u32 %s243, 1
        %s1070 = smul.addr %s1069, 16
        %s1071 = scalar_lea.vmem [#allocation13], %s1070
        // Predicated region
        $region125: #{transformer_forward.4} parent=99 // pred_check
          %p1072 = pneg %p256
        $region126: #{transformer_forward.4} parent=99 // pred_check_branch
          %1074 = sbr.rel (%p1072) target = $region128
        $region127: #{transformer_forward.4} parent=99 // pred_region
          %1075 = dma.done %s1068, 256
        $region128: #{transformer_forward.4} parent=99 // pred_fallthru
          _
        %s1076 = sand.u32 %s67, 1
        %s1077 = scalar_lea.sflag [#allocation15], %s1076
        %s1078 = sand.u32 %s269, 1
        %s1079 = scalar_lea.vmem [#allocation14], %s1078
        // Predicated region
        $region129: #{transformer_forward.4} parent=99 // pred_check
          %p1080 = pneg %p282
        $region130: #{transformer_forward.4} parent=99 // pred_check_branch
          %1082 = sbr.rel (%p1080) target = $region132
        $region131: #{transformer_forward.4} parent=99 // pred_region
          %1083 = dma.done %s1077, 16
        $region132: #{transformer_forward.4} parent=99 // pred_fallthru
          _
        %s1084 = sand.u32 %s67, 1
        %s1085 = scalar_lea.sflag [#allocation15], %s1084
        %s1086 = sand.u32 %s295, 1
        %s1087 = smul.addr %s1086, 16
        %s1088 = scalar_lea.vmem [#allocation16], %s1087
        // Predicated region
        $region133: #{transformer_forward.4} parent=99 // pred_check
          %p1089 = pneg %p308
        $region134: #{transformer_forward.4} parent=99 // pred_check_branch
          %1091 = sbr.rel (%p1089) target = $region136
        $region135: #{transformer_forward.4} parent=99 // pred_region
          %1092 = dma.done %s1085, 256
        $region136: #{transformer_forward.4} parent=99 // pred_fallthru
          _
        %s1093 = sand.u32 %s67, 1
        %s1094 = scalar_lea.sflag [#allocation18], %s1093
        %s1095 = sand.u32 %s321, 1
        %s1096 = scalar_lea.vmem [#allocation17], %s1095
        // Predicated region
        $region137: #{transformer_forward.4} parent=99 // pred_check
          %p1097 = pneg %p334
        $region138: #{transformer_forward.4} parent=99 // pred_check_branch
          %1099 = sbr.rel (%p1097) target = $region140
        $region139: #{transformer_forward.4} parent=99 // pred_region
          %1100 = dma.done %s1094, 16
        $region140: #{transformer_forward.4} parent=99 // pred_fallthru
          _
        %s1101 = sand.u32 %s67, 1
        %s1102 = scalar_lea.sflag [#allocation18], %s1101
        %s1103 = sand.u32 %s347, 1
        %s1104 = smul.addr %s1103, 16
        %s1105 = scalar_lea.vmem [#allocation19], %s1104
        // Predicated region
        $region141: #{transformer_forward.4} parent=99 // pred_check
          %p1106 = pneg %p360
        $region142: #{transformer_forward.4} parent=99 // pred_check_branch
          %1108 = sbr.rel (%p1106) target = $region144
        $region143: #{transformer_forward.4} parent=99 // pred_region
          %1109 = dma.done %s1102, 256
        $region144: #{transformer_forward.4} parent=99 // pred_fallthru
          _
        %s1110 = sand.u32 %s67, 1
        %s1111 = scalar_lea.sflag [#allocation21], %s1110
        %s1112 = sand.u32 %s373, 1
        %s1113 = scalar_lea.vmem [#allocation20], %s1112
        // Predicated region
        $region145: #{transformer_forward.4} parent=99 // pred_check
          %p1114 = pneg %p386
        $region146: #{transformer_forward.4} parent=99 // pred_check_branch
          %1116 = sbr.rel (%p1114) target = $region148
        $region147: #{transformer_forward.4} parent=99 // pred_region
          %1117 = dma.done %s1111, 16
        $region148: #{transformer_forward.4} parent=99 // pred_fallthru
          _
        %s1118 = sand.u32 %s67, 1
        %s1119 = scalar_lea.sflag [#allocation21], %s1118
        %s1120 = sand.u32 %s399, 1
        %s1121 = smul.addr %s1120, 16
        %s1122 = scalar_lea.vmem [#allocation22], %s1121
        // Predicated region
        $region149: #{transformer_forward.4} parent=99 // pred_check
          %p1123 = pneg %p412
        $region150: #{transformer_forward.4} parent=99 // pred_check_branch
          %1125 = sbr.rel (%p1123) target = $region152
        $region151: #{transformer_forward.4} parent=99 // pred_region
          %1126 = dma.done %s1119, 256
        $region152: #{transformer_forward.4} parent=99 // pred_fallthru
          _
        %s1127 = sand.u32 %s67, 1
        %s1128 = scalar_lea.sflag [#allocation24], %s1127
        %s1129 = sand.u32 %s425, 1
        %s1130 = scalar_lea.vmem [#allocation23], %s1129
        // Predicated region
        $region153: #{transformer_forward.4} parent=99 // pred_check
          %p1131 = pneg %p438
        $region154: #{transformer_forward.4} parent=99 // pred_check_branch
          %1133 = sbr.rel (%p1131) target = $region156
        $region155: #{transformer_forward.4} parent=99 // pred_region
          %1134 = dma.done %s1128, 16
        $region156: #{transformer_forward.4} parent=99 // pred_fallthru
          _
        %s1135 = sand.u32 %s67, 1
        %s1136 = scalar_lea.sflag [#allocation24], %s1135
        %s1137 = sand.u32 %s451, 1
        %s1138 = scalar_lea.vmem [#allocation25], %s1137
        // Predicated region
        $region157: #{transformer_forward.4} parent=99 // pred_check
          %p1139 = pneg %p464
        $region158: #{transformer_forward.4} parent=99 // pred_check_branch
          %1141 = sbr.rel (%p1139) target = $region160
        $region159: #{transformer_forward.4} parent=99 // pred_region
          %1142 = dma.done %s1136, 16
        $region160: #{transformer_forward.4} parent=99 // pred_fallthru
          _
        %s1143 = sand.u32 %s67, 1
        %s1144 = scalar_lea.sflag [#allocation27], %s1143
        %s1145 = sand.u32 %s477, 1
        %s1146 = scalar_lea.vmem [#allocation26], %s1145
        // Predicated region
        $region161: #{transformer_forward.4} parent=99 // pred_check
          %p1147 = pneg %p490
        $region162: #{transformer_forward.4} parent=99 // pred_check_branch
          %1149 = sbr.rel (%p1147) target = $region164
        $region163: #{transformer_forward.4} parent=99 // pred_region
          %1150 = dma.done %s1144, 16
        $region164: #{transformer_forward.4} parent=99 // pred_fallthru
          _
        %s1151 = sand.u32 %s67, 1
        %s1152 = scalar_lea.sflag [#allocation27], %s1151
        %s1153 = sand.u32 %s503, 1
        %s1154 = smul.addr %s1153, 16
        %s1155 = scalar_lea.vmem [#allocation28], %s1154
        // Predicated region
        $region165: #{transformer_forward.4} parent=99 // pred_check
          %p1156 = pneg %p516
        $region166: #{transformer_forward.4} parent=99 // pred_check_branch
          %1158 = sbr.rel (%p1156) target = $region168
        $region167: #{transformer_forward.4} parent=99 // pred_region
          %1159 = dma.done %s1152, 256
        $region168: #{transformer_forward.4} parent=99 // pred_fallthru
          _
        %s1160 = sand.u32 %s67, 1
        %s1161 = scalar_lea.sflag [#allocation30], %s1160
        %s1162 = sand.u32 %s529, 1
        %s1163 = scalar_lea.vmem [#allocation29], %s1162
        // Predicated region
        $region169: #{transformer_forward.4} parent=99 // pred_check
          %p1164 = pneg %p542
        $region170: #{transformer_forward.4} parent=99 // pred_check_branch
          %1166 = sbr.rel (%p1164) target = $region172
        $region171: #{transformer_forward.4} parent=99 // pred_region
          %1167 = dma.done %s1161, 16
        $region172: #{transformer_forward.4} parent=99 // pred_fallthru
          _
        %s1168 = sand.u32 %s67, 1
        %s1169 = scalar_lea.sflag [#allocation30], %s1168
        %s1170 = sand.u32 %s555, 1
        %s1171 = smul.addr %s1170, 64
        %s1172 = scalar_lea.vmem [#allocation31], %s1171
        // Predicated region
        $region173: #{transformer_forward.4} parent=99 // pred_check
          %p1173 = pneg %p568
        $region174: #{transformer_forward.4} parent=99 // pred_check_branch
          %1175 = sbr.rel (%p1173) target = $region176
        $region175: #{transformer_forward.4} parent=99 // pred_region
          %1176 = dma.done %s1169, 1024
        $region176: #{transformer_forward.4} parent=99 // pred_fallthru
          _
        %s1177 = sand.u32 %s581, 1
        %s1178 = scalar_lea.sflag [#allocation33], %s1177
        %s1179 = sand.u32 %s581, 1
        %s1180 = scalar_lea.vmem [#allocation32], %s1179
        // Predicated region
        $region177: #{transformer_forward.4} parent=99 // pred_check
          %p1181 = pneg %p594
        $region178: #{transformer_forward.4} parent=99 // pred_check_branch
          %1183 = sbr.rel (%p1181) target = $region180
        $region179: #{transformer_forward.4} parent=99 // pred_region
          %1184 = dma.done %s1178, 16
        $region180: #{transformer_forward.4} parent=99 // pred_fallthru
          _
        %s1185 = sand.u32 %s87, 1
        %s1186 = scalar_lea.sflag [#allocation3], %s1185
        %s1187 = sand.u32 %s87, 1
        %s1188 = scalar_lea.vmem [#allocation2], %s1187
        %p1189 = pneg %p100
        %p1190 = pneg %p97
        %s1191 = sand.u32 %s67, 1
        %s1192 = scalar_lea.sflag [#allocation6], %s1191
        %s1193 = sand.u32 %s113, 1
        %s1194 = scalar_lea.vmem [#allocation5], %s1193
        %p1195 = pneg %p126
        %p1196 = pneg %p123
        %s1197 = sand.u32 %s67, 1
        %s1198 = scalar_lea.sflag [#allocation6], %s1197
        %s1199 = sand.u32 %s139, 1
        %s1200 = smul.addr %s1199, 4
        %s1201 = scalar_lea.vmem [#allocation7], %s1200
        %p1202 = pneg %p152
        %p1203 = pneg %p149
        %s1204 = sand.u32 %s67, 1
        %s1205 = scalar_lea.sflag [#allocation9], %s1204
        %s1206 = sand.u32 %s165, 1
        %s1207 = smul.addr %s1206, 4
        %s1208 = scalar_lea.vmem [#allocation8], %s1207
        %p1209 = pneg %p178
        %p1210 = pneg %p175
        %s1211 = sand.u32 %s67, 1
        %s1212 = scalar_lea.sflag [#allocation9], %s1211
        %s1213 = sand.u32 %s191, 1
        %s1214 = smul.addr %s1213, 16
        %s1215 = scalar_lea.vmem [#allocation10], %s1214
        %p1216 = pneg %p204
        %p1217 = pneg %p201
        %s1218 = sand.u32 %s67, 1
        %s1219 = scalar_lea.sflag [#allocation12], %s1218
        %s1220 = sand.u32 %s217, 1
        %s1221 = scalar_lea.vmem [#allocation11], %s1220
        %p1222 = pneg %p230
        %p1223 = pneg %p227
        %s1224 = sand.u32 %s67, 1
        %s1225 = scalar_lea.sflag [#allocation12], %s1224
        %s1226 = sand.u32 %s243, 1
        %s1227 = smul.addr %s1226, 16
        %s1228 = scalar_lea.vmem [#allocation13], %s1227
        %p1229 = pneg %p256
        %p1230 = pneg %p253
        %s1231 = sand.u32 %s67, 1
        %s1232 = scalar_lea.sflag [#allocation15], %s1231
        %s1233 = sand.u32 %s269, 1
        %s1234 = scalar_lea.vmem [#allocation14], %s1233
        %p1235 = pneg %p282
        %p1236 = pneg %p279
        %s1237 = sand.u32 %s67, 1
        %s1238 = scalar_lea.sflag [#allocation15], %s1237
        %s1239 = sand.u32 %s295, 1
        %s1240 = smul.addr %s1239, 16
        %s1241 = scalar_lea.vmem [#allocation16], %s1240
        %p1242 = pneg %p308
        %p1243 = pneg %p305
        %s1244 = sand.u32 %s67, 1
        %s1245 = scalar_lea.sflag [#allocation18], %s1244
        %s1246 = sand.u32 %s321, 1
        %s1247 = scalar_lea.vmem [#allocation17], %s1246
        %p1248 = pneg %p334
        %p1249 = pneg %p331
        %s1250 = sand.u32 %s67, 1
        %s1251 = scalar_lea.sflag [#allocation18], %s1250
        %s1252 = sand.u32 %s347, 1
        %s1253 = smul.addr %s1252, 16
        %s1254 = scalar_lea.vmem [#allocation19], %s1253
        %p1255 = pneg %p360
        %p1256 = pneg %p357
        %s1257 = sand.u32 %s67, 1
        %s1258 = scalar_lea.sflag [#allocation21], %s1257
        %s1259 = sand.u32 %s373, 1
        %s1260 = scalar_lea.vmem [#allocation20], %s1259
        %p1261 = pneg %p386
        %p1262 = pneg %p383
        %s1263 = sand.u32 %s67, 1
        %s1264 = scalar_lea.sflag [#allocation21], %s1263
        %s1265 = sand.u32 %s399, 1
        %s1266 = smul.addr %s1265, 16
        %s1267 = scalar_lea.vmem [#allocation22], %s1266
        %p1268 = pneg %p412
        %p1269 = pneg %p409
        %s1270 = sand.u32 %s67, 1
        %s1271 = scalar_lea.sflag [#allocation24], %s1270
        %s1272 = sand.u32 %s425, 1
        %s1273 = scalar_lea.vmem [#allocation23], %s1272
        %p1274 = pneg %p438
        %p1275 = pneg %p435
        %s1276 = sand.u32 %s67, 1
        %s1277 = scalar_lea.sflag [#allocation24], %s1276
        %s1278 = sand.u32 %s451, 1
        %s1279 = scalar_lea.vmem [#allocation25], %s1278
        %p1280 = pneg %p464
        %p1281 = pneg %p461
        %s1282 = sand.u32 %s67, 1
        %s1283 = scalar_lea.sflag [#allocation27], %s1282
        %s1284 = sand.u32 %s477, 1
        %s1285 = scalar_lea.vmem [#allocation26], %s1284
        %p1286 = pneg %p490
        %p1287 = pneg %p487
        %s1288 = sand.u32 %s67, 1
        %s1289 = scalar_lea.sflag [#allocation27], %s1288
        %s1290 = sand.u32 %s503, 1
        %s1291 = smul.addr %s1290, 16
        %s1292 = scalar_lea.vmem [#allocation28], %s1291
        %p1293 = pneg %p516
        %p1294 = pneg %p513
        %s1295 = sand.u32 %s67, 1
        %s1296 = scalar_lea.sflag [#allocation30], %s1295
        %s1297 = sand.u32 %s529, 1
        %s1298 = scalar_lea.vmem [#allocation29], %s1297
        %p1299 = pneg %p542
        %p1300 = pneg %p539
        %s1301 = sand.u32 %s67, 1
        %s1302 = scalar_lea.sflag [#allocation30], %s1301
        %s1303 = sand.u32 %s555, 1
        %s1304 = smul.addr %s1303, 64
        %s1305 = scalar_lea.vmem [#allocation31], %s1304
        %p1306 = pneg %p568
        %p1307 = pneg %p565
        %s1308 = sand.u32 %s581, 1
        %s1309 = scalar_lea.sflag [#allocation33], %s1308
        %s1310 = sand.u32 %s581, 1
        %s1311 = scalar_lea.vmem [#allocation32], %s1310
        %p1312 = pneg %p594
        %p1313 = pneg %p591
        %p1314 = pneg %p620
        %p1315 = pneg %p617
        %s1316 = sand.u32 %s607, 1
        %s1317 = scalar_lea.sflag [#allocation4], %s1316
        %s1318 = sand.u32 %s607, 1
        %s1319 = smul.addr %s1318, 4
        %s1320 = scalar_lea.vmem [#allocation34], %s1319
        %p1322 = scmp.eq.s32.totalorder %s72, 0
        // Predicated region
        $region181: #{transformer_forward.4} parent=99 // pred_check
          %p1323 = pneg %p1322
        $region182: #{transformer_forward.4} parent=99 // pred_check_branch
          %1325 = sbr.rel (%p1323) target = $region184
        $region183: #{transformer_forward.4} parent=99 // pred_region
          %v1326 = vld [vmem:[%s1036] sm:$0xf]
          %vm1327 = vcmask 257024
          %1328 = vst.msk [vmem:[%s1320] sm:$0xf] %vm1327, %v1326
        $region184: #{transformer_forward.4} parent=99 // pred_fallthru
          _
        %v1329 = vld [vmem:[%s1320] sm:$0xf]
        %v1330 = vld [vmem:[%s1045] sm:$0xf]
        %v1331 = vunpack.c.l.bf16 %v1329
        %v1332 = vld [vmem:[%s1054] sm:$0xf]
        %v1333 = vld [vmem:[%s1054 + $0x4] sm:$0xf]
        %v1334 = vld [vmem:[%s1054 + $0x8] sm:$0xf]
        %v1335 = vld [vmem:[%s1054 + $0xc] sm:$0xf]
        %v1336 = vld [vmem:[%s1062] sm:$0x1]
        %v1338 = vlaneseq
        %v1339 = vshrl.u32 %v1338, 7
        %v1340 = vsub.s32 0, %v1339
        %v1341 = vrot.slane %v1336, %v1340
        %v1347 = vunpack.c.l.b16 %v1332
        %v1348 = vunpack.c.l.b16 %v1333
        %v1349 = vunpack.c.l.b16 %v1334
        %v1350 = vunpack.c.l.b16 %v1335
        %v1351 = vpack.c.b16 %v1348, %v1347
        %v1352 = vpack.c.b16 %v1350, %v1349
        %vm1355 = vcmask 261120
        %v1357 = vsel %vm1355, %v1329, 0
        %1359 = vmatprep.subr.bf16.mxu0 0
        %1360 = vmatpush1.bf16.msra.mxu0 %v1351
        %1361 = vmatprep.subr.bf16.mxu0 0
        %1362 = vmatpush1.bf16.msra.mxu0 %v1352
        %1363 = vmatprep.subr.bf16.mxu0 0
        %1364 = vmatpush1.bf16.msra.mxu0 0
        %1365 = vmatprep.subr.bf16.mxu0 0
        %1366 = vmatpush1.bf16.msra.mxu0 0
        %1367 = vmatprep.subr.bf16.mxu0 0
        %1368 = vmatpush1.bf16.msra.mxu0 0
        %1369 = vmatprep.subr.bf16.mxu0 0
        %1370 = vmatpush1.bf16.msra.mxu0 0
        %1371 = vmatprep.subr.bf16.mxu0 0
        %1372 = vmatpush1.bf16.msra.mxu0 0
        %1373 = vmatprep.subr.bf16.mxu0 0
        %1374 = vmatpush1.bf16.msra.mxu0 0
        %1375 = vmatprep.subr.bf16.mxu0 0
        %1376 = vmatpush1.bf16.msra.mxu0 0
        %1377 = vmatprep.subr.bf16.mxu0 0
        %1378 = vmatpush1.bf16.msra.mxu0 0
        %1379 = vmatprep.subr.bf16.mxu0 0
        %1380 = vmatpush1.bf16.msra.mxu0 0
        %1381 = vmatprep.subr.bf16.mxu0 0
        %1382 = vmatpush1.bf16.msra.mxu0 0
        %1383 = vmatprep.subr.bf16.mxu0 0
        %1384 = vmatpush1.bf16.msra.mxu0 0
        %1385 = vmatprep.subr.bf16.mxu0 0
        %1386 = vmatpush1.bf16.msra.mxu0 0
        %1387 = vmatprep.subr.bf16.mxu0 0
        %1388 = vmatpush1.bf16.msra.mxu0 0
        %1389 = vmatprep.subr.bf16.mxu0 0
        %1390 = vmatpush1.bf16.msra.mxu0 0
        %1391 = vmatprep.mubr.bf16.mxu0 0
        %1392 = vmatmul.mubr.bf16.gmra.mrb[0].mxu0 %v1357
        %v1393 = vpop.f32.mrb[0].mxu0
        %v1394 = vadd.f32 %v1341, %v1393
        %v1395 = vpop.f32.mrb[0].mxu0
        %v1396 = vpop.f32.mrb[0].mxu0
        %v1397 = vpop.f32.mrb[0].mxu0
        %1398 = vdwg.mxu0
        %v1399 = vpack.c.bf16 %v1394, %v1394
        %v1400 = vlaneseq
        %v1401 = vshrl.u32 %v1400, 7
        %v1402 = vlaneseq
        %v1403 = vand.u32 %v1402, 127
        %vm1404 = vcmp.gt.s32.totalorder %v1403, %v1401
        %v1405 = vld [vmem:[%s1019] sm:$0x1]
        %vm1406 = vcmp.gt.f32.partialorder %v1405, 0.0
        %v1407 = vsel %vm1406, 1, 0
        %v1408 = vlaneseq
        %v1409 = vshrl.u32 %v1408, 7
        %v1410 = vsub.s32 0, %v1409
        %v1411 = vrot.slane %v1407, %v1410
        %vm1412 = vcmp.eq.s32.totalorder %v1411, 1
        %vm1413 = vmor %vm1404, %vm1412
        %v1414 = vsel %vm1413, -1e+09, 0.0
        %v1415 = vld [vmem:[%s1071] sm:$0xf]
        %v1416 = vld [vmem:[%s1071 + $0x4] sm:$0xf]
        %v1417 = vld [vmem:[%s1071 + $0x8] sm:$0xf]
        %v1418 = vld [vmem:[%s1071 + $0xc] sm:$0xf]
        %1420 = vrot.lane.b32.xlu0 %v1399, 96
        %v1421 = vpop.permute.xlu0 %1420
        %vm1422 = vcmask 64512
        %v1424 = vsel %vm1422, %v1399, 0
        %v1427 = vsel %vm1422, %v1421, 0
        %1429 = vmatprep.subr.bf16.mxu0 0
        %1430 = vmatpush1.bf16.xpose.msra.mxu0 %v1427
        %1431 = vmatprep.subr.bf16.mxu0 0
        %1432 = vmatpush1.bf16.xpose.msra.mxu0 0
        %1433 = vmatprep.subr.bf16.mxu0 0
        %1434 = vmatpush1.bf16.xpose.msra.mxu0 0
        %1435 = vmatprep.subr.bf16.mxu0 0
        %1436 = vmatpush1.bf16.xpose.msra.mxu0 0
        %1437 = vmatprep.subr.bf16.mxu0 0
        %1438 = vmatpush1.bf16.xpose.msra.mxu0 0
        %1439 = vmatprep.subr.bf16.mxu0 0
        %1440 = vmatpush1.bf16.xpose.msra.mxu0 0
        %1441 = vmatprep.subr.bf16.mxu0 0
        %1442 = vmatpush1.bf16.xpose.msra.mxu0 0
        %1443 = vmatprep.subr.bf16.mxu0 0
        %1444 = vmatpush1.bf16.xpose.msra.mxu0 0
        %1445 = vmatprep.subr.bf16.mxu0 0
        %1446 = vmatpush1.bf16.xpose.msra.mxu0 0
        %1447 = vmatprep.subr.bf16.mxu0 0
        %1448 = vmatpush1.bf16.xpose.msra.mxu0 0
        %1449 = vmatprep.subr.bf16.mxu0 0
        %1450 = vmatpush1.bf16.xpose.msra.mxu0 0
        %1451 = vmatprep.subr.bf16.mxu0 0
        %1452 = vmatpush1.bf16.xpose.msra.mxu0 0
        %1453 = vmatprep.subr.bf16.mxu0 0
        %1454 = vmatpush1.bf16.xpose.msra.mxu0 0
        %1455 = vmatprep.subr.bf16.mxu0 0
        %1456 = vmatpush1.bf16.xpose.msra.mxu0 0
        %1457 = vmatprep.subr.bf16.mxu0 0
        %1458 = vmatpush1.bf16.xpose.msra.mxu0 0
        %1459 = vmatprep.subr.bf16.mxu0 0
        %1460 = vmatpush1.bf16.xpose.msra.mxu0 0
        %1461 = vmatprep.mubr.bf16.mxu0 0
        %1462 = vmatmul.mubr.bf16.gmra.mrb[0].mxu0 %v1424
        %v1463 = vpop.f32.mrb[0].mxu0
        %v1464 = vadd.f32 0.0, %v1463
        %v1465 = vpop.f32.mrb[0].mxu0
        %v1466 = vpop.f32.mrb[0].mxu0
        %v1467 = vpop.f32.mrb[0].mxu0
        %1468 = vdwg.mxu0
        %v1469 = vmul.f32 %v1464, 0.35355338
        %v1470 = vadd.f32 %v1469, %v1414
        %v1471 = vsel %vm1422, %v1470, -inf
        %1472 = vmax.xlane.f32.xlu0 %v1471
        %v1473 = vpop.xlane.xlu0 %1472
        %v1474 = vsub.f32 %v1470, %v1473
        %v1475 = vmul.f32 %v1474, 1.442695
        %v1476 = vpow.pop %v1475
        %v1477 = vsel %vm1422, %v1476, 0.0
        %1478 = vadd.xlane.f32.xlu0 %v1477
        %v1479 = vpop.xlane.xlu0 %1478
        %v1480 = vrcp.pop %v1479
        %v1481 = vmul.f32 %v1476, %v1480
        %v1482 = vpack.c.bf16 %v1481, %v1481
        %1483 = vrot.lane.b32.xlu0 %v1399, 64
        %v1484 = vpop.permute.xlu0 %1483
        %v1486 = vsel %vm1422, %v1482, 0
        %vm1488 = vcmask 1043456
        %v1490 = vsel %vm1488, %v1484, 0
        %1492 = vmatprep.subr.bf16.mxu0 0
        %1493 = vmatpush1.bf16.msra.mxu0 %v1490
        %1494 = vmatprep.subr.bf16.mxu0 0
        %1495 = vmatpush1.bf16.msra.mxu0 0
        %1496 = vmatprep.subr.bf16.mxu0 0
        %1497 = vmatpush1.bf16.msra.mxu0 0
        %1498 = vmatprep.subr.bf16.mxu0 0
        %1499 = vmatpush1.bf16.msra.mxu0 0
        %1500 = vmatprep.subr.bf16.mxu0 0
        %1501 = vmatpush1.bf16.msra.mxu0 0
        %1502 = vmatprep.subr.bf16.mxu0 0
        %1503 = vmatpush1.bf16.msra.mxu0 0
        %1504 = vmatprep.subr.bf16.mxu0 0
        %1505 = vmatpush1.bf16.msra.mxu0 0
        %1506 = vmatprep.subr.bf16.mxu0 0
        %1507 = vmatpush1.bf16.msra.mxu0 0
        %1508 = vmatprep.subr.bf16.mxu0 0
        %1509 = vmatpush1.bf16.msra.mxu0 0
        %1510 = vmatprep.subr.bf16.mxu0 0
        %1511 = vmatpush1.bf16.msra.mxu0 0
        %1512 = vmatprep.subr.bf16.mxu0 0
        %1513 = vmatpush1.bf16.msra.mxu0 0
        %1514 = vmatprep.subr.bf16.mxu0 0
        %1515 = vmatpush1.bf16.msra.mxu0 0
        %1516 = vmatprep.subr.bf16.mxu0 0
        %1517 = vmatpush1.bf16.msra.mxu0 0
        %1518 = vmatprep.subr.bf16.mxu0 0
        %1519 = vmatpush1.bf16.msra.mxu0 0
        %1520 = vmatprep.subr.bf16.mxu0 0
        %1521 = vmatpush1.bf16.msra.mxu0 0
        %1522 = vmatprep.subr.bf16.mxu0 0
        %1523 = vmatpush1.bf16.msra.mxu0 0
        %1524 = vmatprep.mubr.bf16.mxu0 0
        %1525 = vmatmul.mubr.bf16.gmra.mrb[0].mxu0 %v1486
        %v1526 = vpop.f32.mrb[0].mxu0
        %v1527 = vadd.f32 0.0, %v1526
        %v1528 = vpop.f32.mrb[0].mxu0
        %v1529 = vpop.f32.mrb[0].mxu0
        %v1530 = vpop.f32.mrb[0].mxu0
        %1531 = vdwg.mxu0
        %v1532 = vpack.c.bf16 %v1527, %v1527
        %1533 = vrot.lane.b32.xlu0 %v1399, 120
        %v1534 = vpop.permute.xlu0 %1533
        %1535 = vrot.lane.b32.xlu0 %v1399, 88
        %v1536 = vpop.permute.xlu0 %1535
        %v1538 = vsel %vm1422, %v1534, 0
        %v1541 = vsel %vm1422, %v1536, 0
        %1543 = vmatprep.subr.bf16.mxu0 0
        %1544 = vmatpush1.bf16.xpose.msra.mxu0 %v1541
        %1545 = vmatprep.subr.bf16.mxu0 0
        %1546 = vmatpush1.bf16.xpose.msra.mxu0 0
        %1547 = vmatprep.subr.bf16.mxu0 0
        %1548 = vmatpush1.bf16.xpose.msra.mxu0 0
        %1549 = vmatprep.subr.bf16.mxu0 0
        %1550 = vmatpush1.bf16.xpose.msra.mxu0 0
        %1551 = vmatprep.subr.bf16.mxu0 0
        %1552 = vmatpush1.bf16.xpose.msra.mxu0 0
        %1553 = vmatprep.subr.bf16.mxu0 0
        %1554 = vmatpush1.bf16.xpose.msra.mxu0 0
        %1555 = vmatprep.subr.bf16.mxu0 0
        %1556 = vmatpush1.bf16.xpose.msra.mxu0 0
        %1557 = vmatprep.subr.bf16.mxu0 0
        %1558 = vmatpush1.bf16.xpose.msra.mxu0 0
        %1559 = vmatprep.subr.bf16.mxu0 0
        %1560 = vmatpush1.bf16.xpose.msra.mxu0 0
        %1561 = vmatprep.subr.bf16.mxu0 0
        %1562 = vmatpush1.bf16.xpose.msra.mxu0 0
        %1563 = vmatprep.subr.bf16.mxu0 0
        %1564 = vmatpush1.bf16.xpose.msra.mxu0 0
        %1565 = vmatprep.subr.bf16.mxu0 0
        %1566 = vmatpush1.bf16.xpose.msra.mxu0 0
        %1567 = vmatprep.subr.bf16.mxu0 0
        %1568 = vmatpush1.bf16.xpose.msra.mxu0 0
        %1569 = vmatprep.subr.bf16.mxu0 0
        %1570 = vmatpush1.bf16.xpose.msra.mxu0 0
        %1571 = vmatprep.subr.bf16.mxu0 0
        %1572 = vmatpush1.bf16.xpose.msra.mxu0 0
        %1573 = vmatprep.subr.bf16.mxu0 0
        %1574 = vmatpush1.bf16.xpose.msra.mxu0 0
        %1575 = vmatprep.mubr.bf16.mxu0 0
        %1576 = vmatmul.mubr.bf16.gmra.mrb[0].mxu0 %v1538
        %v1577 = vpop.f32.mrb[0].mxu0
        %v1578 = vadd.f32 0.0, %v1577
        %v1579 = vpop.f32.mrb[0].mxu0
        %v1580 = vpop.f32.mrb[0].mxu0
        %v1581 = vpop.f32.mrb[0].mxu0
        %1582 = vdwg.mxu0
        %v1583 = vmul.f32 %v1578, 0.35355338
        %v1584 = vadd.f32 %v1583, %v1414
        %v1585 = vsel %vm1422, %v1584, -inf
        %1586 = vmax.xlane.f32.xlu0 %v1585
        %v1587 = vpop.xlane.xlu0 %1586
        %v1588 = vsub.f32 %v1584, %v1587
        %v1589 = vmul.f32 %v1588, 1.442695
        %v1590 = vpow.pop %v1589
        %v1591 = vsel %vm1422, %v1590, 0.0
        %1592 = vadd.xlane.f32.xlu0 %v1591
        %v1593 = vpop.xlane.xlu0 %1592
        %v1594 = vrcp.pop %v1593
        %v1595 = vmul.f32 %v1590, %v1594
        %v1596 = vpack.c.bf16 %v1595, %v1595
        %1597 = vrot.lane.b32.xlu0 %v1399, 56
        %v1598 = vpop.permute.xlu0 %1597
        %v1600 = vsel %vm1422, %v1596, 0
        %v1603 = vsel %vm1488, %v1598, 0
        %1605 = vmatprep.subr.bf16.mxu0 0
        %1606 = vmatpush1.bf16.msra.mxu0 %v1603
        %1607 = vmatprep.subr.bf16.mxu0 0
        %1608 = vmatpush1.bf16.msra.mxu0 0
        %1609 = vmatprep.subr.bf16.mxu0 0
        %1610 = vmatpush1.bf16.msra.mxu0 0
        %1611 = vmatprep.subr.bf16.mxu0 0
        %1612 = vmatpush1.bf16.msra.mxu0 0
        %1613 = vmatprep.subr.bf16.mxu0 0
        %1614 = vmatpush1.bf16.msra.mxu0 0
        %1615 = vmatprep.subr.bf16.mxu0 0
        %1616 = vmatpush1.bf16.msra.mxu0 0
        %1617 = vmatprep.subr.bf16.mxu0 0
        %1618 = vmatpush1.bf16.msra.mxu0 0
        %1619 = vmatprep.subr.bf16.mxu0 0
        %1620 = vmatpush1.bf16.msra.mxu0 0
        %1621 = vmatprep.subr.bf16.mxu0 0
        %1622 = vmatpush1.bf16.msra.mxu0 0
        %1623 = vmatprep.subr.bf16.mxu0 0
        %1624 = vmatpush1.bf16.msra.mxu0 0
        %1625 = vmatprep.subr.bf16.mxu0 0
        %1626 = vmatpush1.bf16.msra.mxu0 0
        %1627 = vmatprep.subr.bf16.mxu0 0
        %1628 = vmatpush1.bf16.msra.mxu0 0
        %1629 = vmatprep.subr.bf16.mxu0 0
        %1630 = vmatpush1.bf16.msra.mxu0 0
        %1631 = vmatprep.subr.bf16.mxu0 0
        %1632 = vmatpush1.bf16.msra.mxu0 0
        %1633 = vmatprep.subr.bf16.mxu0 0
        %1634 = vmatpush1.bf16.msra.mxu0 0
        %1635 = vmatprep.subr.bf16.mxu0 0
        %1636 = vmatpush1.bf16.msra.mxu0 0
        %1637 = vmatprep.mubr.bf16.mxu0 0
        %1638 = vmatmul.mubr.bf16.gmra.mrb[0].mxu0 %v1600
        %v1639 = vpop.f32.mrb[0].mxu0
        %v1640 = vadd.f32 0.0, %v1639
        %v1641 = vpop.f32.mrb[0].mxu0
        %v1642 = vpop.f32.mrb[0].mxu0
        %v1643 = vpop.f32.mrb[0].mxu0
        %1644 = vdwg.mxu0
        %v1645 = vpack.c.bf16 %v1640, %v1640
        %v1647 = vsel %vm1422, %v1645, 0
        %v1650 = vsel %vm1488, %v1416, 0
        %1652 = vmatprep.subr.bf16.mxu0 0
        %1653 = vmatpush1.bf16.msra.mxu0 %v1650
        %1654 = vmatprep.subr.bf16.mxu0 0
        %1655 = vmatpush1.bf16.msra.mxu0 0
        %1656 = vmatprep.subr.bf16.mxu0 0
        %1657 = vmatpush1.bf16.msra.mxu0 0
        %1658 = vmatprep.subr.bf16.mxu0 0
        %1659 = vmatpush1.bf16.msra.mxu0 0
        %1660 = vmatprep.subr.bf16.mxu0 0
        %1661 = vmatpush1.bf16.msra.mxu0 0
        %1662 = vmatprep.subr.bf16.mxu0 0
        %1663 = vmatpush1.bf16.msra.mxu0 0
        %1664 = vmatprep.subr.bf16.mxu0 0
        %1665 = vmatpush1.bf16.msra.mxu0 0
        %1666 = vmatprep.subr.bf16.mxu0 0
        %1667 = vmatpush1.bf16.msra.mxu0 0
        %1668 = vmatprep.subr.bf16.mxu0 0
        %1669 = vmatpush1.bf16.msra.mxu0 0
        %1670 = vmatprep.subr.bf16.mxu0 0
        %1671 = vmatpush1.bf16.msra.mxu0 0
        %1672 = vmatprep.subr.bf16.mxu0 0
        %1673 = vmatpush1.bf16.msra.mxu0 0
        %1674 = vmatprep.subr.bf16.mxu0 0
        %1675 = vmatpush1.bf16.msra.mxu0 0
        %1676 = vmatprep.subr.bf16.mxu0 0
        %1677 = vmatpush1.bf16.msra.mxu0 0
        %1678 = vmatprep.subr.bf16.mxu0 0
        %1679 = vmatpush1.bf16.msra.mxu0 0
        %1680 = vmatprep.subr.bf16.mxu0 0
        %1681 = vmatpush1.bf16.msra.mxu0 0
        %1682 = vmatprep.subr.bf16.mxu0 0
        %1683 = vmatpush1.bf16.msra.mxu0 0
        %1684 = vmatprep.mubr.bf16.mxu0 0
        %1685 = vmatmul.mubr.bf16.gmra.mrb[0].mxu0 %v1647
        %v1686 = vpop.f32.mrb[0].mxu0
        %v1687 = vadd.f32 0.0, %v1686
        %v1688 = vpop.f32.mrb[0].mxu0
        %v1689 = vpop.f32.mrb[0].mxu0
        %v1690 = vpop.f32.mrb[0].mxu0
        %1691 = vdwg.mxu0
        %v1693 = vsel %vm1422, %v1532, 0
        %v1696 = vsel %vm1488, %v1415, 0
        %1698 = vmatprep.subr.bf16.mxu0 0
        %1699 = vmatpush1.bf16.msra.mxu0 %v1696
        %1700 = vmatprep.subr.bf16.mxu0 0
        %1701 = vmatpush1.bf16.msra.mxu0 0
        %1702 = vmatprep.subr.bf16.mxu0 0
        %1703 = vmatpush1.bf16.msra.mxu0 0
        %1704 = vmatprep.subr.bf16.mxu0 0
        %1705 = vmatpush1.bf16.msra.mxu0 0
        %1706 = vmatprep.subr.bf16.mxu0 0
        %1707 = vmatpush1.bf16.msra.mxu0 0
        %1708 = vmatprep.subr.bf16.mxu0 0
        %1709 = vmatpush1.bf16.msra.mxu0 0
        %1710 = vmatprep.subr.bf16.mxu0 0
        %1711 = vmatpush1.bf16.msra.mxu0 0
        %1712 = vmatprep.subr.bf16.mxu0 0
        %1713 = vmatpush1.bf16.msra.mxu0 0
        %1714 = vmatprep.subr.bf16.mxu0 0
        %1715 = vmatpush1.bf16.msra.mxu0 0
        %1716 = vmatprep.subr.bf16.mxu0 0
        %1717 = vmatpush1.bf16.msra.mxu0 0
        %1718 = vmatprep.subr.bf16.mxu0 0
        %1719 = vmatpush1.bf16.msra.mxu0 0
        %1720 = vmatprep.subr.bf16.mxu0 0
        %1721 = vmatpush1.bf16.msra.mxu0 0
        %1722 = vmatprep.subr.bf16.mxu0 0
        %1723 = vmatpush1.bf16.msra.mxu0 0
        %1724 = vmatprep.subr.bf16.mxu0 0
        %1725 = vmatpush1.bf16.msra.mxu0 0
        %1726 = vmatprep.subr.bf16.mxu0 0
        %1727 = vmatpush1.bf16.msra.mxu0 0
        %1728 = vmatprep.subr.bf16.mxu0 0
        %1729 = vmatpush1.bf16.msra.mxu0 0
        %1730 = vmatprep.mubr.bf16.mxu0 0
        %1731 = vmatmul.mubr.bf16.gmra.mrb[0].mxu0 %v1693
        %v1732 = vpop.f32.mrb[0].mxu0
        %v1733 = vadd.f32 %v1687, %v1732
        %v1734 = vpop.f32.mrb[0].mxu0
        %v1735 = vpop.f32.mrb[0].mxu0
        %v1736 = vpop.f32.mrb[0].mxu0
        %1737 = vdwg.mxu0
        %1738 = vrot.lane.b32.xlu0 %v1399, 112
        %v1739 = vpop.permute.xlu0 %1738
        %1740 = vrot.lane.b32.xlu0 %v1399, 80
        %v1741 = vpop.permute.xlu0 %1740
        %v1743 = vsel %vm1422, %v1739, 0
        %v1746 = vsel %vm1422, %v1741, 0
        %1748 = vmatprep.subr.bf16.mxu0 0
        %1749 = vmatpush1.bf16.xpose.msra.mxu0 %v1746
        %1750 = vmatprep.subr.bf16.mxu0 0
        %1751 = vmatpush1.bf16.xpose.msra.mxu0 0
        %1752 = vmatprep.subr.bf16.mxu0 0
        %1753 = vmatpush1.bf16.xpose.msra.mxu0 0
        %1754 = vmatprep.subr.bf16.mxu0 0
        %1755 = vmatpush1.bf16.xpose.msra.mxu0 0
        %1756 = vmatprep.subr.bf16.mxu0 0
        %1757 = vmatpush1.bf16.xpose.msra.mxu0 0
        %1758 = vmatprep.subr.bf16.mxu0 0
        %1759 = vmatpush1.bf16.xpose.msra.mxu0 0
        %1760 = vmatprep.subr.bf16.mxu0 0
        %1761 = vmatpush1.bf16.xpose.msra.mxu0 0
        %1762 = vmatprep.subr.bf16.mxu0 0
        %1763 = vmatpush1.bf16.xpose.msra.mxu0 0
        %1764 = vmatprep.subr.bf16.mxu0 0
        %1765 = vmatpush1.bf16.xpose.msra.mxu0 0
        %1766 = vmatprep.subr.bf16.mxu0 0
        %1767 = vmatpush1.bf16.xpose.msra.mxu0 0
        %1768 = vmatprep.subr.bf16.mxu0 0
        %1769 = vmatpush1.bf16.xpose.msra.mxu0 0
        %1770 = vmatprep.subr.bf16.mxu0 0
        %1771 = vmatpush1.bf16.xpose.msra.mxu0 0
        %1772 = vmatprep.subr.bf16.mxu0 0
        %1773 = vmatpush1.bf16.xpose.msra.mxu0 0
        %1774 = vmatprep.subr.bf16.mxu0 0
        %1775 = vmatpush1.bf16.xpose.msra.mxu0 0
        %1776 = vmatprep.subr.bf16.mxu0 0
        %1777 = vmatpush1.bf16.xpose.msra.mxu0 0
        %1778 = vmatprep.subr.bf16.mxu0 0
        %1779 = vmatpush1.bf16.xpose.msra.mxu0 0
        %1780 = vmatprep.mubr.bf16.mxu0 0
        %1781 = vmatmul.mubr.bf16.gmra.mrb[0].mxu0 %v1743
        %v1782 = vpop.f32.mrb[0].mxu0
        %v1783 = vadd.f32 0.0, %v1782
        %v1784 = vpop.f32.mrb[0].mxu0
        %v1785 = vpop.f32.mrb[0].mxu0
        %v1786 = vpop.f32.mrb[0].mxu0
        %1787 = vdwg.mxu0
        %v1788 = vmul.f32 %v1783, 0.35355338
        %v1789 = vadd.f32 %v1788, %v1414
        %v1790 = vsel %vm1422, %v1789, -inf
        %1791 = vmax.xlane.f32.xlu0 %v1790
        %v1792 = vpop.xlane.xlu0 %1791
        %v1793 = vsub.f32 %v1789, %v1792
        %v1794 = vmul.f32 %v1793, 1.442695
        %v1795 = vpow.pop %v1794
        %v1796 = vsel %vm1422, %v1795, 0.0
        %1797 = vadd.xlane.f32.xlu0 %v1796
        %v1798 = vpop.xlane.xlu0 %1797
        %v1799 = vrcp.pop %v1798
        %v1800 = vmul.f32 %v1795, %v1799
        %v1801 = vpack.c.bf16 %v1800, %v1800
        %1802 = vrot.lane.b32.xlu0 %v1399, 48
        %v1803 = vpop.permute.xlu0 %1802
        %v1805 = vsel %vm1422, %v1801, 0
        %v1808 = vsel %vm1488, %v1803, 0
        %1810 = vmatprep.subr.bf16.mxu0 0
        %1811 = vmatpush1.bf16.msra.mxu0 %v1808
        %1812 = vmatprep.subr.bf16.mxu0 0
        %1813 = vmatpush1.bf16.msra.mxu0 0
        %1814 = vmatprep.subr.bf16.mxu0 0
        %1815 = vmatpush1.bf16.msra.mxu0 0
        %1816 = vmatprep.subr.bf16.mxu0 0
        %1817 = vmatpush1.bf16.msra.mxu0 0
        %1818 = vmatprep.subr.bf16.mxu0 0
        %1819 = vmatpush1.bf16.msra.mxu0 0
        %1820 = vmatprep.subr.bf16.mxu0 0
        %1821 = vmatpush1.bf16.msra.mxu0 0
        %1822 = vmatprep.subr.bf16.mxu0 0
        %1823 = vmatpush1.bf16.msra.mxu0 0
        %1824 = vmatprep.subr.bf16.mxu0 0
        %1825 = vmatpush1.bf16.msra.mxu0 0
        %1826 = vmatprep.subr.bf16.mxu0 0
        %1827 = vmatpush1.bf16.msra.mxu0 0
        %1828 = vmatprep.subr.bf16.mxu0 0
        %1829 = vmatpush1.bf16.msra.mxu0 0
        %1830 = vmatprep.subr.bf16.mxu0 0
        %1831 = vmatpush1.bf16.msra.mxu0 0
        %1832 = vmatprep.subr.bf16.mxu0 0
        %1833 = vmatpush1.bf16.msra.mxu0 0
        %1834 = vmatprep.subr.bf16.mxu0 0
        %1835 = vmatpush1.bf16.msra.mxu0 0
        %1836 = vmatprep.subr.bf16.mxu0 0
        %1837 = vmatpush1.bf16.msra.mxu0 0
        %1838 = vmatprep.subr.bf16.mxu0 0
        %1839 = vmatpush1.bf16.msra.mxu0 0
        %1840 = vmatprep.subr.bf16.mxu0 0
        %1841 = vmatpush1.bf16.msra.mxu0 0
        %1842 = vmatprep.mubr.bf16.mxu0 0
        %1843 = vmatmul.mubr.bf16.gmra.mrb[0].mxu0 %v1805
        %v1844 = vpop.f32.mrb[0].mxu0
        %v1845 = vadd.f32 0.0, %v1844
        %v1846 = vpop.f32.mrb[0].mxu0
        %v1847 = vpop.f32.mrb[0].mxu0
        %v1848 = vpop.f32.mrb[0].mxu0
        %1849 = vdwg.mxu0
        %v1850 = vpack.c.bf16 %v1845, %v1845
        %v1852 = vsel %vm1422, %v1850, 0
        %v1855 = vsel %vm1488, %v1417, 0
        %1857 = vmatprep.subr.bf16.mxu0 0
        %1858 = vmatpush1.bf16.msra.mxu0 %v1855
        %1859 = vmatprep.subr.bf16.mxu0 0
        %1860 = vmatpush1.bf16.msra.mxu0 0
        %1861 = vmatprep.subr.bf16.mxu0 0
        %1862 = vmatpush1.bf16.msra.mxu0 0
        %1863 = vmatprep.subr.bf16.mxu0 0
        %1864 = vmatpush1.bf16.msra.mxu0 0
        %1865 = vmatprep.subr.bf16.mxu0 0
        %1866 = vmatpush1.bf16.msra.mxu0 0
        %1867 = vmatprep.subr.bf16.mxu0 0
        %1868 = vmatpush1.bf16.msra.mxu0 0
        %1869 = vmatprep.subr.bf16.mxu0 0
        %1870 = vmatpush1.bf16.msra.mxu0 0
        %1871 = vmatprep.subr.bf16.mxu0 0
        %1872 = vmatpush1.bf16.msra.mxu0 0
        %1873 = vmatprep.subr.bf16.mxu0 0
        %1874 = vmatpush1.bf16.msra.mxu0 0
        %1875 = vmatprep.subr.bf16.mxu0 0
        %1876 = vmatpush1.bf16.msra.mxu0 0
        %1877 = vmatprep.subr.bf16.mxu0 0
        %1878 = vmatpush1.bf16.msra.mxu0 0
        %1879 = vmatprep.subr.bf16.mxu0 0
        %1880 = vmatpush1.bf16.msra.mxu0 0
        %1881 = vmatprep.subr.bf16.mxu0 0
        %1882 = vmatpush1.bf16.msra.mxu0 0
        %1883 = vmatprep.subr.bf16.mxu0 0
        %1884 = vmatpush1.bf16.msra.mxu0 0
        %1885 = vmatprep.subr.bf16.mxu0 0
        %1886 = vmatpush1.bf16.msra.mxu0 0
        %1887 = vmatprep.subr.bf16.mxu0 0
        %1888 = vmatpush1.bf16.msra.mxu0 0
        %1889 = vmatprep.mubr.bf16.mxu0 0
        %1890 = vmatmul.mubr.bf16.gmra.mrb[0].mxu0 %v1852
        %v1891 = vpop.f32.mrb[0].mxu0
        %v1892 = vadd.f32 0.0, %v1891
        %v1893 = vpop.f32.mrb[0].mxu0
        %v1894 = vpop.f32.mrb[0].mxu0
        %v1895 = vpop.f32.mrb[0].mxu0
        %1896 = vdwg.mxu0
        %v1897 = vadd.f32 %v1733, %v1892
        %1898 = vrot.lane.b32.xlu0 %v1399, 104
        %v1899 = vpop.permute.xlu0 %1898
        %1900 = vrot.lane.b32.xlu0 %v1399, 72
        %v1901 = vpop.permute.xlu0 %1900
        %v1903 = vsel %vm1422, %v1899, 0
        %v1906 = vsel %vm1422, %v1901, 0
        %1908 = vmatprep.subr.bf16.mxu0 0
        %1909 = vmatpush1.bf16.xpose.msra.mxu0 %v1906
        %1910 = vmatprep.subr.bf16.mxu0 0
        %1911 = vmatpush1.bf16.xpose.msra.mxu0 0
        %1912 = vmatprep.subr.bf16.mxu0 0
        %1913 = vmatpush1.bf16.xpose.msra.mxu0 0
        %1914 = vmatprep.subr.bf16.mxu0 0
        %1915 = vmatpush1.bf16.xpose.msra.mxu0 0
        %1916 = vmatprep.subr.bf16.mxu0 0
        %1917 = vmatpush1.bf16.xpose.msra.mxu0 0
        %1918 = vmatprep.subr.bf16.mxu0 0
        %1919 = vmatpush1.bf16.xpose.msra.mxu0 0
        %1920 = vmatprep.subr.bf16.mxu0 0
        %1921 = vmatpush1.bf16.xpose.msra.mxu0 0
        %1922 = vmatprep.subr.bf16.mxu0 0
        %1923 = vmatpush1.bf16.xpose.msra.mxu0 0
        %1924 = vmatprep.subr.bf16.mxu0 0
        %1925 = vmatpush1.bf16.xpose.msra.mxu0 0
        %1926 = vmatprep.subr.bf16.mxu0 0
        %1927 = vmatpush1.bf16.xpose.msra.mxu0 0
        %1928 = vmatprep.subr.bf16.mxu0 0
        %1929 = vmatpush1.bf16.xpose.msra.mxu0 0
        %1930 = vmatprep.subr.bf16.mxu0 0
        %1931 = vmatpush1.bf16.xpose.msra.mxu0 0
        %1932 = vmatprep.subr.bf16.mxu0 0
        %1933 = vmatpush1.bf16.xpose.msra.mxu0 0
        %1934 = vmatprep.subr.bf16.mxu0 0
        %1935 = vmatpush1.bf16.xpose.msra.mxu0 0
        %1936 = vmatprep.subr.bf16.mxu0 0
        %1937 = vmatpush1.bf16.xpose.msra.mxu0 0
        %1938 = vmatprep.subr.bf16.mxu0 0
        %1939 = vmatpush1.bf16.xpose.msra.mxu0 0
        %1940 = vmatprep.mubr.bf16.mxu0 0
        %1941 = vmatmul.mubr.bf16.gmra.mrb[0].mxu0 %v1903
        %v1942 = vpop.f32.mrb[0].mxu0
        %v1943 = vadd.f32 0.0, %v1942
        %v1944 = vpop.f32.mrb[0].mxu0
        %v1945 = vpop.f32.mrb[0].mxu0
        %v1946 = vpop.f32.mrb[0].mxu0
        %1947 = vdwg.mxu0
        %v1948 = vmul.f32 %v1943, 0.35355338
        %v1949 = vadd.f32 %v1948, %v1414
        %v1950 = vsel %vm1422, %v1949, -inf
        %1951 = vmax.xlane.f32.xlu0 %v1950
        %v1952 = vpop.xlane.xlu0 %1951
        %v1953 = vsub.f32 %v1949, %v1952
        %v1954 = vmul.f32 %v1953, 1.442695
        %v1955 = vpow.pop %v1954
        %v1956 = vsel %vm1422, %v1955, 0.0
        %1957 = vadd.xlane.f32.xlu0 %v1956
        %v1958 = vpop.xlane.xlu0 %1957
        %v1959 = vrcp.pop %v1958
        %v1960 = vmul.f32 %v1955, %v1959
        %v1961 = vpack.c.bf16 %v1960, %v1960
        %1962 = vrot.lane.b32.xlu0 %v1399, 40
        %v1963 = vpop.permute.xlu0 %1962
        %v1965 = vsel %vm1422, %v1961, 0
        %v1968 = vsel %vm1488, %v1963, 0
        %1970 = vmatprep.subr.bf16.mxu0 0
        %1971 = vmatpush1.bf16.msra.mxu0 %v1968
        %1972 = vmatprep.subr.bf16.mxu0 0
        %1973 = vmatpush1.bf16.msra.mxu0 0
        %1974 = vmatprep.subr.bf16.mxu0 0
        %1975 = vmatpush1.bf16.msra.mxu0 0
        %1976 = vmatprep.subr.bf16.mxu0 0
        %1977 = vmatpush1.bf16.msra.mxu0 0
        %1978 = vmatprep.subr.bf16.mxu0 0
        %1979 = vmatpush1.bf16.msra.mxu0 0
        %1980 = vmatprep.subr.bf16.mxu0 0
        %1981 = vmatpush1.bf16.msra.mxu0 0
        %1982 = vmatprep.subr.bf16.mxu0 0
        %1983 = vmatpush1.bf16.msra.mxu0 0
        %1984 = vmatprep.subr.bf16.mxu0 0
        %1985 = vmatpush1.bf16.msra.mxu0 0
        %1986 = vmatprep.subr.bf16.mxu0 0
        %1987 = vmatpush1.bf16.msra.mxu0 0
        %1988 = vmatprep.subr.bf16.mxu0 0
        %1989 = vmatpush1.bf16.msra.mxu0 0
        %1990 = vmatprep.subr.bf16.mxu0 0
        %1991 = vmatpush1.bf16.msra.mxu0 0
        %1992 = vmatprep.subr.bf16.mxu0 0
        %1993 = vmatpush1.bf16.msra.mxu0 0
        %1994 = vmatprep.subr.bf16.mxu0 0
        %1995 = vmatpush1.bf16.msra.mxu0 0
        %1996 = vmatprep.subr.bf16.mxu0 0
        %1997 = vmatpush1.bf16.msra.mxu0 0
        %1998 = vmatprep.subr.bf16.mxu0 0
        %1999 = vmatpush1.bf16.msra.mxu0 0
        %2000 = vmatprep.subr.bf16.mxu0 0
        %2001 = vmatpush1.bf16.msra.mxu0 0
        %2002 = vmatprep.mubr.bf16.mxu0 0
        %2003 = vmatmul.mubr.bf16.gmra.mrb[0].mxu0 %v1965
        %v2004 = vpop.f32.mrb[0].mxu0
        %v2005 = vadd.f32 0.0, %v2004
        %v2006 = vpop.f32.mrb[0].mxu0
        %v2007 = vpop.f32.mrb[0].mxu0
        %v2008 = vpop.f32.mrb[0].mxu0
        %2009 = vdwg.mxu0
        %v2010 = vpack.c.bf16 %v2005, %v2005
        %v2012 = vsel %vm1422, %v2010, 0
        %v2015 = vsel %vm1488, %v1418, 0
        %2017 = vmatprep.subr.bf16.mxu0 0
        %2018 = vmatpush1.bf16.msra.mxu0 %v2015
        %2019 = vmatprep.subr.bf16.mxu0 0
        %2020 = vmatpush1.bf16.msra.mxu0 0
        %2021 = vmatprep.subr.bf16.mxu0 0
        %2022 = vmatpush1.bf16.msra.mxu0 0
        %2023 = vmatprep.subr.bf16.mxu0 0
        %2024 = vmatpush1.bf16.msra.mxu0 0
        %2025 = vmatprep.subr.bf16.mxu0 0
        %2026 = vmatpush1.bf16.msra.mxu0 0
        %2027 = vmatprep.subr.bf16.mxu0 0
        %2028 = vmatpush1.bf16.msra.mxu0 0
        %2029 = vmatprep.subr.bf16.mxu0 0
        %2030 = vmatpush1.bf16.msra.mxu0 0
        %2031 = vmatprep.subr.bf16.mxu0 0
        %2032 = vmatpush1.bf16.msra.mxu0 0
        %2033 = vmatprep.subr.bf16.mxu0 0
        %2034 = vmatpush1.bf16.msra.mxu0 0
        %2035 = vmatprep.subr.bf16.mxu0 0
        %2036 = vmatpush1.bf16.msra.mxu0 0
        %2037 = vmatprep.subr.bf16.mxu0 0
        %2038 = vmatpush1.bf16.msra.mxu0 0
        %2039 = vmatprep.subr.bf16.mxu0 0
        %2040 = vmatpush1.bf16.msra.mxu0 0
        %2041 = vmatprep.subr.bf16.mxu0 0
        %2042 = vmatpush1.bf16.msra.mxu0 0
        %2043 = vmatprep.subr.bf16.mxu0 0
        %2044 = vmatpush1.bf16.msra.mxu0 0
        %2045 = vmatprep.subr.bf16.mxu0 0
        %2046 = vmatpush1.bf16.msra.mxu0 0
        %2047 = vmatprep.subr.bf16.mxu0 0
        %2048 = vmatpush1.bf16.msra.mxu0 0
        %2049 = vmatprep.mubr.bf16.mxu0 0
        %2050 = vmatmul.mubr.bf16.gmra.mrb[0].mxu0 %v2012
        %v2051 = vpop.f32.mrb[0].mxu0
        %v2052 = vadd.f32 0.0, %v2051
        %v2053 = vpop.f32.mrb[0].mxu0
        %v2054 = vpop.f32.mrb[0].mxu0
        %v2055 = vpop.f32.mrb[0].mxu0
        %2056 = vdwg.mxu0
        %v2057 = vadd.f32 %v1897, %v2052
        %v2058 = vld [vmem:[%s1079] sm:$0x1]
        %v2060 = vlaneseq
        %v2061 = vshrl.u32 %v2060, 7
        %v2062 = vsub.s32 0, %v2061
        %v2063 = vrot.slane %v2058, %v2062
        %v2065 = vadd.f32 %v2057, %v2063
        %v2066 = vld [vmem:[%s1138] sm:$0x1]
        %v2067 = vld [vmem:[%s1146] sm:$0x1]
        %v2068 = vadd.f32 %v2065, %v1331
        %v2069 = vsel %vm1355, %v2068, 0.0
        %2070 = vadd.xlane.f32.xlu0 %v2069
        %v2071 = vpop.xlane.xlu0 %2070
        %v2072 = vrcp.pop 32.0
        %v2073 = vmul.f32 %v2071, %v2072
        %v2074 = vsub.f32 %v2068, %v2073
        %v2075 = vmul.f32 %v2074, %v2074
        %v2076 = vsel %vm1355, %v2075, 0.0
        %2077 = vadd.xlane.f32.xlu0 %v2076
        %v2078 = vpop.xlane.xlu0 %2077
        %v2079 = vmul.f32 %v2078, %v2072
        %v2080 = vadd.f32 %v2079, 1e-05
        %v2081 = vrsqrt.pop %v2080
        %v2082 = vmul.f32 %v2074, %v2081
        %v2084 = vlaneseq
        %v2085 = vshrl.u32 %v2084, 7
        %v2086 = vsub.s32 0, %v2085
        %v2087 = vrot.slane %v2066, %v2086
        %v2089 = vmul.f32 %v2082, %v2087
        %v2091 = vlaneseq
        %v2092 = vshrl.u32 %v2091, 7
        %v2093 = vsub.s32 0, %v2092
        %v2094 = vrot.slane %v2067, %v2093
        %v2096 = vadd.f32 %v2089, %v2094
        %v2097 = vpack.c.bf16 %v2096, %v2096
        %v2098 = vld [vmem:[%s1088] sm:$0xf]
        %v2099 = vld [vmem:[%s1088 + $0x4] sm:$0xf]
        %v2100 = vld [vmem:[%s1088 + $0x8] sm:$0xf]
        %v2101 = vld [vmem:[%s1088 + $0xc] sm:$0xf]
        %v2102 = vld [vmem:[%s1096] sm:$0x1]
        %v2104 = vlaneseq
        %v2105 = vshrl.u32 %v2104, 7
        %v2106 = vsub.s32 0, %v2105
        %v2107 = vrot.slane %v2102, %v2106
        %v2113 = vunpack.c.l.b16 %v2098
        %v2114 = vunpack.c.l.b16 %v2099
        %v2115 = vunpack.c.l.b16 %v2100
        %v2116 = vunpack.c.l.b16 %v2101
        %v2117 = vpack.c.b16 %v2114, %v2113
        %v2118 = vpack.c.b16 %v2116, %v2115
        %v2122 = vsel %vm1355, %v2097, 0
        %2124 = vmatprep.subr.bf16.mxu0 0
        %2125 = vmatpush1.bf16.msra.mxu0 %v2117
        %2126 = vmatprep.subr.bf16.mxu0 0
        %2127 = vmatpush1.bf16.msra.mxu0 %v2118
        %2128 = vmatprep.subr.bf16.mxu0 0
        %2129 = vmatpush1.bf16.msra.mxu0 0
        %2130 = vmatprep.subr.bf16.mxu0 0
        %2131 = vmatpush1.bf16.msra.mxu0 0
        %2132 = vmatprep.subr.bf16.mxu0 0
        %2133 = vmatpush1.bf16.msra.mxu0 0
        %2134 = vmatprep.subr.bf16.mxu0 0
        %2135 = vmatpush1.bf16.msra.mxu0 0
        %2136 = vmatprep.subr.bf16.mxu0 0
        %2137 = vmatpush1.bf16.msra.mxu0 0
        %2138 = vmatprep.subr.bf16.mxu0 0
        %2139 = vmatpush1.bf16.msra.mxu0 0
        %2140 = vmatprep.subr.bf16.mxu0 0
        %2141 = vmatpush1.bf16.msra.mxu0 0
        %2142 = vmatprep.subr.bf16.mxu0 0
        %2143 = vmatpush1.bf16.msra.mxu0 0
        %2144 = vmatprep.subr.bf16.mxu0 0
        %2145 = vmatpush1.bf16.msra.mxu0 0
        %2146 = vmatprep.subr.bf16.mxu0 0
        %2147 = vmatpush1.bf16.msra.mxu0 0
        %2148 = vmatprep.subr.bf16.mxu0 0
        %2149 = vmatpush1.bf16.msra.mxu0 0
        %2150 = vmatprep.subr.bf16.mxu0 0
        %2151 = vmatpush1.bf16.msra.mxu0 0
        %2152 = vmatprep.subr.bf16.mxu0 0
        %2153 = vmatpush1.bf16.msra.mxu0 0
        %2154 = vmatprep.subr.bf16.mxu0 0
        %2155 = vmatpush1.bf16.msra.mxu0 0
        %2156 = vmatprep.mubr.bf16.mxu0 0
        %2157 = vmatmul.mubr.bf16.gmra.mrb[0].mxu0 %v2122
        %v2158 = vpop.f32.mrb[0].mxu0
        %v2159 = vadd.f32 %v2107, %v2158
        %v2160 = vpop.f32.mrb[0].mxu0
        %v2161 = vpop.f32.mrb[0].mxu0
        %v2162 = vpop.f32.mrb[0].mxu0
        %2163 = vdwg.mxu0
        %v2164 = vpack.c.bf16 %v2159, %v2159
        %v2165 = vld [vmem:[%s1105] sm:$0xf]
        %v2166 = vld [vmem:[%s1105 + $0x4] sm:$0xf]
        %v2167 = vld [vmem:[%s1105 + $0x8] sm:$0xf]
        %v2168 = vld [vmem:[%s1105 + $0xc] sm:$0xf]
        %v2169 = vld [vmem:[%s1113] sm:$0x1]
        %v2171 = vlaneseq
        %v2172 = vshrl.u32 %v2171, 7
        %v2173 = vsub.s32 0, %v2172
        %v2174 = vrot.slane %v2169, %v2173
        %v2180 = vunpack.c.l.b16 %v2165
        %v2181 = vunpack.c.l.b16 %v2166
        %v2182 = vunpack.c.l.b16 %v2167
        %v2183 = vunpack.c.l.b16 %v2168
        %v2184 = vpack.c.b16 %v2181, %v2180
        %v2185 = vpack.c.b16 %v2183, %v2182
        %v2189 = vsel %vm1355, %v1330, 0
        %2191 = vmatprep.subr.bf16.mxu0 0
        %2192 = vmatpush1.bf16.msra.mxu0 %v2184
        %2193 = vmatprep.subr.bf16.mxu0 0
        %2194 = vmatpush1.bf16.msra.mxu0 %v2185
        %2195 = vmatprep.subr.bf16.mxu0 0
        %2196 = vmatpush1.bf16.msra.mxu0 0
        %2197 = vmatprep.subr.bf16.mxu0 0
        %2198 = vmatpush1.bf16.msra.mxu0 0
        %2199 = vmatprep.subr.bf16.mxu0 0
        %2200 = vmatpush1.bf16.msra.mxu0 0
        %2201 = vmatprep.subr.bf16.mxu0 0
        %2202 = vmatpush1.bf16.msra.mxu0 0
        %2203 = vmatprep.subr.bf16.mxu0 0
        %2204 = vmatpush1.bf16.msra.mxu0 0
        %2205 = vmatprep.subr.bf16.mxu0 0
        %2206 = vmatpush1.bf16.msra.mxu0 0
        %2207 = vmatprep.subr.bf16.mxu0 0
        %2208 = vmatpush1.bf16.msra.mxu0 0
        %2209 = vmatprep.subr.bf16.mxu0 0
        %2210 = vmatpush1.bf16.msra.mxu0 0
        %2211 = vmatprep.subr.bf16.mxu0 0
        %2212 = vmatpush1.bf16.msra.mxu0 0
        %2213 = vmatprep.subr.bf16.mxu0 0
        %2214 = vmatpush1.bf16.msra.mxu0 0
        %2215 = vmatprep.subr.bf16.mxu0 0
        %2216 = vmatpush1.bf16.msra.mxu0 0
        %2217 = vmatprep.subr.bf16.mxu0 0
        %2218 = vmatpush1.bf16.msra.mxu0 0
        %2219 = vmatprep.subr.bf16.mxu0 0
        %2220 = vmatpush1.bf16.msra.mxu0 0
        %2221 = vmatprep.subr.bf16.mxu0 0
        %2222 = vmatpush1.bf16.msra.mxu0 0
        %2223 = vmatprep.mubr.bf16.mxu0 0
        %2224 = vmatmul.mubr.bf16.gmra.mrb[0].mxu0 %v2189
        %v2225 = vpop.f32.mrb[0].mxu0
        %v2226 = vadd.f32 %v2174, %v2225
        %v2227 = vpop.f32.mrb[0].mxu0
        %v2228 = vpop.f32.mrb[0].mxu0
        %v2229 = vpop.f32.mrb[0].mxu0
        %2230 = vdwg.mxu0
        %v2231 = vpack.c.bf16 %v2226, %v2226
        %v2232 = vld [vmem:[%s1027] sm:$0x1]
        %vm2233 = vcmp.gt.f32.partialorder %v2232, 0.0
        %v2234 = vsel %vm2233, -1e+09, 0.0
        %v2236 = vlaneseq
        %v2237 = vshrl.u32 %v2236, 7
        %v2238 = vsub.s32 0, %v2237
        %v2239 = vrot.slane %v2234, %v2238
        %v2241 = vld [vmem:[%s1122] sm:$0xf]
        %v2242 = vld [vmem:[%s1122 + $0x4] sm:$0xf]
        %v2243 = vld [vmem:[%s1122 + $0x8] sm:$0xf]
        %v2244 = vld [vmem:[%s1122 + $0xc] sm:$0xf]
        %v2246 = vsel %vm1422, %v2164, 0
        %v2249 = vsel %vm1422, %v2231, 0
        %2251 = vmatprep.subr.bf16.mxu0 0
        %2252 = vmatpush1.bf16.xpose.msra.mxu0 %v2249
        %2253 = vmatprep.subr.bf16.mxu0 0
        %2254 = vmatpush1.bf16.xpose.msra.mxu0 0
        %2255 = vmatprep.subr.bf16.mxu0 0
        %2256 = vmatpush1.bf16.xpose.msra.mxu0 0
        %2257 = vmatprep.subr.bf16.mxu0 0
        %2258 = vmatpush1.bf16.xpose.msra.mxu0 0
        %2259 = vmatprep.subr.bf16.mxu0 0
        %2260 = vmatpush1.bf16.xpose.msra.mxu0 0
        %2261 = vmatprep.subr.bf16.mxu0 0
        %2262 = vmatpush1.bf16.xpose.msra.mxu0 0
        %2263 = vmatprep.subr.bf16.mxu0 0
        %2264 = vmatpush1.bf16.xpose.msra.mxu0 0
        %2265 = vmatprep.subr.bf16.mxu0 0
        %2266 = vmatpush1.bf16.xpose.msra.mxu0 0
        %2267 = vmatprep.subr.bf16.mxu0 0
        %2268 = vmatpush1.bf16.xpose.msra.mxu0 0
        %2269 = vmatprep.subr.bf16.mxu0 0
        %2270 = vmatpush1.bf16.xpose.msra.mxu0 0
        %2271 = vmatprep.subr.bf16.mxu0 0
        %2272 = vmatpush1.bf16.xpose.msra.mxu0 0
        %2273 = vmatprep.subr.bf16.mxu0 0
        %2274 = vmatpush1.bf16.xpose.msra.mxu0 0
        %2275 = vmatprep.subr.bf16.mxu0 0
        %2276 = vmatpush1.bf16.xpose.msra.mxu0 0
        %2277 = vmatprep.subr.bf16.mxu0 0
        %2278 = vmatpush1.bf16.xpose.msra.mxu0 0
        %2279 = vmatprep.subr.bf16.mxu0 0
        %2280 = vmatpush1.bf16.xpose.msra.mxu0 0
        %2281 = vmatprep.subr.bf16.mxu0 0
        %2282 = vmatpush1.bf16.xpose.msra.mxu0 0
        %2283 = vmatprep.mubr.bf16.mxu0 0
        %2284 = vmatmul.mubr.bf16.gmra.mrb[0].mxu0 %v2246
        %v2285 = vpop.f32.mrb[0].mxu0
        %v2286 = vadd.f32 0.0, %v2285
        %v2287 = vpop.f32.mrb[0].mxu0
        %v2288 = vpop.f32.mrb[0].mxu0
        %v2289 = vpop.f32.mrb[0].mxu0
        %2290 = vdwg.mxu0
        %v2291 = vmul.f32 %v2286, 0.35355338
        %v2292 = vadd.f32 %v2291, %v2239
        %v2293 = vsel %vm1422, %v2292, -inf
        %2294 = vmax.xlane.f32.xlu0 %v2293
        %v2295 = vpop.xlane.xlu0 %2294
        %v2296 = vsub.f32 %v2292, %v2295
        %v2297 = vmul.f32 %v2296, 1.442695
        %v2298 = vpow.pop %v2297
        %v2299 = vsel %vm1422, %v2298, 0.0
        %2300 = vadd.xlane.f32.xlu0 %v2299
        %v2301 = vpop.xlane.xlu0 %2300
        %v2302 = vrcp.pop %v2301
        %v2303 = vmul.f32 %v2298, %v2302
        %v2304 = vpack.c.bf16 %v2303, %v2303
        %2306 = vrot.lane.b32.xlu0 %v2231, 96
        %v2307 = vpop.permute.xlu0 %2306
        %v2309 = vsel %vm1422, %v2304, 0
        %v2312 = vsel %vm1488, %v2307, 0
        %2314 = vmatprep.subr.bf16.mxu0 0
        %2315 = vmatpush1.bf16.msra.mxu0 %v2312
        %2316 = vmatprep.subr.bf16.mxu0 0
        %2317 = vmatpush1.bf16.msra.mxu0 0
        %2318 = vmatprep.subr.bf16.mxu0 0
        %2319 = vmatpush1.bf16.msra.mxu0 0
        %2320 = vmatprep.subr.bf16.mxu0 0
        %2321 = vmatpush1.bf16.msra.mxu0 0
        %2322 = vmatprep.subr.bf16.mxu0 0
        %2323 = vmatpush1.bf16.msra.mxu0 0
        %2324 = vmatprep.subr.bf16.mxu0 0
        %2325 = vmatpush1.bf16.msra.mxu0 0
        %2326 = vmatprep.subr.bf16.mxu0 0
        %2327 = vmatpush1.bf16.msra.mxu0 0
        %2328 = vmatprep.subr.bf16.mxu0 0
        %2329 = vmatpush1.bf16.msra.mxu0 0
        %2330 = vmatprep.subr.bf16.mxu0 0
        %2331 = vmatpush1.bf16.msra.mxu0 0
        %2332 = vmatprep.subr.bf16.mxu0 0
        %2333 = vmatpush1.bf16.msra.mxu0 0
        %2334 = vmatprep.subr.bf16.mxu0 0
        %2335 = vmatpush1.bf16.msra.mxu0 0
        %2336 = vmatprep.subr.bf16.mxu0 0
        %2337 = vmatpush1.bf16.msra.mxu0 0
        %2338 = vmatprep.subr.bf16.mxu0 0
        %2339 = vmatpush1.bf16.msra.mxu0 0
        %2340 = vmatprep.subr.bf16.mxu0 0
        %2341 = vmatpush1.bf16.msra.mxu0 0
        %2342 = vmatprep.subr.bf16.mxu0 0
        %2343 = vmatpush1.bf16.msra.mxu0 0
        %2344 = vmatprep.subr.bf16.mxu0 0
        %2345 = vmatpush1.bf16.msra.mxu0 0
        %2346 = vmatprep.mubr.bf16.mxu0 0
        %2347 = vmatmul.mubr.bf16.gmra.mrb[0].mxu0 %v2309
        %v2348 = vpop.f32.mrb[0].mxu0
        %v2349 = vadd.f32 0.0, %v2348
        %v2350 = vpop.f32.mrb[0].mxu0
        %v2351 = vpop.f32.mrb[0].mxu0
        %v2352 = vpop.f32.mrb[0].mxu0
        %2353 = vdwg.mxu0
        %v2354 = vpack.c.bf16 %v2349, %v2349
        %2356 = vrot.lane.b32.xlu0 %v2164, 120
        %v2357 = vpop.permute.xlu0 %2356
        %2358 = vrot.lane.b32.xlu0 %v2231, 120
        %v2359 = vpop.permute.xlu0 %2358
        %v2361 = vsel %vm1422, %v2357, 0
        %v2364 = vsel %vm1422, %v2359, 0
        %2366 = vmatprep.subr.bf16.mxu0 0
        %2367 = vmatpush1.bf16.xpose.msra.mxu0 %v2364
        %2368 = vmatprep.subr.bf16.mxu0 0
        %2369 = vmatpush1.bf16.xpose.msra.mxu0 0
        %2370 = vmatprep.subr.bf16.mxu0 0
        %2371 = vmatpush1.bf16.xpose.msra.mxu0 0
        %2372 = vmatprep.subr.bf16.mxu0 0
        %2373 = vmatpush1.bf16.xpose.msra.mxu0 0
        %2374 = vmatprep.subr.bf16.mxu0 0
        %2375 = vmatpush1.bf16.xpose.msra.mxu0 0
        %2376 = vmatprep.subr.bf16.mxu0 0
        %2377 = vmatpush1.bf16.xpose.msra.mxu0 0
        %2378 = vmatprep.subr.bf16.mxu0 0
        %2379 = vmatpush1.bf16.xpose.msra.mxu0 0
        %2380 = vmatprep.subr.bf16.mxu0 0
        %2381 = vmatpush1.bf16.xpose.msra.mxu0 0
        %2382 = vmatprep.subr.bf16.mxu0 0
        %2383 = vmatpush1.bf16.xpose.msra.mxu0 0
        %2384 = vmatprep.subr.bf16.mxu0 0
        %2385 = vmatpush1.bf16.xpose.msra.mxu0 0
        %2386 = vmatprep.subr.bf16.mxu0 0
        %2387 = vmatpush1.bf16.xpose.msra.mxu0 0
        %2388 = vmatprep.subr.bf16.mxu0 0
        %2389 = vmatpush1.bf16.xpose.msra.mxu0 0
        %2390 = vmatprep.subr.bf16.mxu0 0
        %2391 = vmatpush1.bf16.xpose.msra.mxu0 0
        %2392 = vmatprep.subr.bf16.mxu0 0
        %2393 = vmatpush1.bf16.xpose.msra.mxu0 0
        %2394 = vmatprep.subr.bf16.mxu0 0
        %2395 = vmatpush1.bf16.xpose.msra.mxu0 0
        %2396 = vmatprep.subr.bf16.mxu0 0
        %2397 = vmatpush1.bf16.xpose.msra.mxu0 0
        %2398 = vmatprep.mubr.bf16.mxu0 0
        %2399 = vmatmul.mubr.bf16.gmra.mrb[0].mxu0 %v2361
        %v2400 = vpop.f32.mrb[0].mxu0
        %v2401 = vadd.f32 0.0, %v2400
        %v2402 = vpop.f32.mrb[0].mxu0
        %v2403 = vpop.f32.mrb[0].mxu0
        %v2404 = vpop.f32.mrb[0].mxu0
        %2405 = vdwg.mxu0
        %v2406 = vmul.f32 %v2401, 0.35355338
        %v2407 = vadd.f32 %v2406, %v2239
        %v2408 = vsel %vm1422, %v2407, -inf
        %2409 = vmax.xlane.f32.xlu0 %v2408
        %v2410 = vpop.xlane.xlu0 %2409
        %v2411 = vsub.f32 %v2407, %v2410
        %v2412 = vmul.f32 %v2411, 1.442695
        %v2413 = vpow.pop %v2412
        %v2414 = vsel %vm1422, %v2413, 0.0
        %2415 = vadd.xlane.f32.xlu0 %v2414
        %v2416 = vpop.xlane.xlu0 %2415
        %v2417 = vrcp.pop %v2416
        %v2418 = vmul.f32 %v2413, %v2417
        %v2419 = vpack.c.bf16 %v2418, %v2418
        %2420 = vrot.lane.b32.xlu0 %v2231, 88
        %v2421 = vpop.permute.xlu0 %2420
        %v2423 = vsel %vm1422, %v2419, 0
        %v2426 = vsel %vm1488, %v2421, 0
        %2428 = vmatprep.subr.bf16.mxu0 0
        %2429 = vmatpush1.bf16.msra.mxu0 %v2426
        %2430 = vmatprep.subr.bf16.mxu0 0
        %2431 = vmatpush1.bf16.msra.mxu0 0
        %2432 = vmatprep.subr.bf16.mxu0 0
        %2433 = vmatpush1.bf16.msra.mxu0 0
        %2434 = vmatprep.subr.bf16.mxu0 0
        %2435 = vmatpush1.bf16.msra.mxu0 0
        %2436 = vmatprep.subr.bf16.mxu0 0
        %2437 = vmatpush1.bf16.msra.mxu0 0
        %2438 = vmatprep.subr.bf16.mxu0 0
        %2439 = vmatpush1.bf16.msra.mxu0 0
        %2440 = vmatprep.subr.bf16.mxu0 0
        %2441 = vmatpush1.bf16.msra.mxu0 0
        %2442 = vmatprep.subr.bf16.mxu0 0
        %2443 = vmatpush1.bf16.msra.mxu0 0
        %2444 = vmatprep.subr.bf16.mxu0 0
        %2445 = vmatpush1.bf16.msra.mxu0 0
        %2446 = vmatprep.subr.bf16.mxu0 0
        %2447 = vmatpush1.bf16.msra.mxu0 0
        %2448 = vmatprep.subr.bf16.mxu0 0
        %2449 = vmatpush1.bf16.msra.mxu0 0
        %2450 = vmatprep.subr.bf16.mxu0 0
        %2451 = vmatpush1.bf16.msra.mxu0 0
        %2452 = vmatprep.subr.bf16.mxu0 0
        %2453 = vmatpush1.bf16.msra.mxu0 0
        %2454 = vmatprep.subr.bf16.mxu0 0
        %2455 = vmatpush1.bf16.msra.mxu0 0
        %2456 = vmatprep.subr.bf16.mxu0 0
        %2457 = vmatpush1.bf16.msra.mxu0 0
        %2458 = vmatprep.subr.bf16.mxu0 0
        %2459 = vmatpush1.bf16.msra.mxu0 0
        %2460 = vmatprep.mubr.bf16.mxu0 0
        %2461 = vmatmul.mubr.bf16.gmra.mrb[0].mxu0 %v2423
        %v2462 = vpop.f32.mrb[0].mxu0
        %v2463 = vadd.f32 0.0, %v2462
        %v2464 = vpop.f32.mrb[0].mxu0
        %v2465 = vpop.f32.mrb[0].mxu0
        %v2466 = vpop.f32.mrb[0].mxu0
        %2467 = vdwg.mxu0
        %v2468 = vpack.c.bf16 %v2463, %v2463
        %v2470 = vsel %vm1422, %v2468, 0
        %v2473 = vsel %vm1488, %v2242, 0
        %2475 = vmatprep.subr.bf16.mxu0 0
        %2476 = vmatpush1.bf16.msra.mxu0 %v2473
        %2477 = vmatprep.subr.bf16.mxu0 0
        %2478 = vmatpush1.bf16.msra.mxu0 0
        %2479 = vmatprep.subr.bf16.mxu0 0
        %2480 = vmatpush1.bf16.msra.mxu0 0
        %2481 = vmatprep.subr.bf16.mxu0 0
        %2482 = vmatpush1.bf16.msra.mxu0 0
        %2483 = vmatprep.subr.bf16.mxu0 0
        %2484 = vmatpush1.bf16.msra.mxu0 0
        %2485 = vmatprep.subr.bf16.mxu0 0
        %2486 = vmatpush1.bf16.msra.mxu0 0
        %2487 = vmatprep.subr.bf16.mxu0 0
        %2488 = vmatpush1.bf16.msra.mxu0 0
        %2489 = vmatprep.subr.bf16.mxu0 0
        %2490 = vmatpush1.bf16.msra.mxu0 0
        %2491 = vmatprep.subr.bf16.mxu0 0
        %2492 = vmatpush1.bf16.msra.mxu0 0
        %2493 = vmatprep.subr.bf16.mxu0 0
        %2494 = vmatpush1.bf16.msra.mxu0 0
        %2495 = vmatprep.subr.bf16.mxu0 0
        %2496 = vmatpush1.bf16.msra.mxu0 0
        %2497 = vmatprep.subr.bf16.mxu0 0
        %2498 = vmatpush1.bf16.msra.mxu0 0
        %2499 = vmatprep.subr.bf16.mxu0 0
        %2500 = vmatpush1.bf16.msra.mxu0 0
        %2501 = vmatprep.subr.bf16.mxu0 0
        %2502 = vmatpush1.bf16.msra.mxu0 0
        %2503 = vmatprep.subr.bf16.mxu0 0
        %2504 = vmatpush1.bf16.msra.mxu0 0
        %2505 = vmatprep.subr.bf16.mxu0 0
        %2506 = vmatpush1.bf16.msra.mxu0 0
        %2507 = vmatprep.mubr.bf16.mxu0 0
        %2508 = vmatmul.mubr.bf16.gmra.mrb[0].mxu0 %v2470
        %v2509 = vpop.f32.mrb[0].mxu0
        %v2510 = vadd.f32 0.0, %v2509
        %v2511 = vpop.f32.mrb[0].mxu0
        %v2512 = vpop.f32.mrb[0].mxu0
        %v2513 = vpop.f32.mrb[0].mxu0
        %2514 = vdwg.mxu0
        %v2516 = vsel %vm1422, %v2354, 0
        %v2519 = vsel %vm1488, %v2241, 0
        %2521 = vmatprep.subr.bf16.mxu0 0
        %2522 = vmatpush1.bf16.msra.mxu0 %v2519
        %2523 = vmatprep.subr.bf16.mxu0 0
        %2524 = vmatpush1.bf16.msra.mxu0 0
        %2525 = vmatprep.subr.bf16.mxu0 0
        %2526 = vmatpush1.bf16.msra.mxu0 0
        %2527 = vmatprep.subr.bf16.mxu0 0
        %2528 = vmatpush1.bf16.msra.mxu0 0
        %2529 = vmatprep.subr.bf16.mxu0 0
        %2530 = vmatpush1.bf16.msra.mxu0 0
        %2531 = vmatprep.subr.bf16.mxu0 0
        %2532 = vmatpush1.bf16.msra.mxu0 0
        %2533 = vmatprep.subr.bf16.mxu0 0
        %2534 = vmatpush1.bf16.msra.mxu0 0
        %2535 = vmatprep.subr.bf16.mxu0 0
        %2536 = vmatpush1.bf16.msra.mxu0 0
        %2537 = vmatprep.subr.bf16.mxu0 0
        %2538 = vmatpush1.bf16.msra.mxu0 0
        %2539 = vmatprep.subr.bf16.mxu0 0
        %2540 = vmatpush1.bf16.msra.mxu0 0
        %2541 = vmatprep.subr.bf16.mxu0 0
        %2542 = vmatpush1.bf16.msra.mxu0 0
        %2543 = vmatprep.subr.bf16.mxu0 0
        %2544 = vmatpush1.bf16.msra.mxu0 0
        %2545 = vmatprep.subr.bf16.mxu0 0
        %2546 = vmatpush1.bf16.msra.mxu0 0
        %2547 = vmatprep.subr.bf16.mxu0 0
        %2548 = vmatpush1.bf16.msra.mxu0 0
        %2549 = vmatprep.subr.bf16.mxu0 0
        %2550 = vmatpush1.bf16.msra.mxu0 0
        %2551 = vmatprep.subr.bf16.mxu0 0
        %2552 = vmatpush1.bf16.msra.mxu0 0
        %2553 = vmatprep.mubr.bf16.mxu0 0
        %2554 = vmatmul.mubr.bf16.gmra.mrb[0].mxu0 %v2516
        %v2555 = vpop.f32.mrb[0].mxu0
        %v2556 = vadd.f32 %v2510, %v2555
        %v2557 = vpop.f32.mrb[0].mxu0
        %v2558 = vpop.f32.mrb[0].mxu0
        %v2559 = vpop.f32.mrb[0].mxu0
        %2560 = vdwg.mxu0
        %2561 = vrot.lane.b32.xlu0 %v2164, 112
        %v2562 = vpop.permute.xlu0 %2561
        %2563 = vrot.lane.b32.xlu0 %v2231, 112
        %v2564 = vpop.permute.xlu0 %2563
        %v2566 = vsel %vm1422, %v2562, 0
        %v2569 = vsel %vm1422, %v2564, 0
        %2571 = vmatprep.subr.bf16.mxu0 0
        %2572 = vmatpush1.bf16.xpose.msra.mxu0 %v2569
        %2573 = vmatprep.subr.bf16.mxu0 0
        %2574 = vmatpush1.bf16.xpose.msra.mxu0 0
        %2575 = vmatprep.subr.bf16.mxu0 0
        %2576 = vmatpush1.bf16.xpose.msra.mxu0 0
        %2577 = vmatprep.subr.bf16.mxu0 0
        %2578 = vmatpush1.bf16.xpose.msra.mxu0 0
        %2579 = vmatprep.subr.bf16.mxu0 0
        %2580 = vmatpush1.bf16.xpose.msra.mxu0 0
        %2581 = vmatprep.subr.bf16.mxu0 0
        %2582 = vmatpush1.bf16.xpose.msra.mxu0 0
        %2583 = vmatprep.subr.bf16.mxu0 0
        %2584 = vmatpush1.bf16.xpose.msra.mxu0 0
        %2585 = vmatprep.subr.bf16.mxu0 0
        %2586 = vmatpush1.bf16.xpose.msra.mxu0 0
        %2587 = vmatprep.subr.bf16.mxu0 0
        %2588 = vmatpush1.bf16.xpose.msra.mxu0 0
        %2589 = vmatprep.subr.bf16.mxu0 0
        %2590 = vmatpush1.bf16.xpose.msra.mxu0 0
        %2591 = vmatprep.subr.bf16.mxu0 0
        %2592 = vmatpush1.bf16.xpose.msra.mxu0 0
        %2593 = vmatprep.subr.bf16.mxu0 0
        %2594 = vmatpush1.bf16.xpose.msra.mxu0 0
        %2595 = vmatprep.subr.bf16.mxu0 0
        %2596 = vmatpush1.bf16.xpose.msra.mxu0 0
        %2597 = vmatprep.subr.bf16.mxu0 0
        %2598 = vmatpush1.bf16.xpose.msra.mxu0 0
        %2599 = vmatprep.subr.bf16.mxu0 0
        %2600 = vmatpush1.bf16.xpose.msra.mxu0 0
        %2601 = vmatprep.subr.bf16.mxu0 0
        %2602 = vmatpush1.bf16.xpose.msra.mxu0 0
        %2603 = vmatprep.mubr.bf16.mxu0 0
        %2604 = vmatmul.mubr.bf16.gmra.mrb[0].mxu0 %v2566
        %v2605 = vpop.f32.mrb[0].mxu0
        %v2606 = vadd.f32 0.0, %v2605
        %v2607 = vpop.f32.mrb[0].mxu0
        %v2608 = vpop.f32.mrb[0].mxu0
        %v2609 = vpop.f32.mrb[0].mxu0
        %2610 = vdwg.mxu0
        %v2611 = vmul.f32 %v2606, 0.35355338
        %v2612 = vadd.f32 %v2611, %v2239
        %v2613 = vsel %vm1422, %v2612, -inf
        %2614 = vmax.xlane.f32.xlu0 %v2613
        %v2615 = vpop.xlane.xlu0 %2614
        %v2616 = vsub.f32 %v2612, %v2615
        %v2617 = vmul.f32 %v2616, 1.442695
        %v2618 = vpow.pop %v2617
        %v2619 = vsel %vm1422, %v2618, 0.0
        %2620 = vadd.xlane.f32.xlu0 %v2619
        %v2621 = vpop.xlane.xlu0 %2620
        %v2622 = vrcp.pop %v2621
        %v2623 = vmul.f32 %v2618, %v2622
        %v2624 = vpack.c.bf16 %v2623, %v2623
        %2625 = vrot.lane.b32.xlu0 %v2231, 80
        %v2626 = vpop.permute.xlu0 %2625
        %v2628 = vsel %vm1422, %v2624, 0
        %v2631 = vsel %vm1488, %v2626, 0
        %2633 = vmatprep.subr.bf16.mxu0 0
        %2634 = vmatpush1.bf16.msra.mxu0 %v2631
        %2635 = vmatprep.subr.bf16.mxu0 0
        %2636 = vmatpush1.bf16.msra.mxu0 0
        %2637 = vmatprep.subr.bf16.mxu0 0
        %2638 = vmatpush1.bf16.msra.mxu0 0
        %2639 = vmatprep.subr.bf16.mxu0 0
        %2640 = vmatpush1.bf16.msra.mxu0 0
        %2641 = vmatprep.subr.bf16.mxu0 0
        %2642 = vmatpush1.bf16.msra.mxu0 0
        %2643 = vmatprep.subr.bf16.mxu0 0
        %2644 = vmatpush1.bf16.msra.mxu0 0
        %2645 = vmatprep.subr.bf16.mxu0 0
        %2646 = vmatpush1.bf16.msra.mxu0 0
        %2647 = vmatprep.subr.bf16.mxu0 0
        %2648 = vmatpush1.bf16.msra.mxu0 0
        %2649 = vmatprep.subr.bf16.mxu0 0
        %2650 = vmatpush1.bf16.msra.mxu0 0
        %2651 = vmatprep.subr.bf16.mxu0 0
        %2652 = vmatpush1.bf16.msra.mxu0 0
        %2653 = vmatprep.subr.bf16.mxu0 0
        %2654 = vmatpush1.bf16.msra.mxu0 0
        %2655 = vmatprep.subr.bf16.mxu0 0
        %2656 = vmatpush1.bf16.msra.mxu0 0
        %2657 = vmatprep.subr.bf16.mxu0 0
        %2658 = vmatpush1.bf16.msra.mxu0 0
        %2659 = vmatprep.subr.bf16.mxu0 0
        %2660 = vmatpush1.bf16.msra.mxu0 0
        %2661 = vmatprep.subr.bf16.mxu0 0
        %2662 = vmatpush1.bf16.msra.mxu0 0
        %2663 = vmatprep.subr.bf16.mxu0 0
        %2664 = vmatpush1.bf16.msra.mxu0 0
        %2665 = vmatprep.mubr.bf16.mxu0 0
        %2666 = vmatmul.mubr.bf16.gmra.mrb[0].mxu0 %v2628
        %v2667 = vpop.f32.mrb[0].mxu0
        %v2668 = vadd.f32 0.0, %v2667
        %v2669 = vpop.f32.mrb[0].mxu0
        %v2670 = vpop.f32.mrb[0].mxu0
        %v2671 = vpop.f32.mrb[0].mxu0
        %2672 = vdwg.mxu0
        %v2673 = vpack.c.bf16 %v2668, %v2668
        %v2675 = vsel %vm1422, %v2673, 0
        %v2678 = vsel %vm1488, %v2243, 0
        %2680 = vmatprep.subr.bf16.mxu0 0
        %2681 = vmatpush1.bf16.msra.mxu0 %v2678
        %2682 = vmatprep.subr.bf16.mxu0 0
        %2683 = vmatpush1.bf16.msra.mxu0 0
        %2684 = vmatprep.subr.bf16.mxu0 0
        %2685 = vmatpush1.bf16.msra.mxu0 0
        %2686 = vmatprep.subr.bf16.mxu0 0
        %2687 = vmatpush1.bf16.msra.mxu0 0
        %2688 = vmatprep.subr.bf16.mxu0 0
        %2689 = vmatpush1.bf16.msra.mxu0 0
        %2690 = vmatprep.subr.bf16.mxu0 0
        %2691 = vmatpush1.bf16.msra.mxu0 0
        %2692 = vmatprep.subr.bf16.mxu0 0
        %2693 = vmatpush1.bf16.msra.mxu0 0
        %2694 = vmatprep.subr.bf16.mxu0 0
        %2695 = vmatpush1.bf16.msra.mxu0 0
        %2696 = vmatprep.subr.bf16.mxu0 0
        %2697 = vmatpush1.bf16.msra.mxu0 0
        %2698 = vmatprep.subr.bf16.mxu0 0
        %2699 = vmatpush1.bf16.msra.mxu0 0
        %2700 = vmatprep.subr.bf16.mxu0 0
        %2701 = vmatpush1.bf16.msra.mxu0 0
        %2702 = vmatprep.subr.bf16.mxu0 0
        %2703 = vmatpush1.bf16.msra.mxu0 0
        %2704 = vmatprep.subr.bf16.mxu0 0
        %2705 = vmatpush1.bf16.msra.mxu0 0
        %2706 = vmatprep.subr.bf16.mxu0 0
        %2707 = vmatpush1.bf16.msra.mxu0 0
        %2708 = vmatprep.subr.bf16.mxu0 0
        %2709 = vmatpush1.bf16.msra.mxu0 0
        %2710 = vmatprep.subr.bf16.mxu0 0
        %2711 = vmatpush1.bf16.msra.mxu0 0
        %2712 = vmatprep.mubr.bf16.mxu0 0
        %2713 = vmatmul.mubr.bf16.gmra.mrb[0].mxu0 %v2675
        %v2714 = vpop.f32.mrb[0].mxu0
        %v2715 = vadd.f32 0.0, %v2714
        %v2716 = vpop.f32.mrb[0].mxu0
        %v2717 = vpop.f32.mrb[0].mxu0
        %v2718 = vpop.f32.mrb[0].mxu0
        %2719 = vdwg.mxu0
        %v2720 = vadd.f32 %v2556, %v2715
        %2721 = vrot.lane.b32.xlu0 %v2164, 104
        %v2722 = vpop.permute.xlu0 %2721
        %2723 = vrot.lane.b32.xlu0 %v2231, 104
        %v2724 = vpop.permute.xlu0 %2723
        %v2726 = vsel %vm1422, %v2722, 0
        %v2729 = vsel %vm1422, %v2724, 0
        %2731 = vmatprep.subr.bf16.mxu0 0
        %2732 = vmatpush1.bf16.xpose.msra.mxu0 %v2729
        %2733 = vmatprep.subr.bf16.mxu0 0
        %2734 = vmatpush1.bf16.xpose.msra.mxu0 0
        %2735 = vmatprep.subr.bf16.mxu0 0
        %2736 = vmatpush1.bf16.xpose.msra.mxu0 0
        %2737 = vmatprep.subr.bf16.mxu0 0
        %2738 = vmatpush1.bf16.xpose.msra.mxu0 0
        %2739 = vmatprep.subr.bf16.mxu0 0
        %2740 = vmatpush1.bf16.xpose.msra.mxu0 0
        %2741 = vmatprep.subr.bf16.mxu0 0
        %2742 = vmatpush1.bf16.xpose.msra.mxu0 0
        %2743 = vmatprep.subr.bf16.mxu0 0
        %2744 = vmatpush1.bf16.xpose.msra.mxu0 0
        %2745 = vmatprep.subr.bf16.mxu0 0
        %2746 = vmatpush1.bf16.xpose.msra.mxu0 0
        %2747 = vmatprep.subr.bf16.mxu0 0
        %2748 = vmatpush1.bf16.xpose.msra.mxu0 0
        %2749 = vmatprep.subr.bf16.mxu0 0
        %2750 = vmatpush1.bf16.xpose.msra.mxu0 0
        %2751 = vmatprep.subr.bf16.mxu0 0
        %2752 = vmatpush1.bf16.xpose.msra.mxu0 0
        %2753 = vmatprep.subr.bf16.mxu0 0
        %2754 = vmatpush1.bf16.xpose.msra.mxu0 0
        %2755 = vmatprep.subr.bf16.mxu0 0
        %2756 = vmatpush1.bf16.xpose.msra.mxu0 0
        %2757 = vmatprep.subr.bf16.mxu0 0
        %2758 = vmatpush1.bf16.xpose.msra.mxu0 0
        %2759 = vmatprep.subr.bf16.mxu0 0
        %2760 = vmatpush1.bf16.xpose.msra.mxu0 0
        %2761 = vmatprep.subr.bf16.mxu0 0
        %2762 = vmatpush1.bf16.xpose.msra.mxu0 0
        %2763 = vmatprep.mubr.bf16.mxu0 0
        %2764 = vmatmul.mubr.bf16.gmra.mrb[0].mxu0 %v2726
        %v2765 = vpop.f32.mrb[0].mxu0
        %v2766 = vadd.f32 0.0, %v2765
        %v2767 = vpop.f32.mrb[0].mxu0
        %v2768 = vpop.f32.mrb[0].mxu0
        %v2769 = vpop.f32.mrb[0].mxu0
        %2770 = vdwg.mxu0
        %v2771 = vmul.f32 %v2766, 0.35355338
        %v2772 = vadd.f32 %v2771, %v2239
        %v2773 = vsel %vm1422, %v2772, -inf
        %2774 = vmax.xlane.f32.xlu0 %v2773
        %v2775 = vpop.xlane.xlu0 %2774
        %v2776 = vsub.f32 %v2772, %v2775
        %v2777 = vmul.f32 %v2776, 1.442695
        %v2778 = vpow.pop %v2777
        %v2779 = vsel %vm1422, %v2778, 0.0
        %2780 = vadd.xlane.f32.xlu0 %v2779
        %v2781 = vpop.xlane.xlu0 %2780
        %v2782 = vrcp.pop %v2781
        %v2783 = vmul.f32 %v2778, %v2782
        %v2784 = vpack.c.bf16 %v2783, %v2783
        %2785 = vrot.lane.b32.xlu0 %v2231, 72
        %v2786 = vpop.permute.xlu0 %2785
        %v2788 = vsel %vm1422, %v2784, 0
        %v2791 = vsel %vm1488, %v2786, 0
        %2793 = vmatprep.subr.bf16.mxu0 0
        %2794 = vmatpush1.bf16.msra.mxu0 %v2791
        %2795 = vmatprep.subr.bf16.mxu0 0
        %2796 = vmatpush1.bf16.msra.mxu0 0
        %2797 = vmatprep.subr.bf16.mxu0 0
        %2798 = vmatpush1.bf16.msra.mxu0 0
        %2799 = vmatprep.subr.bf16.mxu0 0
        %2800 = vmatpush1.bf16.msra.mxu0 0
        %2801 = vmatprep.subr.bf16.mxu0 0
        %2802 = vmatpush1.bf16.msra.mxu0 0
        %2803 = vmatprep.subr.bf16.mxu0 0
        %2804 = vmatpush1.bf16.msra.mxu0 0
        %2805 = vmatprep.subr.bf16.mxu0 0
        %2806 = vmatpush1.bf16.msra.mxu0 0
        %2807 = vmatprep.subr.bf16.mxu0 0
        %2808 = vmatpush1.bf16.msra.mxu0 0
        %2809 = vmatprep.subr.bf16.mxu0 0
        %2810 = vmatpush1.bf16.msra.mxu0 0
        %2811 = vmatprep.subr.bf16.mxu0 0
        %2812 = vmatpush1.bf16.msra.mxu0 0
        %2813 = vmatprep.subr.bf16.mxu0 0
        %2814 = vmatpush1.bf16.msra.mxu0 0
        %2815 = vmatprep.subr.bf16.mxu0 0
        %2816 = vmatpush1.bf16.msra.mxu0 0
        %2817 = vmatprep.subr.bf16.mxu0 0
        %2818 = vmatpush1.bf16.msra.mxu0 0
        %2819 = vmatprep.subr.bf16.mxu0 0
        %2820 = vmatpush1.bf16.msra.mxu0 0
        %2821 = vmatprep.subr.bf16.mxu0 0
        %2822 = vmatpush1.bf16.msra.mxu0 0
        %2823 = vmatprep.subr.bf16.mxu0 0
        %2824 = vmatpush1.bf16.msra.mxu0 0
        %2825 = vmatprep.mubr.bf16.mxu0 0
        %2826 = vmatmul.mubr.bf16.gmra.mrb[0].mxu0 %v2788
        %v2827 = vpop.f32.mrb[0].mxu0
        %v2828 = vadd.f32 0.0, %v2827
        %v2829 = vpop.f32.mrb[0].mxu0
        %v2830 = vpop.f32.mrb[0].mxu0
        %v2831 = vpop.f32.mrb[0].mxu0
        %2832 = vdwg.mxu0
        %v2833 = vpack.c.bf16 %v2828, %v2828
        %v2835 = vsel %vm1422, %v2833, 0
        %v2838 = vsel %vm1488, %v2244, 0
        %2840 = vmatprep.subr.bf16.mxu0 0
        %2841 = vmatpush1.bf16.msra.mxu0 %v2838
        %2842 = vmatprep.subr.bf16.mxu0 0
        %2843 = vmatpush1.bf16.msra.mxu0 0
        %2844 = vmatprep.subr.bf16.mxu0 0
        %2845 = vmatpush1.bf16.msra.mxu0 0
        %2846 = vmatprep.subr.bf16.mxu0 0
        %2847 = vmatpush1.bf16.msra.mxu0 0
        %2848 = vmatprep.subr.bf16.mxu0 0
        %2849 = vmatpush1.bf16.msra.mxu0 0
        %2850 = vmatprep.subr.bf16.mxu0 0
        %2851 = vmatpush1.bf16.msra.mxu0 0
        %2852 = vmatprep.subr.bf16.mxu0 0
        %2853 = vmatpush1.bf16.msra.mxu0 0
        %2854 = vmatprep.subr.bf16.mxu0 0
        %2855 = vmatpush1.bf16.msra.mxu0 0
        %2856 = vmatprep.subr.bf16.mxu0 0
        %2857 = vmatpush1.bf16.msra.mxu0 0
        %2858 = vmatprep.subr.bf16.mxu0 0
        %2859 = vmatpush1.bf16.msra.mxu0 0
        %2860 = vmatprep.subr.bf16.mxu0 0
        %2861 = vmatpush1.bf16.msra.mxu0 0
        %2862 = vmatprep.subr.bf16.mxu0 0
        %2863 = vmatpush1.bf16.msra.mxu0 0
        %2864 = vmatprep.subr.bf16.mxu0 0
        %2865 = vmatpush1.bf16.msra.mxu0 0
        %2866 = vmatprep.subr.bf16.mxu0 0
        %2867 = vmatpush1.bf16.msra.mxu0 0
        %2868 = vmatprep.subr.bf16.mxu0 0
        %2869 = vmatpush1.bf16.msra.mxu0 0
        %2870 = vmatprep.subr.bf16.mxu0 0
        %2871 = vmatpush1.bf16.msra.mxu0 0
        %2872 = vmatprep.mubr.bf16.mxu0 0
        %2873 = vmatmul.mubr.bf16.gmra.mrb[0].mxu0 %v2835
        %v2874 = vpop.f32.mrb[0].mxu0
        %v2875 = vadd.f32 0.0, %v2874
        %v2876 = vpop.f32.mrb[0].mxu0
        %v2877 = vpop.f32.mrb[0].mxu0
        %v2878 = vpop.f32.mrb[0].mxu0
        %2879 = vdwg.mxu0
        %v2880 = vadd.f32 %v2720, %v2875
        %v2881 = vld [vmem:[%s1130] sm:$0x1]
        %v2883 = vlaneseq
        %v2884 = vshrl.u32 %v2883, 7
        %v2885 = vsub.s32 0, %v2884
        %v2886 = vrot.slane %v2881, %v2885
        %v2888 = vadd.f32 %v2880, %v2886
        %v2889 = vadd.f32 %v2888, %v2096
        %v2890 = vsel %vm1355, %v2889, 0.0
        %2891 = vadd.xlane.f32.xlu0 %v2890
        %v2892 = vpop.xlane.xlu0 %2891
        %v2893 = vmul.f32 %v2892, %v2072
        %v2894 = vsub.f32 %v2889, %v2893
        %v2895 = vmul.f32 %v2894, %v2894
        %v2896 = vsel %vm1355, %v2895, 0.0
        %2897 = vadd.xlane.f32.xlu0 %v2896
        %v2898 = vpop.xlane.xlu0 %2897
        %v2899 = vmul.f32 %v2898, %v2072
        %v2900 = vadd.f32 %v2899, 1e-05
        %v2901 = vrsqrt.pop %v2900
        %v2902 = vmul.f32 %v2894, %v2901
        %v2903 = vmul.f32 %v2902, %v2087
        %v2904 = vadd.f32 %v2903, %v2094
        %v2905 = vpack.c.bf16 %v2904, %v2904
        %v2906 = vld [vmem:[%s1155] sm:$0xf]
        %v2907 = vld [vmem:[%s1155 + $0x4] sm:$0xf]
        %v2908 = vld [vmem:[%s1155 + $0x8] sm:$0xf]
        %v2909 = vld [vmem:[%s1155 + $0xc] sm:$0xf]
        %v2910 = vld [vmem:[%s1163] sm:$0x1]
        %v2912 = vlaneseq
        %v2913 = vshrl.u32 %v2912, 7
        %v2914 = vsub.s32 0, %v2913
        %v2915 = vrot.slane %v2910, %v2914
        %v2921 = vunpack.c.l.b16 %v2906
        %v2922 = vunpack.c.l.b16 %v2907
        %v2923 = vunpack.c.l.b16 %v2908
        %v2924 = vunpack.c.l.b16 %v2909
        %v2925 = vpack.c.b16 %v2922, %v2921
        %v2926 = vpack.c.b16 %v2924, %v2923
        %v2930 = vsel %vm1355, %v2905, 0
        %2932 = vmatprep.subr.bf16.mxu0 0
        %2933 = vmatpush1.bf16.msra.mxu0 %v2925
        %2934 = vmatprep.subr.bf16.mxu0 0
        %2935 = vmatpush1.bf16.msra.mxu0 %v2926
        %2936 = vmatprep.subr.bf16.mxu0 0
        %2937 = vmatpush1.bf16.msra.mxu0 0
        %2938 = vmatprep.subr.bf16.mxu0 0
        %2939 = vmatpush1.bf16.msra.mxu0 0
        %2940 = vmatprep.subr.bf16.mxu0 0
        %2941 = vmatpush1.bf16.msra.mxu0 0
        %2942 = vmatprep.subr.bf16.mxu0 0
        %2943 = vmatpush1.bf16.msra.mxu0 0
        %2944 = vmatprep.subr.bf16.mxu0 0
        %2945 = vmatpush1.bf16.msra.mxu0 0
        %2946 = vmatprep.subr.bf16.mxu0 0
        %2947 = vmatpush1.bf16.msra.mxu0 0
        %2948 = vmatprep.subr.bf16.mxu0 0
        %2949 = vmatpush1.bf16.msra.mxu0 0
        %2950 = vmatprep.subr.bf16.mxu0 0
        %2951 = vmatpush1.bf16.msra.mxu0 0
        %2952 = vmatprep.subr.bf16.mxu0 0
        %2953 = vmatpush1.bf16.msra.mxu0 0
        %2954 = vmatprep.subr.bf16.mxu0 0
        %2955 = vmatpush1.bf16.msra.mxu0 0
        %2956 = vmatprep.subr.bf16.mxu0 0
        %2957 = vmatpush1.bf16.msra.mxu0 0
        %2958 = vmatprep.subr.bf16.mxu0 0
        %2959 = vmatpush1.bf16.msra.mxu0 0
        %2960 = vmatprep.subr.bf16.mxu0 0
        %2961 = vmatpush1.bf16.msra.mxu0 0
        %2962 = vmatprep.subr.bf16.mxu0 0
        %2963 = vmatpush1.bf16.msra.mxu0 0
        %2964 = vmatprep.mubr.bf16.mxu0 0
        %2965 = vmatmul.mubr.bf16.gmra.mrb[0].mxu0 %v2930
        %v2966 = vpop.f32.mrb[0].mxu0
        %v2967 = vadd.f32 %v2915, %v2966
        %v2968 = vpop.f32.mrb[0].mxu0
        %v2969 = vpop.f32.mrb[0].mxu0
        %v2970 = vpop.f32.mrb[0].mxu0
        %2971 = vdwg.mxu0
        %v2972 = vmax.f32 %v2967, 0.0
        %v2973 = vpack.c.bf16 %v2972, %v2972
        %v2974 = vld [vmem:[%s1172] sm:$0xf]
        %v2975 = vld [vmem:[%s1172 + $0x4] sm:$0xf]
        %v2976 = vld [vmem:[%s1172 + $0x8] sm:$0xf]
        %v2977 = vld [vmem:[%s1172 + $0xc] sm:$0xf]
        %v2978 = vld [vmem:[%s1172 + $0x10] sm:$0xf]
        %v2979 = vld [vmem:[%s1172 + $0x14] sm:$0xf]
        %v2980 = vld [vmem:[%s1172 + $0x18] sm:$0xf]
        %v2981 = vld [vmem:[%s1172 + $0x1c] sm:$0xf]
        %v2982 = vld [vmem:[%s1172 + $0x20] sm:$0xf]
        %v2983 = vld [vmem:[%s1172 + $0x24] sm:$0xf]
        %v2984 = vld [vmem:[%s1172 + $0x28] sm:$0xf]
        %v2985 = vld [vmem:[%s1172 + $0x2c] sm:$0xf]
        %v2986 = vld [vmem:[%s1172 + $0x30] sm:$0xf]
        %v2987 = vld [vmem:[%s1172 + $0x34] sm:$0xf]
        %v2988 = vld [vmem:[%s1172 + $0x38] sm:$0xf]
        %v2989 = vld [vmem:[%s1172 + $0x3c] sm:$0xf]
        %v2990 = vld [vmem:[%s1180] sm:$0x1]
        %v2992 = vlaneseq
        %v2993 = vshrl.u32 %v2992, 7
        %v2994 = vsub.s32 0, %v2993
        %v2995 = vrot.slane %v2990, %v2994
        %v3013 = vunpack.c.l.b16 %v2974
        %v3014 = vunpack.c.l.b16 %v2975
        %v3015 = vunpack.c.l.b16 %v2976
        %v3016 = vunpack.c.l.b16 %v2977
        %v3017 = vunpack.c.l.b16 %v2978
        %v3018 = vunpack.c.l.b16 %v2979
        %v3019 = vunpack.c.l.b16 %v2980
        %v3020 = vunpack.c.l.b16 %v2981
        %v3021 = vunpack.c.l.b16 %v2982
        %v3022 = vunpack.c.l.b16 %v2983
        %v3023 = vunpack.c.l.b16 %v2984
        %v3024 = vunpack.c.l.b16 %v2985
        %v3025 = vunpack.c.l.b16 %v2986
        %v3026 = vunpack.c.l.b16 %v2987
        %v3027 = vunpack.c.l.b16 %v2988
        %v3028 = vunpack.c.l.b16 %v2989
        %v3029 = vpack.c.b16 %v3014, %v3013
        %v3030 = vpack.c.b16 %v3016, %v3015
        %v3031 = vpack.c.b16 %v3018, %v3017
        %v3032 = vpack.c.b16 %v3020, %v3019
        %v3033 = vpack.c.b16 %v3022, %v3021
        %v3034 = vpack.c.b16 %v3024, %v3023
        %v3035 = vpack.c.b16 %v3026, %v3025
        %v3036 = vpack.c.b16 %v3028, %v3027
        %3045 = vmatprep.subr.bf16.mxu0 0
        %3046 = vmatpush1.bf16.msra.mxu0 %v3029
        %3047 = vmatprep.subr.bf16.mxu0 0
        %3048 = vmatpush1.bf16.msra.mxu0 %v3030
        %3049 = vmatprep.subr.bf16.mxu0 0
        %3050 = vmatpush1.bf16.msra.mxu0 %v3031
        %3051 = vmatprep.subr.bf16.mxu0 0
        %3052 = vmatpush1.bf16.msra.mxu0 %v3032
        %3053 = vmatprep.subr.bf16.mxu0 0
        %3054 = vmatpush1.bf16.msra.mxu0 %v3033
        %3055 = vmatprep.subr.bf16.mxu0 0
        %3056 = vmatpush1.bf16.msra.mxu0 %v3034
        %3057 = vmatprep.subr.bf16.mxu0 0
        %3058 = vmatpush1.bf16.msra.mxu0 %v3035
        %3059 = vmatprep.subr.bf16.mxu0 0
        %3060 = vmatpush1.bf16.msra.mxu0 %v3036
        %3061 = vmatprep.subr.bf16.mxu0 0
        %3062 = vmatpush1.bf16.msra.mxu0 0
        %3063 = vmatprep.subr.bf16.mxu0 0
        %3064 = vmatpush1.bf16.msra.mxu0 0
        %3065 = vmatprep.subr.bf16.mxu0 0
        %3066 = vmatpush1.bf16.msra.mxu0 0
        %3067 = vmatprep.subr.bf16.mxu0 0
        %3068 = vmatpush1.bf16.msra.mxu0 0
        %3069 = vmatprep.subr.bf16.mxu0 0
        %3070 = vmatpush1.bf16.msra.mxu0 0
        %3071 = vmatprep.subr.bf16.mxu0 0
        %3072 = vmatpush1.bf16.msra.mxu0 0
        %3073 = vmatprep.subr.bf16.mxu0 0
        %3074 = vmatpush1.bf16.msra.mxu0 0
        %3075 = vmatprep.subr.bf16.mxu0 0
        %3076 = vmatpush1.bf16.msra.mxu0 0
        %3077 = vmatprep.mubr.bf16.mxu0 0
        %3078 = vmatmul.mubr.bf16.gmra.mrb[0].mxu0 %v2973
        %v3079 = vpop.f32.mrb[0].mxu0
        %v3080 = vadd.f32 %v2995, %v3079
        %v3081 = vpop.f32.mrb[0].mxu0
        %v3082 = vpop.f32.mrb[0].mxu0
        %v3083 = vpop.f32.mrb[0].mxu0
        %3084 = vdwg.mxu0
        %v3085 = vadd.f32 %v3080, %v2904
        %v3086 = vsel %vm1355, %v3085, 0.0
        %3087 = vadd.xlane.f32.xlu0 %v3086
        %v3088 = vpop.xlane.xlu0 %3087
        %v3089 = vmul.f32 %v3088, %v2072
        %v3090 = vsub.f32 %v3085, %v3089
        %v3091 = vmul.f32 %v3090, %v3090
        %v3092 = vsel %vm1355, %v3091, 0.0
        %3093 = vadd.xlane.f32.xlu0 %v3092
        %v3094 = vpop.xlane.xlu0 %3093
        %v3095 = vmul.f32 %v3094, %v2072
        %v3096 = vadd.f32 %v3095, 1e-05
        %v3097 = vrsqrt.pop %v3096
        %v3098 = vmul.f32 %v3090, %v3097
        %v3099 = vmul.f32 %v3098, %v2087
        %v3100 = vadd.f32 %v3099, %v2094
        %v3101 = vpack.c.bf16 %v3100, %v3100
        %vm3102 = vcmask 257024
        %3103 = vst.msk [vmem:[%s1320] sm:$0xf] %vm3102, %v3101
        %s3104 = sand.u32 %s607, 1
        %s3105 = scalar_lea.sflag [#allocation4], %s3104
        %s3106 = sand.u32 %s607, 1
        %s3107 = smul.addr %s3106, 4
        %s3108 = scalar_lea.vmem [#allocation34], %s3107
        // Predicated region
        $region185: #{transformer_forward.4} parent=99 // pred_check
          %p3109 = pneg %p617
        $region186: #{transformer_forward.4} parent=99 // pred_check_branch
          %3111 = sbr.rel (%p3109) target = $region188
        $region187: #{transformer_forward.4} parent=99 // pred_region
          %s3113 = ssub.s32 64, 64
          %3114 = vsyncadd %s3105, %s3113
          %s3115 = smul.addr %s71, 64
          %s3116 = scalar_lea.hbm %s20, %s3115
          %s3118 = sshll.u32 %s3108, 4
          %s3119 = int_to_ptr.vmem [resolvable:$true] %s3118
          %3121 = dma.vmem_to_hbm [thread:$0]  %s3119, 64, %s3116, %s3105
        $region188: #{transformer_forward.4} parent=99 // pred_fallthru
          _
      $region100: #{transformer_forward.4} parent=5 // pred_fallthru
        _
      %p3122 = scmp.le.s32.totalorder 2, %s62
      // Predicated region
      $region189: #{transformer_forward.4} parent=5 // pred_check
        %p3123 = pneg %p3122
      $region190: #{transformer_forward.4} parent=5 // pred_check_branch
        %3125 = sbr.rel (%p3123) target = $region192
      $region191: #{transformer_forward.4} parent=5 // pred_region
        %s3126 = ssub.s32 %s62, 2
        // Predicated region
        $region193: #{transformer_forward.4} parent=191 // pred_check
          %p3127 = pneg %p623
        $region194: #{transformer_forward.4} parent=191 // pred_check_branch
          %3129 = sbr.rel (%p3127) target = $region196
        $region195: #{transformer_forward.4} parent=191 // pred_region
          %s3130 = sand.u32 %s608, 1
          %s3131 = scalar_lea.sflag [#allocation4], %s3130
          %s3132 = sand.u32 %s608, 1
          %s3133 = smul.addr %s3132, 4
          %s3134 = scalar_lea.vmem [#allocation34], %s3133
          %3135 = dma.done %s3131, 64
        $region196: #{transformer_forward.4} parent=191 // pred_fallthru
          _
      $region192: #{transformer_forward.4} parent=5 // pred_fallthru
        _
    $region6: #{transformer_forward.4} parent=1 // loop_footer
      %s66 = sadd.s32 1, %s62
    $region7: #{transformer_forward.4} parent=1 // loop_footer_branch
      %61 = sbr.rel target = $region3
    $region8: #{transformer_forward.4} parent=1 // loop_exit
      _
    %3136 = vsyncpa [#allocation3], 1
    %s3137 = scalar_lea.sflag [#allocation3], 1
    %3138 = vsyncpa %s3137, 1
    %3139 = vsyncpa [#allocation6], 1
    %s3140 = scalar_lea.sflag [#allocation6], 1
    %3141 = vsyncpa %s3140, 1
    %3142 = vsyncpa [#allocation9], 1
    %s3143 = scalar_lea.sflag [#allocation9], 1
    %3144 = vsyncpa %s3143, 1
    %3145 = vsyncpa [#allocation12], 1
    %s3146 = scalar_lea.sflag [#allocation12], 1
    %3147 = vsyncpa %s3146, 1
    %3148 = vsyncpa [#allocation15], 1
    %s3149 = scalar_lea.sflag [#allocation15], 1
    %3150 = vsyncpa %s3149, 1
    %3151 = vsyncpa [#allocation18], 1
    %s3152 = scalar_lea.sflag [#allocation18], 1
    %3153 = vsyncpa %s3152, 1
    %3154 = vsyncpa [#allocation21], 1
    %s3155 = scalar_lea.sflag [#allocation21], 1
    %3156 = vsyncpa %s3155, 1
    %3157 = vsyncpa [#allocation24], 1
    %s3158 = scalar_lea.sflag [#allocation24], 1
    %3159 = vsyncpa %s3158, 1
    %3160 = vsyncpa [#allocation27], 1
    %s3161 = scalar_lea.sflag [#allocation27], 1
    %3162 = vsyncpa %s3161, 1
    %3163 = vsyncpa [#allocation30], 1
    %s3164 = scalar_lea.sflag [#allocation30], 1
    %3165 = vsyncpa %s3164, 1
    %3166 = vsyncpa [#allocation33], 1
    %s3167 = scalar_lea.sflag [#allocation33], 1
    %3168 = vsyncpa %s3167, 1
    %3169 = vsyncpa [#allocation4], 1
    %s3170 = scalar_lea.sflag [#allocation4], 1
    %3171 = vsyncpa %s3170, 1

</llo_original>
